<compile_context>
chip_gen: v6e
topology: v6e:2x2x1
jax: 0.10.0
libtpu: 0.0.40
codegen_flags: <defaults>
</compile_context>

<pallas_src>
import jax
import jax.numpy as jnp
from jax.experimental import pallas as pl
from jax.experimental.pallas import tpu as pltpu

BN_EPS = 1e-5
CG = 128      # slab channel-group width (one 128-lane group)
LEFT = 16     # left halo margin of the padded scratch (bf16 sublane tile = 16)


def _round_up(x, m):
    return ((x + m - 1) // m) * m


# ----------------------------------------------------------------------------
# Kernel 1: per-image per-channel sum / sum-of-squares for the initial input
# (later layers get their stats from the fused conv epilogue).  Runs on the
# lane-padded input so loads/stores are lane-dense.
# ----------------------------------------------------------------------------
def _channel_stats_kernel(x_ref, sum_ref, sq_ref):
    x = x_ref[0]  # (H, W, C)
    sum_ref[...] = jnp.sum(x, axis=(0, 1)).reshape(1, 1, -1)
    sq_ref[...] = jnp.sum(x * x, axis=(0, 1)).reshape(1, 1, -1)


def channel_stats(x):
    """x: (N, H, W, C) f32, C a multiple of 128 -> per-channel (sum, sum_sq)."""
    N, H, W, C = x.shape
    ps, psq = pl.pallas_call(
        _channel_stats_kernel,
        grid=(N,),
        in_specs=[pl.BlockSpec((1, H, W, C), lambda n: (n, 0, 0, 0))],
        out_specs=[
            pl.BlockSpec((1, 1, C), lambda n: (n, 0, 0)),
            pl.BlockSpec((1, 1, C), lambda n: (n, 0, 0)),
        ],
        out_shape=[
            jax.ShapeDtypeStruct((N, 1, C), jnp.float32),
            jax.ShapeDtypeStruct((N, 1, C), jnp.float32),
        ],
        compiler_params=pltpu.CompilerParams(dimension_semantics=("parallel",)),
    )(x)
    return jnp.sum(ps[:, 0, :], axis=0), jnp.sum(psq[:, 0, :], axis=0)


# ----------------------------------------------------------------------------
# Kernel 2: fused (BatchNorm -> ReLU -> 3x3 "same" conv) over the channel slab.
# Grid = (image, input channel group).  Per group: BN+ReLU, bf16 im2col, one
# (H*W, 9*128) @ (9*128, Co) MXU matmul accumulated in f32.  At the last group
# the result (plus bias) is merged in place into the slab's open group and the
# next layer's BN statistics are emitted as a fused epilogue.
# ----------------------------------------------------------------------------
def _make_conv_kernel(H, W, Wp, add_input):
    def kernel(x_ref, scale_ref, shift_ref, w_ref, b_ref,
               out_ref, sum_ref, sq_ref, acc_ref, pad_ref):
        Ci = x_ref.shape[3]
        Co = b_ref.shape[1]
        g = pl.program_id(1)

        # BN (precomputed per-channel scale/shift) + ReLU in f32 on the VPU;
        # a single bf16 cast for the conv operand.
        x = x_ref[0]  # (H, W, Ci) f32, raw slab group
        a = jnp.maximum(x * scale_ref[0] + shift_ref[0], 0.0).astype(jnp.bfloat16)

        # Fully (re)initialize the padded scratch every step: halo rows, halo
        # column strips, then one interior store at a 16-aligned column offset.
        # No iota masks, and no reads of uninitialized VMEM.
        pad_ref[0:1, :, :] = jnp.zeros((1, Wp, Ci), jnp.bfloat16)
        pad_ref[H + 1:H + 2, :, :] = jnp.zeros((1, Wp, Ci), jnp.bfloat16)
        pad_ref[1:H + 1, 0:LEFT, :] = jnp.zeros((H, LEFT, Ci), jnp.bfloat16)
        pad_ref[1:H + 1, LEFT + W:Wp, :] = jnp.zeros(
            (H, Wp - LEFT - W, Ci), jnp.bfloat16)
        pad_ref[1:H + 1, LEFT:LEFT + W, :] = a

        # im2col: 9 shifted plain window reads (halo already zero), lane-concat
        # in bf16.  K ordering is tap-major, channel-minor within the group.
        cols = [pad_ref[dy:dy + H, LEFT - 1 + dx:LEFT - 1 + dx + W, :]
                for dy in range(3) for dx in range(3)]
        slab = jnp.concatenate(cols, axis=-1).reshape(H * W, 9 * Ci)

        @pl.when(g == 0)
        def _():
            acc_ref[...] = jnp.zeros_like(acc_ref)

        # Single big-K MXU matmul per channel group, f32 accumulation.
        acc_ref[...] += jnp.dot(slab, w_ref[0], preferred_element_type=jnp.float32)

        @pl.when(g == pl.num_programs(1) - 1)
        def _():
            y = (acc_ref[...] + b_ref[...]).reshape(H, W, Co)
            if add_input:
                # Merge new channels into the (aliased) open slab group: y is
                # exactly 0 outside this layer's output lanes (zero-padded
                # weights/bias) and the raw group is exactly 0 on those lanes,
                # so a single add preserves earlier channels.
                y = y + x
            out_ref[0] = y
            # Fused epilogue: per-image channel sums for the next layer's
            # BatchNorm statistics (no extra pass over HBM).
            sum_ref[...] = jnp.sum(y, axis=(0, 1)).reshape(1, 1, Co)
            sq_ref[...] = jnp.sum(y * y, axis=(0, 1)).reshape(1, 1, Co)

    return kernel


def _fused_bn_relu_conv(slab, scale, shift, w_packed, b_pad, *,
                        og, add_input, alias_out):
    """One dense-block layer.

    slab:     (N, H, W, C_slab) f32 channel slab (all channels produced so far).
    scale/shift: (1, G_in*128) f32 per-slab-channel BN scale/shift (0 on gaps).
    w_packed: (G_in, 9*128, Co) bf16 im2col weights (tap-major, channel-minor).
    b_pad:    (1, Co) f32 bias (real entries at the layer's output lanes).
    og:       output channel group index in the slab (alias_out only).
    add_input: merge with the existing open group (in-place dense-block append).
    alias_out: write in place into the slab (inner layers) vs. a fresh output.
    """
    N, H, W, C_slab = slab.shape
    G_in = w_packed.shape[0]
    Co = b_pad.shape[1]
    Wp = _round_up(LEFT + W + 1, 16)
    assert (not add_input) or alias_out

    if alias_out:
        assert Co == CG
        out0_shape = (N, H, W, C_slab)
        out0_spec = pl.BlockSpec((1, H, W, CG), lambda n, g, og=og: (n, 0, 0, og))
        aliases = {0: 0}
    else:
        out0_shape = (N, H, W, Co)
        out0_spec = pl.BlockSpec((1, H, W, Co), lambda n, g: (n, 0, 0, 0))
        aliases = {}

    # TODO(synk): add an H-strip grid axis (+1-row halo) and set per-generation
    #             vmem_limit_bytes for large images (v7x: 64 MiB VMEM).
    return pl.pallas_call(
        _make_conv_kernel(H, W, Wp, add_input),
        grid=(N, G_in),
        in_specs=[
            pl.BlockSpec((1, H, W, CG), lambda n, g: (n, 0, 0, g)),
            pl.BlockSpec((1, CG), lambda n, g: (0, g)),
            pl.BlockSpec((1, CG), lambda n, g: (0, g)),
            pl.BlockSpec((1, 9 * CG, Co), lambda n, g: (g, 0, 0)),
            pl.BlockSpec((1, Co), lambda n, g: (0, 0)),
        ],
        out_specs=[
            out0_spec,
            pl.BlockSpec((1, 1, Co), lambda n, g: (n, 0, 0)),
            pl.BlockSpec((1, 1, Co), lambda n, g: (n, 0, 0)),
        ],
        out_shape=[
            jax.ShapeDtypeStruct(out0_shape, jnp.float32),
            jax.ShapeDtypeStruct((N, 1, Co), jnp.float32),
            jax.ShapeDtypeStruct((N, 1, Co), jnp.float32),
        ],
        scratch_shapes=[
            pltpu.VMEM((H * W, Co), jnp.float32),        # f32 conv accumulator
            pltpu.VMEM((H + 2, Wp, CG), jnp.bfloat16),   # bf16 padded activation
        ],
        input_output_aliases=aliases,
        compiler_params=pltpu.CompilerParams(
            dimension_semantics=("parallel", "arbitrary")),
    )(slab, scale, shift, w_packed, b_pad)


# ----------------------------------------------------------------------------
# Per-layer operand preparation (tiny, wrapper-side glue).
# ----------------------------------------------------------------------------
def _layer_operands(s, sq, cnt, pos, gamma, beta, w, b, *, G_in, out_off, Co):
    pos_arr = jnp.asarray(pos, dtype=jnp.int32)
    mean = s[pos_arr] / cnt
    var = jnp.maximum(sq[pos_arr] / cnt - mean * mean, 0.0)  # biased variance
    inv = jax.lax.rsqrt(var + BN_EPS)
    sc = gamma * inv
    sh = beta - mean * sc

    K_in = G_in * CG
    scale = jnp.zeros((K_in,), jnp.float32).at[pos_arr].set(sc).reshape(1, K_in)
    shift = jnp.zeros((K_in,), jnp.float32).at[pos_arr].set(sh).reshape(1, K_in)

    cout = w.shape[-1]
    # Scatter weight rows to slab channel positions, place output channels at
    # `out_off` lanes, then pack as (G_in, 9*128, Co) tap-major/channel-minor.
    w_s = jnp.zeros((K_in, 3, 3, cout), jnp.float32).at[pos_arr].set(
        jnp.transpose(w, (2, 0, 1, 3)))
    w_full = jax.lax.dynamic_update_slice(
        jnp.zeros((K_in, 3, 3, Co), jnp.float32), w_s, (0, 0, 0, out_off))
    w_packed = (w_full.reshape(G_in, CG, 3, 3, Co)
                .transpose(0, 2, 3, 1, 4)
                .reshape(G_in, 9 * CG, Co)
                .astype(jnp.bfloat16))
    b_pad = jnp.pad(b, (out_off, Co - out_off - cout)).reshape(1, Co)
    return scale, shift, w_packed, b_pad


# ----------------------------------------------------------------------------
# Module: parameter init + forward
# ----------------------------------------------------------------------------
def init_params(key, c_in, c_out, num_layers, gr):
    def block(k, cin, cout):
        k1, k2, k3, k4 = jax.random.split(k, 4)
        fan_in = cin * 9
        return {
            "w": jax.random.normal(k1, (3, 3, cin, cout), jnp.float32)
            * (2.0 / fan_in) ** 0.5,
            "b": 0.05 * jax.random.normal(k2, (cout,), jnp.float32),
            "gamma": 1.0 + 0.1 * jax.random.normal(k3, (cin,), jnp.float32),
            "beta": 0.1 * jax.random.normal(k4, (cin,), jnp.float32),
        }

    keys = jax.random.split(key, num_layers)
    params = {"layers": []}
    c_prev = c_in
    for i in range(num_layers - 1):
        params["layers"].append(block(keys[i], c_prev, gr))
        c_prev += gr
    params["final"] = block(keys[-1], c_prev, c_out)
    return params


def _forward(params, x_nchw):
    x = jnp.transpose(x_nchw, (0, 2, 3, 1)).astype(jnp.float32)  # NCHW -> NHWC
    N, H, W, c_in = x.shape
    cnt = float(N * H * W)

    # --- static packing of the dense block's channels into 128-lane groups ---
    # (a layer's gr channels never straddle a group so its in-place group write
    #  stays a single 128-lane block).
    positions = list(range(c_in))   # slab position of every logical channel
    placements = []                 # (slab start, gr) per inner layer
    end = c_in
    for p in params["layers"]:
        gr = p["w"].shape[-1]
        assert gr <= CG  # TODO(synk): support growth rates > 128
        start = end if (end % CG) + gr <= CG else _round_up(end, CG)
        placements.append((start, gr))
        positions.extend(range(start, start + gr))
        end = start + gr
    C_slab = _round_up(end, CG)
    Cin_p = _round_up(c_in, CG)

    # Channel slab: padded once; every layer afterwards writes in place.
    xp = jnp.pad(x, ((0, 0), (0, 0), (0, 0), (0, Cin_p - c_in)))
    s0, sq0 = channel_stats(xp)     # lane-dense stats pass over the input only
    slab = jnp.pad(xp, ((0, 0), (0, 0), (0, 0), (0, C_slab - Cin_p)))

    # Running per-slab-channel sums; existing channels never change, so every
    # layer's BN batch statistics come from these sums + the fused epilogues.
    s = jnp.zeros((C_slab,), jnp.float32).at[:Cin_p].set(s0)
    sq = jnp.zeros((C_slab,), jnp.float32).at[:Cin_p].set(sq0)

    n_logical = c_in
    for p, (start, gr) in zip(params["layers"], placements):
        pos = positions[:n_logical]
        G_in = pos[-1] // CG + 1
        og, off = start // CG, start % CG
        scale, shift, wpk, bpd = _layer_operands(
            s, sq, cnt, pos, p["gamma"], p["beta"], p["w"], p["b"],
            G_in=G_in, out_off=off, Co=CG)
        slab, gsum, gsq = _fused_bn_relu_conv(
            slab, scale, shift, wpk, bpd,
            og=og, add_input=(off != 0), alias_out=True)
        s = s.at[og * CG:(og + 1) * CG].set(jnp.sum(gsum[:, 0, :], axis=0))
        sq = sq.at[og * CG:(og + 1) * CG].set(jnp.sum(gsq[:, 0, :], axis=0))
        n_logical += gr

    p = params["final"]
    c_out = p["w"].shape[-1]
    Co = _round_up(c_out, CG)
    pos = positions[:n_logical]
    G_in = pos[-1] // CG + 1
    scale, shift, wpk, bpd = _layer_operands(
        s, sq, cnt, pos, p["gamma"], p["beta"], p["w"], p["b"],
        G_in=G_in, out_off=0, Co=Co)
    y, _, _ = _fused_bn_relu_conv(slab, scale, shift, wpk, bpd,
                                  og=0, add_input=False, alias_out=False)
    return jnp.transpose(y[..., :c_out], (0, 3, 1, 2))  # NHWC -> NCHW


neural_transform_forward = jax.jit(_forward)


# ----------------------------------------------------------------------------
# Pure-JAX reference. Conv operands are cast to bf16 (f32 accumulation) to
# mirror the kernel's MXU precision so the check stays tight; any structural
# bug (wrong shift / tap ordering / stats / packing) would still show up.
# ----------------------------------------------------------------------------
def _ref_block(x, p):
    mean = jnp.mean(x, axis=(0, 1, 2))
    var = jnp.mean((x - mean) ** 2, axis=(0, 1, 2))
    a = jnp.maximum(
        (x - mean) * jax.lax.rsqrt(var + BN_EPS) * p["gamma"] + p["beta"], 0.0
    )
    y = jax.lax.conv_general_dilated(
        a.astype(jnp.bfloat16),
        p["w"].astype(jnp.bfloat16),
        (1, 1),
        "SAME",
        dimension_numbers=("NHWC", "HWIO", "NHWC"),
        preferred_element_type=jnp.float32,
    )
    return y + p["b"]


def _ref_forward(params, x_nchw):
    x = jnp.transpose(x_nchw, (0, 2, 3, 1))
    for p in params["layers"]:
        x = jnp.concatenate([x, _ref_block(x, p)], axis=-1)
    x = _ref_block(x, params["final"])
    return jnp.transpose(x, (0, 3, 1, 2))


if __name__ == "__main__":
    c_in, c_out, num_layers, gr = 4, 8, 3, 4
    key = jax.random.PRNGKey(0)
    kx, kp = jax.random.split(key)
    x = jax.random.normal(kx, (2, c_in, 16, 16), jnp.float32)  # NCHW like PyTorch
    params = init_params(kp, c_in, c_out, num_layers, gr)

    out = jax.block_until_ready(neural_transform_forward(params, x))
    assert out.shape == (2, c_out, 16, 16), out.shape

    ref = jax.block_until_ready(_ref_forward(params, x))
    max_err = float(jnp.max(jnp.abs(out - ref)))
    assert jnp.allclose(out, ref, atol=2e-3, rtol=2e-3), max_err
    print("KERNEL_OK")
</pallas_src>

<mosaic_0001>
module attributes {stable_mosaic.version = 11 : i64} {
  func.func @_channel_stats_kernel(%arg0: i32, %arg1: memref<1x16x16x128xf32, #tpu.memory_space<vmem>>, %arg2: memref<1x1x128xf32, #tpu.memory_space<vmem>>, %arg3: memref<1x1x128xf32, #tpu.memory_space<vmem>>) attributes {dimension_semantics = [#tpu.dimension_semantics<parallel>], iteration_bounds = array<i64: 2>, scalar_prefetch = 0 : i64, scratch_operands = 0 : i64, tpu.core_type = #tpu.core_type<tc>, window_params = [{transform_indices = @transform_0, window_bounds = array<i64: 1, 16, 16, 128>}, {transform_indices = @transform_1, window_bounds = array<i64: 1, 1, 128>}, {transform_indices = @transform_2, window_bounds = array<i64: 1, 1, 128>}]} {
    %c0 = arith.constant 0 : index
    %c0_0 = arith.constant 0 : index
    %c0_1 = arith.constant 0 : index
    %c0_2 = arith.constant 0 : index
    %0 = vector.load %arg1[%c0, %c0_0, %c0_1, %c0_2] : memref<1x16x16x128xf32, #tpu.memory_space<vmem>>, vector<1x16x16x128xf32>
    %1 = vector.shape_cast %0 : vector<1x16x16x128xf32> to vector<16x16x128xf32>
    %cst = arith.constant dense<0.000000e+00> : vector<128xf32>
    %2 = vector.multi_reduction <add>, %1, %cst [0, 1] : vector<16x16x128xf32> to vector<128xf32>
    %3 = vector.shape_cast %2 : vector<128xf32> to vector<1x1x128xf32>
    %c0_3 = arith.constant 0 : index
    %c0_4 = arith.constant 0 : index
    %c0_5 = arith.constant 0 : index
    %4 = vector.load %arg2[%c0_3, %c0_4, %c0_5] : memref<1x1x128xf32, #tpu.memory_space<vmem>>, vector<1x1x128xf32>
    tpu.vector_store %arg2[%c0_3, %c0_4, %c0_5], %3 {strides = array<i32>} : memref<1x1x128xf32, #tpu.memory_space<vmem>>, vector<1x1x128xf32>,
    %5 = arith.mulf %1, %1 : vector<16x16x128xf32>
    %cst_6 = arith.constant dense<0.000000e+00> : vector<128xf32>
    %6 = vector.multi_reduction <add>, %5, %cst_6 [0, 1] : vector<16x16x128xf32> to vector<128xf32>
    %7 = vector.shape_cast %6 : vector<128xf32> to vector<1x1x128xf32>
    %c0_7 = arith.constant 0 : index
    %c0_8 = arith.constant 0 : index
    %c0_9 = arith.constant 0 : index
    %8 = vector.load %arg3[%c0_7, %c0_8, %c0_9] : memref<1x1x128xf32, #tpu.memory_space<vmem>>, vector<1x1x128xf32>
    tpu.vector_store %arg3[%c0_7, %c0_8, %c0_9], %7 {strides = array<i32>} : memref<1x1x128xf32, #tpu.memory_space<vmem>>, vector<1x1x128xf32>,
    return
  }
  func.func @transform_0(%arg0: i32) -> (i32, i32, i32, i32) {
    %c0_i32 = arith.constant 0 : i32
    %c0_i32_0 = arith.constant 0 : i32
    %c0_i32_1 = arith.constant 0 : i32
    %c0_i32_2 = arith.constant 0 : i32
    return %arg0, %c0_i32, %c0_i32_0, %c0_i32_1 : i32, i32, i32, i32
  }
  func.func @transform_1(%arg0: i32) -> (i32, i32, i32) {
    %c0_i32 = arith.constant 0 : i32
    %c0_i32_0 = arith.constant 0 : i32
    %c0_i32_1 = arith.constant 0 : i32
    return %arg0, %c0_i32, %c0_i32_0 : i32, i32, i32
  }
  func.func @transform_2(%arg0: i32) -> (i32, i32, i32) {
    %c0_i32 = arith.constant 0 : i32
    %c0_i32_0 = arith.constant 0 : i32
    %c0_i32_1 = arith.constant 0 : i32
    return %arg0, %c0_i32, %c0_i32_0 : i32, i32, i32
  }
}

module attributes {stable_mosaic.version = 11 : i64} {
  func.func @kernel(%arg0: i32, %arg1: i32, %arg2: memref<1x16x16x128xf32, #tpu.memory_space<vmem>>, %arg3: memref<1x128xf32, #tpu.memory_space<vmem>>, %arg4: memref<1x128xf32, #tpu.memory_space<vmem>>, %arg5: memref<1x1152x128xbf16, #tpu.memory_space<vmem>>, %arg6: memref<1x128xf32, #tpu.memory_space<vmem>>, %arg7: memref<1x16x16x128xf32, #tpu.memory_space<vmem>>, %arg8: memref<1x1x128xf32, #tpu.memory_space<vmem>>, %arg9: memref<1x1x128xf32, #tpu.memory_space<vmem>>, %arg10: memref<256x128xf32, #tpu.memory_space<vmem>>, %arg11: memref<18x48x128xbf16, #tpu.memory_space<vmem>>) attributes {dimension_semantics = [#tpu.dimension_semantics<parallel>, #tpu.dimension_semantics<arbitrary>], iteration_bounds = array<i64: 2, 1>, scalar_prefetch = 0 : i64, scratch_operands = 2 : i64, tpu.core_type = #tpu.core_type<tc>, window_params = [{transform_indices = @transform_0, window_bounds = array<i64: 1, 16, 16, 128>}, {transform_indices = @transform_1, window_bounds = array<i64: 1, 128>}, {transform_indices = @transform_2, window_bounds = array<i64: 1, 128>}, {transform_indices = @transform_3, window_bounds = array<i64: 1, 1152, 128>}, {pipeline_mode = #tpu.pipeline_mode<synchronous>, transform_indices = @transform_4, window_bounds = array<i64: 1, 128>}, {transform_indices = @transform_5, window_bounds = array<i64: 1, 16, 16, 128>}, {transform_indices = @transform_6, window_bounds = array<i64: 1, 1, 128>}, {transform_indices = @transform_7, window_bounds = array<i64: 1, 1, 128>}]} {
    %c0 = arith.constant 0 : index
    %c0_0 = arith.constant 0 : index
    %c0_1 = arith.constant 0 : index
    %c0_2 = arith.constant 0 : index
    %0 = vector.load %arg2[%c0, %c0_0, %c0_1, %c0_2] : memref<1x16x16x128xf32, #tpu.memory_space<vmem>>, vector<1x16x16x128xf32>
    %1 = vector.shape_cast %0 : vector<1x16x16x128xf32> to vector<16x16x128xf32>
    %c0_3 = arith.constant 0 : index
    %c0_4 = arith.constant 0 : index
    %2 = vector.load %arg3[%c0_3, %c0_4] : memref<1x128xf32, #tpu.memory_space<vmem>>, vector<1x128xf32>
    %3 = vector.shape_cast %2 : vector<1x128xf32> to vector<128xf32>
    %4 = vector.shape_cast %3 : vector<128xf32> to vector<1x1x128xf32>
    %5 = vector.broadcast %4 : vector<1x1x128xf32> to vector<16x16x128xf32>
    %6 = arith.mulf %1, %5 : vector<16x16x128xf32>
    %c0_5 = arith.constant 0 : index
    %c0_6 = arith.constant 0 : index
    %7 = vector.load %arg4[%c0_5, %c0_6] : memref<1x128xf32, #tpu.memory_space<vmem>>, vector<1x128xf32>
    %8 = vector.shape_cast %7 : vector<1x128xf32> to vector<128xf32>
    %9 = vector.shape_cast %8 : vector<128xf32> to vector<1x1x128xf32>
    %10 = vector.broadcast %9 : vector<1x1x128xf32> to vector<16x16x128xf32>
    %11 = arith.addf %6, %10 : vector<16x16x128xf32>
    %cst = arith.constant 0.000000e+00 : f32
    %12 = vector.broadcast %cst : f32 to vector<16x16x128xf32>
    %13 = arith.maximumf %11, %12 : vector<16x16x128xf32>
    %14 = arith.truncf %13 : vector<16x16x128xf32> to vector<16x16x128xbf16>
    %cst_7 = arith.constant 0.000000e+00 : bf16
    %15 = vector.broadcast %cst_7 : bf16 to vector<1x48x128xbf16>
    %c0_8 = arith.constant 0 : index
    %c0_9 = arith.constant 0 : index
    %c0_10 = arith.constant 0 : index
    %16 = vector.load %arg11[%c0_8, %c0_9, %c0_10] : memref<18x48x128xbf16, #tpu.memory_space<vmem>>, vector<1x48x128xbf16>
    tpu.vector_store %arg11[%c0_8, %c0_9, %c0_10], %15 {strides = array<i32>} : memref<18x48x128xbf16, #tpu.memory_space<vmem>>, vector<1x48x128xbf16>,
    %cst_11 = arith.constant 0.000000e+00 : bf16
    %17 = vector.broadcast %cst_11 : bf16 to vector<1x48x128xbf16>
    %c17 = arith.constant 17 : index
    %c0_12 = arith.constant 0 : index
    %c0_13 = arith.constant 0 : index
    %18 = vector.load %arg11[%c17, %c0_12, %c0_13] : memref<18x48x128xbf16, #tpu.memory_space<vmem>>, vector<1x48x128xbf16>
    tpu.vector_store %arg11[%c17, %c0_12, %c0_13], %17 {strides = array<i32>} : memref<18x48x128xbf16, #tpu.memory_space<vmem>>, vector<1x48x128xbf16>,
    %cst_14 = arith.constant 0.000000e+00 : bf16
    %19 = vector.broadcast %cst_14 : bf16 to vector<16x16x128xbf16>
    %c1 = arith.constant 1 : index
    %c0_15 = arith.constant 0 : index
    %c0_16 = arith.constant 0 : index
    %20 = vector.load %arg11[%c1, %c0_15, %c0_16] : memref<18x48x128xbf16, #tpu.memory_space<vmem>>, vector<16x16x128xbf16>
    tpu.vector_store %arg11[%c1, %c0_15, %c0_16], %19 {strides = array<i32>} : memref<18x48x128xbf16, #tpu.memory_space<vmem>>, vector<16x16x128xbf16>,
    %cst_17 = arith.constant 0.000000e+00 : bf16
    %21 = vector.broadcast %cst_17 : bf16 to vector<16x16x128xbf16>
    %c1_18 = arith.constant 1 : index
    %c32 = arith.constant 32 : index
    %c0_19 = arith.constant 0 : index
    %22 = vector.load %arg11[%c1_18, %c32, %c0_19] : memref<18x48x128xbf16, #tpu.memory_space<vmem>>, vector<16x16x128xbf16>
    tpu.vector_store %arg11[%c1_18, %c32, %c0_19], %21 {strides = array<i32>} : memref<18x48x128xbf16, #tpu.memory_space<vmem>>, vector<16x16x128xbf16>,
    %c1_20 = arith.constant 1 : index
    %c16 = arith.constant 16 : index
    %c0_21 = arith.constant 0 : index
    %23 = vector.load %arg11[%c1_20, %c16, %c0_21] : memref<18x48x128xbf16, #tpu.memory_space<vmem>>, vector<16x16x128xbf16>
    tpu.vector_store %arg11[%c1_20, %c16, %c0_21], %14 {strides = array<i32>} : memref<18x48x128xbf16, #tpu.memory_space<vmem>>, vector<16x16x128xbf16>,
    %c0_22 = arith.constant 0 : index
    %c15 = arith.constant 15 : index
    %c0_23 = arith.constant 0 : index
    %24 = vector.load %arg11[%c0_22, %c15, %c0_23] : memref<18x48x128xbf16, #tpu.memory_space<vmem>>, vector<16x16x128xbf16>
    %c0_24 = arith.constant 0 : index
    %c16_25 = arith.constant 16 : index
    %c0_26 = arith.constant 0 : index
    %25 = vector.load %arg11[%c0_24, %c16_25, %c0_26] : memref<18x48x128xbf16, #tpu.memory_space<vmem>>, vector<16x16x128xbf16>
    %c0_27 = arith.constant 0 : index
    %c17_28 = arith.constant 17 : index
    %c0_29 = arith.constant 0 : index
    %26 = vector.load %arg11[%c0_27, %c17_28, %c0_29] : memref<18x48x128xbf16, #tpu.memory_space<vmem>>, vector<16x16x128xbf16>
    %c1_30 = arith.constant 1 : index
    %c15_31 = arith.constant 15 : index
    %c0_32 = arith.constant 0 : index
    %27 = vector.load %arg11[%c1_30, %c15_31, %c0_32] : memref<18x48x128xbf16, #tpu.memory_space<vmem>>, vector<16x16x128xbf16>
    %c1_33 = arith.constant 1 : index
    %c16_34 = arith.constant 16 : index
    %c0_35 = arith.constant 0 : index
    %28 = vector.load %arg11[%c1_33, %c16_34, %c0_35] : memref<18x48x128xbf16, #tpu.memory_space<vmem>>, vector<16x16x128xbf16>
    %c1_36 = arith.constant 1 : index
    %c17_37 = arith.constant 17 : index
    %c0_38 = arith.constant 0 : index
    %29 = vector.load %arg11[%c1_36, %c17_37, %c0_38] : memref<18x48x128xbf16, #tpu.memory_space<vmem>>, vector<16x16x128xbf16>
    %c2 = arith.constant 2 : index
    %c15_39 = arith.constant 15 : index
    %c0_40 = arith.constant 0 : index
    %30 = vector.load %arg11[%c2, %c15_39, %c0_40] : memref<18x48x128xbf16, #tpu.memory_space<vmem>>, vector<16x16x128xbf16>
    %c2_41 = arith.constant 2 : index
    %c16_42 = arith.constant 16 : index
    %c0_43 = arith.constant 0 : index
    %31 = vector.load %arg11[%c2_41, %c16_42, %c0_43] : memref<18x48x128xbf16, #tpu.memory_space<vmem>>, vector<16x16x128xbf16>
    %c2_44 = arith.constant 2 : index
    %c17_45 = arith.constant 17 : index
    %c0_46 = arith.constant 0 : index
    %32 = vector.load %arg11[%c2_44, %c17_45, %c0_46] : memref<18x48x128xbf16, #tpu.memory_space<vmem>>, vector<16x16x128xbf16>
    %33 = tpu.concatenate %24, %25, %26, %27, %28, %29, %30, %31, %32 in 2 : vector<16x16x128xbf16>, vector<16x16x128xbf16>, vector<16x16x128xbf16>, vector<16x16x128xbf16>, vector<16x16x128xbf16>, vector<16x16x128xbf16>, vector<16x16x128xbf16>, vector<16x16x128xbf16>, vector<16x16x128xbf16> -> vector<16x16x1152xbf16>
    %34 = vector.shape_cast %33 : vector<16x16x1152xbf16> to vector<256x1152xbf16>
    %c0_i32 = arith.constant 0 : i32
    %35 = arith.cmpi eq, %arg1, %c0_i32 : i32
    %36 = arith.extui %35 : i1 to i32
    %c0_i32_47 = arith.constant 0 : i32
    %37 = arith.cmpi ne, %36, %c0_i32_47 : i32
    scf.if %37 {
      %cst_58 = arith.constant 0.000000e+00 : f32
      %47 = vector.broadcast %cst_58 : f32 to vector<256x128xf32>
      %c0_59 = arith.constant 0 : index
      %c0_60 = arith.constant 0 : index
      %48 = vector.load %arg10[%c0_59, %c0_60] : memref<256x128xf32, #tpu.memory_space<vmem>>, vector<256x128xf32>
      tpu.vector_store %arg10[%c0_59, %c0_60], %47 {strides = array<i32>} : memref<256x128xf32, #tpu.memory_space<vmem>>, vector<256x128xf32>,
    } else {
    }
    %c0_48 = arith.constant 0 : index
    %c0_49 = arith.constant 0 : index
    %38 = vector.load %arg10[%c0_48, %c0_49] : memref<256x128xf32, #tpu.memory_space<vmem>>, vector<256x128xf32>
    %c0_50 = arith.constant 0 : index
    %c0_51 = arith.constant 0 : index
    %c0_52 = arith.constant 0 : index
    %39 = vector.load %arg5[%c0_50, %c0_51, %c0_52] : memref<1x1152x128xbf16, #tpu.memory_space<vmem>>, vector<1x1152x128xbf16>
    %40 = vector.shape_cast %39 : vector<1x1152x128xbf16> to vector<1152x128xbf16>
    %cst_53 = arith.constant dense<0.000000e+00> : vector<256x128xf32>
    %41 = tpu.matmul %34, %40, %cst_53 {dimension_numbers = #tpu.dot_dimension_numbers<[1], [0], [0], [1], [0, 0, 1, 1], [], []>} : vector<256x1152xbf16>, vector<1152x128xbf16>, vector<256x128xf32> -> vector<256x128xf32>
    %42 = arith.addf %38, %41 : vector<256x128xf32>
    %c0_54 = arith.constant 0 : index
    %c0_55 = arith.constant 0 : index
    %43 = vector.load %arg10[%c0_54, %c0_55] : memref<256x128xf32, #tpu.memory_space<vmem>>, vector<256x128xf32>
    tpu.vector_store %arg10[%c0_54, %c0_55], %42 {strides = array<i32>} : memref<256x128xf32, #tpu.memory_space<vmem>>, vector<256x128xf32>,
    %c0_i32_56 = arith.constant 0 : i32
    %44 = arith.cmpi eq, %arg1, %c0_i32_56 : i32
    %45 = arith.extui %44 : i1 to i32
    %c0_i32_57 = arith.constant 0 : i32
    %46 = arith.cmpi ne, %45, %c0_i32_57 : i32
    scf.if %46 {
      %c0_58 = arith.constant 0 : index
      %c0_59 = arith.constant 0 : index
      %47 = vector.load %arg10[%c0_58, %c0_59] : memref<256x128xf32, #tpu.memory_space<vmem>>, vector<256x128xf32>
      %c0_60 = arith.constant 0 : index
      %c0_61 = arith.constant 0 : index
      %48 = vector.load %arg6[%c0_60, %c0_61] : memref<1x128xf32, #tpu.memory_space<vmem>>, vector<1x128xf32>
      %49 = vector.broadcast %48 : vector<1x128xf32> to vector<256x128xf32>
      %50 = arith.addf %47, %49 : vector<256x128xf32>
      %51 = vector.shape_cast %50 : vector<256x128xf32> to vector<16x16x128xf32>
      %52 = arith.addf %51, %1 : vector<16x16x128xf32>
      %c0_62 = arith.constant 0 : index
      %c0_63 = arith.constant 0 : index
      %c0_64 = arith.constant 0 : index
      %c0_65 = arith.constant 0 : index
      %53 = vector.load %arg7[%c0_62, %c0_63, %c0_64, %c0_65] : memref<1x16x16x128xf32, #tpu.memory_space<vmem>>, vector<1x16x16x128xf32>
      %54 = vector.shape_cast %53 : vector<1x16x16x128xf32> to vector<16x16x128xf32>
      %55 = vector.shape_cast %52 : vector<16x16x128xf32> to vector<1x16x16x128xf32>
      tpu.vector_store %arg7[%c0_62, %c0_63, %c0_64, %c0_65], %55 {strides = array<i32>} : memref<1x16x16x128xf32, #tpu.memory_space<vmem>>, vector<1x16x16x128xf32>,
      %cst_66 = arith.constant dense<0.000000e+00> : vector<128xf32>
      %56 = vector.multi_reduction <add>, %52, %cst_66 [0, 1] : vector<16x16x128xf32> to vector<128xf32>
      %57 = vector.shape_cast %56 : vector<128xf32> to vector<1x1x128xf32>
      %c0_67 = arith.constant 0 : index
      %c0_68 = arith.constant 0 : index
      %c0_69 = arith.constant 0 : index
      %58 = vector.load %arg8[%c0_67, %c0_68, %c0_69] : memref<1x1x128xf32, #tpu.memory_space<vmem>>, vector<1x1x128xf32>
      tpu.vector_store %arg8[%c0_67, %c0_68, %c0_69], %57 {strides = array<i32>} : memref<1x1x128xf32, #tpu.memory_space<vmem>>, vector<1x1x128xf32>,
      %59 = arith.mulf %52, %52 : vector<16x16x128xf32>
      %cst_70 = arith.constant dense<0.000000e+00> : vector<128xf32>
      %60 = vector.multi_reduction <add>, %59, %cst_70 [0, 1] : vector<16x16x128xf32> to vector<128xf32>
      %61 = vector.shape_cast %60 : vector<128xf32> to vector<1x1x128xf32>
      %c0_71 = arith.constant 0 : index
      %c0_72 = arith.constant 0 : index
      %c0_73 = arith.constant 0 : index
      %62 = vector.load %arg9[%c0_71, %c0_72, %c0_73] : memref<1x1x128xf32, #tpu.memory_space<vmem>>, vector<1x1x128xf32>
      tpu.vector_store %arg9[%c0_71, %c0_72, %c0_73], %61 {strides = array<i32>} : memref<1x1x128xf32, #tpu.memory_space<vmem>>, vector<1x1x128xf32>,
    } else {
    }
    return
  }
  func.func @transform_0(%arg0: i32, %arg1: i32) -> (i32, i32, i32, i32) {
    %c0_i32 = arith.constant 0 : i32
    %c0_i32_0 = arith.constant 0 : i32
    %c0_i32_1 = arith.constant 0 : i32
    return %arg0, %c0_i32, %c0_i32_0, %arg1 : i32, i32, i32, i32
  }
  func.func @transform_1(%arg0: i32, %arg1: i32) -> (i32, i32) {
    %c0_i32 = arith.constant 0 : i32
    %c0_i32_0 = arith.constant 0 : i32
    return %c0_i32, %arg1 : i32, i32
  }
  func.func @transform_2(%arg0: i32, %arg1: i32) -> (i32, i32) {
    %c0_i32 = arith.constant 0 : i32
    %c0_i32_0 = arith.constant 0 : i32
    return %c0_i32, %arg1 : i32, i32
  }
  func.func @transform_3(%arg0: i32, %arg1: i32) -> (i32, i32, i32) {
    %c0_i32 = arith.constant 0 : i32
    %c0_i32_0 = arith.constant 0 : i32
    %c0_i32_1 = arith.constant 0 : i32
    return %arg1, %c0_i32, %c0_i32_0 : i32, i32, i32
  }
  func.func @transform_4(%arg0: i32, %arg1: i32) -> (i32, i32) {
    %c0_i32 = arith.constant 0 : i32
    %c0_i32_0 = arith.constant 0 : i32
    %c0_i32_1 = arith.constant 0 : i32
    return %c0_i32, %c0_i32_0 : i32, i32
  }
  func.func @transform_5(%arg0: i32, %arg1: i32) -> (i32, i32, i32, i32) {
    %c0_i32 = arith.constant 0 : i32
    %c0_i32_0 = arith.constant 0 : i32
    %c0_i32_1 = arith.constant 0 : i32
    %c0_i32_2 = arith.constant 0 : i32
    return %arg0, %c0_i32, %c0_i32_0, %c0_i32_1 : i32, i32, i32, i32
  }
  func.func @transform_6(%arg0: i32, %arg1: i32) -> (i32, i32, i32) {
    %c0_i32 = arith.constant 0 : i32
    %c0_i32_0 = arith.constant 0 : i32
    %c0_i32_1 = arith.constant 0 : i32
    return %arg0, %c0_i32, %c0_i32_0 : i32, i32, i32
  }
  func.func @transform_7(%arg0: i32, %arg1: i32) -> (i32, i32, i32) {
    %c0_i32 = arith.constant 0 : i32
    %c0_i32_0 = arith.constant 0 : i32
    %c0_i32_1 = arith.constant 0 : i32
    return %arg0, %c0_i32, %c0_i32_0 : i32, i32, i32
  }
}

module attributes {stable_mosaic.version = 11 : i64} {
  func.func @kernel(%arg0: i32, %arg1: i32, %arg2: memref<1x16x16x128xf32, #tpu.memory_space<vmem>>, %arg3: memref<1x128xf32, #tpu.memory_space<vmem>>, %arg4: memref<1x128xf32, #tpu.memory_space<vmem>>, %arg5: memref<1x1152x128xbf16, #tpu.memory_space<vmem>>, %arg6: memref<1x128xf32, #tpu.memory_space<vmem>>, %arg7: memref<1x16x16x128xf32, #tpu.memory_space<vmem>>, %arg8: memref<1x1x128xf32, #tpu.memory_space<vmem>>, %arg9: memref<1x1x128xf32, #tpu.memory_space<vmem>>, %arg10: memref<256x128xf32, #tpu.memory_space<vmem>>, %arg11: memref<18x48x128xbf16, #tpu.memory_space<vmem>>) attributes {dimension_semantics = [#tpu.dimension_semantics<parallel>, #tpu.dimension_semantics<arbitrary>], iteration_bounds = array<i64: 2, 1>, scalar_prefetch = 0 : i64, scratch_operands = 2 : i64, tpu.core_type = #tpu.core_type<tc>, window_params = [{transform_indices = @transform_0, window_bounds = array<i64: 1, 16, 16, 128>}, {transform_indices = @transform_1, window_bounds = array<i64: 1, 128>}, {transform_indices = @transform_2, window_bounds = array<i64: 1, 128>}, {transform_indices = @transform_3, window_bounds = array<i64: 1, 1152, 128>}, {pipeline_mode = #tpu.pipeline_mode<synchronous>, transform_indices = @transform_4, window_bounds = array<i64: 1, 128>}, {transform_indices = @transform_5, window_bounds = array<i64: 1, 16, 16, 128>}, {transform_indices = @transform_6, window_bounds = array<i64: 1, 1, 128>}, {transform_indices = @transform_7, window_bounds = array<i64: 1, 1, 128>}]} {
    %c0 = arith.constant 0 : index
    %c0_0 = arith.constant 0 : index
    %c0_1 = arith.constant 0 : index
    %c0_2 = arith.constant 0 : index
    %0 = vector.load %arg2[%c0, %c0_0, %c0_1, %c0_2] : memref<1x16x16x128xf32, #tpu.memory_space<vmem>>, vector<1x16x16x128xf32>
    %1 = vector.shape_cast %0 : vector<1x16x16x128xf32> to vector<16x16x128xf32>
    %c0_3 = arith.constant 0 : index
    %c0_4 = arith.constant 0 : index
    %2 = vector.load %arg3[%c0_3, %c0_4] : memref<1x128xf32, #tpu.memory_space<vmem>>, vector<1x128xf32>
    %3 = vector.shape_cast %2 : vector<1x128xf32> to vector<128xf32>
    %4 = vector.shape_cast %3 : vector<128xf32> to vector<1x1x128xf32>
    %5 = vector.broadcast %4 : vector<1x1x128xf32> to vector<16x16x128xf32>
    %6 = arith.mulf %1, %5 : vector<16x16x128xf32>
    %c0_5 = arith.constant 0 : index
    %c0_6 = arith.constant 0 : index
    %7 = vector.load %arg4[%c0_5, %c0_6] : memref<1x128xf32, #tpu.memory_space<vmem>>, vector<1x128xf32>
    %8 = vector.shape_cast %7 : vector<1x128xf32> to vector<128xf32>
    %9 = vector.shape_cast %8 : vector<128xf32> to vector<1x1x128xf32>
    %10 = vector.broadcast %9 : vector<1x1x128xf32> to vector<16x16x128xf32>
    %11 = arith.addf %6, %10 : vector<16x16x128xf32>
    %cst = arith.constant 0.000000e+00 : f32
    %12 = vector.broadcast %cst : f32 to vector<16x16x128xf32>
    %13 = arith.maximumf %11, %12 : vector<16x16x128xf32>
    %14 = arith.truncf %13 : vector<16x16x128xf32> to vector<16x16x128xbf16>
    %cst_7 = arith.constant 0.000000e+00 : bf16
    %15 = vector.broadcast %cst_7 : bf16 to vector<1x48x128xbf16>
    %c0_8 = arith.constant 0 : index
    %c0_9 = arith.constant 0 : index
    %c0_10 = arith.constant 0 : index
    %16 = vector.load %arg11[%c0_8, %c0_9, %c0_10] : memref<18x48x128xbf16, #tpu.memory_space<vmem>>, vector<1x48x128xbf16>
    tpu.vector_store %arg11[%c0_8, %c0_9, %c0_10], %15 {strides = array<i32>} : memref<18x48x128xbf16, #tpu.memory_space<vmem>>, vector<1x48x128xbf16>,
    %cst_11 = arith.constant 0.000000e+00 : bf16
    %17 = vector.broadcast %cst_11 : bf16 to vector<1x48x128xbf16>
    %c17 = arith.constant 17 : index
    %c0_12 = arith.constant 0 : index
    %c0_13 = arith.constant 0 : index
    %18 = vector.load %arg11[%c17, %c0_12, %c0_13] : memref<18x48x128xbf16, #tpu.memory_space<vmem>>, vector<1x48x128xbf16>
    tpu.vector_store %arg11[%c17, %c0_12, %c0_13], %17 {strides = array<i32>} : memref<18x48x128xbf16, #tpu.memory_space<vmem>>, vector<1x48x128xbf16>,
    %cst_14 = arith.constant 0.000000e+00 : bf16
    %19 = vector.broadcast %cst_14 : bf16 to vector<16x16x128xbf16>
    %c1 = arith.constant 1 : index
    %c0_15 = arith.constant 0 : index
    %c0_16 = arith.constant 0 : index
    %20 = vector.load %arg11[%c1, %c0_15, %c0_16] : memref<18x48x128xbf16, #tpu.memory_space<vmem>>, vector<16x16x128xbf16>
    tpu.vector_store %arg11[%c1, %c0_15, %c0_16], %19 {strides = array<i32>} : memref<18x48x128xbf16, #tpu.memory_space<vmem>>, vector<16x16x128xbf16>,
    %cst_17 = arith.constant 0.000000e+00 : bf16
    %21 = vector.broadcast %cst_17 : bf16 to vector<16x16x128xbf16>
    %c1_18 = arith.constant 1 : index
    %c32 = arith.constant 32 : index
    %c0_19 = arith.constant 0 : index
    %22 = vector.load %arg11[%c1_18, %c32, %c0_19] : memref<18x48x128xbf16, #tpu.memory_space<vmem>>, vector<16x16x128xbf16>
    tpu.vector_store %arg11[%c1_18, %c32, %c0_19], %21 {strides = array<i32>} : memref<18x48x128xbf16, #tpu.memory_space<vmem>>, vector<16x16x128xbf16>,
    %c1_20 = arith.constant 1 : index
    %c16 = arith.constant 16 : index
    %c0_21 = arith.constant 0 : index
    %23 = vector.load %arg11[%c1_20, %c16, %c0_21] : memref<18x48x128xbf16, #tpu.memory_space<vmem>>, vector<16x16x128xbf16>
    tpu.vector_store %arg11[%c1_20, %c16, %c0_21], %14 {strides = array<i32>} : memref<18x48x128xbf16, #tpu.memory_space<vmem>>, vector<16x16x128xbf16>,
    %c0_22 = arith.constant 0 : index
    %c15 = arith.constant 15 : index
    %c0_23 = arith.constant 0 : index
    %24 = vector.load %arg11[%c0_22, %c15, %c0_23] : memref<18x48x128xbf16, #tpu.memory_space<vmem>>, vector<16x16x128xbf16>
    %c0_24 = arith.constant 0 : index
    %c16_25 = arith.constant 16 : index
    %c0_26 = arith.constant 0 : index
    %25 = vector.load %arg11[%c0_24, %c16_25, %c0_26] : memref<18x48x128xbf16, #tpu.memory_space<vmem>>, vector<16x16x128xbf16>
    %c0_27 = arith.constant 0 : index
    %c17_28 = arith.constant 17 : index
    %c0_29 = arith.constant 0 : index
    %26 = vector.load %arg11[%c0_27, %c17_28, %c0_29] : memref<18x48x128xbf16, #tpu.memory_space<vmem>>, vector<16x16x128xbf16>
    %c1_30 = arith.constant 1 : index
    %c15_31 = arith.constant 15 : index
    %c0_32 = arith.constant 0 : index
    %27 = vector.load %arg11[%c1_30, %c15_31, %c0_32] : memref<18x48x128xbf16, #tpu.memory_space<vmem>>, vector<16x16x128xbf16>
    %c1_33 = arith.constant 1 : index
    %c16_34 = arith.constant 16 : index
    %c0_35 = arith.constant 0 : index
    %28 = vector.load %arg11[%c1_33, %c16_34, %c0_35] : memref<18x48x128xbf16, #tpu.memory_space<vmem>>, vector<16x16x128xbf16>
    %c1_36 = arith.constant 1 : index
    %c17_37 = arith.constant 17 : index
    %c0_38 = arith.constant 0 : index
    %29 = vector.load %arg11[%c1_36, %c17_37, %c0_38] : memref<18x48x128xbf16, #tpu.memory_space<vmem>>, vector<16x16x128xbf16>
    %c2 = arith.constant 2 : index
    %c15_39 = arith.constant 15 : index
    %c0_40 = arith.constant 0 : index
    %30 = vector.load %arg11[%c2, %c15_39, %c0_40] : memref<18x48x128xbf16, #tpu.memory_space<vmem>>, vector<16x16x128xbf16>
    %c2_41 = arith.constant 2 : index
    %c16_42 = arith.constant 16 : index
    %c0_43 = arith.constant 0 : index
    %31 = vector.load %arg11[%c2_41, %c16_42, %c0_43] : memref<18x48x128xbf16, #tpu.memory_space<vmem>>, vector<16x16x128xbf16>
    %c2_44 = arith.constant 2 : index
    %c17_45 = arith.constant 17 : index
    %c0_46 = arith.constant 0 : index
    %32 = vector.load %arg11[%c2_44, %c17_45, %c0_46] : memref<18x48x128xbf16, #tpu.memory_space<vmem>>, vector<16x16x128xbf16>
    %33 = tpu.concatenate %24, %25, %26, %27, %28, %29, %30, %31, %32 in 2 : vector<16x16x128xbf16>, vector<16x16x128xbf16>, vector<16x16x128xbf16>, vector<16x16x128xbf16>, vector<16x16x128xbf16>, vector<16x16x128xbf16>, vector<16x16x128xbf16>, vector<16x16x128xbf16>, vector<16x16x128xbf16> -> vector<16x16x1152xbf16>
    %34 = vector.shape_cast %33 : vector<16x16x1152xbf16> to vector<256x1152xbf16>
    %c0_i32 = arith.constant 0 : i32
    %35 = arith.cmpi eq, %arg1, %c0_i32 : i32
    %36 = arith.extui %35 : i1 to i32
    %c0_i32_47 = arith.constant 0 : i32
    %37 = arith.cmpi ne, %36, %c0_i32_47 : i32
    scf.if %37 {
      %cst_58 = arith.constant 0.000000e+00 : f32
      %47 = vector.broadcast %cst_58 : f32 to vector<256x128xf32>
      %c0_59 = arith.constant 0 : index
      %c0_60 = arith.constant 0 : index
      %48 = vector.load %arg10[%c0_59, %c0_60] : memref<256x128xf32, #tpu.memory_space<vmem>>, vector<256x128xf32>
      tpu.vector_store %arg10[%c0_59, %c0_60], %47 {strides = array<i32>} : memref<256x128xf32, #tpu.memory_space<vmem>>, vector<256x128xf32>,
    } else {
    }
    %c0_48 = arith.constant 0 : index
    %c0_49 = arith.constant 0 : index
    %38 = vector.load %arg10[%c0_48, %c0_49] : memref<256x128xf32, #tpu.memory_space<vmem>>, vector<256x128xf32>
    %c0_50 = arith.constant 0 : index
    %c0_51 = arith.constant 0 : index
    %c0_52 = arith.constant 0 : index
    %39 = vector.load %arg5[%c0_50, %c0_51, %c0_52] : memref<1x1152x128xbf16, #tpu.memory_space<vmem>>, vector<1x1152x128xbf16>
    %40 = vector.shape_cast %39 : vector<1x1152x128xbf16> to vector<1152x128xbf16>
    %cst_53 = arith.constant dense<0.000000e+00> : vector<256x128xf32>
    %41 = tpu.matmul %34, %40, %cst_53 {dimension_numbers = #tpu.dot_dimension_numbers<[1], [0], [0], [1], [0, 0, 1, 1], [], []>} : vector<256x1152xbf16>, vector<1152x128xbf16>, vector<256x128xf32> -> vector<256x128xf32>
    %42 = arith.addf %38, %41 : vector<256x128xf32>
    %c0_54 = arith.constant 0 : index
    %c0_55 = arith.constant 0 : index
    %43 = vector.load %arg10[%c0_54, %c0_55] : memref<256x128xf32, #tpu.memory_space<vmem>>, vector<256x128xf32>
    tpu.vector_store %arg10[%c0_54, %c0_55], %42 {strides = array<i32>} : memref<256x128xf32, #tpu.memory_space<vmem>>, vector<256x128xf32>,
    %c0_i32_56 = arith.constant 0 : i32
    %44 = arith.cmpi eq, %arg1, %c0_i32_56 : i32
    %45 = arith.extui %44 : i1 to i32
    %c0_i32_57 = arith.constant 0 : i32
    %46 = arith.cmpi ne, %45, %c0_i32_57 : i32
    scf.if %46 {
      %c0_58 = arith.constant 0 : index
      %c0_59 = arith.constant 0 : index
      %47 = vector.load %arg10[%c0_58, %c0_59] : memref<256x128xf32, #tpu.memory_space<vmem>>, vector<256x128xf32>
      %c0_60 = arith.constant 0 : index
      %c0_61 = arith.constant 0 : index
      %48 = vector.load %arg6[%c0_60, %c0_61] : memref<1x128xf32, #tpu.memory_space<vmem>>, vector<1x128xf32>
      %49 = vector.broadcast %48 : vector<1x128xf32> to vector<256x128xf32>
      %50 = arith.addf %47, %49 : vector<256x128xf32>
      %51 = vector.shape_cast %50 : vector<256x128xf32> to vector<16x16x128xf32>
      %c0_62 = arith.constant 0 : index
      %c0_63 = arith.constant 0 : index
      %c0_64 = arith.constant 0 : index
      %c0_65 = arith.constant 0 : index
      %52 = vector.load %arg7[%c0_62, %c0_63, %c0_64, %c0_65] : memref<1x16x16x128xf32, #tpu.memory_space<vmem>>, vector<1x16x16x128xf32>
      %53 = vector.shape_cast %52 : vector<1x16x16x128xf32> to vector<16x16x128xf32>
      %54 = vector.shape_cast %51 : vector<16x16x128xf32> to vector<1x16x16x128xf32>
      tpu.vector_store %arg7[%c0_62, %c0_63, %c0_64, %c0_65], %54 {strides = array<i32>} : memref<1x16x16x128xf32, #tpu.memory_space<vmem>>, vector<1x16x16x128xf32>,
      %cst_66 = arith.constant dense<0.000000e+00> : vector<128xf32>
      %55 = vector.multi_reduction <add>, %51, %cst_66 [0, 1] : vector<16x16x128xf32> to vector<128xf32>
      %56 = vector.shape_cast %55 : vector<128xf32> to vector<1x1x128xf32>
      %c0_67 = arith.constant 0 : index
      %c0_68 = arith.constant 0 : index
      %c0_69 = arith.constant 0 : index
      %57 = vector.load %arg8[%c0_67, %c0_68, %c0_69] : memref<1x1x128xf32, #tpu.memory_space<vmem>>, vector<1x1x128xf32>
      tpu.vector_store %arg8[%c0_67, %c0_68, %c0_69], %56 {strides = array<i32>} : memref<1x1x128xf32, #tpu.memory_space<vmem>>, vector<1x1x128xf32>,
      %58 = arith.mulf %51, %51 : vector<16x16x128xf32>
      %cst_70 = arith.constant dense<0.000000e+00> : vector<128xf32>
      %59 = vector.multi_reduction <add>, %58, %cst_70 [0, 1] : vector<16x16x128xf32> to vector<128xf32>
      %60 = vector.shape_cast %59 : vector<128xf32> to vector<1x1x128xf32>
      %c0_71 = arith.constant 0 : index
      %c0_72 = arith.constant 0 : index
      %c0_73 = arith.constant 0 : index
      %61 = vector.load %arg9[%c0_71, %c0_72, %c0_73] : memref<1x1x128xf32, #tpu.memory_space<vmem>>, vector<1x1x128xf32>
      tpu.vector_store %arg9[%c0_71, %c0_72, %c0_73], %60 {strides = array<i32>} : memref<1x1x128xf32, #tpu.memory_space<vmem>>, vector<1x1x128xf32>,
    } else {
    }
    return
  }
  func.func @transform_0(%arg0: i32, %arg1: i32) -> (i32, i32, i32, i32) {
    %c0_i32 = arith.constant 0 : i32
    %c0_i32_0 = arith.constant 0 : i32
    %c0_i32_1 = arith.constant 0 : i32
    return %arg0, %c0_i32, %c0_i32_0, %arg1 : i32, i32, i32, i32
  }
  func.func @transform_1(%arg0: i32, %arg1: i32) -> (i32, i32) {
    %c0_i32 = arith.constant 0 : i32
    %c0_i32_0 = arith.constant 0 : i32
    return %c0_i32, %arg1 : i32, i32
  }
  func.func @transform_2(%arg0: i32, %arg1: i32) -> (i32, i32) {
    %c0_i32 = arith.constant 0 : i32
    %c0_i32_0 = arith.constant 0 : i32
    return %c0_i32, %arg1 : i32, i32
  }
  func.func @transform_3(%arg0: i32, %arg1: i32) -> (i32, i32, i32) {
    %c0_i32 = arith.constant 0 : i32
    %c0_i32_0 = arith.constant 0 : i32
    %c0_i32_1 = arith.constant 0 : i32
    return %arg1, %c0_i32, %c0_i32_0 : i32, i32, i32
  }
  func.func @transform_4(%arg0: i32, %arg1: i32) -> (i32, i32) {
    %c0_i32 = arith.constant 0 : i32
    %c0_i32_0 = arith.constant 0 : i32
    %c0_i32_1 = arith.constant 0 : i32
    return %c0_i32, %c0_i32_0 : i32, i32
  }
  func.func @transform_5(%arg0: i32, %arg1: i32) -> (i32, i32, i32, i32) {
    %c0_i32 = arith.constant 0 : i32
    %c0_i32_0 = arith.constant 0 : i32
    %c0_i32_1 = arith.constant 0 : i32
    %c0_i32_2 = arith.constant 0 : i32
    return %arg0, %c0_i32, %c0_i32_0, %c0_i32_1 : i32, i32, i32, i32
  }
  func.func @transform_6(%arg0: i32, %arg1: i32) -> (i32, i32, i32) {
    %c0_i32 = arith.constant 0 : i32
    %c0_i32_0 = arith.constant 0 : i32
    %c0_i32_1 = arith.constant 0 : i32
    return %arg0, %c0_i32, %c0_i32_0 : i32, i32, i32
  }
  func.func @transform_7(%arg0: i32, %arg1: i32) -> (i32, i32, i32) {
    %c0_i32 = arith.constant 0 : i32
    %c0_i32_0 = arith.constant 0 : i32
    %c0_i32_1 = arith.constant 0 : i32
    return %arg0, %c0_i32, %c0_i32_0 : i32, i32, i32
  }
}

</mosaic_0001>

<llo_original>
// kernel: _forward.4
$region0: #{_forward.4}
  #allocation0 [shape = 'u32[]', space=smem, size = 0x4, offset = 0x4, fixed_abs, tag = 'smem constant byte address 0x4 - core index']
  #allocation1 [shape = 'u32[144,128]{1,0:T(1,128)}', space=vmem, size = 0x12000, scoped, tag = 'internal scratch']
  %s0 = inlined_call_operand.vmem [shape: f32[2,16,16,128], index: 0, kind: input, shape index: {}]
  %s1 = inlined_call_operand.vmem [shape: f32[2,1,128], index: 1, kind: output, shape index: {0}]
  %s2 = inlined_call_operand.vmem [shape: f32[2,1,128], index: 2, kind: output, shape index: {1}]
  %3 = xla_tuple %s1, %s2
  %s4 = sld [smem:[#allocation0]]
  $region45: #{_forward.4} parent=0
    _
  %s6 = ssub.s32 1, %s4
  %s7 = scalar_select 0, %s6, %s4
  loop: start=0, step=1, limit=4
  $region2: #{_forward.4} parent=0 // loop_pre_header
    _
  $region3: #{_forward.4} parent=0 // loop_header
    %s9 = sphi 0, %s13
    %p10 = scmp.ge.s32.totalorder %s9, 4
    %s19 = sphi 0, %s21
    %s22 = sphi 0, %s19
    %s23 = sphi 0, %s22
    %s39 = sphi 0, %s23
    %s45 = sphi 0, %s47
    %s48 = sphi 0, %s45
    %s49 = sphi 0, %s48
    %s65 = sphi 0, %s49
    %s71 = sphi 0, %s73
    %s74 = sphi 0, %s71
    %s75 = sphi 0, %s74
    %s91 = sphi 0, %s75
  $region4: #{_forward.4} parent=0 // loop_header_branch
    %12 = sbr.rel (%p10) target = $region8
  $region5: #{_forward.4} parent=0 // loop_body
    %s14 = ssub.s32 %s9, 1
    %s15 = ssub.s32 %s9, 2
    %s16 = sadd.s32 %s9, 1
    %s17 = ssub.s32 %s9, %s16
    %p18 = scmp.eq.s32.totalorder %s17, 0
    %s20 = sadd.s32 %s19, 1
    %s21 = scalar_select %p18, %s19, %s20
    %p24 = pneg %p18
    %p25 = scmp.eq.s32.totalorder %s9, 1
    %p26 = por %p24, %p25
    %p27 = scmp.ne.s32.totalorder %s19, %s22
    %p28 = scmp.eq.s32.totalorder %s9, 0
    %p29 = por %p27, %p28
    %p30 = scmp.ne.s32.totalorder %s19, %s22
    %p31 = scmp.eq.s32.totalorder %s14, 1
    %p32 = por %p30, %p31
    %p33 = scmp.ne.s32.totalorder %s22, %s23
    %p34 = scmp.eq.s32.totalorder %s14, 0
    %p35 = por %p33, %p34
    %p36 = scmp.ne.s32.totalorder %s22, %s23
    %p37 = scmp.eq.s32.totalorder %s15, 1
    %p38 = por %p36, %p37
    %p40 = scmp.ne.s32.totalorder %s23, %s39
    %p41 = scmp.eq.s32.totalorder %s15, 0
    %p42 = por %p40, %p41
    %s43 = ssub.s32 %s9, %s16
    %p44 = scmp.eq.s32.totalorder %s43, 0
    %s46 = sadd.s32 %s45, 1
    %s47 = scalar_select %p44, %s45, %s46
    %p50 = pneg %p44
    %p51 = scmp.eq.s32.totalorder %s9, 1
    %p52 = por %p50, %p51
    %p53 = scmp.ne.s32.totalorder %s45, %s48
    %p54 = scmp.eq.s32.totalorder %s9, 0
    %p55 = por %p53, %p54
    %p56 = scmp.ne.s32.totalorder %s45, %s48
    %p57 = scmp.eq.s32.totalorder %s14, 1
    %p58 = por %p56, %p57
    %p59 = scmp.ne.s32.totalorder %s48, %s49
    %p60 = scmp.eq.s32.totalorder %s14, 0
    %p61 = por %p59, %p60
    %p62 = scmp.ne.s32.totalorder %s48, %s49
    %p63 = scmp.eq.s32.totalorder %s15, 1
    %p64 = por %p62, %p63
    %p66 = scmp.ne.s32.totalorder %s49, %s65
    %p67 = scmp.eq.s32.totalorder %s15, 0
    %p68 = por %p66, %p67
    %s69 = ssub.s32 %s9, %s16
    %p70 = scmp.eq.s32.totalorder %s69, 0
    %s72 = sadd.s32 %s71, 1
    %s73 = scalar_select %p70, %s71, %s72
    %p76 = pneg %p70
    %p77 = scmp.eq.s32.totalorder %s9, 1
    %p78 = por %p76, %p77
    %p79 = scmp.ne.s32.totalorder %s71, %s74
    %p80 = scmp.eq.s32.totalorder %s9, 0
    %p81 = por %p79, %p80
    %p82 = scmp.ne.s32.totalorder %s71, %s74
    %p83 = scmp.eq.s32.totalorder %s14, 1
    %p84 = por %p82, %p83
    %p85 = scmp.ne.s32.totalorder %s74, %s75
    %p86 = scmp.eq.s32.totalorder %s14, 0
    %p87 = por %p85, %p86
    %p88 = scmp.ne.s32.totalorder %s74, %s75
    %p89 = scmp.eq.s32.totalorder %s15, 1
    %p90 = por %p88, %p89
    %p92 = scmp.ne.s32.totalorder %s75, %s91
    %p93 = scmp.eq.s32.totalorder %s15, 0
    %p94 = por %p92, %p93
    %p95 = scmp.le.s32.totalorder 1, %s9
    %p96 = scmp.lt.s32.totalorder %s9, 3
    %p97 = pnand %p95, %p96
    %p98 = pneg %p97
    // Predicated region
    $region9: #{_forward.4} parent=5 // pred_check
      _
    $region10: #{_forward.4} parent=5 // pred_check_branch
      %100 = sbr.rel (%p97) target = $region12
    $region11: #{_forward.4} parent=5 // pred_region
      %s101 = ssub.s32 %s9, 1
    $region12: #{_forward.4} parent=5 // pred_fallthru
      _
    %p102 = scmp.lt.s32.totalorder %s9, 2
    // Predicated region
    $region13: #{_forward.4} parent=5 // pred_check
      %p103 = pneg %p102
    $region14: #{_forward.4} parent=5 // pred_check_branch
      %105 = sbr.rel (%p103) target = $region16
    $region15: #{_forward.4} parent=5 // pred_region
      // Predicated region
      $region17: #{_forward.4} parent=15 // pred_check
        %p106 = pneg %p29
      $region18: #{_forward.4} parent=15 // pred_check_branch
        %108 = sbr.rel (%p106) target = $region20
      $region19: #{_forward.4} parent=15 // pred_region
        %p109 = scmp.lt.s32.totalorder %s9, 1
        %s110 = scalar_select %p109, %s9, 1
        %s111 = smul.addr %s110, 32
        %s112 = smul.addr %s111, 8
        %s113 = scalar_lea.vmem %s0, %s112
      $region20: #{_forward.4} parent=15 // pred_fallthru
        _
    $region16: #{_forward.4} parent=5 // pred_fallthru
      _
    %p114 = scmp.le.s32.totalorder 1, %s9
    %p115 = scmp.lt.s32.totalorder %s9, 3
    %p116 = pnand %p114, %p115
    %p117 = pneg %p116
    // Predicated region
    $region21: #{_forward.4} parent=5 // pred_check
      _
    $region22: #{_forward.4} parent=5 // pred_check_branch
      %119 = sbr.rel (%p116) target = $region24
    $region23: #{_forward.4} parent=5 // pred_region
      %s120 = ssub.s32 %s9, 1
      %p121 = scmp.lt.s32.totalorder %s14, 1
      %s122 = scalar_select %p121, %s14, 1
      %s123 = smul.addr %s122, 32
      %s124 = smul.addr %s123, 8
      %s125 = scalar_lea.vmem %s0, %s124
      %p126 = pneg %p35
      %p127 = pneg %p32
      %p128 = pneg %p61
      %p129 = pneg %p58
      %p130 = scmp.lt.s32.totalorder %s14, 1
      %s131 = scalar_select %p130, %s14, 1
      %s132 = scalar_lea.vmem %s1, %s131
      %p133 = pneg %p87
      %p134 = pneg %p84
      %p135 = scmp.lt.s32.totalorder %s14, 1
      %s136 = scalar_select %p135, %s14, 1
      %s137 = scalar_lea.vmem %s2, %s136
      %p138 = scmp.lt.s32.totalorder %s14, 1
      %s139 = scalar_select %p138, %s14, 1
      %s140 = smul.addr %s139, 32
      %s141 = smul.addr %s140, 8
      %s142 = scalar_lea.vmem %s0, %s141
      %p143 = scmp.lt.s32.totalorder %s14, 1
      %s144 = scalar_select %p143, %s14, 1
      %s145 = scalar_lea.vmem %s1, %s144
      %p146 = scmp.lt.s32.totalorder %s14, 1
      %s147 = scalar_select %p146, %s14, 1
      %s148 = scalar_lea.vmem %s2, %s147
      %v149 = vld [vmem:[%s142] sm:$0xff]
      %v150 = vld [vmem:[%s142 + $0x8] sm:$0xff]
      %v151 = vld [vmem:[%s142 + $0x10] sm:$0xff]
      %v152 = vld [vmem:[%s142 + $0x18] sm:$0xff]
      %v153 = vld [vmem:[%s142 + $0x20] sm:$0xff]
      %v154 = vld [vmem:[%s142 + $0x28] sm:$0xff]
      %v155 = vld [vmem:[%s142 + $0x30] sm:$0xff]
      %v156 = vld [vmem:[%s142 + $0x38] sm:$0xff]
      %v157 = vld [vmem:[%s142 + $0x40] sm:$0xff]
      %v158 = vld [vmem:[%s142 + $0x48] sm:$0xff]
      %v159 = vld [vmem:[%s142 + $0x50] sm:$0xff]
      %v160 = vld [vmem:[%s142 + $0x58] sm:$0xff]
      %v161 = vld [vmem:[%s142 + $0x60] sm:$0xff]
      %v162 = vld [vmem:[%s142 + $0x68] sm:$0xff]
      %v163 = vld [vmem:[%s142 + $0x70] sm:$0xff]
      %v164 = vld [vmem:[%s142 + $0x78] sm:$0xff]
      %v165 = vld [vmem:[%s142 + $0x80] sm:$0xff]
      %v166 = vld [vmem:[%s142 + $0x88] sm:$0xff]
      %v167 = vld [vmem:[%s142 + $0x90] sm:$0xff]
      %v168 = vld [vmem:[%s142 + $0x98] sm:$0xff]
      %v169 = vld [vmem:[%s142 + $0xa0] sm:$0xff]
      %v170 = vld [vmem:[%s142 + $0xa8] sm:$0xff]
      %v171 = vld [vmem:[%s142 + $0xb0] sm:$0xff]
      %v172 = vld [vmem:[%s142 + $0xb8] sm:$0xff]
      %v173 = vld [vmem:[%s142 + $0xc0] sm:$0xff]
      %v174 = vld [vmem:[%s142 + $0xc8] sm:$0xff]
      %v175 = vld [vmem:[%s142 + $0xd0] sm:$0xff]
      %v176 = vld [vmem:[%s142 + $0xd8] sm:$0xff]
      %v177 = vld [vmem:[%s142 + $0xe0] sm:$0xff]
      %v178 = vld [vmem:[%s142 + $0xe8] sm:$0xff]
      %v179 = vld [vmem:[%s142 + $0xf0] sm:$0xff]
      %v180 = vld [vmem:[%s142 + $0xf8] sm:$0xff]
      %v181 = vadd.f32 %v149, %v150
      %v182 = vadd.f32 %v181, %v151
      %v183 = vadd.f32 %v182, %v152
      %v184 = vadd.f32 %v183, %v153
      %v185 = vadd.f32 %v184, %v154
      %v186 = vadd.f32 %v185, %v155
      %v187 = vadd.f32 %v186, %v156
      %v188 = vadd.f32 %v187, %v157
      %v189 = vadd.f32 %v188, %v158
      %v190 = vadd.f32 %v189, %v159
      %v191 = vadd.f32 %v190, %v160
      %v192 = vadd.f32 %v191, %v161
      %v193 = vadd.f32 %v192, %v162
      %v194 = vadd.f32 %v193, %v163
      %v195 = vadd.f32 %v194, %v164
      %v196 = vadd.f32 %v195, %v165
      %v197 = vadd.f32 %v196, %v166
      %v198 = vadd.f32 %v197, %v167
      %v199 = vadd.f32 %v198, %v168
      %v200 = vadd.f32 %v199, %v169
      %v201 = vadd.f32 %v200, %v170
      %v202 = vadd.f32 %v201, %v171
      %v203 = vadd.f32 %v202, %v172
      %v204 = vadd.f32 %v203, %v173
      %v205 = vadd.f32 %v204, %v174
      %v206 = vadd.f32 %v205, %v175
      %v207 = vadd.f32 %v206, %v176
      %v208 = vadd.f32 %v207, %v177
      %v209 = vadd.f32 %v208, %v178
      %v210 = vadd.f32 %v209, %v179
      %v211 = vadd.f32 %v210, %v180
      %v212 = vrot.slane %v211, 4
      %v213 = vadd.f32 %v211, %v212
      %v214 = vrot.slane %v213, 2
      %v215 = vadd.f32 %v213, %v214
      %v216 = vrot.slane %v215, 1
      %v217 = vadd.f32 %v215, %v216
      %218 = vst [vmem:[%s145] sm:$0x1] %v217
      %v219 = vmul.f32 %v149, %v149
      %v220 = vmul.f32 %v150, %v150
      %v221 = vmul.f32 %v151, %v151
      %v222 = vmul.f32 %v152, %v152
      %v223 = vmul.f32 %v153, %v153
      %v224 = vmul.f32 %v154, %v154
      %v225 = vmul.f32 %v155, %v155
      %v226 = vmul.f32 %v156, %v156
      %v227 = vmul.f32 %v157, %v157
      %v228 = vmul.f32 %v158, %v158
      %v229 = vmul.f32 %v159, %v159
      %v230 = vmul.f32 %v160, %v160
      %v231 = vmul.f32 %v161, %v161
      %v232 = vmul.f32 %v162, %v162
      %v233 = vmul.f32 %v163, %v163
      %v234 = vmul.f32 %v164, %v164
      %v235 = vmul.f32 %v165, %v165
      %v236 = vmul.f32 %v166, %v166
      %v237 = vmul.f32 %v167, %v167
      %v238 = vmul.f32 %v168, %v168
      %v239 = vmul.f32 %v169, %v169
      %v240 = vmul.f32 %v170, %v170
      %v241 = vmul.f32 %v171, %v171
      %v242 = vmul.f32 %v172, %v172
      %v243 = vmul.f32 %v173, %v173
      %v244 = vmul.f32 %v174, %v174
      %v245 = vmul.f32 %v175, %v175
      %v246 = vmul.f32 %v176, %v176
      %v247 = vmul.f32 %v177, %v177
      %v248 = vmul.f32 %v178, %v178
      %v249 = vmul.f32 %v179, %v179
      %v250 = vmul.f32 %v180, %v180
      %v251 = vadd.f32 %v219, %v220
      %v252 = vadd.f32 %v251, %v221
      %v253 = vadd.f32 %v252, %v222
      %v254 = vadd.f32 %v253, %v223
      %v255 = vadd.f32 %v254, %v224
      %v256 = vadd.f32 %v255, %v225
      %v257 = vadd.f32 %v256, %v226
      %v258 = vadd.f32 %v257, %v227
      %v259 = vadd.f32 %v258, %v228
      %v260 = vadd.f32 %v259, %v229
      %v261 = vadd.f32 %v260, %v230
      %v262 = vadd.f32 %v261, %v231
      %v263 = vadd.f32 %v262, %v232
      %v264 = vadd.f32 %v263, %v233
      %v265 = vadd.f32 %v264, %v234
      %v266 = vadd.f32 %v265, %v235
      %v267 = vadd.f32 %v266, %v236
      %v268 = vadd.f32 %v267, %v237
      %v269 = vadd.f32 %v268, %v238
      %v270 = vadd.f32 %v269, %v239
      %v271 = vadd.f32 %v270, %v240
      %v272 = vadd.f32 %v271, %v241
      %v273 = vadd.f32 %v272, %v242
      %v274 = vadd.f32 %v273, %v243
      %v275 = vadd.f32 %v274, %v244
      %v276 = vadd.f32 %v275, %v245
      %v277 = vadd.f32 %v276, %v246
      %v278 = vadd.f32 %v277, %v247
      %v279 = vadd.f32 %v278, %v248
      %v280 = vadd.f32 %v279, %v249
      %v281 = vadd.f32 %v280, %v250
      %v282 = vrot.slane %v281, 4
      %v283 = vadd.f32 %v281, %v282
      %v284 = vrot.slane %v283, 2
      %v285 = vadd.f32 %v283, %v284
      %v286 = vrot.slane %v285, 1
      %v287 = vadd.f32 %v285, %v286
      %288 = vst [vmem:[%s148] sm:$0x1] %v287
      %p289 = scmp.lt.s32.totalorder %s14, 1
      %s290 = scalar_select %p289, %s14, 1
      %s291 = scalar_lea.vmem %s1, %s290
      %p292 = scmp.lt.s32.totalorder %s14, 1
      %s293 = scalar_select %p292, %s14, 1
      %s294 = scalar_lea.vmem %s2, %s293
      // Predicated region
      $region25: #{_forward.4} parent=23 // pred_check
        %p295 = pneg %p58
      $region26: #{_forward.4} parent=23 // pred_check_branch
        %297 = sbr.rel (%p295) target = $region28
      $region27: #{_forward.4} parent=23 // pred_region
        _
      $region28: #{_forward.4} parent=23 // pred_fallthru
        _
      // Predicated region
      $region29: #{_forward.4} parent=23 // pred_check
        %p298 = pneg %p84
      $region30: #{_forward.4} parent=23 // pred_check_branch
        %300 = sbr.rel (%p298) target = $region32
      $region31: #{_forward.4} parent=23 // pred_region
        _
      $region32: #{_forward.4} parent=23 // pred_fallthru
        _
    $region24: #{_forward.4} parent=5 // pred_fallthru
      _
    %p301 = scmp.le.s32.totalorder 2, %s9
    // Predicated region
    $region33: #{_forward.4} parent=5 // pred_check
      %p302 = pneg %p301
    $region34: #{_forward.4} parent=5 // pred_check_branch
      %304 = sbr.rel (%p302) target = $region36
    $region35: #{_forward.4} parent=5 // pred_region
      %s305 = ssub.s32 %s9, 2
      // Predicated region
      $region37: #{_forward.4} parent=35 // pred_check
        %p306 = pneg %p64
      $region38: #{_forward.4} parent=35 // pred_check_branch
        %308 = sbr.rel (%p306) target = $region40
      $region39: #{_forward.4} parent=35 // pred_region
        %p309 = scmp.lt.s32.totalorder %s15, 1
        %s310 = scalar_select %p309, %s15, 1
        %s311 = scalar_lea.vmem %s1, %s310
      $region40: #{_forward.4} parent=35 // pred_fallthru
        _
      // Predicated region
      $region41: #{_forward.4} parent=35 // pred_check
        %p312 = pneg %p90
      $region42: #{_forward.4} parent=35 // pred_check_branch
        %314 = sbr.rel (%p312) target = $region44
      $region43: #{_forward.4} parent=35 // pred_region
        %p315 = scmp.lt.s32.totalorder %s15, 1
        %s316 = scalar_select %p315, %s15, 1
        %s317 = scalar_lea.vmem %s2, %s316
      $region44: #{_forward.4} parent=35 // pred_fallthru
        _
    $region36: #{_forward.4} parent=5 // pred_fallthru
      _
  $region6: #{_forward.4} parent=0 // loop_footer
    %s13 = sadd.s32 1, %s9
  $region7: #{_forward.4} parent=0 // loop_footer_branch
    %8 = sbr.rel target = $region3
  $region8: #{_forward.4} parent=0 // loop_exit
    _

// kernel: _forward.5
$region0: #{_forward.5}
  #allocation0 [shape = 'u32[]', space=smem, size = 0x4, offset = 0x4, fixed_abs, tag = 'smem constant byte address 0x4 - core index']
  #allocation1 [shape = 'u32[144,128]{1,0:T(1,128)}', space=vmem, size = 0x12000, scoped, tag = 'internal scratch']
  #allocation2 [shape = 'f32[256,128]{1,0:T(8,128)}', space=vmem, size = 0x20000, scoped, tag = 'scratch operand']
  #allocation3 [shape = 'bf16[18,48,128]{2,1,0:T(8,128)(2,1)}', space=vmem, size = 0x36000, scoped, tag = 'scratch operand']
  %s0 = inlined_call_operand.vmem [shape: f32[2,16,16,128], index: 0, kind: input, shape index: {}, may-alias: {0,5}]
  %s1 = inlined_call_operand.vmem [shape: f32[1,128], index: 1, kind: input, shape index: {}]
  %s2 = inlined_call_operand.vmem [shape: f32[1,128], index: 2, kind: input, shape index: {}]
  %s3 = inlined_call_operand.vmem [shape: bf16[1,1152,128], index: 3, kind: input, shape index: {}]
  %s4 = inlined_call_operand.vmem [shape: f32[1,128], index: 4, kind: input, shape index: {}]
  %s5 = inlined_call_operand.vmem [shape: f32[2,16,16,128], index: 5, kind: output, shape index: {0}, may-alias: {0,5}]
  %s6 = inlined_call_operand.vmem [shape: f32[2,1,128], index: 6, kind: output, shape index: {1}]
  %s7 = inlined_call_operand.vmem [shape: f32[2,1,128], index: 7, kind: output, shape index: {2}]
  %8 = xla_tuple %s5, %s6, %s7
  %s9 = sld [smem:[#allocation0]]
  $region77: #{_forward.5} parent=0
    _
  %s11 = ssub.s32 1, %s9
  %s12 = scalar_select 0, %s11, %s9
  loop: start=0, step=1, limit=4
  $region2: #{_forward.5} parent=0 // loop_pre_header
    _
  $region3: #{_forward.5} parent=0 // loop_header
    %s14 = sphi 0, %s18
    %p15 = scmp.ge.s32.totalorder %s14, 4
    %s21 = sphi 0, %s33
    %s22 = sphi 0, %s29
    %s23 = sphi 0, %s21
    %s24 = sphi 0, %s22
    %s25 = sphi 0, %s23
    %s26 = sphi 0, %s24
    %s38 = sphi 0, %s40
    %s41 = sphi 0, %s38
    %s42 = sphi 0, %s41
    %s58 = sphi 0, %s42
    %s64 = sphi 0, %s66
    %s67 = sphi 0, %s64
    %s68 = sphi 0, %s67
    %s84 = sphi 0, %s68
    %s90 = sphi 0, %s92
    %s93 = sphi 0, %s90
    %s94 = sphi 0, %s93
    %s110 = sphi 0, %s94
    %s116 = sphi 0, %s118
    %s119 = sphi 0, %s116
    %s120 = sphi 0, %s119
    %s136 = sphi 0, %s120
    %s140 = sphi 0, %s140
    %s142 = sphi 0, %s140
    %s143 = sphi 0, %s142
    %s157 = sphi 0, %s143
    %s163 = sphi 0, %s165
    %s166 = sphi 0, %s163
    %s167 = sphi 0, %s166
    %s183 = sphi 0, %s167
    %s189 = sphi 0, %s191
    %s192 = sphi 0, %s189
    %s193 = sphi 0, %s192
    %s209 = sphi 0, %s193
    %s215 = sphi 0, %s217
    %s218 = sphi 0, %s215
    %s219 = sphi 0, %s218
    %s235 = sphi 0, %s219
  $region4: #{_forward.5} parent=0 // loop_header_branch
    %17 = sbr.rel (%p15) target = $region8
  $region5: #{_forward.5} parent=0 // loop_body
    %s19 = ssub.s32 %s14, 1
    %s20 = ssub.s32 %s14, 2
    %s27 = sadd.s32 1, %s22
    %p28 = scmp.ge.s32.totalorder %s27, 1
    %s29 = scalar_select %p28, 0, %s27
    %s30 = sadd.s32 1, %s21
    %s31 = scalar_select %p28, %s30, %s21
    %p32 = scmp.ge.s32.totalorder %s31, 2
    %s33 = scalar_select %p32, 0, %s31
    %s34 = ssub.s32 %s21, %s33
    %s35 = ssub.s32 %s22, %s29
    %s36 = sor.u32 %s34, %s35
    %p37 = scmp.eq.s32.totalorder %s36, 0
    %s39 = sadd.s32 %s38, 1
    %s40 = scalar_select %p37, %s38, %s39
    %p43 = pneg %p37
    %p44 = scmp.eq.s32.totalorder %s14, 1
    %p45 = por %p43, %p44
    %p46 = scmp.ne.s32.totalorder %s38, %s41
    %p47 = scmp.eq.s32.totalorder %s14, 0
    %p48 = por %p46, %p47
    %p49 = scmp.ne.s32.totalorder %s38, %s41
    %p50 = scmp.eq.s32.totalorder %s19, 1
    %p51 = por %p49, %p50
    %p52 = scmp.ne.s32.totalorder %s41, %s42
    %p53 = scmp.eq.s32.totalorder %s19, 0
    %p54 = por %p52, %p53
    %p55 = scmp.ne.s32.totalorder %s41, %s42
    %p56 = scmp.eq.s32.totalorder %s20, 1
    %p57 = por %p55, %p56
    %p59 = scmp.ne.s32.totalorder %s42, %s58
    %p60 = scmp.eq.s32.totalorder %s20, 0
    %p61 = por %p59, %p60
    %s62 = ssub.s32 %s22, %s29
    %p63 = scmp.eq.s32.totalorder %s62, 0
    %s65 = sadd.s32 %s64, 1
    %s66 = scalar_select %p63, %s64, %s65
    %p69 = pneg %p63
    %p70 = scmp.eq.s32.totalorder %s14, 1
    %p71 = por %p69, %p70
    %p72 = scmp.ne.s32.totalorder %s64, %s67
    %p73 = scmp.eq.s32.totalorder %s14, 0
    %p74 = por %p72, %p73
    %p75 = scmp.ne.s32.totalorder %s64, %s67
    %p76 = scmp.eq.s32.totalorder %s19, 1
    %p77 = por %p75, %p76
    %p78 = scmp.ne.s32.totalorder %s67, %s68
    %p79 = scmp.eq.s32.totalorder %s19, 0
    %p80 = por %p78, %p79
    %p81 = scmp.ne.s32.totalorder %s67, %s68
    %p82 = scmp.eq.s32.totalorder %s20, 1
    %p83 = por %p81, %p82
    %p85 = scmp.ne.s32.totalorder %s68, %s84
    %p86 = scmp.eq.s32.totalorder %s20, 0
    %p87 = por %p85, %p86
    %s88 = ssub.s32 %s22, %s29
    %p89 = scmp.eq.s32.totalorder %s88, 0
    %s91 = sadd.s32 %s90, 1
    %s92 = scalar_select %p89, %s90, %s91
    %p95 = pneg %p89
    %p96 = scmp.eq.s32.totalorder %s14, 1
    %p97 = por %p95, %p96
    %p98 = scmp.ne.s32.totalorder %s90, %s93
    %p99 = scmp.eq.s32.totalorder %s14, 0
    %p100 = por %p98, %p99
    %p101 = scmp.ne.s32.totalorder %s90, %s93
    %p102 = scmp.eq.s32.totalorder %s19, 1
    %p103 = por %p101, %p102
    %p104 = scmp.ne.s32.totalorder %s93, %s94
    %p105 = scmp.eq.s32.totalorder %s19, 0
    %p106 = por %p104, %p105
    %p107 = scmp.ne.s32.totalorder %s93, %s94
    %p108 = scmp.eq.s32.totalorder %s20, 1
    %p109 = por %p107, %p108
    %p111 = scmp.ne.s32.totalorder %s94, %s110
    %p112 = scmp.eq.s32.totalorder %s20, 0
    %p113 = por %p111, %p112
    %s114 = ssub.s32 %s22, %s29
    %p115 = scmp.eq.s32.totalorder %s114, 0
    %s117 = sadd.s32 %s116, 1
    %s118 = scalar_select %p115, %s116, %s117
    %p121 = pneg %p115
    %p122 = scmp.eq.s32.totalorder %s14, 1
    %p123 = por %p121, %p122
    %p124 = scmp.ne.s32.totalorder %s116, %s119
    %p125 = scmp.eq.s32.totalorder %s14, 0
    %p126 = por %p124, %p125
    %p127 = scmp.ne.s32.totalorder %s116, %s119
    %p128 = scmp.eq.s32.totalorder %s19, 1
    %p129 = por %p127, %p128
    %p130 = scmp.ne.s32.totalorder %s119, %s120
    %p131 = scmp.eq.s32.totalorder %s19, 0
    %p132 = por %p130, %p131
    %p133 = scmp.ne.s32.totalorder %s119, %s120
    %p134 = scmp.eq.s32.totalorder %s20, 1
    %p135 = por %p133, %p134
    %p137 = scmp.ne.s32.totalorder %s120, %s136
    %p138 = scmp.eq.s32.totalorder %s20, 0
    %p139 = por %p137, %p138
    %s141 = sadd.s32 %s140, 1
    %p144 = scmp.eq.s32.totalorder %s14, 1
    %p145 = scmp.ne.s32.totalorder %s140, %s142
    %p146 = scmp.eq.s32.totalorder %s14, 0
    %p147 = por %p145, %p146
    %p148 = scmp.ne.s32.totalorder %s140, %s142
    %p149 = scmp.eq.s32.totalorder %s19, 1
    %p150 = por %p148, %p149
    %p151 = scmp.ne.s32.totalorder %s142, %s143
    %p152 = scmp.eq.s32.totalorder %s19, 0
    %p153 = por %p151, %p152
    %p154 = scmp.ne.s32.totalorder %s142, %s143
    %p155 = scmp.eq.s32.totalorder %s20, 1
    %p156 = por %p154, %p155
    %p158 = scmp.ne.s32.totalorder %s143, %s157
    %p159 = scmp.eq.s32.totalorder %s20, 0
    %p160 = por %p158, %p159
    %s161 = ssub.s32 %s21, %s33
    %p162 = scmp.eq.s32.totalorder %s161, 0
    %s164 = sadd.s32 %s163, 1
    %s165 = scalar_select %p162, %s163, %s164
    %p168 = pneg %p162
    %p169 = scmp.eq.s32.totalorder %s14, 1
    %p170 = por %p168, %p169
    %p171 = scmp.ne.s32.totalorder %s163, %s166
    %p172 = scmp.eq.s32.totalorder %s14, 0
    %p173 = por %p171, %p172
    %p174 = scmp.ne.s32.totalorder %s163, %s166
    %p175 = scmp.eq.s32.totalorder %s19, 1
    %p176 = por %p174, %p175
    %p177 = scmp.ne.s32.totalorder %s166, %s167
    %p178 = scmp.eq.s32.totalorder %s19, 0
    %p179 = por %p177, %p178
    %p180 = scmp.ne.s32.totalorder %s166, %s167
    %p181 = scmp.eq.s32.totalorder %s20, 1
    %p182 = por %p180, %p181
    %p184 = scmp.ne.s32.totalorder %s167, %s183
    %p185 = scmp.eq.s32.totalorder %s20, 0
    %p186 = por %p184, %p185
    %s187 = ssub.s32 %s21, %s33
    %p188 = scmp.eq.s32.totalorder %s187, 0
    %s190 = sadd.s32 %s189, 1
    %s191 = scalar_select %p188, %s189, %s190
    %p194 = pneg %p188
    %p195 = scmp.eq.s32.totalorder %s14, 1
    %p196 = por %p194, %p195
    %p197 = scmp.ne.s32.totalorder %s189, %s192
    %p198 = scmp.eq.s32.totalorder %s14, 0
    %p199 = por %p197, %p198
    %p200 = scmp.ne.s32.totalorder %s189, %s192
    %p201 = scmp.eq.s32.totalorder %s19, 1
    %p202 = por %p200, %p201
    %p203 = scmp.ne.s32.totalorder %s192, %s193
    %p204 = scmp.eq.s32.totalorder %s19, 0
    %p205 = por %p203, %p204
    %p206 = scmp.ne.s32.totalorder %s192, %s193
    %p207 = scmp.eq.s32.totalorder %s20, 1
    %p208 = por %p206, %p207
    %p210 = scmp.ne.s32.totalorder %s193, %s209
    %p211 = scmp.eq.s32.totalorder %s20, 0
    %p212 = por %p210, %p211
    %s213 = ssub.s32 %s21, %s33
    %p214 = scmp.eq.s32.totalorder %s213, 0
    %s216 = sadd.s32 %s215, 1
    %s217 = scalar_select %p214, %s215, %s216
    %p220 = pneg %p214
    %p221 = scmp.eq.s32.totalorder %s14, 1
    %p222 = por %p220, %p221
    %p223 = scmp.ne.s32.totalorder %s215, %s218
    %p224 = scmp.eq.s32.totalorder %s14, 0
    %p225 = por %p223, %p224
    %p226 = scmp.ne.s32.totalorder %s215, %s218
    %p227 = scmp.eq.s32.totalorder %s19, 1
    %p228 = por %p226, %p227
    %p229 = scmp.ne.s32.totalorder %s218, %s219
    %p230 = scmp.eq.s32.totalorder %s19, 0
    %p231 = por %p229, %p230
    %p232 = scmp.ne.s32.totalorder %s218, %s219
    %p233 = scmp.eq.s32.totalorder %s20, 1
    %p234 = por %p232, %p233
    %p236 = scmp.ne.s32.totalorder %s219, %s235
    %p237 = scmp.eq.s32.totalorder %s20, 0
    %p238 = por %p236, %p237
    %p239 = scmp.le.s32.totalorder 1, %s14
    %p240 = scmp.lt.s32.totalorder %s14, 3
    %p241 = pnand %p239, %p240
    %p242 = pneg %p241
    // Predicated region
    $region9: #{_forward.5} parent=5 // pred_check
      _
    $region10: #{_forward.5} parent=5 // pred_check_branch
      %244 = sbr.rel (%p241) target = $region12
    $region11: #{_forward.5} parent=5 // pred_region
      %s245 = ssub.s32 %s14, 1
      // Predicated region
      $region13: #{_forward.5} parent=11 // pred_check
        %p246 = pneg %p80
      $region14: #{_forward.5} parent=11 // pred_check_branch
        %248 = sbr.rel (%p246) target = $region16
      $region15: #{_forward.5} parent=11 // pred_region
        %p249 = scmp.lt.s32.totalorder %s24, 0
        %s250 = scalar_select %p249, %s24, 0
        %s251 = scalar_lea.vmem %s1, %s250
      $region16: #{_forward.5} parent=11 // pred_fallthru
        _
      // Predicated region
      $region17: #{_forward.5} parent=11 // pred_check
        %p252 = pneg %p106
      $region18: #{_forward.5} parent=11 // pred_check_branch
        %254 = sbr.rel (%p252) target = $region20
      $region19: #{_forward.5} parent=11 // pred_region
        %p255 = scmp.lt.s32.totalorder %s24, 0
        %s256 = scalar_select %p255, %s24, 0
        %s257 = scalar_lea.vmem %s2, %s256
      $region20: #{_forward.5} parent=11 // pred_fallthru
        _
      // Predicated region
      $region21: #{_forward.5} parent=11 // pred_check
        %p258 = pneg %p132
      $region22: #{_forward.5} parent=11 // pred_check_branch
        %260 = sbr.rel (%p258) target = $region24
      $region23: #{_forward.5} parent=11 // pred_region
        %p261 = scmp.lt.s32.totalorder %s24, 0
        %s262 = scalar_select %p261, %s24, 0
        %s263 = smul.addr %s262, 144
        %s264 = smul.addr %s263, 4
        %s265 = scalar_lea.vmem %s3, %s264
      $region24: #{_forward.5} parent=11 // pred_fallthru
        _
      // Predicated region
      $region25: #{_forward.5} parent=11 // pred_check
        %p266 = pneg %p153
      $region26: #{_forward.5} parent=11 // pred_check_branch
        %268 = sbr.rel (%p266) target = $region28
      $region27: #{_forward.5} parent=11 // pred_region
        _
      $region28: #{_forward.5} parent=11 // pred_fallthru
        _
    $region12: #{_forward.5} parent=5 // pred_fallthru
      _
    %p269 = scmp.lt.s32.totalorder %s14, 2
    // Predicated region
    $region29: #{_forward.5} parent=5 // pred_check
      %p270 = pneg %p269
    $region30: #{_forward.5} parent=5 // pred_check_branch
      %272 = sbr.rel (%p270) target = $region32
    $region31: #{_forward.5} parent=5 // pred_region
      // Predicated region
      $region33: #{_forward.5} parent=31 // pred_check
        %p273 = pneg %p48
      $region34: #{_forward.5} parent=31 // pred_check_branch
        %275 = sbr.rel (%p273) target = $region36
      $region35: #{_forward.5} parent=31 // pred_region
        %p276 = scmp.lt.s32.totalorder %s21, 1
        %s277 = scalar_select %p276, %s21, 1
        %p278 = scmp.lt.s32.totalorder %s22, 0
        %s279 = scalar_select %p278, %s22, 0
        %s280 = smul.addr %s277, 32
        %s281 = sadd.s32 %s279, %s280
        %s282 = smul.addr %s281, 8
        %s283 = scalar_lea.vmem %s0, %s282
      $region36: #{_forward.5} parent=31 // pred_fallthru
        _
    $region32: #{_forward.5} parent=5 // pred_fallthru
      _
    %p284 = scmp.le.s32.totalorder 1, %s14
    %p285 = scmp.lt.s32.totalorder %s14, 3
    %p286 = pnand %p284, %p285
    %p287 = pneg %p286
    // Predicated region
    $region37: #{_forward.5} parent=5 // pred_check
      _
    $region38: #{_forward.5} parent=5 // pred_check_branch
      %289 = sbr.rel (%p286) target = $region40
    $region39: #{_forward.5} parent=5 // pred_region
      %s290 = ssub.s32 %s14, 1
      %p291 = scmp.lt.s32.totalorder %s23, 1
      %s292 = scalar_select %p291, %s23, 1
      %p293 = scmp.lt.s32.totalorder %s24, 0
      %s294 = scalar_select %p293, %s24, 0
      %s295 = smul.addr %s292, 32
      %s296 = sadd.s32 %s294, %s295
      %s297 = smul.addr %s296, 8
      %s298 = scalar_lea.vmem %s0, %s297
      %p299 = pneg %p54
      %p300 = pneg %p51
      %p301 = scmp.lt.s32.totalorder %s24, 0
      %s302 = scalar_select %p301, %s24, 0
      %s303 = scalar_lea.vmem %s1, %s302
      %p304 = pneg %p80
      %p305 = pneg %p77
      %p306 = scmp.lt.s32.totalorder %s24, 0
      %s307 = scalar_select %p306, %s24, 0
      %s308 = scalar_lea.vmem %s2, %s307
      %p309 = pneg %p106
      %p310 = pneg %p103
      %p311 = scmp.lt.s32.totalorder %s24, 0
      %s312 = scalar_select %p311, %s24, 0
      %s313 = smul.addr %s312, 144
      %s314 = smul.addr %s313, 4
      %s315 = scalar_lea.vmem %s3, %s314
      %p316 = pneg %p132
      %p317 = pneg %p129
      %p318 = pneg %p153
      %p319 = pneg %p150
      %p320 = pneg %p179
      %p321 = pneg %p176
      %p322 = scmp.lt.s32.totalorder %s23, 1
      %s323 = scalar_select %p322, %s23, 1
      %s324 = smul.addr %s323, 32
      %s325 = smul.addr %s324, 8
      %s326 = scalar_lea.vmem %s5, %s325
      %p327 = pneg %p205
      %p328 = pneg %p202
      %p329 = scmp.lt.s32.totalorder %s23, 1
      %s330 = scalar_select %p329, %s23, 1
      %s331 = scalar_lea.vmem %s6, %s330
      %p332 = pneg %p231
      %p333 = pneg %p228
      %p334 = scmp.lt.s32.totalorder %s23, 1
      %s335 = scalar_select %p334, %s23, 1
      %s336 = scalar_lea.vmem %s7, %s335
      %p337 = scmp.lt.s32.totalorder %s23, 1
      %s338 = scalar_select %p337, %s23, 1
      %p339 = scmp.lt.s32.totalorder %s24, 0
      %s340 = scalar_select %p339, %s24, 0
      %s341 = smul.addr %s338, 32
      %s342 = sadd.s32 %s340, %s341
      %s343 = smul.addr %s342, 8
      %s344 = scalar_lea.vmem %s0, %s343
      %p345 = scmp.lt.s32.totalorder %s24, 0
      %s346 = scalar_select %p345, %s24, 0
      %s347 = scalar_lea.vmem %s1, %s346
      %p348 = scmp.lt.s32.totalorder %s24, 0
      %s349 = scalar_select %p348, %s24, 0
      %s350 = scalar_lea.vmem %s2, %s349
      %p351 = scmp.lt.s32.totalorder %s24, 0
      %s352 = scalar_select %p351, %s24, 0
      %s353 = smul.addr %s352, 144
      %s354 = smul.addr %s353, 4
      %s355 = scalar_lea.vmem %s3, %s354
      %p356 = scmp.lt.s32.totalorder %s23, 1
      %s357 = scalar_select %p356, %s23, 1
      %s358 = smul.addr %s357, 32
      %s359 = smul.addr %s358, 8
      %s360 = scalar_lea.vmem %s5, %s359
      %p361 = scmp.lt.s32.totalorder %s23, 1
      %s362 = scalar_select %p361, %s23, 1
      %s363 = scalar_lea.vmem %s6, %s362
      %p364 = scmp.lt.s32.totalorder %s23, 1
      %s365 = scalar_select %p364, %s23, 1
      %s366 = scalar_lea.vmem %s7, %s365
      %v368 = vld [vmem:[%s344] sm:$0xff]
      %v369 = vld [vmem:[%s344 + $0x8] sm:$0xff]
      %v370 = vld [vmem:[%s344 + $0x10] sm:$0xff]
      %v371 = vld [vmem:[%s344 + $0x18] sm:$0xff]
      %v372 = vld [vmem:[%s344 + $0x20] sm:$0xff]
      %v373 = vld [vmem:[%s344 + $0x28] sm:$0xff]
      %v374 = vld [vmem:[%s344 + $0x30] sm:$0xff]
      %v375 = vld [vmem:[%s344 + $0x38] sm:$0xff]
      %v376 = vld [vmem:[%s344 + $0x40] sm:$0xff]
      %v377 = vld [vmem:[%s344 + $0x48] sm:$0xff]
      %v378 = vld [vmem:[%s344 + $0x50] sm:$0xff]
      %v379 = vld [vmem:[%s344 + $0x58] sm:$0xff]
      %v380 = vld [vmem:[%s344 + $0x60] sm:$0xff]
      %v381 = vld [vmem:[%s344 + $0x68] sm:$0xff]
      %v382 = vld [vmem:[%s344 + $0x70] sm:$0xff]
      %v383 = vld [vmem:[%s344 + $0x78] sm:$0xff]
      %v384 = vld [vmem:[%s344 + $0x80] sm:$0xff]
      %v385 = vld [vmem:[%s344 + $0x88] sm:$0xff]
      %v386 = vld [vmem:[%s344 + $0x90] sm:$0xff]
      %v387 = vld [vmem:[%s344 + $0x98] sm:$0xff]
      %v388 = vld [vmem:[%s344 + $0xa0] sm:$0xff]
      %v389 = vld [vmem:[%s344 + $0xa8] sm:$0xff]
      %v390 = vld [vmem:[%s344 + $0xb0] sm:$0xff]
      %v391 = vld [vmem:[%s344 + $0xb8] sm:$0xff]
      %v392 = vld [vmem:[%s344 + $0xc0] sm:$0xff]
      %v393 = vld [vmem:[%s344 + $0xc8] sm:$0xff]
      %v394 = vld [vmem:[%s344 + $0xd0] sm:$0xff]
      %v395 = vld [vmem:[%s344 + $0xd8] sm:$0xff]
      %v396 = vld [vmem:[%s344 + $0xe0] sm:$0xff]
      %v397 = vld [vmem:[%s344 + $0xe8] sm:$0xff]
      %v398 = vld [vmem:[%s344 + $0xf0] sm:$0xff]
      %v399 = vld [vmem:[%s344 + $0xf8] sm:$0xff]
      %v400 = vld [vmem:[%s347] sm:$0x1]
      %v402 = vlaneseq
      %v403 = vshrl.u32 %v402, 7
      %v404 = vsub.s32 0, %v403
      %v405 = vrot.slane %v400, %v404
      %v407 = vmul.f32 %v368, %v405
      %v408 = vmul.f32 %v369, %v405
      %v409 = vmul.f32 %v370, %v405
      %v410 = vmul.f32 %v371, %v405
      %v411 = vmul.f32 %v372, %v405
      %v412 = vmul.f32 %v373, %v405
      %v413 = vmul.f32 %v374, %v405
      %v414 = vmul.f32 %v375, %v405
      %v415 = vmul.f32 %v376, %v405
      %v416 = vmul.f32 %v377, %v405
      %v417 = vmul.f32 %v378, %v405
      %v418 = vmul.f32 %v379, %v405
      %v419 = vmul.f32 %v380, %v405
      %v420 = vmul.f32 %v381, %v405
      %v421 = vmul.f32 %v382, %v405
      %v422 = vmul.f32 %v383, %v405
      %v423 = vmul.f32 %v384, %v405
      %v424 = vmul.f32 %v385, %v405
      %v425 = vmul.f32 %v386, %v405
      %v426 = vmul.f32 %v387, %v405
      %v427 = vmul.f32 %v388, %v405
      %v428 = vmul.f32 %v389, %v405
      %v429 = vmul.f32 %v390, %v405
      %v430 = vmul.f32 %v391, %v405
      %v431 = vmul.f32 %v392, %v405
      %v432 = vmul.f32 %v393, %v405
      %v433 = vmul.f32 %v394, %v405
      %v434 = vmul.f32 %v395, %v405
      %v435 = vmul.f32 %v396, %v405
      %v436 = vmul.f32 %v397, %v405
      %v437 = vmul.f32 %v398, %v405
      %v438 = vmul.f32 %v399, %v405
      %v439 = vld [vmem:[%s350] sm:$0x1]
      %v441 = vlaneseq
      %v442 = vshrl.u32 %v441, 7
      %v443 = vsub.s32 0, %v442
      %v444 = vrot.slane %v439, %v443
      %v446 = vadd.f32 %v407, %v444
      %v447 = vadd.f32 %v408, %v444
      %v448 = vadd.f32 %v409, %v444
      %v449 = vadd.f32 %v410, %v444
      %v450 = vadd.f32 %v411, %v444
      %v451 = vadd.f32 %v412, %v444
      %v452 = vadd.f32 %v413, %v444
      %v453 = vadd.f32 %v414, %v444
      %v454 = vadd.f32 %v415, %v444
      %v455 = vadd.f32 %v416, %v444
      %v456 = vadd.f32 %v417, %v444
      %v457 = vadd.f32 %v418, %v444
      %v458 = vadd.f32 %v419, %v444
      %v459 = vadd.f32 %v420, %v444
      %v460 = vadd.f32 %v421, %v444
      %v461 = vadd.f32 %v422, %v444
      %v462 = vadd.f32 %v423, %v444
      %v463 = vadd.f32 %v424, %v444
      %v464 = vadd.f32 %v425, %v444
      %v465 = vadd.f32 %v426, %v444
      %v466 = vadd.f32 %v427, %v444
      %v467 = vadd.f32 %v428, %v444
      %v468 = vadd.f32 %v429, %v444
      %v469 = vadd.f32 %v430, %v444
      %v470 = vadd.f32 %v431, %v444
      %v471 = vadd.f32 %v432, %v444
      %v472 = vadd.f32 %v433, %v444
      %v473 = vadd.f32 %v434, %v444
      %v474 = vadd.f32 %v435, %v444
      %v475 = vadd.f32 %v436, %v444
      %v476 = vadd.f32 %v437, %v444
      %v477 = vadd.f32 %v438, %v444
      %v478 = vmax.f32 %v446, 0.0
      %v479 = vmax.f32 %v447, 0.0
      %v480 = vmax.f32 %v448, 0.0
      %v481 = vmax.f32 %v449, 0.0
      %v482 = vmax.f32 %v450, 0.0
      %v483 = vmax.f32 %v451, 0.0
      %v484 = vmax.f32 %v452, 0.0
      %v485 = vmax.f32 %v453, 0.0
      %v486 = vmax.f32 %v454, 0.0
      %v487 = vmax.f32 %v455, 0.0
      %v488 = vmax.f32 %v456, 0.0
      %v489 = vmax.f32 %v457, 0.0
      %v490 = vmax.f32 %v458, 0.0
      %v491 = vmax.f32 %v459, 0.0
      %v492 = vmax.f32 %v460, 0.0
      %v493 = vmax.f32 %v461, 0.0
      %v494 = vmax.f32 %v462, 0.0
      %v495 = vmax.f32 %v463, 0.0
      %v496 = vmax.f32 %v464, 0.0
      %v497 = vmax.f32 %v465, 0.0
      %v498 = vmax.f32 %v466, 0.0
      %v499 = vmax.f32 %v467, 0.0
      %v500 = vmax.f32 %v468, 0.0
      %v501 = vmax.f32 %v469, 0.0
      %v502 = vmax.f32 %v470, 0.0
      %v503 = vmax.f32 %v471, 0.0
      %v504 = vmax.f32 %v472, 0.0
      %v505 = vmax.f32 %v473, 0.0
      %v506 = vmax.f32 %v474, 0.0
      %v507 = vmax.f32 %v475, 0.0
      %v508 = vmax.f32 %v476, 0.0
      %v509 = vmax.f32 %v477, 0.0
      %v510 = vpack.c.bf16 %v479, %v478
      %v511 = vpack.c.bf16 %v481, %v480
      %v512 = vpack.c.bf16 %v483, %v482
      %v513 = vpack.c.bf16 %v485, %v484
      %v514 = vpack.c.bf16 %v487, %v486
      %v515 = vpack.c.bf16 %v489, %v488
      %v516 = vpack.c.bf16 %v491, %v490
      %v517 = vpack.c.bf16 %v493, %v492
      %v518 = vpack.c.bf16 %v495, %v494
      %v519 = vpack.c.bf16 %v497, %v496
      %v520 = vpack.c.bf16 %v499, %v498
      %v521 = vpack.c.bf16 %v501, %v500
      %v522 = vpack.c.bf16 %v503, %v502
      %v523 = vpack.c.bf16 %v505, %v504
      %v524 = vpack.c.bf16 %v507, %v506
      %v525 = vpack.c.bf16 %v509, %v508
      %526 = vst [vmem:[#allocation3] sm:$0xf] 0
      %527 = vst [vmem:[#allocation3 + $0x4] sm:$0xf] 0
      %528 = vst [vmem:[#allocation3 + $0x8] sm:$0xf] 0
      %529 = vst [vmem:[#allocation3 + $0xc] sm:$0xf] 0
      %530 = vst [vmem:[#allocation3 + $0x10] sm:$0xf] 0
      %531 = vst [vmem:[#allocation3 + $0x14] sm:$0xf] 0
      %s532 = scalar_lea.vmem [#allocation3], 408
      %533 = vst [vmem:[%s532] sm:$0xf] 0
      %534 = vst [vmem:[%s532 + $0x4] sm:$0xf] 0
      %535 = vst [vmem:[%s532 + $0x8] sm:$0xf] 0
      %536 = vst [vmem:[%s532 + $0xc] sm:$0xf] 0
      %537 = vst [vmem:[%s532 + $0x10] sm:$0xf] 0
      %538 = vst [vmem:[%s532 + $0x14] sm:$0xf] 0
      %s539 = scalar_lea.vmem [#allocation3], 24
      %540 = vst [vmem:[%s539] sm:$0xf] 0
      %541 = vst [vmem:[%s539 + $0x4] sm:$0xf] 0
      %542 = vst [vmem:[%s539 + $0x18] sm:$0xf] 0
      %543 = vst [vmem:[%s539 + $0x1c] sm:$0xf] 0
      %544 = vst [vmem:[%s539 + $0x30] sm:$0xf] 0
      %545 = vst [vmem:[%s539 + $0x34] sm:$0xf] 0
      %546 = vst [vmem:[%s539 + $0x48] sm:$0xf] 0
      %547 = vst [vmem:[%s539 + $0x4c] sm:$0xf] 0
      %548 = vst [vmem:[%s539 + $0x60] sm:$0xf] 0
      %549 = vst [vmem:[%s539 + $0x64] sm:$0xf] 0
      %550 = vst [vmem:[%s539 + $0x78] sm:$0xf] 0
      %551 = vst [vmem:[%s539 + $0x7c] sm:$0xf] 0
      %552 = vst [vmem:[%s539 + $0x90] sm:$0xf] 0
      %553 = vst [vmem:[%s539 + $0x94] sm:$0xf] 0
      %554 = vst [vmem:[%s539 + $0xa8] sm:$0xf] 0
      %555 = vst [vmem:[%s539 + $0xac] sm:$0xf] 0
      %556 = vst [vmem:[%s539 + $0xc0] sm:$0xf] 0
      %557 = vst [vmem:[%s539 + $0xc4] sm:$0xf] 0
      %558 = vst [vmem:[%s539 + $0xd8] sm:$0xf] 0
      %559 = vst [vmem:[%s539 + $0xdc] sm:$0xf] 0
      %560 = vst [vmem:[%s539 + $0xf0] sm:$0xf] 0
      %561 = vst [vmem:[%s539 + $0xf4] sm:$0xf] 0
      %562 = vst [vmem:[%s539 + $0x108] sm:$0xf] 0
      %563 = vst [vmem:[%s539 + $0x10c] sm:$0xf] 0
      %564 = vst [vmem:[%s539 + $0x120] sm:$0xf] 0
      %565 = vst [vmem:[%s539 + $0x124] sm:$0xf] 0
      %566 = vst [vmem:[%s539 + $0x138] sm:$0xf] 0
      %567 = vst [vmem:[%s539 + $0x13c] sm:$0xf] 0
      %568 = vst [vmem:[%s539 + $0x150] sm:$0xf] 0
      %569 = vst [vmem:[%s539 + $0x154] sm:$0xf] 0
      %570 = vst [vmem:[%s539 + $0x168] sm:$0xf] 0
      %571 = vst [vmem:[%s539 + $0x16c] sm:$0xf] 0
      %572 = vst [vmem:[%s539 + $0x10] sm:$0xf] 0
      %573 = vst [vmem:[%s539 + $0x14] sm:$0xf] 0
      %574 = vst [vmem:[%s539 + $0x28] sm:$0xf] 0
      %575 = vst [vmem:[%s539 + $0x2c] sm:$0xf] 0
      %576 = vst [vmem:[%s539 + $0x40] sm:$0xf] 0
      %577 = vst [vmem:[%s539 + $0x44] sm:$0xf] 0
      %578 = vst [vmem:[%s539 + $0x58] sm:$0xf] 0
      %579 = vst [vmem:[%s539 + $0x5c] sm:$0xf] 0
      %580 = vst [vmem:[%s539 + $0x70] sm:$0xf] 0
      %581 = vst [vmem:[%s539 + $0x74] sm:$0xf] 0
      %582 = vst [vmem:[%s539 + $0x88] sm:$0xf] 0
      %583 = vst [vmem:[%s539 + $0x8c] sm:$0xf] 0
      %584 = vst [vmem:[%s539 + $0xa0] sm:$0xf] 0
      %585 = vst [vmem:[%s539 + $0xa4] sm:$0xf] 0
      %586 = vst [vmem:[%s539 + $0xb8] sm:$0xf] 0
      %587 = vst [vmem:[%s539 + $0xbc] sm:$0xf] 0
      %588 = vst [vmem:[%s539 + $0xd0] sm:$0xf] 0
      %589 = vst [vmem:[%s539 + $0xd4] sm:$0xf] 0
      %590 = vst [vmem:[%s539 + $0xe8] sm:$0xf] 0
      %591 = vst [vmem:[%s539 + $0xec] sm:$0xf] 0
      %592 = vst [vmem:[%s539 + $0x100] sm:$0xf] 0
      %593 = vst [vmem:[%s539 + $0x104] sm:$0xf] 0
      %594 = vst [vmem:[%s539 + $0x118] sm:$0xf] 0
      %595 = vst [vmem:[%s539 + $0x11c] sm:$0xf] 0
      %596 = vst [vmem:[%s539 + $0x130] sm:$0xf] 0
      %597 = vst [vmem:[%s539 + $0x134] sm:$0xf] 0
      %598 = vst [vmem:[%s539 + $0x148] sm:$0xf] 0
      %599 = vst [vmem:[%s539 + $0x14c] sm:$0xf] 0
      %600 = vst [vmem:[%s539 + $0x160] sm:$0xf] 0
      %601 = vst [vmem:[%s539 + $0x164] sm:$0xf] 0
      %602 = vst [vmem:[%s539 + $0x178] sm:$0xf] 0
      %603 = vst [vmem:[%s539 + $0x17c] sm:$0xf] 0
      %v620 = vunpack.c.l.b16 %v510
      %v621 = vunpack.c.h.b16 %v510
      %v622 = vunpack.c.l.b16 %v511
      %v623 = vunpack.c.h.b16 %v511
      %v624 = vunpack.c.l.b16 %v512
      %v625 = vunpack.c.h.b16 %v512
      %v626 = vunpack.c.l.b16 %v513
      %v627 = vunpack.c.h.b16 %v513
      %v628 = vunpack.c.l.b16 %v514
      %v629 = vunpack.c.h.b16 %v514
      %v630 = vunpack.c.l.b16 %v515
      %v631 = vunpack.c.h.b16 %v515
      %v632 = vunpack.c.l.b16 %v516
      %v633 = vunpack.c.h.b16 %v516
      %v634 = vunpack.c.l.b16 %v517
      %v635 = vunpack.c.h.b16 %v517
      %v636 = vunpack.c.l.b16 %v518
      %v637 = vunpack.c.h.b16 %v518
      %v638 = vunpack.c.l.b16 %v519
      %v639 = vunpack.c.h.b16 %v519
      %v640 = vunpack.c.l.b16 %v520
      %v641 = vunpack.c.h.b16 %v520
      %v642 = vunpack.c.l.b16 %v521
      %v643 = vunpack.c.h.b16 %v521
      %v644 = vunpack.c.l.b16 %v522
      %v645 = vunpack.c.h.b16 %v522
      %v646 = vunpack.c.l.b16 %v523
      %v647 = vunpack.c.h.b16 %v523
      %v648 = vunpack.c.l.b16 %v524
      %v649 = vunpack.c.h.b16 %v524
      %v650 = vunpack.c.l.b16 %v525
      %v651 = vunpack.c.h.b16 %v525
      %v652 = vpack.c.b16 %v620, %v620
      %v653 = vpack.c.b16 %v621, %v621
      %v654 = vpack.c.b16 %v622, %v622
      %v655 = vpack.c.b16 %v623, %v623
      %v656 = vpack.c.b16 %v624, %v624
      %v657 = vpack.c.b16 %v625, %v625
      %v658 = vpack.c.b16 %v626, %v626
      %v659 = vpack.c.b16 %v627, %v627
      %v660 = vpack.c.b16 %v628, %v628
      %v661 = vpack.c.b16 %v629, %v629
      %v662 = vpack.c.b16 %v630, %v630
      %v663 = vpack.c.b16 %v631, %v631
      %v664 = vpack.c.b16 %v632, %v632
      %v665 = vpack.c.b16 %v633, %v633
      %v666 = vpack.c.b16 %v634, %v634
      %v667 = vpack.c.b16 %v635, %v635
      %v668 = vpack.c.b16 %v636, %v636
      %v669 = vpack.c.b16 %v637, %v637
      %v670 = vpack.c.b16 %v638, %v638
      %v671 = vpack.c.b16 %v639, %v639
      %v672 = vpack.c.b16 %v640, %v640
      %v673 = vpack.c.b16 %v641, %v641
      %v674 = vpack.c.b16 %v642, %v642
      %v675 = vpack.c.b16 %v643, %v643
      %v676 = vpack.c.b16 %v644, %v644
      %v677 = vpack.c.b16 %v645, %v645
      %v678 = vpack.c.b16 %v646, %v646
      %v679 = vpack.c.b16 %v647, %v647
      %v680 = vpack.c.b16 %v648, %v648
      %v681 = vpack.c.b16 %v649, %v649
      %v682 = vpack.c.b16 %v650, %v650
      %v683 = vpack.c.b16 %v651, %v651
      %716 = vst [vmem:[%s539 + $0x8] sm:$0xf] %v652
      %717 = vst [vmem:[%s539 + $0xc] sm:$0xf] %v653
      %718 = vst [vmem:[%s539 + $0x20] sm:$0xf] %v654
      %719 = vst [vmem:[%s539 + $0x24] sm:$0xf] %v655
      %720 = vst [vmem:[%s539 + $0x38] sm:$0xf] %v656
      %721 = vst [vmem:[%s539 + $0x3c] sm:$0xf] %v657
      %722 = vst [vmem:[%s539 + $0x50] sm:$0xf] %v658
      %723 = vst [vmem:[%s539 + $0x54] sm:$0xf] %v659
      %724 = vst [vmem:[%s539 + $0x68] sm:$0xf] %v660
      %725 = vst [vmem:[%s539 + $0x6c] sm:$0xf] %v661
      %726 = vst [vmem:[%s539 + $0x80] sm:$0xf] %v662
      %727 = vst [vmem:[%s539 + $0x84] sm:$0xf] %v663
      %728 = vst [vmem:[%s539 + $0x98] sm:$0xf] %v664
      %729 = vst [vmem:[%s539 + $0x9c] sm:$0xf] %v665
      %730 = vst [vmem:[%s539 + $0xb0] sm:$0xf] %v666
      %731 = vst [vmem:[%s539 + $0xb4] sm:$0xf] %v667
      %732 = vst [vmem:[%s539 + $0xc8] sm:$0xf] %v668
      %733 = vst [vmem:[%s539 + $0xcc] sm:$0xf] %v669
      %734 = vst [vmem:[%s539 + $0xe0] sm:$0xf] %v670
      %735 = vst [vmem:[%s539 + $0xe4] sm:$0xf] %v671
      %736 = vst [vmem:[%s539 + $0xf8] sm:$0xf] %v672
      %737 = vst [vmem:[%s539 + $0xfc] sm:$0xf] %v673
      %738 = vst [vmem:[%s539 + $0x110] sm:$0xf] %v674
      %739 = vst [vmem:[%s539 + $0x114] sm:$0xf] %v675
      %740 = vst [vmem:[%s539 + $0x128] sm:$0xf] %v676
      %741 = vst [vmem:[%s539 + $0x12c] sm:$0xf] %v677
      %742 = vst [vmem:[%s539 + $0x140] sm:$0xf] %v678
      %743 = vst [vmem:[%s539 + $0x144] sm:$0xf] %v679
      %744 = vst [vmem:[%s539 + $0x158] sm:$0xf] %v680
      %745 = vst [vmem:[%s539 + $0x15c] sm:$0xf] %v681
      %746 = vst [vmem:[%s539 + $0x170] sm:$0xf] %v682
      %747 = vst [vmem:[%s539 + $0x174] sm:$0xf] %v683
      %v748 = vld [vmem:[#allocation3 + $0x4] sm:$0x8]
      %v749 = vld [vmem:[#allocation3 + $0x8] sm:$0xf]
      %v750 = vld [vmem:[#allocation3 + $0xc] sm:$0xf]
      %v751 = vld [vmem:[#allocation3 + $0x1c] sm:$0x8]
      %v752 = vld [vmem:[#allocation3 + $0x20] sm:$0xf]
      %v753 = vld [vmem:[#allocation3 + $0x24] sm:$0xf]
      %v754 = vld [vmem:[#allocation3 + $0x34] sm:$0x8]
      %v755 = vld [vmem:[#allocation3 + $0x38] sm:$0xf]
      %v756 = vld [vmem:[#allocation3 + $0x3c] sm:$0xf]
      %v757 = vld [vmem:[#allocation3 + $0x4c] sm:$0x8]
      %v758 = vld [vmem:[#allocation3 + $0x50] sm:$0xf]
      %v759 = vld [vmem:[#allocation3 + $0x54] sm:$0xf]
      %v760 = vld [vmem:[#allocation3 + $0x64] sm:$0x8]
      %v761 = vld [vmem:[#allocation3 + $0x68] sm:$0xf]
      %v762 = vld [vmem:[#allocation3 + $0x6c] sm:$0xf]
      %v763 = vld [vmem:[#allocation3 + $0x7c] sm:$0x8]
      %v764 = vld [vmem:[#allocation3 + $0x80] sm:$0xf]
      %v765 = vld [vmem:[#allocation3 + $0x84] sm:$0xf]
      %v766 = vld [vmem:[#allocation3 + $0x94] sm:$0x8]
      %v767 = vld [vmem:[#allocation3 + $0x98] sm:$0xf]
      %v768 = vld [vmem:[#allocation3 + $0x9c] sm:$0xf]
      %v769 = vld [vmem:[#allocation3 + $0xac] sm:$0x8]
      %v770 = vld [vmem:[#allocation3 + $0xb0] sm:$0xf]
      %v771 = vld [vmem:[#allocation3 + $0xb4] sm:$0xf]
      %v772 = vld [vmem:[#allocation3 + $0xc4] sm:$0x8]
      %v773 = vld [vmem:[#allocation3 + $0xc8] sm:$0xf]
      %v774 = vld [vmem:[#allocation3 + $0xcc] sm:$0xf]
      %v775 = vld [vmem:[#allocation3 + $0xdc] sm:$0x8]
      %v776 = vld [vmem:[#allocation3 + $0xe0] sm:$0xf]
      %v777 = vld [vmem:[#allocation3 + $0xe4] sm:$0xf]
      %v778 = vld [vmem:[#allocation3 + $0xf4] sm:$0x8]
      %v779 = vld [vmem:[#allocation3 + $0xf8] sm:$0xf]
      %v780 = vld [vmem:[#allocation3 + $0xfc] sm:$0xf]
      %v781 = vld [vmem:[#allocation3 + $0x10c] sm:$0x8]
      %v782 = vld [vmem:[#allocation3 + $0x110] sm:$0xf]
      %v783 = vld [vmem:[#allocation3 + $0x114] sm:$0xf]
      %v784 = vld [vmem:[#allocation3 + $0x124] sm:$0x8]
      %v785 = vld [vmem:[#allocation3 + $0x128] sm:$0xf]
      %v786 = vld [vmem:[#allocation3 + $0x12c] sm:$0xf]
      %v787 = vld [vmem:[#allocation3 + $0x13c] sm:$0x8]
      %v788 = vld [vmem:[#allocation3 + $0x140] sm:$0xf]
      %v789 = vld [vmem:[#allocation3 + $0x144] sm:$0xf]
      %v790 = vld [vmem:[#allocation3 + $0x154] sm:$0x8]
      %v791 = vld [vmem:[#allocation3 + $0x158] sm:$0xf]
      %v792 = vld [vmem:[#allocation3 + $0x15c] sm:$0xf]
      %v793 = vld [vmem:[#allocation3 + $0x16c] sm:$0x8]
      %v794 = vld [vmem:[#allocation3 + $0x170] sm:$0xf]
      %v795 = vld [vmem:[#allocation3 + $0x174] sm:$0xf]
      %v796 = vld [vmem:[#allocation3 + $0x10] sm:$0x1]
      %v797 = vld [vmem:[#allocation3 + $0x28] sm:$0x1]
      %v798 = vld [vmem:[#allocation3 + $0x40] sm:$0x1]
      %v799 = vld [vmem:[#allocation3 + $0x58] sm:$0x1]
      %v800 = vld [vmem:[#allocation3 + $0x70] sm:$0x1]
      %v801 = vld [vmem:[#allocation3 + $0x88] sm:$0x1]
      %v802 = vld [vmem:[#allocation3 + $0xa0] sm:$0x1]
      %v803 = vld [vmem:[#allocation3 + $0xb8] sm:$0x1]
      %v804 = vld [vmem:[#allocation3 + $0xd0] sm:$0x1]
      %v805 = vld [vmem:[#allocation3 + $0xe8] sm:$0x1]
      %v806 = vld [vmem:[#allocation3 + $0x100] sm:$0x1]
      %v807 = vld [vmem:[#allocation3 + $0x118] sm:$0x1]
      %v808 = vld [vmem:[#allocation3 + $0x130] sm:$0x1]
      %v809 = vld [vmem:[#allocation3 + $0x148] sm:$0x1]
      %v810 = vld [vmem:[#allocation3 + $0x160] sm:$0x1]
      %v811 = vld [vmem:[#allocation3 + $0x178] sm:$0x1]
      %v812 = vld [vmem:[%s539 + $0x4] sm:$0x8]
      %v813 = vld [vmem:[%s539 + $0x8] sm:$0xf]
      %v814 = vld [vmem:[%s539 + $0xc] sm:$0xf]
      %v815 = vld [vmem:[%s539 + $0x1c] sm:$0x8]
      %v816 = vld [vmem:[%s539 + $0x20] sm:$0xf]
      %v817 = vld [vmem:[%s539 + $0x24] sm:$0xf]
      %v818 = vld [vmem:[%s539 + $0x34] sm:$0x8]
      %v819 = vld [vmem:[%s539 + $0x38] sm:$0xf]
      %v820 = vld [vmem:[%s539 + $0x3c] sm:$0xf]
      %v821 = vld [vmem:[%s539 + $0x4c] sm:$0x8]
      %v822 = vld [vmem:[%s539 + $0x50] sm:$0xf]
      %v823 = vld [vmem:[%s539 + $0x54] sm:$0xf]
      %v824 = vld [vmem:[%s539 + $0x64] sm:$0x8]
      %v825 = vld [vmem:[%s539 + $0x68] sm:$0xf]
      %v826 = vld [vmem:[%s539 + $0x6c] sm:$0xf]
      %v827 = vld [vmem:[%s539 + $0x7c] sm:$0x8]
      %v828 = vld [vmem:[%s539 + $0x80] sm:$0xf]
      %v829 = vld [vmem:[%s539 + $0x84] sm:$0xf]
      %v830 = vld [vmem:[%s539 + $0x94] sm:$0x8]
      %v831 = vld [vmem:[%s539 + $0x98] sm:$0xf]
      %v832 = vld [vmem:[%s539 + $0x9c] sm:$0xf]
      %v833 = vld [vmem:[%s539 + $0xac] sm:$0x8]
      %v834 = vld [vmem:[%s539 + $0xb0] sm:$0xf]
      %v835 = vld [vmem:[%s539 + $0xb4] sm:$0xf]
      %v836 = vld [vmem:[%s539 + $0xc4] sm:$0x8]
      %v837 = vld [vmem:[%s539 + $0xc8] sm:$0xf]
      %v838 = vld [vmem:[%s539 + $0xcc] sm:$0xf]
      %v839 = vld [vmem:[%s539 + $0xdc] sm:$0x8]
      %v840 = vld [vmem:[%s539 + $0xe0] sm:$0xf]
      %v841 = vld [vmem:[%s539 + $0xe4] sm:$0xf]
      %v842 = vld [vmem:[%s539 + $0xf4] sm:$0x8]
      %v843 = vld [vmem:[%s539 + $0xf8] sm:$0xf]
      %v844 = vld [vmem:[%s539 + $0xfc] sm:$0xf]
      %v845 = vld [vmem:[%s539 + $0x10c] sm:$0x8]
      %v846 = vld [vmem:[%s539 + $0x110] sm:$0xf]
      %v847 = vld [vmem:[%s539 + $0x114] sm:$0xf]
      %v848 = vld [vmem:[%s539 + $0x124] sm:$0x8]
      %v849 = vld [vmem:[%s539 + $0x128] sm:$0xf]
      %v850 = vld [vmem:[%s539 + $0x12c] sm:$0xf]
      %v851 = vld [vmem:[%s539 + $0x13c] sm:$0x8]
      %v852 = vld [vmem:[%s539 + $0x140] sm:$0xf]
      %v853 = vld [vmem:[%s539 + $0x144] sm:$0xf]
      %v854 = vld [vmem:[%s539 + $0x154] sm:$0x8]
      %v855 = vld [vmem:[%s539 + $0x158] sm:$0xf]
      %v856 = vld [vmem:[%s539 + $0x15c] sm:$0xf]
      %v857 = vld [vmem:[%s539 + $0x16c] sm:$0x8]
      %v858 = vld [vmem:[%s539 + $0x170] sm:$0xf]
      %v859 = vld [vmem:[%s539 + $0x174] sm:$0xf]
      %v860 = vld [vmem:[%s539 + $0x10] sm:$0x1]
      %v861 = vld [vmem:[%s539 + $0x28] sm:$0x1]
      %v862 = vld [vmem:[%s539 + $0x40] sm:$0x1]
      %v863 = vld [vmem:[%s539 + $0x58] sm:$0x1]
      %v864 = vld [vmem:[%s539 + $0x70] sm:$0x1]
      %v865 = vld [vmem:[%s539 + $0x88] sm:$0x1]
      %v866 = vld [vmem:[%s539 + $0xa0] sm:$0x1]
      %v867 = vld [vmem:[%s539 + $0xb8] sm:$0x1]
      %v868 = vld [vmem:[%s539 + $0xd0] sm:$0x1]
      %v869 = vld [vmem:[%s539 + $0xe8] sm:$0x1]
      %v870 = vld [vmem:[%s539 + $0x100] sm:$0x1]
      %v871 = vld [vmem:[%s539 + $0x118] sm:$0x1]
      %v872 = vld [vmem:[%s539 + $0x130] sm:$0x1]
      %v873 = vld [vmem:[%s539 + $0x148] sm:$0x1]
      %v874 = vld [vmem:[%s539 + $0x160] sm:$0x1]
      %v875 = vld [vmem:[%s539 + $0x178] sm:$0x1]
      %s876 = scalar_lea.vmem [#allocation3], 48
      %v877 = vld [vmem:[%s876 + $0x4] sm:$0x8]
      %v878 = vld [vmem:[%s876 + $0x8] sm:$0xf]
      %v879 = vld [vmem:[%s876 + $0xc] sm:$0xf]
      %v880 = vld [vmem:[%s876 + $0x1c] sm:$0x8]
      %v881 = vld [vmem:[%s876 + $0x20] sm:$0xf]
      %v882 = vld [vmem:[%s876 + $0x24] sm:$0xf]
      %v883 = vld [vmem:[%s876 + $0x34] sm:$0x8]
      %v884 = vld [vmem:[%s876 + $0x38] sm:$0xf]
      %v885 = vld [vmem:[%s876 + $0x3c] sm:$0xf]
      %v886 = vld [vmem:[%s876 + $0x4c] sm:$0x8]
      %v887 = vld [vmem:[%s876 + $0x50] sm:$0xf]
      %v888 = vld [vmem:[%s876 + $0x54] sm:$0xf]
      %v889 = vld [vmem:[%s876 + $0x64] sm:$0x8]
      %v890 = vld [vmem:[%s876 + $0x68] sm:$0xf]
      %v891 = vld [vmem:[%s876 + $0x6c] sm:$0xf]
      %v892 = vld [vmem:[%s876 + $0x7c] sm:$0x8]
      %v893 = vld [vmem:[%s876 + $0x80] sm:$0xf]
      %v894 = vld [vmem:[%s876 + $0x84] sm:$0xf]
      %v895 = vld [vmem:[%s876 + $0x94] sm:$0x8]
      %v896 = vld [vmem:[%s876 + $0x98] sm:$0xf]
      %v897 = vld [vmem:[%s876 + $0x9c] sm:$0xf]
      %v898 = vld [vmem:[%s876 + $0xac] sm:$0x8]
      %v899 = vld [vmem:[%s876 + $0xb0] sm:$0xf]
      %v900 = vld [vmem:[%s876 + $0xb4] sm:$0xf]
      %v901 = vld [vmem:[%s876 + $0xc4] sm:$0x8]
      %v902 = vld [vmem:[%s876 + $0xc8] sm:$0xf]
      %v903 = vld [vmem:[%s876 + $0xcc] sm:$0xf]
      %v904 = vld [vmem:[%s876 + $0xdc] sm:$0x8]
      %v905 = vld [vmem:[%s876 + $0xe0] sm:$0xf]
      %v906 = vld [vmem:[%s876 + $0xe4] sm:$0xf]
      %v907 = vld [vmem:[%s876 + $0xf4] sm:$0x8]
      %v908 = vld [vmem:[%s876 + $0xf8] sm:$0xf]
      %v909 = vld [vmem:[%s876 + $0xfc] sm:$0xf]
      %v910 = vld [vmem:[%s876 + $0x10c] sm:$0x8]
      %v911 = vld [vmem:[%s876 + $0x110] sm:$0xf]
      %v912 = vld [vmem:[%s876 + $0x114] sm:$0xf]
      %v913 = vld [vmem:[%s876 + $0x124] sm:$0x8]
      %v914 = vld [vmem:[%s876 + $0x128] sm:$0xf]
      %v915 = vld [vmem:[%s876 + $0x12c] sm:$0xf]
      %v916 = vld [vmem:[%s876 + $0x13c] sm:$0x8]
      %v917 = vld [vmem:[%s876 + $0x140] sm:$0xf]
      %v918 = vld [vmem:[%s876 + $0x144] sm:$0xf]
      %v919 = vld [vmem:[%s876 + $0x154] sm:$0x8]
      %v920 = vld [vmem:[%s876 + $0x158] sm:$0xf]
      %v921 = vld [vmem:[%s876 + $0x15c] sm:$0xf]
      %v922 = vld [vmem:[%s876 + $0x16c] sm:$0x8]
      %v923 = vld [vmem:[%s876 + $0x170] sm:$0xf]
      %v924 = vld [vmem:[%s876 + $0x174] sm:$0xf]
      %v925 = vld [vmem:[%s876 + $0x10] sm:$0x1]
      %v926 = vld [vmem:[%s876 + $0x28] sm:$0x1]
      %v927 = vld [vmem:[%s876 + $0x40] sm:$0x1]
      %v928 = vld [vmem:[%s876 + $0x58] sm:$0x1]
      %v929 = vld [vmem:[%s876 + $0x70] sm:$0x1]
      %v930 = vld [vmem:[%s876 + $0x88] sm:$0x1]
      %v931 = vld [vmem:[%s876 + $0xa0] sm:$0x1]
      %v932 = vld [vmem:[%s876 + $0xb8] sm:$0x1]
      %v933 = vld [vmem:[%s876 + $0xd0] sm:$0x1]
      %v934 = vld [vmem:[%s876 + $0xe8] sm:$0x1]
      %v935 = vld [vmem:[%s876 + $0x100] sm:$0x1]
      %v936 = vld [vmem:[%s876 + $0x118] sm:$0x1]
      %v937 = vld [vmem:[%s876 + $0x130] sm:$0x1]
      %v938 = vld [vmem:[%s876 + $0x148] sm:$0x1]
      %v939 = vld [vmem:[%s876 + $0x160] sm:$0x1]
      %v940 = vld [vmem:[%s876 + $0x178] sm:$0x1]
      %v989 = vunpack.c.l.b16 %v748
      %v990 = vunpack.c.l.b16 %v749
      %v991 = vunpack.c.l.b16 %v750
      %v992 = vunpack.c.l.b16 %v751
      %v993 = vunpack.c.l.b16 %v752
      %v994 = vunpack.c.l.b16 %v753
      %v995 = vunpack.c.l.b16 %v754
      %v996 = vunpack.c.l.b16 %v755
      %v997 = vunpack.c.l.b16 %v756
      %v998 = vunpack.c.l.b16 %v757
      %v999 = vunpack.c.l.b16 %v758
      %v1000 = vunpack.c.l.b16 %v759
      %v1001 = vunpack.c.l.b16 %v760
      %v1002 = vunpack.c.l.b16 %v761
      %v1003 = vunpack.c.l.b16 %v762
      %v1004 = vunpack.c.l.b16 %v763
      %v1005 = vunpack.c.l.b16 %v764
      %v1006 = vunpack.c.l.b16 %v765
      %v1007 = vunpack.c.l.b16 %v766
      %v1008 = vunpack.c.l.b16 %v767
      %v1009 = vunpack.c.l.b16 %v768
      %v1010 = vunpack.c.l.b16 %v769
      %v1011 = vunpack.c.l.b16 %v770
      %v1012 = vunpack.c.l.b16 %v771
      %v1013 = vunpack.c.l.b16 %v772
      %v1014 = vunpack.c.l.b16 %v773
      %v1015 = vunpack.c.l.b16 %v774
      %v1016 = vunpack.c.l.b16 %v775
      %v1017 = vunpack.c.l.b16 %v776
      %v1018 = vunpack.c.l.b16 %v777
      %v1019 = vunpack.c.l.b16 %v778
      %v1020 = vunpack.c.l.b16 %v779
      %v1021 = vunpack.c.l.b16 %v780
      %v1022 = vunpack.c.l.b16 %v781
      %v1023 = vunpack.c.l.b16 %v782
      %v1024 = vunpack.c.l.b16 %v783
      %v1025 = vunpack.c.l.b16 %v784
      %v1026 = vunpack.c.l.b16 %v785
      %v1027 = vunpack.c.l.b16 %v786
      %v1028 = vunpack.c.l.b16 %v787
      %v1029 = vunpack.c.l.b16 %v788
      %v1030 = vunpack.c.l.b16 %v789
      %v1031 = vunpack.c.l.b16 %v790
      %v1032 = vunpack.c.l.b16 %v791
      %v1033 = vunpack.c.l.b16 %v792
      %v1034 = vunpack.c.l.b16 %v793
      %v1035 = vunpack.c.l.b16 %v794
      %v1036 = vunpack.c.l.b16 %v795
      %v1037 = vpack.c.b16 %v990, %v989
      %v1038 = vpack.c.b16 %v991, %v991
      %v1039 = vpack.c.b16 %v993, %v992
      %v1040 = vpack.c.b16 %v994, %v994
      %v1041 = vpack.c.b16 %v996, %v995
      %v1042 = vpack.c.b16 %v997, %v997
      %v1043 = vpack.c.b16 %v999, %v998
      %v1044 = vpack.c.b16 %v1000, %v1000
      %v1045 = vpack.c.b16 %v1002, %v1001
      %v1046 = vpack.c.b16 %v1003, %v1003
      %v1047 = vpack.c.b16 %v1005, %v1004
      %v1048 = vpack.c.b16 %v1006, %v1006
      %v1049 = vpack.c.b16 %v1008, %v1007
      %v1050 = vpack.c.b16 %v1009, %v1009
      %v1051 = vpack.c.b16 %v1011, %v1010
      %v1052 = vpack.c.b16 %v1012, %v1012
      %v1053 = vpack.c.b16 %v1014, %v1013
      %v1054 = vpack.c.b16 %v1015, %v1015
      %v1055 = vpack.c.b16 %v1017, %v1016
      %v1056 = vpack.c.b16 %v1018, %v1018
      %v1057 = vpack.c.b16 %v1020, %v1019
      %v1058 = vpack.c.b16 %v1021, %v1021
      %v1059 = vpack.c.b16 %v1023, %v1022
      %v1060 = vpack.c.b16 %v1024, %v1024
      %v1061 = vpack.c.b16 %v1026, %v1025
      %v1062 = vpack.c.b16 %v1027, %v1027
      %v1063 = vpack.c.b16 %v1029, %v1028
      %v1064 = vpack.c.b16 %v1030, %v1030
      %v1065 = vpack.c.b16 %v1032, %v1031
      %v1066 = vpack.c.b16 %v1033, %v1033
      %v1067 = vpack.c.b16 %v1035, %v1034
      %v1068 = vpack.c.b16 %v1036, %v1036
      %v1069 = vpack.c.b16 %v991, %v990
      %v1070 = vpack.c.b16 %v994, %v993
      %v1071 = vpack.c.b16 %v997, %v996
      %v1072 = vpack.c.b16 %v1000, %v999
      %v1073 = vpack.c.b16 %v1003, %v1002
      %v1074 = vpack.c.b16 %v1006, %v1005
      %v1075 = vpack.c.b16 %v1009, %v1008
      %v1076 = vpack.c.b16 %v1012, %v1011
      %v1077 = vpack.c.b16 %v1015, %v1014
      %v1078 = vpack.c.b16 %v1018, %v1017
      %v1079 = vpack.c.b16 %v1021, %v1020
      %v1080 = vpack.c.b16 %v1024, %v1023
      %v1081 = vpack.c.b16 %v1027, %v1026
      %v1082 = vpack.c.b16 %v1030, %v1029
      %v1083 = vpack.c.b16 %v1033, %v1032
      %v1084 = vpack.c.b16 %v1036, %v1035
      %v1086 = vshrl.u32 %v1069, 16
      %v1088 = vrot.slane %v1086, 4
      %v1089 = vshll.u32 %v1069, 16
      %v1091 = vrot.slane %v1089, 5
      %v1092 = vor.u32 %v1088, %v1091
      %v1094 = vshrl.u32 %v1070, 16
      %v1096 = vrot.slane %v1094, 4
      %v1097 = vshll.u32 %v1070, 16
      %v1099 = vrot.slane %v1097, 5
      %v1100 = vor.u32 %v1096, %v1099
      %v1102 = vshrl.u32 %v1071, 16
      %v1104 = vrot.slane %v1102, 4
      %v1105 = vshll.u32 %v1071, 16
      %v1107 = vrot.slane %v1105, 5
      %v1108 = vor.u32 %v1104, %v1107
      %v1110 = vshrl.u32 %v1072, 16
      %v1112 = vrot.slane %v1110, 4
      %v1113 = vshll.u32 %v1072, 16
      %v1115 = vrot.slane %v1113, 5
      %v1116 = vor.u32 %v1112, %v1115
      %v1118 = vshrl.u32 %v1073, 16
      %v1120 = vrot.slane %v1118, 4
      %v1121 = vshll.u32 %v1073, 16
      %v1123 = vrot.slane %v1121, 5
      %v1124 = vor.u32 %v1120, %v1123
      %v1126 = vshrl.u32 %v1074, 16
      %v1128 = vrot.slane %v1126, 4
      %v1129 = vshll.u32 %v1074, 16
      %v1131 = vrot.slane %v1129, 5
      %v1132 = vor.u32 %v1128, %v1131
      %v1134 = vshrl.u32 %v1075, 16
      %v1136 = vrot.slane %v1134, 4
      %v1137 = vshll.u32 %v1075, 16
      %v1139 = vrot.slane %v1137, 5
      %v1140 = vor.u32 %v1136, %v1139
      %v1142 = vshrl.u32 %v1076, 16
      %v1144 = vrot.slane %v1142, 4
      %v1145 = vshll.u32 %v1076, 16
      %v1147 = vrot.slane %v1145, 5
      %v1148 = vor.u32 %v1144, %v1147
      %v1150 = vshrl.u32 %v1077, 16
      %v1152 = vrot.slane %v1150, 4
      %v1153 = vshll.u32 %v1077, 16
      %v1155 = vrot.slane %v1153, 5
      %v1156 = vor.u32 %v1152, %v1155
      %v1158 = vshrl.u32 %v1078, 16
      %v1160 = vrot.slane %v1158, 4
      %v1161 = vshll.u32 %v1078, 16
      %v1163 = vrot.slane %v1161, 5
      %v1164 = vor.u32 %v1160, %v1163
      %v1166 = vshrl.u32 %v1079, 16
      %v1168 = vrot.slane %v1166, 4
      %v1169 = vshll.u32 %v1079, 16
      %v1171 = vrot.slane %v1169, 5
      %v1172 = vor.u32 %v1168, %v1171
      %v1174 = vshrl.u32 %v1080, 16
      %v1176 = vrot.slane %v1174, 4
      %v1177 = vshll.u32 %v1080, 16
      %v1179 = vrot.slane %v1177, 5
      %v1180 = vor.u32 %v1176, %v1179
      %v1182 = vshrl.u32 %v1081, 16
      %v1184 = vrot.slane %v1182, 4
      %v1185 = vshll.u32 %v1081, 16
      %v1187 = vrot.slane %v1185, 5
      %v1188 = vor.u32 %v1184, %v1187
      %v1190 = vshrl.u32 %v1082, 16
      %v1192 = vrot.slane %v1190, 4
      %v1193 = vshll.u32 %v1082, 16
      %v1195 = vrot.slane %v1193, 5
      %v1196 = vor.u32 %v1192, %v1195
      %v1198 = vshrl.u32 %v1083, 16
      %v1200 = vrot.slane %v1198, 4
      %v1201 = vshll.u32 %v1083, 16
      %v1203 = vrot.slane %v1201, 5
      %v1204 = vor.u32 %v1200, %v1203
      %v1206 = vshrl.u32 %v1084, 16
      %v1208 = vrot.slane %v1206, 4
      %v1209 = vshll.u32 %v1084, 16
      %v1211 = vrot.slane %v1209, 5
      %v1212 = vor.u32 %v1208, %v1211
      %v1229 = vunpack.c.l.b16 %v796
      %v1230 = vunpack.c.l.b16 %v797
      %v1231 = vunpack.c.l.b16 %v798
      %v1232 = vunpack.c.l.b16 %v799
      %v1233 = vunpack.c.l.b16 %v800
      %v1234 = vunpack.c.l.b16 %v801
      %v1235 = vunpack.c.l.b16 %v802
      %v1236 = vunpack.c.l.b16 %v803
      %v1237 = vunpack.c.l.b16 %v804
      %v1238 = vunpack.c.l.b16 %v805
      %v1239 = vunpack.c.l.b16 %v806
      %v1240 = vunpack.c.l.b16 %v807
      %v1241 = vunpack.c.l.b16 %v808
      %v1242 = vunpack.c.l.b16 %v809
      %v1243 = vunpack.c.l.b16 %v810
      %v1244 = vunpack.c.l.b16 %v811
      %v1245 = vpack.c.b16 %v1229, %v1229
      %v1246 = vpack.c.b16 %v1230, %v1230
      %v1247 = vpack.c.b16 %v1231, %v1231
      %v1248 = vpack.c.b16 %v1232, %v1232
      %v1249 = vpack.c.b16 %v1233, %v1233
      %v1250 = vpack.c.b16 %v1234, %v1234
      %v1251 = vpack.c.b16 %v1235, %v1235
      %v1252 = vpack.c.b16 %v1236, %v1236
      %v1253 = vpack.c.b16 %v1237, %v1237
      %v1254 = vpack.c.b16 %v1238, %v1238
      %v1255 = vpack.c.b16 %v1239, %v1239
      %v1256 = vpack.c.b16 %v1240, %v1240
      %v1257 = vpack.c.b16 %v1241, %v1241
      %v1258 = vpack.c.b16 %v1242, %v1242
      %v1259 = vpack.c.b16 %v1243, %v1243
      %v1260 = vpack.c.b16 %v1244, %v1244
      %vm1261 = vcmask 1042432
      %v1262 = vrot.slane %v1069, 5
      %v1263 = vrot.slane %v1245, 5
      %v1264 = vsel %vm1261, %v1262, %v1263
      %v1265 = vrot.slane %v1070, 5
      %v1266 = vrot.slane %v1246, 5
      %v1267 = vsel %vm1261, %v1265, %v1266
      %v1268 = vrot.slane %v1071, 5
      %v1269 = vrot.slane %v1247, 5
      %v1270 = vsel %vm1261, %v1268, %v1269
      %v1271 = vrot.slane %v1072, 5
      %v1272 = vrot.slane %v1248, 5
      %v1273 = vsel %vm1261, %v1271, %v1272
      %v1274 = vrot.slane %v1073, 5
      %v1275 = vrot.slane %v1249, 5
      %v1276 = vsel %vm1261, %v1274, %v1275
      %v1277 = vrot.slane %v1074, 5
      %v1278 = vrot.slane %v1250, 5
      %v1279 = vsel %vm1261, %v1277, %v1278
      %v1280 = vrot.slane %v1075, 5
      %v1281 = vrot.slane %v1251, 5
      %v1282 = vsel %vm1261, %v1280, %v1281
      %v1283 = vrot.slane %v1076, 5
      %v1284 = vrot.slane %v1252, 5
      %v1285 = vsel %vm1261, %v1283, %v1284
      %v1286 = vrot.slane %v1077, 5
      %v1287 = vrot.slane %v1253, 5
      %v1288 = vsel %vm1261, %v1286, %v1287
      %v1289 = vrot.slane %v1078, 5
      %v1290 = vrot.slane %v1254, 5
      %v1291 = vsel %vm1261, %v1289, %v1290
      %v1292 = vrot.slane %v1079, 5
      %v1293 = vrot.slane %v1255, 5
      %v1294 = vsel %vm1261, %v1292, %v1293
      %v1295 = vrot.slane %v1080, 5
      %v1296 = vrot.slane %v1256, 5
      %v1297 = vsel %vm1261, %v1295, %v1296
      %v1298 = vrot.slane %v1081, 5
      %v1299 = vrot.slane %v1257, 5
      %v1300 = vsel %vm1261, %v1298, %v1299
      %v1301 = vrot.slane %v1082, 5
      %v1302 = vrot.slane %v1258, 5
      %v1303 = vsel %vm1261, %v1301, %v1302
      %v1304 = vrot.slane %v1083, 5
      %v1305 = vrot.slane %v1259, 5
      %v1306 = vsel %vm1261, %v1304, %v1305
      %v1307 = vrot.slane %v1084, 5
      %v1308 = vrot.slane %v1260, 5
      %v1309 = vsel %vm1261, %v1307, %v1308
      %v1358 = vunpack.c.l.b16 %v812
      %v1359 = vunpack.c.l.b16 %v813
      %v1360 = vunpack.c.l.b16 %v814
      %v1361 = vunpack.c.l.b16 %v815
      %v1362 = vunpack.c.l.b16 %v816
      %v1363 = vunpack.c.l.b16 %v817
      %v1364 = vunpack.c.l.b16 %v818
      %v1365 = vunpack.c.l.b16 %v819
      %v1366 = vunpack.c.l.b16 %v820
      %v1367 = vunpack.c.l.b16 %v821
      %v1368 = vunpack.c.l.b16 %v822
      %v1369 = vunpack.c.l.b16 %v823
      %v1370 = vunpack.c.l.b16 %v824
      %v1371 = vunpack.c.l.b16 %v825
      %v1372 = vunpack.c.l.b16 %v826
      %v1373 = vunpack.c.l.b16 %v827
      %v1374 = vunpack.c.l.b16 %v828
      %v1375 = vunpack.c.l.b16 %v829
      %v1376 = vunpack.c.l.b16 %v830
      %v1377 = vunpack.c.l.b16 %v831
      %v1378 = vunpack.c.l.b16 %v832
      %v1379 = vunpack.c.l.b16 %v833
      %v1380 = vunpack.c.l.b16 %v834
      %v1381 = vunpack.c.l.b16 %v835
      %v1382 = vunpack.c.l.b16 %v836
      %v1383 = vunpack.c.l.b16 %v837
      %v1384 = vunpack.c.l.b16 %v838
      %v1385 = vunpack.c.l.b16 %v839
      %v1386 = vunpack.c.l.b16 %v840
      %v1387 = vunpack.c.l.b16 %v841
      %v1388 = vunpack.c.l.b16 %v842
      %v1389 = vunpack.c.l.b16 %v843
      %v1390 = vunpack.c.l.b16 %v844
      %v1391 = vunpack.c.l.b16 %v845
      %v1392 = vunpack.c.l.b16 %v846
      %v1393 = vunpack.c.l.b16 %v847
      %v1394 = vunpack.c.l.b16 %v848
      %v1395 = vunpack.c.l.b16 %v849
      %v1396 = vunpack.c.l.b16 %v850
      %v1397 = vunpack.c.l.b16 %v851
      %v1398 = vunpack.c.l.b16 %v852
      %v1399 = vunpack.c.l.b16 %v853
      %v1400 = vunpack.c.l.b16 %v854
      %v1401 = vunpack.c.l.b16 %v855
      %v1402 = vunpack.c.l.b16 %v856
      %v1403 = vunpack.c.l.b16 %v857
      %v1404 = vunpack.c.l.b16 %v858
      %v1405 = vunpack.c.l.b16 %v859
      %v1406 = vpack.c.b16 %v1359, %v1358
      %v1407 = vpack.c.b16 %v1360, %v1360
      %v1408 = vpack.c.b16 %v1362, %v1361
      %v1409 = vpack.c.b16 %v1363, %v1363
      %v1410 = vpack.c.b16 %v1365, %v1364
      %v1411 = vpack.c.b16 %v1366, %v1366
      %v1412 = vpack.c.b16 %v1368, %v1367
      %v1413 = vpack.c.b16 %v1369, %v1369
      %v1414 = vpack.c.b16 %v1371, %v1370
      %v1415 = vpack.c.b16 %v1372, %v1372
      %v1416 = vpack.c.b16 %v1374, %v1373
      %v1417 = vpack.c.b16 %v1375, %v1375
      %v1418 = vpack.c.b16 %v1377, %v1376
      %v1419 = vpack.c.b16 %v1378, %v1378
      %v1420 = vpack.c.b16 %v1380, %v1379
      %v1421 = vpack.c.b16 %v1381, %v1381
      %v1422 = vpack.c.b16 %v1383, %v1382
      %v1423 = vpack.c.b16 %v1384, %v1384
      %v1424 = vpack.c.b16 %v1386, %v1385
      %v1425 = vpack.c.b16 %v1387, %v1387
      %v1426 = vpack.c.b16 %v1389, %v1388
      %v1427 = vpack.c.b16 %v1390, %v1390
      %v1428 = vpack.c.b16 %v1392, %v1391
      %v1429 = vpack.c.b16 %v1393, %v1393
      %v1430 = vpack.c.b16 %v1395, %v1394
      %v1431 = vpack.c.b16 %v1396, %v1396
      %v1432 = vpack.c.b16 %v1398, %v1397
      %v1433 = vpack.c.b16 %v1399, %v1399
      %v1434 = vpack.c.b16 %v1401, %v1400
      %v1435 = vpack.c.b16 %v1402, %v1402
      %v1436 = vpack.c.b16 %v1404, %v1403
      %v1437 = vpack.c.b16 %v1405, %v1405
      %v1438 = vpack.c.b16 %v1360, %v1359
      %v1439 = vpack.c.b16 %v1363, %v1362
      %v1440 = vpack.c.b16 %v1366, %v1365
      %v1441 = vpack.c.b16 %v1369, %v1368
      %v1442 = vpack.c.b16 %v1372, %v1371
      %v1443 = vpack.c.b16 %v1375, %v1374
      %v1444 = vpack.c.b16 %v1378, %v1377
      %v1445 = vpack.c.b16 %v1381, %v1380
      %v1446 = vpack.c.b16 %v1384, %v1383
      %v1447 = vpack.c.b16 %v1387, %v1386
      %v1448 = vpack.c.b16 %v1390, %v1389
      %v1449 = vpack.c.b16 %v1393, %v1392
      %v1450 = vpack.c.b16 %v1396, %v1395
      %v1451 = vpack.c.b16 %v1399, %v1398
      %v1452 = vpack.c.b16 %v1402, %v1401
      %v1453 = vpack.c.b16 %v1405, %v1404
      %v1455 = vshrl.u32 %v1438, 16
      %v1457 = vrot.slane %v1455, 4
      %v1458 = vshll.u32 %v1438, 16
      %v1460 = vrot.slane %v1458, 5
      %v1461 = vor.u32 %v1457, %v1460
      %v1463 = vshrl.u32 %v1439, 16
      %v1465 = vrot.slane %v1463, 4
      %v1466 = vshll.u32 %v1439, 16
      %v1468 = vrot.slane %v1466, 5
      %v1469 = vor.u32 %v1465, %v1468
      %v1471 = vshrl.u32 %v1440, 16
      %v1473 = vrot.slane %v1471, 4
      %v1474 = vshll.u32 %v1440, 16
      %v1476 = vrot.slane %v1474, 5
      %v1477 = vor.u32 %v1473, %v1476
      %v1479 = vshrl.u32 %v1441, 16
      %v1481 = vrot.slane %v1479, 4
      %v1482 = vshll.u32 %v1441, 16
      %v1484 = vrot.slane %v1482, 5
      %v1485 = vor.u32 %v1481, %v1484
      %v1487 = vshrl.u32 %v1442, 16
      %v1489 = vrot.slane %v1487, 4
      %v1490 = vshll.u32 %v1442, 16
      %v1492 = vrot.slane %v1490, 5
      %v1493 = vor.u32 %v1489, %v1492
      %v1495 = vshrl.u32 %v1443, 16
      %v1497 = vrot.slane %v1495, 4
      %v1498 = vshll.u32 %v1443, 16
      %v1500 = vrot.slane %v1498, 5
      %v1501 = vor.u32 %v1497, %v1500
      %v1503 = vshrl.u32 %v1444, 16
      %v1505 = vrot.slane %v1503, 4
      %v1506 = vshll.u32 %v1444, 16
      %v1508 = vrot.slane %v1506, 5
      %v1509 = vor.u32 %v1505, %v1508
      %v1511 = vshrl.u32 %v1445, 16
      %v1513 = vrot.slane %v1511, 4
      %v1514 = vshll.u32 %v1445, 16
      %v1516 = vrot.slane %v1514, 5
      %v1517 = vor.u32 %v1513, %v1516
      %v1519 = vshrl.u32 %v1446, 16
      %v1521 = vrot.slane %v1519, 4
      %v1522 = vshll.u32 %v1446, 16
      %v1524 = vrot.slane %v1522, 5
      %v1525 = vor.u32 %v1521, %v1524
      %v1527 = vshrl.u32 %v1447, 16
      %v1529 = vrot.slane %v1527, 4
      %v1530 = vshll.u32 %v1447, 16
      %v1532 = vrot.slane %v1530, 5
      %v1533 = vor.u32 %v1529, %v1532
      %v1535 = vshrl.u32 %v1448, 16
      %v1537 = vrot.slane %v1535, 4
      %v1538 = vshll.u32 %v1448, 16
      %v1540 = vrot.slane %v1538, 5
      %v1541 = vor.u32 %v1537, %v1540
      %v1543 = vshrl.u32 %v1449, 16
      %v1545 = vrot.slane %v1543, 4
      %v1546 = vshll.u32 %v1449, 16
      %v1548 = vrot.slane %v1546, 5
      %v1549 = vor.u32 %v1545, %v1548
      %v1551 = vshrl.u32 %v1450, 16
      %v1553 = vrot.slane %v1551, 4
      %v1554 = vshll.u32 %v1450, 16
      %v1556 = vrot.slane %v1554, 5
      %v1557 = vor.u32 %v1553, %v1556
      %v1559 = vshrl.u32 %v1451, 16
      %v1561 = vrot.slane %v1559, 4
      %v1562 = vshll.u32 %v1451, 16
      %v1564 = vrot.slane %v1562, 5
      %v1565 = vor.u32 %v1561, %v1564
      %v1567 = vshrl.u32 %v1452, 16
      %v1569 = vrot.slane %v1567, 4
      %v1570 = vshll.u32 %v1452, 16
      %v1572 = vrot.slane %v1570, 5
      %v1573 = vor.u32 %v1569, %v1572
      %v1575 = vshrl.u32 %v1453, 16
      %v1577 = vrot.slane %v1575, 4
      %v1578 = vshll.u32 %v1453, 16
      %v1580 = vrot.slane %v1578, 5
      %v1581 = vor.u32 %v1577, %v1580
      %v1598 = vunpack.c.l.b16 %v860
      %v1599 = vunpack.c.l.b16 %v861
      %v1600 = vunpack.c.l.b16 %v862
      %v1601 = vunpack.c.l.b16 %v863
      %v1602 = vunpack.c.l.b16 %v864
      %v1603 = vunpack.c.l.b16 %v865
      %v1604 = vunpack.c.l.b16 %v866
      %v1605 = vunpack.c.l.b16 %v867
      %v1606 = vunpack.c.l.b16 %v868
      %v1607 = vunpack.c.l.b16 %v869
      %v1608 = vunpack.c.l.b16 %v870
      %v1609 = vunpack.c.l.b16 %v871
      %v1610 = vunpack.c.l.b16 %v872
      %v1611 = vunpack.c.l.b16 %v873
      %v1612 = vunpack.c.l.b16 %v874
      %v1613 = vunpack.c.l.b16 %v875
      %v1614 = vpack.c.b16 %v1598, %v1598
      %v1615 = vpack.c.b16 %v1599, %v1599
      %v1616 = vpack.c.b16 %v1600, %v1600
      %v1617 = vpack.c.b16 %v1601, %v1601
      %v1618 = vpack.c.b16 %v1602, %v1602
      %v1619 = vpack.c.b16 %v1603, %v1603
      %v1620 = vpack.c.b16 %v1604, %v1604
      %v1621 = vpack.c.b16 %v1605, %v1605
      %v1622 = vpack.c.b16 %v1606, %v1606
      %v1623 = vpack.c.b16 %v1607, %v1607
      %v1624 = vpack.c.b16 %v1608, %v1608
      %v1625 = vpack.c.b16 %v1609, %v1609
      %v1626 = vpack.c.b16 %v1610, %v1610
      %v1627 = vpack.c.b16 %v1611, %v1611
      %v1628 = vpack.c.b16 %v1612, %v1612
      %v1629 = vpack.c.b16 %v1613, %v1613
      %v1630 = vrot.slane %v1438, 5
      %v1631 = vrot.slane %v1614, 5
      %v1632 = vsel %vm1261, %v1630, %v1631
      %v1633 = vrot.slane %v1439, 5
      %v1634 = vrot.slane %v1615, 5
      %v1635 = vsel %vm1261, %v1633, %v1634
      %v1636 = vrot.slane %v1440, 5
      %v1637 = vrot.slane %v1616, 5
      %v1638 = vsel %vm1261, %v1636, %v1637
      %v1639 = vrot.slane %v1441, 5
      %v1640 = vrot.slane %v1617, 5
      %v1641 = vsel %vm1261, %v1639, %v1640
      %v1642 = vrot.slane %v1442, 5
      %v1643 = vrot.slane %v1618, 5
      %v1644 = vsel %vm1261, %v1642, %v1643
      %v1645 = vrot.slane %v1443, 5
      %v1646 = vrot.slane %v1619, 5
      %v1647 = vsel %vm1261, %v1645, %v1646
      %v1648 = vrot.slane %v1444, 5
      %v1649 = vrot.slane %v1620, 5
      %v1650 = vsel %vm1261, %v1648, %v1649
      %v1651 = vrot.slane %v1445, 5
      %v1652 = vrot.slane %v1621, 5
      %v1653 = vsel %vm1261, %v1651, %v1652
      %v1654 = vrot.slane %v1446, 5
      %v1655 = vrot.slane %v1622, 5
      %v1656 = vsel %vm1261, %v1654, %v1655
      %v1657 = vrot.slane %v1447, 5
      %v1658 = vrot.slane %v1623, 5
      %v1659 = vsel %vm1261, %v1657, %v1658
      %v1660 = vrot.slane %v1448, 5
      %v1661 = vrot.slane %v1624, 5
      %v1662 = vsel %vm1261, %v1660, %v1661
      %v1663 = vrot.slane %v1449, 5
      %v1664 = vrot.slane %v1625, 5
      %v1665 = vsel %vm1261, %v1663, %v1664
      %v1666 = vrot.slane %v1450, 5
      %v1667 = vrot.slane %v1626, 5
      %v1668 = vsel %vm1261, %v1666, %v1667
      %v1669 = vrot.slane %v1451, 5
      %v1670 = vrot.slane %v1627, 5
      %v1671 = vsel %vm1261, %v1669, %v1670
      %v1672 = vrot.slane %v1452, 5
      %v1673 = vrot.slane %v1628, 5
      %v1674 = vsel %vm1261, %v1672, %v1673
      %v1675 = vrot.slane %v1453, 5
      %v1676 = vrot.slane %v1629, 5
      %v1677 = vsel %vm1261, %v1675, %v1676
      %v1726 = vunpack.c.l.b16 %v877
      %v1727 = vunpack.c.l.b16 %v878
      %v1728 = vunpack.c.l.b16 %v879
      %v1729 = vunpack.c.l.b16 %v880
      %v1730 = vunpack.c.l.b16 %v881
      %v1731 = vunpack.c.l.b16 %v882
      %v1732 = vunpack.c.l.b16 %v883
      %v1733 = vunpack.c.l.b16 %v884
      %v1734 = vunpack.c.l.b16 %v885
      %v1735 = vunpack.c.l.b16 %v886
      %v1736 = vunpack.c.l.b16 %v887
      %v1737 = vunpack.c.l.b16 %v888
      %v1738 = vunpack.c.l.b16 %v889
      %v1739 = vunpack.c.l.b16 %v890
      %v1740 = vunpack.c.l.b16 %v891
      %v1741 = vunpack.c.l.b16 %v892
      %v1742 = vunpack.c.l.b16 %v893
      %v1743 = vunpack.c.l.b16 %v894
      %v1744 = vunpack.c.l.b16 %v895
      %v1745 = vunpack.c.l.b16 %v896
      %v1746 = vunpack.c.l.b16 %v897
      %v1747 = vunpack.c.l.b16 %v898
      %v1748 = vunpack.c.l.b16 %v899
      %v1749 = vunpack.c.l.b16 %v900
      %v1750 = vunpack.c.l.b16 %v901
      %v1751 = vunpack.c.l.b16 %v902
      %v1752 = vunpack.c.l.b16 %v903
      %v1753 = vunpack.c.l.b16 %v904
      %v1754 = vunpack.c.l.b16 %v905
      %v1755 = vunpack.c.l.b16 %v906
      %v1756 = vunpack.c.l.b16 %v907
      %v1757 = vunpack.c.l.b16 %v908
      %v1758 = vunpack.c.l.b16 %v909
      %v1759 = vunpack.c.l.b16 %v910
      %v1760 = vunpack.c.l.b16 %v911
      %v1761 = vunpack.c.l.b16 %v912
      %v1762 = vunpack.c.l.b16 %v913
      %v1763 = vunpack.c.l.b16 %v914
      %v1764 = vunpack.c.l.b16 %v915
      %v1765 = vunpack.c.l.b16 %v916
      %v1766 = vunpack.c.l.b16 %v917
      %v1767 = vunpack.c.l.b16 %v918
      %v1768 = vunpack.c.l.b16 %v919
      %v1769 = vunpack.c.l.b16 %v920
      %v1770 = vunpack.c.l.b16 %v921
      %v1771 = vunpack.c.l.b16 %v922
      %v1772 = vunpack.c.l.b16 %v923
      %v1773 = vunpack.c.l.b16 %v924
      %v1774 = vpack.c.b16 %v1727, %v1726
      %v1775 = vpack.c.b16 %v1728, %v1728
      %v1776 = vpack.c.b16 %v1730, %v1729
      %v1777 = vpack.c.b16 %v1731, %v1731
      %v1778 = vpack.c.b16 %v1733, %v1732
      %v1779 = vpack.c.b16 %v1734, %v1734
      %v1780 = vpack.c.b16 %v1736, %v1735
      %v1781 = vpack.c.b16 %v1737, %v1737
      %v1782 = vpack.c.b16 %v1739, %v1738
      %v1783 = vpack.c.b16 %v1740, %v1740
      %v1784 = vpack.c.b16 %v1742, %v1741
      %v1785 = vpack.c.b16 %v1743, %v1743
      %v1786 = vpack.c.b16 %v1745, %v1744
      %v1787 = vpack.c.b16 %v1746, %v1746
      %v1788 = vpack.c.b16 %v1748, %v1747
      %v1789 = vpack.c.b16 %v1749, %v1749
      %v1790 = vpack.c.b16 %v1751, %v1750
      %v1791 = vpack.c.b16 %v1752, %v1752
      %v1792 = vpack.c.b16 %v1754, %v1753
      %v1793 = vpack.c.b16 %v1755, %v1755
      %v1794 = vpack.c.b16 %v1757, %v1756
      %v1795 = vpack.c.b16 %v1758, %v1758
      %v1796 = vpack.c.b16 %v1760, %v1759
      %v1797 = vpack.c.b16 %v1761, %v1761
      %v1798 = vpack.c.b16 %v1763, %v1762
      %v1799 = vpack.c.b16 %v1764, %v1764
      %v1800 = vpack.c.b16 %v1766, %v1765
      %v1801 = vpack.c.b16 %v1767, %v1767
      %v1802 = vpack.c.b16 %v1769, %v1768
      %v1803 = vpack.c.b16 %v1770, %v1770
      %v1804 = vpack.c.b16 %v1772, %v1771
      %v1805 = vpack.c.b16 %v1773, %v1773
      %v1806 = vpack.c.b16 %v1728, %v1727
      %v1807 = vpack.c.b16 %v1731, %v1730
      %v1808 = vpack.c.b16 %v1734, %v1733
      %v1809 = vpack.c.b16 %v1737, %v1736
      %v1810 = vpack.c.b16 %v1740, %v1739
      %v1811 = vpack.c.b16 %v1743, %v1742
      %v1812 = vpack.c.b16 %v1746, %v1745
      %v1813 = vpack.c.b16 %v1749, %v1748
      %v1814 = vpack.c.b16 %v1752, %v1751
      %v1815 = vpack.c.b16 %v1755, %v1754
      %v1816 = vpack.c.b16 %v1758, %v1757
      %v1817 = vpack.c.b16 %v1761, %v1760
      %v1818 = vpack.c.b16 %v1764, %v1763
      %v1819 = vpack.c.b16 %v1767, %v1766
      %v1820 = vpack.c.b16 %v1770, %v1769
      %v1821 = vpack.c.b16 %v1773, %v1772
      %v1823 = vshrl.u32 %v1806, 16
      %v1825 = vrot.slane %v1823, 4
      %v1826 = vshll.u32 %v1806, 16
      %v1828 = vrot.slane %v1826, 5
      %v1829 = vor.u32 %v1825, %v1828
      %v1831 = vshrl.u32 %v1807, 16
      %v1833 = vrot.slane %v1831, 4
      %v1834 = vshll.u32 %v1807, 16
      %v1836 = vrot.slane %v1834, 5
      %v1837 = vor.u32 %v1833, %v1836
      %v1839 = vshrl.u32 %v1808, 16
      %v1841 = vrot.slane %v1839, 4
      %v1842 = vshll.u32 %v1808, 16
      %v1844 = vrot.slane %v1842, 5
      %v1845 = vor.u32 %v1841, %v1844
      %v1847 = vshrl.u32 %v1809, 16
      %v1849 = vrot.slane %v1847, 4
      %v1850 = vshll.u32 %v1809, 16
      %v1852 = vrot.slane %v1850, 5
      %v1853 = vor.u32 %v1849, %v1852
      %v1855 = vshrl.u32 %v1810, 16
      %v1857 = vrot.slane %v1855, 4
      %v1858 = vshll.u32 %v1810, 16
      %v1860 = vrot.slane %v1858, 5
      %v1861 = vor.u32 %v1857, %v1860
      %v1863 = vshrl.u32 %v1811, 16
      %v1865 = vrot.slane %v1863, 4
      %v1866 = vshll.u32 %v1811, 16
      %v1868 = vrot.slane %v1866, 5
      %v1869 = vor.u32 %v1865, %v1868
      %v1871 = vshrl.u32 %v1812, 16
      %v1873 = vrot.slane %v1871, 4
      %v1874 = vshll.u32 %v1812, 16
      %v1876 = vrot.slane %v1874, 5
      %v1877 = vor.u32 %v1873, %v1876
      %v1879 = vshrl.u32 %v1813, 16
      %v1881 = vrot.slane %v1879, 4
      %v1882 = vshll.u32 %v1813, 16
      %v1884 = vrot.slane %v1882, 5
      %v1885 = vor.u32 %v1881, %v1884
      %v1887 = vshrl.u32 %v1814, 16
      %v1889 = vrot.slane %v1887, 4
      %v1890 = vshll.u32 %v1814, 16
      %v1892 = vrot.slane %v1890, 5
      %v1893 = vor.u32 %v1889, %v1892
      %v1895 = vshrl.u32 %v1815, 16
      %v1897 = vrot.slane %v1895, 4
      %v1898 = vshll.u32 %v1815, 16
      %v1900 = vrot.slane %v1898, 5
      %v1901 = vor.u32 %v1897, %v1900
      %v1903 = vshrl.u32 %v1816, 16
      %v1905 = vrot.slane %v1903, 4
      %v1906 = vshll.u32 %v1816, 16
      %v1908 = vrot.slane %v1906, 5
      %v1909 = vor.u32 %v1905, %v1908
      %v1911 = vshrl.u32 %v1817, 16
      %v1913 = vrot.slane %v1911, 4
      %v1914 = vshll.u32 %v1817, 16
      %v1916 = vrot.slane %v1914, 5
      %v1917 = vor.u32 %v1913, %v1916
      %v1919 = vshrl.u32 %v1818, 16
      %v1921 = vrot.slane %v1919, 4
      %v1922 = vshll.u32 %v1818, 16
      %v1924 = vrot.slane %v1922, 5
      %v1925 = vor.u32 %v1921, %v1924
      %v1927 = vshrl.u32 %v1819, 16
      %v1929 = vrot.slane %v1927, 4
      %v1930 = vshll.u32 %v1819, 16
      %v1932 = vrot.slane %v1930, 5
      %v1933 = vor.u32 %v1929, %v1932
      %v1935 = vshrl.u32 %v1820, 16
      %v1937 = vrot.slane %v1935, 4
      %v1938 = vshll.u32 %v1820, 16
      %v1940 = vrot.slane %v1938, 5
      %v1941 = vor.u32 %v1937, %v1940
      %v1943 = vshrl.u32 %v1821, 16
      %v1945 = vrot.slane %v1943, 4
      %v1946 = vshll.u32 %v1821, 16
      %v1948 = vrot.slane %v1946, 5
      %v1949 = vor.u32 %v1945, %v1948
      %v1966 = vunpack.c.l.b16 %v925
      %v1967 = vunpack.c.l.b16 %v926
      %v1968 = vunpack.c.l.b16 %v927
      %v1969 = vunpack.c.l.b16 %v928
      %v1970 = vunpack.c.l.b16 %v929
      %v1971 = vunpack.c.l.b16 %v930
      %v1972 = vunpack.c.l.b16 %v931
      %v1973 = vunpack.c.l.b16 %v932
      %v1974 = vunpack.c.l.b16 %v933
      %v1975 = vunpack.c.l.b16 %v934
      %v1976 = vunpack.c.l.b16 %v935
      %v1977 = vunpack.c.l.b16 %v936
      %v1978 = vunpack.c.l.b16 %v937
      %v1979 = vunpack.c.l.b16 %v938
      %v1980 = vunpack.c.l.b16 %v939
      %v1981 = vunpack.c.l.b16 %v940
      %v1982 = vpack.c.b16 %v1966, %v1966
      %v1983 = vpack.c.b16 %v1967, %v1967
      %v1984 = vpack.c.b16 %v1968, %v1968
      %v1985 = vpack.c.b16 %v1969, %v1969
      %v1986 = vpack.c.b16 %v1970, %v1970
      %v1987 = vpack.c.b16 %v1971, %v1971
      %v1988 = vpack.c.b16 %v1972, %v1972
      %v1989 = vpack.c.b16 %v1973, %v1973
      %v1990 = vpack.c.b16 %v1974, %v1974
      %v1991 = vpack.c.b16 %v1975, %v1975
      %v1992 = vpack.c.b16 %v1976, %v1976
      %v1993 = vpack.c.b16 %v1977, %v1977
      %v1994 = vpack.c.b16 %v1978, %v1978
      %v1995 = vpack.c.b16 %v1979, %v1979
      %v1996 = vpack.c.b16 %v1980, %v1980
      %v1997 = vpack.c.b16 %v1981, %v1981
      %v1998 = vrot.slane %v1806, 5
      %v1999 = vrot.slane %v1982, 5
      %v2000 = vsel %vm1261, %v1998, %v1999
      %v2001 = vrot.slane %v1807, 5
      %v2002 = vrot.slane %v1983, 5
      %v2003 = vsel %vm1261, %v2001, %v2002
      %v2004 = vrot.slane %v1808, 5
      %v2005 = vrot.slane %v1984, 5
      %v2006 = vsel %vm1261, %v2004, %v2005
      %v2007 = vrot.slane %v1809, 5
      %v2008 = vrot.slane %v1985, 5
      %v2009 = vsel %vm1261, %v2007, %v2008
      %v2010 = vrot.slane %v1810, 5
      %v2011 = vrot.slane %v1986, 5
      %v2012 = vsel %vm1261, %v2010, %v2011
      %v2013 = vrot.slane %v1811, 5
      %v2014 = vrot.slane %v1987, 5
      %v2015 = vsel %vm1261, %v2013, %v2014
      %v2016 = vrot.slane %v1812, 5
      %v2017 = vrot.slane %v1988, 5
      %v2018 = vsel %vm1261, %v2016, %v2017
      %v2019 = vrot.slane %v1813, 5
      %v2020 = vrot.slane %v1989, 5
      %v2021 = vsel %vm1261, %v2019, %v2020
      %v2022 = vrot.slane %v1814, 5
      %v2023 = vrot.slane %v1990, 5
      %v2024 = vsel %vm1261, %v2022, %v2023
      %v2025 = vrot.slane %v1815, 5
      %v2026 = vrot.slane %v1991, 5
      %v2027 = vsel %vm1261, %v2025, %v2026
      %v2028 = vrot.slane %v1816, 5
      %v2029 = vrot.slane %v1992, 5
      %v2030 = vsel %vm1261, %v2028, %v2029
      %v2031 = vrot.slane %v1817, 5
      %v2032 = vrot.slane %v1993, 5
      %v2033 = vsel %vm1261, %v2031, %v2032
      %v2034 = vrot.slane %v1818, 5
      %v2035 = vrot.slane %v1994, 5
      %v2036 = vsel %vm1261, %v2034, %v2035
      %v2037 = vrot.slane %v1819, 5
      %v2038 = vrot.slane %v1995, 5
      %v2039 = vsel %vm1261, %v2037, %v2038
      %v2040 = vrot.slane %v1820, 5
      %v2041 = vrot.slane %v1996, 5
      %v2042 = vsel %vm1261, %v2040, %v2041
      %v2043 = vrot.slane %v1821, 5
      %v2044 = vrot.slane %v1997, 5
      %v2045 = vsel %vm1261, %v2043, %v2044
      %vm2046 = vsmask.f32 4352
      %v2048 = vshrl.u32 %v1037, 16
      %v2050 = vrot.slane %v2048, 3
      %v2051 = vshll.u32 %v1037, 16
      %v2053 = vrot.slane %v2051, 4
      %v2054 = vor.u32 %v2050, %v2053
      %v2056 = vshrl.u32 %v1038, 16
      %v2058 = vrot.slane %v2056, 3
      %v2059 = vshll.u32 %v1038, 16
      %v2061 = vrot.slane %v2059, 4
      %v2062 = vor.u32 %v2058, %v2061
      %v2063 = vsel %vm2046, %v2054, %v2062
      %v2065 = vshrl.u32 %v1092, 16
      %v2067 = vrot.slane %v2065, 3
      %v2068 = vshll.u32 %v1092, 16
      %v2070 = vrot.slane %v2068, 4
      %v2071 = vor.u32 %v2067, %v2070
      %v2072 = vsel %vm2046, %v2071, %v2071
      %v2074 = vshrl.u32 %v1262, 16
      %v2076 = vrot.slane %v2074, 3
      %v2077 = vshll.u32 %v1262, 16
      %v2079 = vrot.slane %v2077, 4
      %v2080 = vor.u32 %v2076, %v2079
      %v2082 = vshrl.u32 %v1264, 16
      %v2084 = vrot.slane %v2082, 3
      %v2085 = vshll.u32 %v1264, 16
      %v2087 = vrot.slane %v2085, 4
      %v2088 = vor.u32 %v2084, %v2087
      %v2089 = vsel %vm2046, %v2080, %v2088
      %v2091 = vshrl.u32 %v1406, 16
      %v2093 = vrot.slane %v2091, 3
      %v2094 = vshll.u32 %v1406, 16
      %v2096 = vrot.slane %v2094, 4
      %v2097 = vor.u32 %v2093, %v2096
      %v2099 = vshrl.u32 %v1407, 16
      %v2101 = vrot.slane %v2099, 3
      %v2102 = vshll.u32 %v1407, 16
      %v2104 = vrot.slane %v2102, 4
      %v2105 = vor.u32 %v2101, %v2104
      %v2106 = vsel %vm2046, %v2097, %v2105
      %v2108 = vshrl.u32 %v1461, 16
      %v2110 = vrot.slane %v2108, 3
      %v2111 = vshll.u32 %v1461, 16
      %v2113 = vrot.slane %v2111, 4
      %v2114 = vor.u32 %v2110, %v2113
      %v2115 = vsel %vm2046, %v2114, %v2114
      %v2117 = vshrl.u32 %v1630, 16
      %v2119 = vrot.slane %v2117, 3
      %v2120 = vshll.u32 %v1630, 16
      %v2122 = vrot.slane %v2120, 4
      %v2123 = vor.u32 %v2119, %v2122
      %v2125 = vshrl.u32 %v1632, 16
      %v2127 = vrot.slane %v2125, 3
      %v2128 = vshll.u32 %v1632, 16
      %v2130 = vrot.slane %v2128, 4
      %v2131 = vor.u32 %v2127, %v2130
      %v2132 = vsel %vm2046, %v2123, %v2131
      %v2134 = vshrl.u32 %v1774, 16
      %v2136 = vrot.slane %v2134, 3
      %v2137 = vshll.u32 %v1774, 16
      %v2139 = vrot.slane %v2137, 4
      %v2140 = vor.u32 %v2136, %v2139
      %v2142 = vshrl.u32 %v1775, 16
      %v2144 = vrot.slane %v2142, 3
      %v2145 = vshll.u32 %v1775, 16
      %v2147 = vrot.slane %v2145, 4
      %v2148 = vor.u32 %v2144, %v2147
      %v2149 = vsel %vm2046, %v2140, %v2148
      %v2151 = vshrl.u32 %v1829, 16
      %v2153 = vrot.slane %v2151, 3
      %v2154 = vshll.u32 %v1829, 16
      %v2156 = vrot.slane %v2154, 4
      %v2157 = vor.u32 %v2153, %v2156
      %v2158 = vsel %vm2046, %v2157, %v2157
      %v2160 = vshrl.u32 %v1998, 16
      %v2162 = vrot.slane %v2160, 3
      %v2163 = vshll.u32 %v1998, 16
      %v2165 = vrot.slane %v2163, 4
      %v2166 = vor.u32 %v2162, %v2165
      %v2168 = vshrl.u32 %v2000, 16
      %v2170 = vrot.slane %v2168, 3
      %v2171 = vshll.u32 %v2000, 16
      %v2173 = vrot.slane %v2171, 4
      %v2174 = vor.u32 %v2170, %v2173
      %v2175 = vsel %vm2046, %v2166, %v2174
      %v2177 = vshrl.u32 %v1039, 16
      %v2179 = vrot.slane %v2177, 3
      %v2180 = vshll.u32 %v1039, 16
      %v2182 = vrot.slane %v2180, 4
      %v2183 = vor.u32 %v2179, %v2182
      %v2185 = vshrl.u32 %v1040, 16
      %v2187 = vrot.slane %v2185, 3
      %v2188 = vshll.u32 %v1040, 16
      %v2190 = vrot.slane %v2188, 4
      %v2191 = vor.u32 %v2187, %v2190
      %v2192 = vsel %vm2046, %v2183, %v2191
      %v2194 = vshrl.u32 %v1100, 16
      %v2196 = vrot.slane %v2194, 3
      %v2197 = vshll.u32 %v1100, 16
      %v2199 = vrot.slane %v2197, 4
      %v2200 = vor.u32 %v2196, %v2199
      %v2201 = vsel %vm2046, %v2200, %v2200
      %v2203 = vshrl.u32 %v1265, 16
      %v2205 = vrot.slane %v2203, 3
      %v2206 = vshll.u32 %v1265, 16
      %v2208 = vrot.slane %v2206, 4
      %v2209 = vor.u32 %v2205, %v2208
      %v2211 = vshrl.u32 %v1267, 16
      %v2213 = vrot.slane %v2211, 3
      %v2214 = vshll.u32 %v1267, 16
      %v2216 = vrot.slane %v2214, 4
      %v2217 = vor.u32 %v2213, %v2216
      %v2218 = vsel %vm2046, %v2209, %v2217
      %v2220 = vshrl.u32 %v1408, 16
      %v2222 = vrot.slane %v2220, 3
      %v2223 = vshll.u32 %v1408, 16
      %v2225 = vrot.slane %v2223, 4
      %v2226 = vor.u32 %v2222, %v2225
      %v2228 = vshrl.u32 %v1409, 16
      %v2230 = vrot.slane %v2228, 3
      %v2231 = vshll.u32 %v1409, 16
      %v2233 = vrot.slane %v2231, 4
      %v2234 = vor.u32 %v2230, %v2233
      %v2235 = vsel %vm2046, %v2226, %v2234
      %v2237 = vshrl.u32 %v1469, 16
      %v2239 = vrot.slane %v2237, 3
      %v2240 = vshll.u32 %v1469, 16
      %v2242 = vrot.slane %v2240, 4
      %v2243 = vor.u32 %v2239, %v2242
      %v2244 = vsel %vm2046, %v2243, %v2243
      %v2246 = vshrl.u32 %v1633, 16
      %v2248 = vrot.slane %v2246, 3
      %v2249 = vshll.u32 %v1633, 16
      %v2251 = vrot.slane %v2249, 4
      %v2252 = vor.u32 %v2248, %v2251
      %v2254 = vshrl.u32 %v1635, 16
      %v2256 = vrot.slane %v2254, 3
      %v2257 = vshll.u32 %v1635, 16
      %v2259 = vrot.slane %v2257, 4
      %v2260 = vor.u32 %v2256, %v2259
      %v2261 = vsel %vm2046, %v2252, %v2260
      %v2263 = vshrl.u32 %v1776, 16
      %v2265 = vrot.slane %v2263, 3
      %v2266 = vshll.u32 %v1776, 16
      %v2268 = vrot.slane %v2266, 4
      %v2269 = vor.u32 %v2265, %v2268
      %v2271 = vshrl.u32 %v1777, 16
      %v2273 = vrot.slane %v2271, 3
      %v2274 = vshll.u32 %v1777, 16
      %v2276 = vrot.slane %v2274, 4
      %v2277 = vor.u32 %v2273, %v2276
      %v2278 = vsel %vm2046, %v2269, %v2277
      %v2280 = vshrl.u32 %v1837, 16
      %v2282 = vrot.slane %v2280, 3
      %v2283 = vshll.u32 %v1837, 16
      %v2285 = vrot.slane %v2283, 4
      %v2286 = vor.u32 %v2282, %v2285
      %v2287 = vsel %vm2046, %v2286, %v2286
      %v2289 = vshrl.u32 %v2001, 16
      %v2291 = vrot.slane %v2289, 3
      %v2292 = vshll.u32 %v2001, 16
      %v2294 = vrot.slane %v2292, 4
      %v2295 = vor.u32 %v2291, %v2294
      %v2297 = vshrl.u32 %v2003, 16
      %v2299 = vrot.slane %v2297, 3
      %v2300 = vshll.u32 %v2003, 16
      %v2302 = vrot.slane %v2300, 4
      %v2303 = vor.u32 %v2299, %v2302
      %v2304 = vsel %vm2046, %v2295, %v2303
      %v2306 = vshrl.u32 %v1041, 16
      %v2308 = vrot.slane %v2306, 3
      %v2309 = vshll.u32 %v1041, 16
      %v2311 = vrot.slane %v2309, 4
      %v2312 = vor.u32 %v2308, %v2311
      %v2314 = vshrl.u32 %v1042, 16
      %v2316 = vrot.slane %v2314, 3
      %v2317 = vshll.u32 %v1042, 16
      %v2319 = vrot.slane %v2317, 4
      %v2320 = vor.u32 %v2316, %v2319
      %v2321 = vsel %vm2046, %v2312, %v2320
      %v2323 = vshrl.u32 %v1108, 16
      %v2325 = vrot.slane %v2323, 3
      %v2326 = vshll.u32 %v1108, 16
      %v2328 = vrot.slane %v2326, 4
      %v2329 = vor.u32 %v2325, %v2328
      %v2330 = vsel %vm2046, %v2329, %v2329
      %v2332 = vshrl.u32 %v1268, 16
      %v2334 = vrot.slane %v2332, 3
      %v2335 = vshll.u32 %v1268, 16
      %v2337 = vrot.slane %v2335, 4
      %v2338 = vor.u32 %v2334, %v2337
      %v2340 = vshrl.u32 %v1270, 16
      %v2342 = vrot.slane %v2340, 3
      %v2343 = vshll.u32 %v1270, 16
      %v2345 = vrot.slane %v2343, 4
      %v2346 = vor.u32 %v2342, %v2345
      %v2347 = vsel %vm2046, %v2338, %v2346
      %v2349 = vshrl.u32 %v1410, 16
      %v2351 = vrot.slane %v2349, 3
      %v2352 = vshll.u32 %v1410, 16
      %v2354 = vrot.slane %v2352, 4
      %v2355 = vor.u32 %v2351, %v2354
      %v2357 = vshrl.u32 %v1411, 16
      %v2359 = vrot.slane %v2357, 3
      %v2360 = vshll.u32 %v1411, 16
      %v2362 = vrot.slane %v2360, 4
      %v2363 = vor.u32 %v2359, %v2362
      %v2364 = vsel %vm2046, %v2355, %v2363
      %v2366 = vshrl.u32 %v1477, 16
      %v2368 = vrot.slane %v2366, 3
      %v2369 = vshll.u32 %v1477, 16
      %v2371 = vrot.slane %v2369, 4
      %v2372 = vor.u32 %v2368, %v2371
      %v2373 = vsel %vm2046, %v2372, %v2372
      %v2375 = vshrl.u32 %v1636, 16
      %v2377 = vrot.slane %v2375, 3
      %v2378 = vshll.u32 %v1636, 16
      %v2380 = vrot.slane %v2378, 4
      %v2381 = vor.u32 %v2377, %v2380
      %v2383 = vshrl.u32 %v1638, 16
      %v2385 = vrot.slane %v2383, 3
      %v2386 = vshll.u32 %v1638, 16
      %v2388 = vrot.slane %v2386, 4
      %v2389 = vor.u32 %v2385, %v2388
      %v2390 = vsel %vm2046, %v2381, %v2389
      %v2392 = vshrl.u32 %v1778, 16
      %v2394 = vrot.slane %v2392, 3
      %v2395 = vshll.u32 %v1778, 16
      %v2397 = vrot.slane %v2395, 4
      %v2398 = vor.u32 %v2394, %v2397
      %v2400 = vshrl.u32 %v1779, 16
      %v2402 = vrot.slane %v2400, 3
      %v2403 = vshll.u32 %v1779, 16
      %v2405 = vrot.slane %v2403, 4
      %v2406 = vor.u32 %v2402, %v2405
      %v2407 = vsel %vm2046, %v2398, %v2406
      %v2409 = vshrl.u32 %v1845, 16
      %v2411 = vrot.slane %v2409, 3
      %v2412 = vshll.u32 %v1845, 16
      %v2414 = vrot.slane %v2412, 4
      %v2415 = vor.u32 %v2411, %v2414
      %v2416 = vsel %vm2046, %v2415, %v2415
      %v2418 = vshrl.u32 %v2004, 16
      %v2420 = vrot.slane %v2418, 3
      %v2421 = vshll.u32 %v2004, 16
      %v2423 = vrot.slane %v2421, 4
      %v2424 = vor.u32 %v2420, %v2423
      %v2426 = vshrl.u32 %v2006, 16
      %v2428 = vrot.slane %v2426, 3
      %v2429 = vshll.u32 %v2006, 16
      %v2431 = vrot.slane %v2429, 4
      %v2432 = vor.u32 %v2428, %v2431
      %v2433 = vsel %vm2046, %v2424, %v2432
      %v2435 = vshrl.u32 %v1043, 16
      %v2437 = vrot.slane %v2435, 3
      %v2438 = vshll.u32 %v1043, 16
      %v2440 = vrot.slane %v2438, 4
      %v2441 = vor.u32 %v2437, %v2440
      %v2443 = vshrl.u32 %v1044, 16
      %v2445 = vrot.slane %v2443, 3
      %v2446 = vshll.u32 %v1044, 16
      %v2448 = vrot.slane %v2446, 4
      %v2449 = vor.u32 %v2445, %v2448
      %v2450 = vsel %vm2046, %v2441, %v2449
      %v2452 = vshrl.u32 %v1116, 16
      %v2454 = vrot.slane %v2452, 3
      %v2455 = vshll.u32 %v1116, 16
      %v2457 = vrot.slane %v2455, 4
      %v2458 = vor.u32 %v2454, %v2457
      %v2459 = vsel %vm2046, %v2458, %v2458
      %v2461 = vshrl.u32 %v1271, 16
      %v2463 = vrot.slane %v2461, 3
      %v2464 = vshll.u32 %v1271, 16
      %v2466 = vrot.slane %v2464, 4
      %v2467 = vor.u32 %v2463, %v2466
      %v2469 = vshrl.u32 %v1273, 16
      %v2471 = vrot.slane %v2469, 3
      %v2472 = vshll.u32 %v1273, 16
      %v2474 = vrot.slane %v2472, 4
      %v2475 = vor.u32 %v2471, %v2474
      %v2476 = vsel %vm2046, %v2467, %v2475
      %v2478 = vshrl.u32 %v1412, 16
      %v2480 = vrot.slane %v2478, 3
      %v2481 = vshll.u32 %v1412, 16
      %v2483 = vrot.slane %v2481, 4
      %v2484 = vor.u32 %v2480, %v2483
      %v2486 = vshrl.u32 %v1413, 16
      %v2488 = vrot.slane %v2486, 3
      %v2489 = vshll.u32 %v1413, 16
      %v2491 = vrot.slane %v2489, 4
      %v2492 = vor.u32 %v2488, %v2491
      %v2493 = vsel %vm2046, %v2484, %v2492
      %v2495 = vshrl.u32 %v1485, 16
      %v2497 = vrot.slane %v2495, 3
      %v2498 = vshll.u32 %v1485, 16
      %v2500 = vrot.slane %v2498, 4
      %v2501 = vor.u32 %v2497, %v2500
      %v2502 = vsel %vm2046, %v2501, %v2501
      %v2504 = vshrl.u32 %v1639, 16
      %v2506 = vrot.slane %v2504, 3
      %v2507 = vshll.u32 %v1639, 16
      %v2509 = vrot.slane %v2507, 4
      %v2510 = vor.u32 %v2506, %v2509
      %v2512 = vshrl.u32 %v1641, 16
      %v2514 = vrot.slane %v2512, 3
      %v2515 = vshll.u32 %v1641, 16
      %v2517 = vrot.slane %v2515, 4
      %v2518 = vor.u32 %v2514, %v2517
      %v2519 = vsel %vm2046, %v2510, %v2518
      %v2521 = vshrl.u32 %v1780, 16
      %v2523 = vrot.slane %v2521, 3
      %v2524 = vshll.u32 %v1780, 16
      %v2526 = vrot.slane %v2524, 4
      %v2527 = vor.u32 %v2523, %v2526
      %v2529 = vshrl.u32 %v1781, 16
      %v2531 = vrot.slane %v2529, 3
      %v2532 = vshll.u32 %v1781, 16
      %v2534 = vrot.slane %v2532, 4
      %v2535 = vor.u32 %v2531, %v2534
      %v2536 = vsel %vm2046, %v2527, %v2535
      %v2538 = vshrl.u32 %v1853, 16
      %v2540 = vrot.slane %v2538, 3
      %v2541 = vshll.u32 %v1853, 16
      %v2543 = vrot.slane %v2541, 4
      %v2544 = vor.u32 %v2540, %v2543
      %v2545 = vsel %vm2046, %v2544, %v2544
      %v2547 = vshrl.u32 %v2007, 16
      %v2549 = vrot.slane %v2547, 3
      %v2550 = vshll.u32 %v2007, 16
      %v2552 = vrot.slane %v2550, 4
      %v2553 = vor.u32 %v2549, %v2552
      %v2555 = vshrl.u32 %v2009, 16
      %v2557 = vrot.slane %v2555, 3
      %v2558 = vshll.u32 %v2009, 16
      %v2560 = vrot.slane %v2558, 4
      %v2561 = vor.u32 %v2557, %v2560
      %v2562 = vsel %vm2046, %v2553, %v2561
      %v2564 = vshrl.u32 %v1045, 16
      %v2566 = vrot.slane %v2564, 3
      %v2567 = vshll.u32 %v1045, 16
      %v2569 = vrot.slane %v2567, 4
      %v2570 = vor.u32 %v2566, %v2569
      %v2572 = vshrl.u32 %v1046, 16
      %v2574 = vrot.slane %v2572, 3
      %v2575 = vshll.u32 %v1046, 16
      %v2577 = vrot.slane %v2575, 4
      %v2578 = vor.u32 %v2574, %v2577
      %v2579 = vsel %vm2046, %v2570, %v2578
      %v2581 = vshrl.u32 %v1124, 16
      %v2583 = vrot.slane %v2581, 3
      %v2584 = vshll.u32 %v1124, 16
      %v2586 = vrot.slane %v2584, 4
      %v2587 = vor.u32 %v2583, %v2586
      %v2588 = vsel %vm2046, %v2587, %v2587
      %v2590 = vshrl.u32 %v1274, 16
      %v2592 = vrot.slane %v2590, 3
      %v2593 = vshll.u32 %v1274, 16
      %v2595 = vrot.slane %v2593, 4
      %v2596 = vor.u32 %v2592, %v2595
      %v2598 = vshrl.u32 %v1276, 16
      %v2600 = vrot.slane %v2598, 3
      %v2601 = vshll.u32 %v1276, 16
      %v2603 = vrot.slane %v2601, 4
      %v2604 = vor.u32 %v2600, %v2603
      %v2605 = vsel %vm2046, %v2596, %v2604
      %v2607 = vshrl.u32 %v1414, 16
      %v2609 = vrot.slane %v2607, 3
      %v2610 = vshll.u32 %v1414, 16
      %v2612 = vrot.slane %v2610, 4
      %v2613 = vor.u32 %v2609, %v2612
      %v2615 = vshrl.u32 %v1415, 16
      %v2617 = vrot.slane %v2615, 3
      %v2618 = vshll.u32 %v1415, 16
      %v2620 = vrot.slane %v2618, 4
      %v2621 = vor.u32 %v2617, %v2620
      %v2622 = vsel %vm2046, %v2613, %v2621
      %v2624 = vshrl.u32 %v1493, 16
      %v2626 = vrot.slane %v2624, 3
      %v2627 = vshll.u32 %v1493, 16
      %v2629 = vrot.slane %v2627, 4
      %v2630 = vor.u32 %v2626, %v2629
      %v2631 = vsel %vm2046, %v2630, %v2630
      %v2633 = vshrl.u32 %v1642, 16
      %v2635 = vrot.slane %v2633, 3
      %v2636 = vshll.u32 %v1642, 16
      %v2638 = vrot.slane %v2636, 4
      %v2639 = vor.u32 %v2635, %v2638
      %v2641 = vshrl.u32 %v1644, 16
      %v2643 = vrot.slane %v2641, 3
      %v2644 = vshll.u32 %v1644, 16
      %v2646 = vrot.slane %v2644, 4
      %v2647 = vor.u32 %v2643, %v2646
      %v2648 = vsel %vm2046, %v2639, %v2647
      %v2650 = vshrl.u32 %v1782, 16
      %v2652 = vrot.slane %v2650, 3
      %v2653 = vshll.u32 %v1782, 16
      %v2655 = vrot.slane %v2653, 4
      %v2656 = vor.u32 %v2652, %v2655
      %v2658 = vshrl.u32 %v1783, 16
      %v2660 = vrot.slane %v2658, 3
      %v2661 = vshll.u32 %v1783, 16
      %v2663 = vrot.slane %v2661, 4
      %v2664 = vor.u32 %v2660, %v2663
      %v2665 = vsel %vm2046, %v2656, %v2664
      %v2667 = vshrl.u32 %v1861, 16
      %v2669 = vrot.slane %v2667, 3
      %v2670 = vshll.u32 %v1861, 16
      %v2672 = vrot.slane %v2670, 4
      %v2673 = vor.u32 %v2669, %v2672
      %v2674 = vsel %vm2046, %v2673, %v2673
      %v2676 = vshrl.u32 %v2010, 16
      %v2678 = vrot.slane %v2676, 3
      %v2679 = vshll.u32 %v2010, 16
      %v2681 = vrot.slane %v2679, 4
      %v2682 = vor.u32 %v2678, %v2681
      %v2684 = vshrl.u32 %v2012, 16
      %v2686 = vrot.slane %v2684, 3
      %v2687 = vshll.u32 %v2012, 16
      %v2689 = vrot.slane %v2687, 4
      %v2690 = vor.u32 %v2686, %v2689
      %v2691 = vsel %vm2046, %v2682, %v2690
      %v2693 = vshrl.u32 %v1047, 16
      %v2695 = vrot.slane %v2693, 3
      %v2696 = vshll.u32 %v1047, 16
      %v2698 = vrot.slane %v2696, 4
      %v2699 = vor.u32 %v2695, %v2698
      %v2701 = vshrl.u32 %v1048, 16
      %v2703 = vrot.slane %v2701, 3
      %v2704 = vshll.u32 %v1048, 16
      %v2706 = vrot.slane %v2704, 4
      %v2707 = vor.u32 %v2703, %v2706
      %v2708 = vsel %vm2046, %v2699, %v2707
      %v2710 = vshrl.u32 %v1132, 16
      %v2712 = vrot.slane %v2710, 3
      %v2713 = vshll.u32 %v1132, 16
      %v2715 = vrot.slane %v2713, 4
      %v2716 = vor.u32 %v2712, %v2715
      %v2717 = vsel %vm2046, %v2716, %v2716
      %v2719 = vshrl.u32 %v1277, 16
      %v2721 = vrot.slane %v2719, 3
      %v2722 = vshll.u32 %v1277, 16
      %v2724 = vrot.slane %v2722, 4
      %v2725 = vor.u32 %v2721, %v2724
      %v2727 = vshrl.u32 %v1279, 16
      %v2729 = vrot.slane %v2727, 3
      %v2730 = vshll.u32 %v1279, 16
      %v2732 = vrot.slane %v2730, 4
      %v2733 = vor.u32 %v2729, %v2732
      %v2734 = vsel %vm2046, %v2725, %v2733
      %v2736 = vshrl.u32 %v1416, 16
      %v2738 = vrot.slane %v2736, 3
      %v2739 = vshll.u32 %v1416, 16
      %v2741 = vrot.slane %v2739, 4
      %v2742 = vor.u32 %v2738, %v2741
      %v2744 = vshrl.u32 %v1417, 16
      %v2746 = vrot.slane %v2744, 3
      %v2747 = vshll.u32 %v1417, 16
      %v2749 = vrot.slane %v2747, 4
      %v2750 = vor.u32 %v2746, %v2749
      %v2751 = vsel %vm2046, %v2742, %v2750
      %v2753 = vshrl.u32 %v1501, 16
      %v2755 = vrot.slane %v2753, 3
      %v2756 = vshll.u32 %v1501, 16
      %v2758 = vrot.slane %v2756, 4
      %v2759 = vor.u32 %v2755, %v2758
      %v2760 = vsel %vm2046, %v2759, %v2759
      %v2762 = vshrl.u32 %v1645, 16
      %v2764 = vrot.slane %v2762, 3
      %v2765 = vshll.u32 %v1645, 16
      %v2767 = vrot.slane %v2765, 4
      %v2768 = vor.u32 %v2764, %v2767
      %v2770 = vshrl.u32 %v1647, 16
      %v2772 = vrot.slane %v2770, 3
      %v2773 = vshll.u32 %v1647, 16
      %v2775 = vrot.slane %v2773, 4
      %v2776 = vor.u32 %v2772, %v2775
      %v2777 = vsel %vm2046, %v2768, %v2776
      %v2779 = vshrl.u32 %v1784, 16
      %v2781 = vrot.slane %v2779, 3
      %v2782 = vshll.u32 %v1784, 16
      %v2784 = vrot.slane %v2782, 4
      %v2785 = vor.u32 %v2781, %v2784
      %v2787 = vshrl.u32 %v1785, 16
      %v2789 = vrot.slane %v2787, 3
      %v2790 = vshll.u32 %v1785, 16
      %v2792 = vrot.slane %v2790, 4
      %v2793 = vor.u32 %v2789, %v2792
      %v2794 = vsel %vm2046, %v2785, %v2793
      %v2796 = vshrl.u32 %v1869, 16
      %v2798 = vrot.slane %v2796, 3
      %v2799 = vshll.u32 %v1869, 16
      %v2801 = vrot.slane %v2799, 4
      %v2802 = vor.u32 %v2798, %v2801
      %v2803 = vsel %vm2046, %v2802, %v2802
      %v2805 = vshrl.u32 %v2013, 16
      %v2807 = vrot.slane %v2805, 3
      %v2808 = vshll.u32 %v2013, 16
      %v2810 = vrot.slane %v2808, 4
      %v2811 = vor.u32 %v2807, %v2810
      %v2813 = vshrl.u32 %v2015, 16
      %v2815 = vrot.slane %v2813, 3
      %v2816 = vshll.u32 %v2015, 16
      %v2818 = vrot.slane %v2816, 4
      %v2819 = vor.u32 %v2815, %v2818
      %v2820 = vsel %vm2046, %v2811, %v2819
      %v2822 = vshrl.u32 %v1049, 16
      %v2824 = vrot.slane %v2822, 3
      %v2825 = vshll.u32 %v1049, 16
      %v2827 = vrot.slane %v2825, 4
      %v2828 = vor.u32 %v2824, %v2827
      %v2830 = vshrl.u32 %v1050, 16
      %v2832 = vrot.slane %v2830, 3
      %v2833 = vshll.u32 %v1050, 16
      %v2835 = vrot.slane %v2833, 4
      %v2836 = vor.u32 %v2832, %v2835
      %v2837 = vsel %vm2046, %v2828, %v2836
      %v2839 = vshrl.u32 %v1140, 16
      %v2841 = vrot.slane %v2839, 3
      %v2842 = vshll.u32 %v1140, 16
      %v2844 = vrot.slane %v2842, 4
      %v2845 = vor.u32 %v2841, %v2844
      %v2846 = vsel %vm2046, %v2845, %v2845
      %v2848 = vshrl.u32 %v1280, 16
      %v2850 = vrot.slane %v2848, 3
      %v2851 = vshll.u32 %v1280, 16
      %v2853 = vrot.slane %v2851, 4
      %v2854 = vor.u32 %v2850, %v2853
      %v2856 = vshrl.u32 %v1282, 16
      %v2858 = vrot.slane %v2856, 3
      %v2859 = vshll.u32 %v1282, 16
      %v2861 = vrot.slane %v2859, 4
      %v2862 = vor.u32 %v2858, %v2861
      %v2863 = vsel %vm2046, %v2854, %v2862
      %v2865 = vshrl.u32 %v1418, 16
      %v2867 = vrot.slane %v2865, 3
      %v2868 = vshll.u32 %v1418, 16
      %v2870 = vrot.slane %v2868, 4
      %v2871 = vor.u32 %v2867, %v2870
      %v2873 = vshrl.u32 %v1419, 16
      %v2875 = vrot.slane %v2873, 3
      %v2876 = vshll.u32 %v1419, 16
      %v2878 = vrot.slane %v2876, 4
      %v2879 = vor.u32 %v2875, %v2878
      %v2880 = vsel %vm2046, %v2871, %v2879
      %v2882 = vshrl.u32 %v1509, 16
      %v2884 = vrot.slane %v2882, 3
      %v2885 = vshll.u32 %v1509, 16
      %v2887 = vrot.slane %v2885, 4
      %v2888 = vor.u32 %v2884, %v2887
      %v2889 = vsel %vm2046, %v2888, %v2888
      %v2891 = vshrl.u32 %v1648, 16
      %v2893 = vrot.slane %v2891, 3
      %v2894 = vshll.u32 %v1648, 16
      %v2896 = vrot.slane %v2894, 4
      %v2897 = vor.u32 %v2893, %v2896
      %v2899 = vshrl.u32 %v1650, 16
      %v2901 = vrot.slane %v2899, 3
      %v2902 = vshll.u32 %v1650, 16
      %v2904 = vrot.slane %v2902, 4
      %v2905 = vor.u32 %v2901, %v2904
      %v2906 = vsel %vm2046, %v2897, %v2905
      %v2908 = vshrl.u32 %v1786, 16
      %v2910 = vrot.slane %v2908, 3
      %v2911 = vshll.u32 %v1786, 16
      %v2913 = vrot.slane %v2911, 4
      %v2914 = vor.u32 %v2910, %v2913
      %v2916 = vshrl.u32 %v1787, 16
      %v2918 = vrot.slane %v2916, 3
      %v2919 = vshll.u32 %v1787, 16
      %v2921 = vrot.slane %v2919, 4
      %v2922 = vor.u32 %v2918, %v2921
      %v2923 = vsel %vm2046, %v2914, %v2922
      %v2925 = vshrl.u32 %v1877, 16
      %v2927 = vrot.slane %v2925, 3
      %v2928 = vshll.u32 %v1877, 16
      %v2930 = vrot.slane %v2928, 4
      %v2931 = vor.u32 %v2927, %v2930
      %v2932 = vsel %vm2046, %v2931, %v2931
      %v2934 = vshrl.u32 %v2016, 16
      %v2936 = vrot.slane %v2934, 3
      %v2937 = vshll.u32 %v2016, 16
      %v2939 = vrot.slane %v2937, 4
      %v2940 = vor.u32 %v2936, %v2939
      %v2942 = vshrl.u32 %v2018, 16
      %v2944 = vrot.slane %v2942, 3
      %v2945 = vshll.u32 %v2018, 16
      %v2947 = vrot.slane %v2945, 4
      %v2948 = vor.u32 %v2944, %v2947
      %v2949 = vsel %vm2046, %v2940, %v2948
      %v2951 = vshrl.u32 %v1051, 16
      %v2953 = vrot.slane %v2951, 3
      %v2954 = vshll.u32 %v1051, 16
      %v2956 = vrot.slane %v2954, 4
      %v2957 = vor.u32 %v2953, %v2956
      %v2959 = vshrl.u32 %v1052, 16
      %v2961 = vrot.slane %v2959, 3
      %v2962 = vshll.u32 %v1052, 16
      %v2964 = vrot.slane %v2962, 4
      %v2965 = vor.u32 %v2961, %v2964
      %v2966 = vsel %vm2046, %v2957, %v2965
      %v2968 = vshrl.u32 %v1148, 16
      %v2970 = vrot.slane %v2968, 3
      %v2971 = vshll.u32 %v1148, 16
      %v2973 = vrot.slane %v2971, 4
      %v2974 = vor.u32 %v2970, %v2973
      %v2975 = vsel %vm2046, %v2974, %v2974
      %v2977 = vshrl.u32 %v1283, 16
      %v2979 = vrot.slane %v2977, 3
      %v2980 = vshll.u32 %v1283, 16
      %v2982 = vrot.slane %v2980, 4
      %v2983 = vor.u32 %v2979, %v2982
      %v2985 = vshrl.u32 %v1285, 16
      %v2987 = vrot.slane %v2985, 3
      %v2988 = vshll.u32 %v1285, 16
      %v2990 = vrot.slane %v2988, 4
      %v2991 = vor.u32 %v2987, %v2990
      %v2992 = vsel %vm2046, %v2983, %v2991
      %v2994 = vshrl.u32 %v1420, 16
      %v2996 = vrot.slane %v2994, 3
      %v2997 = vshll.u32 %v1420, 16
      %v2999 = vrot.slane %v2997, 4
      %v3000 = vor.u32 %v2996, %v2999
      %v3002 = vshrl.u32 %v1421, 16
      %v3004 = vrot.slane %v3002, 3
      %v3005 = vshll.u32 %v1421, 16
      %v3007 = vrot.slane %v3005, 4
      %v3008 = vor.u32 %v3004, %v3007
      %v3009 = vsel %vm2046, %v3000, %v3008
      %v3011 = vshrl.u32 %v1517, 16
      %v3013 = vrot.slane %v3011, 3
      %v3014 = vshll.u32 %v1517, 16
      %v3016 = vrot.slane %v3014, 4
      %v3017 = vor.u32 %v3013, %v3016
      %v3018 = vsel %vm2046, %v3017, %v3017
      %v3020 = vshrl.u32 %v1651, 16
      %v3022 = vrot.slane %v3020, 3
      %v3023 = vshll.u32 %v1651, 16
      %v3025 = vrot.slane %v3023, 4
      %v3026 = vor.u32 %v3022, %v3025
      %v3028 = vshrl.u32 %v1653, 16
      %v3030 = vrot.slane %v3028, 3
      %v3031 = vshll.u32 %v1653, 16
      %v3033 = vrot.slane %v3031, 4
      %v3034 = vor.u32 %v3030, %v3033
      %v3035 = vsel %vm2046, %v3026, %v3034
      %v3037 = vshrl.u32 %v1788, 16
      %v3039 = vrot.slane %v3037, 3
      %v3040 = vshll.u32 %v1788, 16
      %v3042 = vrot.slane %v3040, 4
      %v3043 = vor.u32 %v3039, %v3042
      %v3045 = vshrl.u32 %v1789, 16
      %v3047 = vrot.slane %v3045, 3
      %v3048 = vshll.u32 %v1789, 16
      %v3050 = vrot.slane %v3048, 4
      %v3051 = vor.u32 %v3047, %v3050
      %v3052 = vsel %vm2046, %v3043, %v3051
      %v3054 = vshrl.u32 %v1885, 16
      %v3056 = vrot.slane %v3054, 3
      %v3057 = vshll.u32 %v1885, 16
      %v3059 = vrot.slane %v3057, 4
      %v3060 = vor.u32 %v3056, %v3059
      %v3061 = vsel %vm2046, %v3060, %v3060
      %v3063 = vshrl.u32 %v2019, 16
      %v3065 = vrot.slane %v3063, 3
      %v3066 = vshll.u32 %v2019, 16
      %v3068 = vrot.slane %v3066, 4
      %v3069 = vor.u32 %v3065, %v3068
      %v3071 = vshrl.u32 %v2021, 16
      %v3073 = vrot.slane %v3071, 3
      %v3074 = vshll.u32 %v2021, 16
      %v3076 = vrot.slane %v3074, 4
      %v3077 = vor.u32 %v3073, %v3076
      %v3078 = vsel %vm2046, %v3069, %v3077
      %v3080 = vshrl.u32 %v1053, 16
      %v3082 = vrot.slane %v3080, 3
      %v3083 = vshll.u32 %v1053, 16
      %v3085 = vrot.slane %v3083, 4
      %v3086 = vor.u32 %v3082, %v3085
      %v3088 = vshrl.u32 %v1054, 16
      %v3090 = vrot.slane %v3088, 3
      %v3091 = vshll.u32 %v1054, 16
      %v3093 = vrot.slane %v3091, 4
      %v3094 = vor.u32 %v3090, %v3093
      %v3095 = vsel %vm2046, %v3086, %v3094
      %v3097 = vshrl.u32 %v1156, 16
      %v3099 = vrot.slane %v3097, 3
      %v3100 = vshll.u32 %v1156, 16
      %v3102 = vrot.slane %v3100, 4
      %v3103 = vor.u32 %v3099, %v3102
      %v3104 = vsel %vm2046, %v3103, %v3103
      %v3106 = vshrl.u32 %v1286, 16
      %v3108 = vrot.slane %v3106, 3
      %v3109 = vshll.u32 %v1286, 16
      %v3111 = vrot.slane %v3109, 4
      %v3112 = vor.u32 %v3108, %v3111
      %v3114 = vshrl.u32 %v1288, 16
      %v3116 = vrot.slane %v3114, 3
      %v3117 = vshll.u32 %v1288, 16
      %v3119 = vrot.slane %v3117, 4
      %v3120 = vor.u32 %v3116, %v3119
      %v3121 = vsel %vm2046, %v3112, %v3120
      %v3123 = vshrl.u32 %v1422, 16
      %v3125 = vrot.slane %v3123, 3
      %v3126 = vshll.u32 %v1422, 16
      %v3128 = vrot.slane %v3126, 4
      %v3129 = vor.u32 %v3125, %v3128
      %v3131 = vshrl.u32 %v1423, 16
      %v3133 = vrot.slane %v3131, 3
      %v3134 = vshll.u32 %v1423, 16
      %v3136 = vrot.slane %v3134, 4
      %v3137 = vor.u32 %v3133, %v3136
      %v3138 = vsel %vm2046, %v3129, %v3137
      %v3140 = vshrl.u32 %v1525, 16
      %v3142 = vrot.slane %v3140, 3
      %v3143 = vshll.u32 %v1525, 16
      %v3145 = vrot.slane %v3143, 4
      %v3146 = vor.u32 %v3142, %v3145
      %v3147 = vsel %vm2046, %v3146, %v3146
      %v3149 = vshrl.u32 %v1654, 16
      %v3151 = vrot.slane %v3149, 3
      %v3152 = vshll.u32 %v1654, 16
      %v3154 = vrot.slane %v3152, 4
      %v3155 = vor.u32 %v3151, %v3154
      %v3157 = vshrl.u32 %v1656, 16
      %v3159 = vrot.slane %v3157, 3
      %v3160 = vshll.u32 %v1656, 16
      %v3162 = vrot.slane %v3160, 4
      %v3163 = vor.u32 %v3159, %v3162
      %v3164 = vsel %vm2046, %v3155, %v3163
      %v3166 = vshrl.u32 %v1790, 16
      %v3168 = vrot.slane %v3166, 3
      %v3169 = vshll.u32 %v1790, 16
      %v3171 = vrot.slane %v3169, 4
      %v3172 = vor.u32 %v3168, %v3171
      %v3174 = vshrl.u32 %v1791, 16
      %v3176 = vrot.slane %v3174, 3
      %v3177 = vshll.u32 %v1791, 16
      %v3179 = vrot.slane %v3177, 4
      %v3180 = vor.u32 %v3176, %v3179
      %v3181 = vsel %vm2046, %v3172, %v3180
      %v3183 = vshrl.u32 %v1893, 16
      %v3185 = vrot.slane %v3183, 3
      %v3186 = vshll.u32 %v1893, 16
      %v3188 = vrot.slane %v3186, 4
      %v3189 = vor.u32 %v3185, %v3188
      %v3190 = vsel %vm2046, %v3189, %v3189
      %v3192 = vshrl.u32 %v2022, 16
      %v3194 = vrot.slane %v3192, 3
      %v3195 = vshll.u32 %v2022, 16
      %v3197 = vrot.slane %v3195, 4
      %v3198 = vor.u32 %v3194, %v3197
      %v3200 = vshrl.u32 %v2024, 16
      %v3202 = vrot.slane %v3200, 3
      %v3203 = vshll.u32 %v2024, 16
      %v3205 = vrot.slane %v3203, 4
      %v3206 = vor.u32 %v3202, %v3205
      %v3207 = vsel %vm2046, %v3198, %v3206
      %v3209 = vshrl.u32 %v1055, 16
      %v3211 = vrot.slane %v3209, 3
      %v3212 = vshll.u32 %v1055, 16
      %v3214 = vrot.slane %v3212, 4
      %v3215 = vor.u32 %v3211, %v3214
      %v3217 = vshrl.u32 %v1056, 16
      %v3219 = vrot.slane %v3217, 3
      %v3220 = vshll.u32 %v1056, 16
      %v3222 = vrot.slane %v3220, 4
      %v3223 = vor.u32 %v3219, %v3222
      %v3224 = vsel %vm2046, %v3215, %v3223
      %v3226 = vshrl.u32 %v1164, 16
      %v3228 = vrot.slane %v3226, 3
      %v3229 = vshll.u32 %v1164, 16
      %v3231 = vrot.slane %v3229, 4
      %v3232 = vor.u32 %v3228, %v3231
      %v3233 = vsel %vm2046, %v3232, %v3232
      %v3235 = vshrl.u32 %v1289, 16
      %v3237 = vrot.slane %v3235, 3
      %v3238 = vshll.u32 %v1289, 16
      %v3240 = vrot.slane %v3238, 4
      %v3241 = vor.u32 %v3237, %v3240
      %v3243 = vshrl.u32 %v1291, 16
      %v3245 = vrot.slane %v3243, 3
      %v3246 = vshll.u32 %v1291, 16
      %v3248 = vrot.slane %v3246, 4
      %v3249 = vor.u32 %v3245, %v3248
      %v3250 = vsel %vm2046, %v3241, %v3249
      %v3252 = vshrl.u32 %v1424, 16
      %v3254 = vrot.slane %v3252, 3
      %v3255 = vshll.u32 %v1424, 16
      %v3257 = vrot.slane %v3255, 4
      %v3258 = vor.u32 %v3254, %v3257
      %v3260 = vshrl.u32 %v1425, 16
      %v3262 = vrot.slane %v3260, 3
      %v3263 = vshll.u32 %v1425, 16
      %v3265 = vrot.slane %v3263, 4
      %v3266 = vor.u32 %v3262, %v3265
      %v3267 = vsel %vm2046, %v3258, %v3266
      %v3269 = vshrl.u32 %v1533, 16
      %v3271 = vrot.slane %v3269, 3
      %v3272 = vshll.u32 %v1533, 16
      %v3274 = vrot.slane %v3272, 4
      %v3275 = vor.u32 %v3271, %v3274
      %v3276 = vsel %vm2046, %v3275, %v3275
      %v3278 = vshrl.u32 %v1657, 16
      %v3280 = vrot.slane %v3278, 3
      %v3281 = vshll.u32 %v1657, 16
      %v3283 = vrot.slane %v3281, 4
      %v3284 = vor.u32 %v3280, %v3283
      %v3286 = vshrl.u32 %v1659, 16
      %v3288 = vrot.slane %v3286, 3
      %v3289 = vshll.u32 %v1659, 16
      %v3291 = vrot.slane %v3289, 4
      %v3292 = vor.u32 %v3288, %v3291
      %v3293 = vsel %vm2046, %v3284, %v3292
      %v3295 = vshrl.u32 %v1792, 16
      %v3297 = vrot.slane %v3295, 3
      %v3298 = vshll.u32 %v1792, 16
      %v3300 = vrot.slane %v3298, 4
      %v3301 = vor.u32 %v3297, %v3300
      %v3303 = vshrl.u32 %v1793, 16
      %v3305 = vrot.slane %v3303, 3
      %v3306 = vshll.u32 %v1793, 16
      %v3308 = vrot.slane %v3306, 4
      %v3309 = vor.u32 %v3305, %v3308
      %v3310 = vsel %vm2046, %v3301, %v3309
      %v3312 = vshrl.u32 %v1901, 16
      %v3314 = vrot.slane %v3312, 3
      %v3315 = vshll.u32 %v1901, 16
      %v3317 = vrot.slane %v3315, 4
      %v3318 = vor.u32 %v3314, %v3317
      %v3319 = vsel %vm2046, %v3318, %v3318
      %v3321 = vshrl.u32 %v2025, 16
      %v3323 = vrot.slane %v3321, 3
      %v3324 = vshll.u32 %v2025, 16
      %v3326 = vrot.slane %v3324, 4
      %v3327 = vor.u32 %v3323, %v3326
      %v3329 = vshrl.u32 %v2027, 16
      %v3331 = vrot.slane %v3329, 3
      %v3332 = vshll.u32 %v2027, 16
      %v3334 = vrot.slane %v3332, 4
      %v3335 = vor.u32 %v3331, %v3334
      %v3336 = vsel %vm2046, %v3327, %v3335
      %v3338 = vshrl.u32 %v1057, 16
      %v3340 = vrot.slane %v3338, 3
      %v3341 = vshll.u32 %v1057, 16
      %v3343 = vrot.slane %v3341, 4
      %v3344 = vor.u32 %v3340, %v3343
      %v3346 = vshrl.u32 %v1058, 16
      %v3348 = vrot.slane %v3346, 3
      %v3349 = vshll.u32 %v1058, 16
      %v3351 = vrot.slane %v3349, 4
      %v3352 = vor.u32 %v3348, %v3351
      %v3353 = vsel %vm2046, %v3344, %v3352
      %v3355 = vshrl.u32 %v1172, 16
      %v3357 = vrot.slane %v3355, 3
      %v3358 = vshll.u32 %v1172, 16
      %v3360 = vrot.slane %v3358, 4
      %v3361 = vor.u32 %v3357, %v3360
      %v3362 = vsel %vm2046, %v3361, %v3361
      %v3364 = vshrl.u32 %v1292, 16
      %v3366 = vrot.slane %v3364, 3
      %v3367 = vshll.u32 %v1292, 16
      %v3369 = vrot.slane %v3367, 4
      %v3370 = vor.u32 %v3366, %v3369
      %v3372 = vshrl.u32 %v1294, 16
      %v3374 = vrot.slane %v3372, 3
      %v3375 = vshll.u32 %v1294, 16
      %v3377 = vrot.slane %v3375, 4
      %v3378 = vor.u32 %v3374, %v3377
      %v3379 = vsel %vm2046, %v3370, %v3378
      %v3381 = vshrl.u32 %v1426, 16
      %v3383 = vrot.slane %v3381, 3
      %v3384 = vshll.u32 %v1426, 16
      %v3386 = vrot.slane %v3384, 4
      %v3387 = vor.u32 %v3383, %v3386
      %v3389 = vshrl.u32 %v1427, 16
      %v3391 = vrot.slane %v3389, 3
      %v3392 = vshll.u32 %v1427, 16
      %v3394 = vrot.slane %v3392, 4
      %v3395 = vor.u32 %v3391, %v3394
      %v3396 = vsel %vm2046, %v3387, %v3395
      %v3398 = vshrl.u32 %v1541, 16
      %v3400 = vrot.slane %v3398, 3
      %v3401 = vshll.u32 %v1541, 16
      %v3403 = vrot.slane %v3401, 4
      %v3404 = vor.u32 %v3400, %v3403
      %v3405 = vsel %vm2046, %v3404, %v3404
      %v3407 = vshrl.u32 %v1660, 16
      %v3409 = vrot.slane %v3407, 3
      %v3410 = vshll.u32 %v1660, 16
      %v3412 = vrot.slane %v3410, 4
      %v3413 = vor.u32 %v3409, %v3412
      %v3415 = vshrl.u32 %v1662, 16
      %v3417 = vrot.slane %v3415, 3
      %v3418 = vshll.u32 %v1662, 16
      %v3420 = vrot.slane %v3418, 4
      %v3421 = vor.u32 %v3417, %v3420
      %v3422 = vsel %vm2046, %v3413, %v3421
      %v3424 = vshrl.u32 %v1794, 16
      %v3426 = vrot.slane %v3424, 3
      %v3427 = vshll.u32 %v1794, 16
      %v3429 = vrot.slane %v3427, 4
      %v3430 = vor.u32 %v3426, %v3429
      %v3432 = vshrl.u32 %v1795, 16
      %v3434 = vrot.slane %v3432, 3
      %v3435 = vshll.u32 %v1795, 16
      %v3437 = vrot.slane %v3435, 4
      %v3438 = vor.u32 %v3434, %v3437
      %v3439 = vsel %vm2046, %v3430, %v3438
      %v3441 = vshrl.u32 %v1909, 16
      %v3443 = vrot.slane %v3441, 3
      %v3444 = vshll.u32 %v1909, 16
      %v3446 = vrot.slane %v3444, 4
      %v3447 = vor.u32 %v3443, %v3446
      %v3448 = vsel %vm2046, %v3447, %v3447
      %v3450 = vshrl.u32 %v2028, 16
      %v3452 = vrot.slane %v3450, 3
      %v3453 = vshll.u32 %v2028, 16
      %v3455 = vrot.slane %v3453, 4
      %v3456 = vor.u32 %v3452, %v3455
      %v3458 = vshrl.u32 %v2030, 16
      %v3460 = vrot.slane %v3458, 3
      %v3461 = vshll.u32 %v2030, 16
      %v3463 = vrot.slane %v3461, 4
      %v3464 = vor.u32 %v3460, %v3463
      %v3465 = vsel %vm2046, %v3456, %v3464
      %v3467 = vshrl.u32 %v1059, 16
      %v3469 = vrot.slane %v3467, 3
      %v3470 = vshll.u32 %v1059, 16
      %v3472 = vrot.slane %v3470, 4
      %v3473 = vor.u32 %v3469, %v3472
      %v3475 = vshrl.u32 %v1060, 16
      %v3477 = vrot.slane %v3475, 3
      %v3478 = vshll.u32 %v1060, 16
      %v3480 = vrot.slane %v3478, 4
      %v3481 = vor.u32 %v3477, %v3480
      %v3482 = vsel %vm2046, %v3473, %v3481
      %v3484 = vshrl.u32 %v1180, 16
      %v3486 = vrot.slane %v3484, 3
      %v3487 = vshll.u32 %v1180, 16
      %v3489 = vrot.slane %v3487, 4
      %v3490 = vor.u32 %v3486, %v3489
      %v3491 = vsel %vm2046, %v3490, %v3490
      %v3493 = vshrl.u32 %v1295, 16
      %v3495 = vrot.slane %v3493, 3
      %v3496 = vshll.u32 %v1295, 16
      %v3498 = vrot.slane %v3496, 4
      %v3499 = vor.u32 %v3495, %v3498
      %v3501 = vshrl.u32 %v1297, 16
      %v3503 = vrot.slane %v3501, 3
      %v3504 = vshll.u32 %v1297, 16
      %v3506 = vrot.slane %v3504, 4
      %v3507 = vor.u32 %v3503, %v3506
      %v3508 = vsel %vm2046, %v3499, %v3507
      %v3510 = vshrl.u32 %v1428, 16
      %v3512 = vrot.slane %v3510, 3
      %v3513 = vshll.u32 %v1428, 16
      %v3515 = vrot.slane %v3513, 4
      %v3516 = vor.u32 %v3512, %v3515
      %v3518 = vshrl.u32 %v1429, 16
      %v3520 = vrot.slane %v3518, 3
      %v3521 = vshll.u32 %v1429, 16
      %v3523 = vrot.slane %v3521, 4
      %v3524 = vor.u32 %v3520, %v3523
      %v3525 = vsel %vm2046, %v3516, %v3524
      %v3527 = vshrl.u32 %v1549, 16
      %v3529 = vrot.slane %v3527, 3
      %v3530 = vshll.u32 %v1549, 16
      %v3532 = vrot.slane %v3530, 4
      %v3533 = vor.u32 %v3529, %v3532
      %v3534 = vsel %vm2046, %v3533, %v3533
      %v3536 = vshrl.u32 %v1663, 16
      %v3538 = vrot.slane %v3536, 3
      %v3539 = vshll.u32 %v1663, 16
      %v3541 = vrot.slane %v3539, 4
      %v3542 = vor.u32 %v3538, %v3541
      %v3544 = vshrl.u32 %v1665, 16
      %v3546 = vrot.slane %v3544, 3
      %v3547 = vshll.u32 %v1665, 16
      %v3549 = vrot.slane %v3547, 4
      %v3550 = vor.u32 %v3546, %v3549
      %v3551 = vsel %vm2046, %v3542, %v3550
      %v3553 = vshrl.u32 %v1796, 16
      %v3555 = vrot.slane %v3553, 3
      %v3556 = vshll.u32 %v1796, 16
      %v3558 = vrot.slane %v3556, 4
      %v3559 = vor.u32 %v3555, %v3558
      %v3561 = vshrl.u32 %v1797, 16
      %v3563 = vrot.slane %v3561, 3
      %v3564 = vshll.u32 %v1797, 16
      %v3566 = vrot.slane %v3564, 4
      %v3567 = vor.u32 %v3563, %v3566
      %v3568 = vsel %vm2046, %v3559, %v3567
      %v3570 = vshrl.u32 %v1917, 16
      %v3572 = vrot.slane %v3570, 3
      %v3573 = vshll.u32 %v1917, 16
      %v3575 = vrot.slane %v3573, 4
      %v3576 = vor.u32 %v3572, %v3575
      %v3577 = vsel %vm2046, %v3576, %v3576
      %v3579 = vshrl.u32 %v2031, 16
      %v3581 = vrot.slane %v3579, 3
      %v3582 = vshll.u32 %v2031, 16
      %v3584 = vrot.slane %v3582, 4
      %v3585 = vor.u32 %v3581, %v3584
      %v3587 = vshrl.u32 %v2033, 16
      %v3589 = vrot.slane %v3587, 3
      %v3590 = vshll.u32 %v2033, 16
      %v3592 = vrot.slane %v3590, 4
      %v3593 = vor.u32 %v3589, %v3592
      %v3594 = vsel %vm2046, %v3585, %v3593
      %v3596 = vshrl.u32 %v1061, 16
      %v3598 = vrot.slane %v3596, 3
      %v3599 = vshll.u32 %v1061, 16
      %v3601 = vrot.slane %v3599, 4
      %v3602 = vor.u32 %v3598, %v3601
      %v3604 = vshrl.u32 %v1062, 16
      %v3606 = vrot.slane %v3604, 3
      %v3607 = vshll.u32 %v1062, 16
      %v3609 = vrot.slane %v3607, 4
      %v3610 = vor.u32 %v3606, %v3609
      %v3611 = vsel %vm2046, %v3602, %v3610
      %v3613 = vshrl.u32 %v1188, 16
      %v3615 = vrot.slane %v3613, 3
      %v3616 = vshll.u32 %v1188, 16
      %v3618 = vrot.slane %v3616, 4
      %v3619 = vor.u32 %v3615, %v3618
      %v3620 = vsel %vm2046, %v3619, %v3619
      %v3622 = vshrl.u32 %v1298, 16
      %v3624 = vrot.slane %v3622, 3
      %v3625 = vshll.u32 %v1298, 16
      %v3627 = vrot.slane %v3625, 4
      %v3628 = vor.u32 %v3624, %v3627
      %v3630 = vshrl.u32 %v1300, 16
      %v3632 = vrot.slane %v3630, 3
      %v3633 = vshll.u32 %v1300, 16
      %v3635 = vrot.slane %v3633, 4
      %v3636 = vor.u32 %v3632, %v3635
      %v3637 = vsel %vm2046, %v3628, %v3636
      %v3639 = vshrl.u32 %v1430, 16
      %v3641 = vrot.slane %v3639, 3
      %v3642 = vshll.u32 %v1430, 16
      %v3644 = vrot.slane %v3642, 4
      %v3645 = vor.u32 %v3641, %v3644
      %v3647 = vshrl.u32 %v1431, 16
      %v3649 = vrot.slane %v3647, 3
      %v3650 = vshll.u32 %v1431, 16
      %v3652 = vrot.slane %v3650, 4
      %v3653 = vor.u32 %v3649, %v3652
      %v3654 = vsel %vm2046, %v3645, %v3653
      %v3656 = vshrl.u32 %v1557, 16
      %v3658 = vrot.slane %v3656, 3
      %v3659 = vshll.u32 %v1557, 16
      %v3661 = vrot.slane %v3659, 4
      %v3662 = vor.u32 %v3658, %v3661
      %v3663 = vsel %vm2046, %v3662, %v3662
      %v3665 = vshrl.u32 %v1666, 16
      %v3667 = vrot.slane %v3665, 3
      %v3668 = vshll.u32 %v1666, 16
      %v3670 = vrot.slane %v3668, 4
      %v3671 = vor.u32 %v3667, %v3670
      %v3673 = vshrl.u32 %v1668, 16
      %v3675 = vrot.slane %v3673, 3
      %v3676 = vshll.u32 %v1668, 16
      %v3678 = vrot.slane %v3676, 4
      %v3679 = vor.u32 %v3675, %v3678
      %v3680 = vsel %vm2046, %v3671, %v3679
      %v3682 = vshrl.u32 %v1798, 16
      %v3684 = vrot.slane %v3682, 3
      %v3685 = vshll.u32 %v1798, 16
      %v3687 = vrot.slane %v3685, 4
      %v3688 = vor.u32 %v3684, %v3687
      %v3690 = vshrl.u32 %v1799, 16
      %v3692 = vrot.slane %v3690, 3
      %v3693 = vshll.u32 %v1799, 16
      %v3695 = vrot.slane %v3693, 4
      %v3696 = vor.u32 %v3692, %v3695
      %v3697 = vsel %vm2046, %v3688, %v3696
      %v3699 = vshrl.u32 %v1925, 16
      %v3701 = vrot.slane %v3699, 3
      %v3702 = vshll.u32 %v1925, 16
      %v3704 = vrot.slane %v3702, 4
      %v3705 = vor.u32 %v3701, %v3704
      %v3706 = vsel %vm2046, %v3705, %v3705
      %v3708 = vshrl.u32 %v2034, 16
      %v3710 = vrot.slane %v3708, 3
      %v3711 = vshll.u32 %v2034, 16
      %v3713 = vrot.slane %v3711, 4
      %v3714 = vor.u32 %v3710, %v3713
      %v3716 = vshrl.u32 %v2036, 16
      %v3718 = vrot.slane %v3716, 3
      %v3719 = vshll.u32 %v2036, 16
      %v3721 = vrot.slane %v3719, 4
      %v3722 = vor.u32 %v3718, %v3721
      %v3723 = vsel %vm2046, %v3714, %v3722
      %v3725 = vshrl.u32 %v1063, 16
      %v3727 = vrot.slane %v3725, 3
      %v3728 = vshll.u32 %v1063, 16
      %v3730 = vrot.slane %v3728, 4
      %v3731 = vor.u32 %v3727, %v3730
      %v3733 = vshrl.u32 %v1064, 16
      %v3735 = vrot.slane %v3733, 3
      %v3736 = vshll.u32 %v1064, 16
      %v3738 = vrot.slane %v3736, 4
      %v3739 = vor.u32 %v3735, %v3738
      %v3740 = vsel %vm2046, %v3731, %v3739
      %v3742 = vshrl.u32 %v1196, 16
      %v3744 = vrot.slane %v3742, 3
      %v3745 = vshll.u32 %v1196, 16
      %v3747 = vrot.slane %v3745, 4
      %v3748 = vor.u32 %v3744, %v3747
      %v3749 = vsel %vm2046, %v3748, %v3748
      %v3751 = vshrl.u32 %v1301, 16
      %v3753 = vrot.slane %v3751, 3
      %v3754 = vshll.u32 %v1301, 16
      %v3756 = vrot.slane %v3754, 4
      %v3757 = vor.u32 %v3753, %v3756
      %v3759 = vshrl.u32 %v1303, 16
      %v3761 = vrot.slane %v3759, 3
      %v3762 = vshll.u32 %v1303, 16
      %v3764 = vrot.slane %v3762, 4
      %v3765 = vor.u32 %v3761, %v3764
      %v3766 = vsel %vm2046, %v3757, %v3765
      %v3768 = vshrl.u32 %v1432, 16
      %v3770 = vrot.slane %v3768, 3
      %v3771 = vshll.u32 %v1432, 16
      %v3773 = vrot.slane %v3771, 4
      %v3774 = vor.u32 %v3770, %v3773
      %v3776 = vshrl.u32 %v1433, 16
      %v3778 = vrot.slane %v3776, 3
      %v3779 = vshll.u32 %v1433, 16
      %v3781 = vrot.slane %v3779, 4
      %v3782 = vor.u32 %v3778, %v3781
      %v3783 = vsel %vm2046, %v3774, %v3782
      %v3785 = vshrl.u32 %v1565, 16
      %v3787 = vrot.slane %v3785, 3
      %v3788 = vshll.u32 %v1565, 16
      %v3790 = vrot.slane %v3788, 4
      %v3791 = vor.u32 %v3787, %v3790
      %v3792 = vsel %vm2046, %v3791, %v3791
      %v3794 = vshrl.u32 %v1669, 16
      %v3796 = vrot.slane %v3794, 3
      %v3797 = vshll.u32 %v1669, 16
      %v3799 = vrot.slane %v3797, 4
      %v3800 = vor.u32 %v3796, %v3799
      %v3802 = vshrl.u32 %v1671, 16
      %v3804 = vrot.slane %v3802, 3
      %v3805 = vshll.u32 %v1671, 16
      %v3807 = vrot.slane %v3805, 4
      %v3808 = vor.u32 %v3804, %v3807
      %v3809 = vsel %vm2046, %v3800, %v3808
      %v3811 = vshrl.u32 %v1800, 16
      %v3813 = vrot.slane %v3811, 3
      %v3814 = vshll.u32 %v1800, 16
      %v3816 = vrot.slane %v3814, 4
      %v3817 = vor.u32 %v3813, %v3816
      %v3819 = vshrl.u32 %v1801, 16
      %v3821 = vrot.slane %v3819, 3
      %v3822 = vshll.u32 %v1801, 16
      %v3824 = vrot.slane %v3822, 4
      %v3825 = vor.u32 %v3821, %v3824
      %v3826 = vsel %vm2046, %v3817, %v3825
      %v3828 = vshrl.u32 %v1933, 16
      %v3830 = vrot.slane %v3828, 3
      %v3831 = vshll.u32 %v1933, 16
      %v3833 = vrot.slane %v3831, 4
      %v3834 = vor.u32 %v3830, %v3833
      %v3835 = vsel %vm2046, %v3834, %v3834
      %v3837 = vshrl.u32 %v2037, 16
      %v3839 = vrot.slane %v3837, 3
      %v3840 = vshll.u32 %v2037, 16
      %v3842 = vrot.slane %v3840, 4
      %v3843 = vor.u32 %v3839, %v3842
      %v3845 = vshrl.u32 %v2039, 16
      %v3847 = vrot.slane %v3845, 3
      %v3848 = vshll.u32 %v2039, 16
      %v3850 = vrot.slane %v3848, 4
      %v3851 = vor.u32 %v3847, %v3850
      %v3852 = vsel %vm2046, %v3843, %v3851
      %v3854 = vshrl.u32 %v1065, 16
      %v3856 = vrot.slane %v3854, 3
      %v3857 = vshll.u32 %v1065, 16
      %v3859 = vrot.slane %v3857, 4
      %v3860 = vor.u32 %v3856, %v3859
      %v3862 = vshrl.u32 %v1066, 16
      %v3864 = vrot.slane %v3862, 3
      %v3865 = vshll.u32 %v1066, 16
      %v3867 = vrot.slane %v3865, 4
      %v3868 = vor.u32 %v3864, %v3867
      %v3869 = vsel %vm2046, %v3860, %v3868
      %v3871 = vshrl.u32 %v1204, 16
      %v3873 = vrot.slane %v3871, 3
      %v3874 = vshll.u32 %v1204, 16
      %v3876 = vrot.slane %v3874, 4
      %v3877 = vor.u32 %v3873, %v3876
      %v3878 = vsel %vm2046, %v3877, %v3877
      %v3880 = vshrl.u32 %v1304, 16
      %v3882 = vrot.slane %v3880, 3
      %v3883 = vshll.u32 %v1304, 16
      %v3885 = vrot.slane %v3883, 4
      %v3886 = vor.u32 %v3882, %v3885
      %v3888 = vshrl.u32 %v1306, 16
      %v3890 = vrot.slane %v3888, 3
      %v3891 = vshll.u32 %v1306, 16
      %v3893 = vrot.slane %v3891, 4
      %v3894 = vor.u32 %v3890, %v3893
      %v3895 = vsel %vm2046, %v3886, %v3894
      %v3897 = vshrl.u32 %v1434, 16
      %v3899 = vrot.slane %v3897, 3
      %v3900 = vshll.u32 %v1434, 16
      %v3902 = vrot.slane %v3900, 4
      %v3903 = vor.u32 %v3899, %v3902
      %v3905 = vshrl.u32 %v1435, 16
      %v3907 = vrot.slane %v3905, 3
      %v3908 = vshll.u32 %v1435, 16
      %v3910 = vrot.slane %v3908, 4
      %v3911 = vor.u32 %v3907, %v3910
      %v3912 = vsel %vm2046, %v3903, %v3911
      %v3914 = vshrl.u32 %v1573, 16
      %v3916 = vrot.slane %v3914, 3
      %v3917 = vshll.u32 %v1573, 16
      %v3919 = vrot.slane %v3917, 4
      %v3920 = vor.u32 %v3916, %v3919
      %v3921 = vsel %vm2046, %v3920, %v3920
      %v3923 = vshrl.u32 %v1672, 16
      %v3925 = vrot.slane %v3923, 3
      %v3926 = vshll.u32 %v1672, 16
      %v3928 = vrot.slane %v3926, 4
      %v3929 = vor.u32 %v3925, %v3928
      %v3931 = vshrl.u32 %v1674, 16
      %v3933 = vrot.slane %v3931, 3
      %v3934 = vshll.u32 %v1674, 16
      %v3936 = vrot.slane %v3934, 4
      %v3937 = vor.u32 %v3933, %v3936
      %v3938 = vsel %vm2046, %v3929, %v3937
      %v3940 = vshrl.u32 %v1802, 16
      %v3942 = vrot.slane %v3940, 3
      %v3943 = vshll.u32 %v1802, 16
      %v3945 = vrot.slane %v3943, 4
      %v3946 = vor.u32 %v3942, %v3945
      %v3948 = vshrl.u32 %v1803, 16
      %v3950 = vrot.slane %v3948, 3
      %v3951 = vshll.u32 %v1803, 16
      %v3953 = vrot.slane %v3951, 4
      %v3954 = vor.u32 %v3950, %v3953
      %v3955 = vsel %vm2046, %v3946, %v3954
      %v3957 = vshrl.u32 %v1941, 16
      %v3959 = vrot.slane %v3957, 3
      %v3960 = vshll.u32 %v1941, 16
      %v3962 = vrot.slane %v3960, 4
      %v3963 = vor.u32 %v3959, %v3962
      %v3964 = vsel %vm2046, %v3963, %v3963
      %v3966 = vshrl.u32 %v2040, 16
      %v3968 = vrot.slane %v3966, 3
      %v3969 = vshll.u32 %v2040, 16
      %v3971 = vrot.slane %v3969, 4
      %v3972 = vor.u32 %v3968, %v3971
      %v3974 = vshrl.u32 %v2042, 16
      %v3976 = vrot.slane %v3974, 3
      %v3977 = vshll.u32 %v2042, 16
      %v3979 = vrot.slane %v3977, 4
      %v3980 = vor.u32 %v3976, %v3979
      %v3981 = vsel %vm2046, %v3972, %v3980
      %v3983 = vshrl.u32 %v1067, 16
      %v3985 = vrot.slane %v3983, 3
      %v3986 = vshll.u32 %v1067, 16
      %v3988 = vrot.slane %v3986, 4
      %v3989 = vor.u32 %v3985, %v3988
      %v3991 = vshrl.u32 %v1068, 16
      %v3993 = vrot.slane %v3991, 3
      %v3994 = vshll.u32 %v1068, 16
      %v3996 = vrot.slane %v3994, 4
      %v3997 = vor.u32 %v3993, %v3996
      %v3998 = vsel %vm2046, %v3989, %v3997
      %v4000 = vshrl.u32 %v1212, 16
      %v4002 = vrot.slane %v4000, 3
      %v4003 = vshll.u32 %v1212, 16
      %v4005 = vrot.slane %v4003, 4
      %v4006 = vor.u32 %v4002, %v4005
      %v4007 = vsel %vm2046, %v4006, %v4006
      %v4009 = vshrl.u32 %v1307, 16
      %v4011 = vrot.slane %v4009, 3
      %v4012 = vshll.u32 %v1307, 16
      %v4014 = vrot.slane %v4012, 4
      %v4015 = vor.u32 %v4011, %v4014
      %v4017 = vshrl.u32 %v1309, 16
      %v4019 = vrot.slane %v4017, 3
      %v4020 = vshll.u32 %v1309, 16
      %v4022 = vrot.slane %v4020, 4
      %v4023 = vor.u32 %v4019, %v4022
      %v4024 = vsel %vm2046, %v4015, %v4023
      %v4026 = vshrl.u32 %v1436, 16
      %v4028 = vrot.slane %v4026, 3
      %v4029 = vshll.u32 %v1436, 16
      %v4031 = vrot.slane %v4029, 4
      %v4032 = vor.u32 %v4028, %v4031
      %v4034 = vshrl.u32 %v1437, 16
      %v4036 = vrot.slane %v4034, 3
      %v4037 = vshll.u32 %v1437, 16
      %v4039 = vrot.slane %v4037, 4
      %v4040 = vor.u32 %v4036, %v4039
      %v4041 = vsel %vm2046, %v4032, %v4040
      %v4043 = vshrl.u32 %v1581, 16
      %v4045 = vrot.slane %v4043, 3
      %v4046 = vshll.u32 %v1581, 16
      %v4048 = vrot.slane %v4046, 4
      %v4049 = vor.u32 %v4045, %v4048
      %v4050 = vsel %vm2046, %v4049, %v4049
      %v4052 = vshrl.u32 %v1675, 16
      %v4054 = vrot.slane %v4052, 3
      %v4055 = vshll.u32 %v1675, 16
      %v4057 = vrot.slane %v4055, 4
      %v4058 = vor.u32 %v4054, %v4057
      %v4060 = vshrl.u32 %v1677, 16
      %v4062 = vrot.slane %v4060, 3
      %v4063 = vshll.u32 %v1677, 16
      %v4065 = vrot.slane %v4063, 4
      %v4066 = vor.u32 %v4062, %v4065
      %v4067 = vsel %vm2046, %v4058, %v4066
      %v4069 = vshrl.u32 %v1804, 16
      %v4071 = vrot.slane %v4069, 3
      %v4072 = vshll.u32 %v1804, 16
      %v4074 = vrot.slane %v4072, 4
      %v4075 = vor.u32 %v4071, %v4074
      %v4077 = vshrl.u32 %v1805, 16
      %v4079 = vrot.slane %v4077, 3
      %v4080 = vshll.u32 %v1805, 16
      %v4082 = vrot.slane %v4080, 4
      %v4083 = vor.u32 %v4079, %v4082
      %v4084 = vsel %vm2046, %v4075, %v4083
      %v4086 = vshrl.u32 %v1949, 16
      %v4088 = vrot.slane %v4086, 3
      %v4089 = vshll.u32 %v1949, 16
      %v4091 = vrot.slane %v4089, 4
      %v4092 = vor.u32 %v4088, %v4091
      %v4093 = vsel %vm2046, %v4092, %v4092
      %v4095 = vshrl.u32 %v2043, 16
      %v4097 = vrot.slane %v4095, 3
      %v4098 = vshll.u32 %v2043, 16
      %v4100 = vrot.slane %v4098, 4
      %v4101 = vor.u32 %v4097, %v4100
      %v4103 = vshrl.u32 %v2045, 16
      %v4105 = vrot.slane %v4103, 3
      %v4106 = vshll.u32 %v2045, 16
      %v4108 = vrot.slane %v4106, 4
      %v4109 = vor.u32 %v4105, %v4108
      %v4110 = vsel %vm2046, %v4101, %v4109
      %p4255 = scmp.eq.s32.totalorder %s24, 0
      // Predicated region
      $region41: #{_forward.5} parent=39 // pred_check
        %p4256 = pneg %p4255
      $region42: #{_forward.5} parent=39 // pred_check_branch
        %4258 = sbr.rel (%p4256) target = $region44
      $region43: #{_forward.5} parent=39 // pred_region
        %4259 = vst [vmem:[#allocation2] sm:$0xff] 0.0
        %4260 = vst [vmem:[#allocation2 + $0x8] sm:$0xff] 0.0
        %4261 = vst [vmem:[#allocation2 + $0x10] sm:$0xff] 0.0
        %4262 = vst [vmem:[#allocation2 + $0x18] sm:$0xff] 0.0
        %4263 = vst [vmem:[#allocation2 + $0x20] sm:$0xff] 0.0
        %4264 = vst [vmem:[#allocation2 + $0x28] sm:$0xff] 0.0
        %4265 = vst [vmem:[#allocation2 + $0x30] sm:$0xff] 0.0
        %4266 = vst [vmem:[#allocation2 + $0x38] sm:$0xff] 0.0
        %4267 = vst [vmem:[#allocation2 + $0x40] sm:$0xff] 0.0
        %4268 = vst [vmem:[#allocation2 + $0x48] sm:$0xff] 0.0
        %4269 = vst [vmem:[#allocation2 + $0x50] sm:$0xff] 0.0
        %4270 = vst [vmem:[#allocation2 + $0x58] sm:$0xff] 0.0
        %4271 = vst [vmem:[#allocation2 + $0x60] sm:$0xff] 0.0
        %4272 = vst [vmem:[#allocation2 + $0x68] sm:$0xff] 0.0
        %4273 = vst [vmem:[#allocation2 + $0x70] sm:$0xff] 0.0
        %4274 = vst [vmem:[#allocation2 + $0x78] sm:$0xff] 0.0
        %4275 = vst [vmem:[#allocation2 + $0x80] sm:$0xff] 0.0
        %4276 = vst [vmem:[#allocation2 + $0x88] sm:$0xff] 0.0
        %4277 = vst [vmem:[#allocation2 + $0x90] sm:$0xff] 0.0
        %4278 = vst [vmem:[#allocation2 + $0x98] sm:$0xff] 0.0
        %4279 = vst [vmem:[#allocation2 + $0xa0] sm:$0xff] 0.0
        %4280 = vst [vmem:[#allocation2 + $0xa8] sm:$0xff] 0.0
        %4281 = vst [vmem:[#allocation2 + $0xb0] sm:$0xff] 0.0
        %4282 = vst [vmem:[#allocation2 + $0xb8] sm:$0xff] 0.0
        %4283 = vst [vmem:[#allocation2 + $0xc0] sm:$0xff] 0.0
        %4284 = vst [vmem:[#allocation2 + $0xc8] sm:$0xff] 0.0
        %4285 = vst [vmem:[#allocation2 + $0xd0] sm:$0xff] 0.0
        %4286 = vst [vmem:[#allocation2 + $0xd8] sm:$0xff] 0.0
        %4287 = vst [vmem:[#allocation2 + $0xe0] sm:$0xff] 0.0
        %4288 = vst [vmem:[#allocation2 + $0xe8] sm:$0xff] 0.0
        %4289 = vst [vmem:[#allocation2 + $0xf0] sm:$0xff] 0.0
        %4290 = vst [vmem:[#allocation2 + $0xf8] sm:$0xff] 0.0
      $region44: #{_forward.5} parent=39 // pred_fallthru
        _
      %v4291 = vld [vmem:[#allocation2] sm:$0xff]
      %v4292 = vld [vmem:[#allocation2 + $0x8] sm:$0xff]
      %v4293 = vld [vmem:[#allocation2 + $0x10] sm:$0xff]
      %v4294 = vld [vmem:[#allocation2 + $0x18] sm:$0xff]
      %v4295 = vld [vmem:[#allocation2 + $0x20] sm:$0xff]
      %v4296 = vld [vmem:[#allocation2 + $0x28] sm:$0xff]
      %v4297 = vld [vmem:[#allocation2 + $0x30] sm:$0xff]
      %v4298 = vld [vmem:[#allocation2 + $0x38] sm:$0xff]
      %v4299 = vld [vmem:[#allocation2 + $0x40] sm:$0xff]
      %v4300 = vld [vmem:[#allocation2 + $0x48] sm:$0xff]
      %v4301 = vld [vmem:[#allocation2 + $0x50] sm:$0xff]
      %v4302 = vld [vmem:[#allocation2 + $0x58] sm:$0xff]
      %v4303 = vld [vmem:[#allocation2 + $0x60] sm:$0xff]
      %v4304 = vld [vmem:[#allocation2 + $0x68] sm:$0xff]
      %v4305 = vld [vmem:[#allocation2 + $0x70] sm:$0xff]
      %v4306 = vld [vmem:[#allocation2 + $0x78] sm:$0xff]
      %v4307 = vld [vmem:[#allocation2 + $0x80] sm:$0xff]
      %v4308 = vld [vmem:[#allocation2 + $0x88] sm:$0xff]
      %v4309 = vld [vmem:[#allocation2 + $0x90] sm:$0xff]
      %v4310 = vld [vmem:[#allocation2 + $0x98] sm:$0xff]
      %v4311 = vld [vmem:[#allocation2 + $0xa0] sm:$0xff]
      %v4312 = vld [vmem:[#allocation2 + $0xa8] sm:$0xff]
      %v4313 = vld [vmem:[#allocation2 + $0xb0] sm:$0xff]
      %v4314 = vld [vmem:[#allocation2 + $0xb8] sm:$0xff]
      %v4315 = vld [vmem:[#allocation2 + $0xc0] sm:$0xff]
      %v4316 = vld [vmem:[#allocation2 + $0xc8] sm:$0xff]
      %v4317 = vld [vmem:[#allocation2 + $0xd0] sm:$0xff]
      %v4318 = vld [vmem:[#allocation2 + $0xd8] sm:$0xff]
      %v4319 = vld [vmem:[#allocation2 + $0xe0] sm:$0xff]
      %v4320 = vld [vmem:[#allocation2 + $0xe8] sm:$0xff]
      %v4321 = vld [vmem:[#allocation2 + $0xf0] sm:$0xff]
      %v4322 = vld [vmem:[#allocation2 + $0xf8] sm:$0xff]
      %v4323 = vld [vmem:[%s355] sm:$0xf]
      %v4324 = vld [vmem:[%s355 + $0x4] sm:$0xf]
      %v4325 = vld [vmem:[%s355 + $0x8] sm:$0xf]
      %v4326 = vld [vmem:[%s355 + $0xc] sm:$0xf]
      %v4327 = vld [vmem:[%s355 + $0x10] sm:$0xf]
      %v4328 = vld [vmem:[%s355 + $0x14] sm:$0xf]
      %v4329 = vld [vmem:[%s355 + $0x18] sm:$0xf]
      %v4330 = vld [vmem:[%s355 + $0x1c] sm:$0xf]
      %v4331 = vld [vmem:[%s355 + $0x20] sm:$0xf]
      %v4332 = vld [vmem:[%s355 + $0x24] sm:$0xf]
      %v4333 = vld [vmem:[%s355 + $0x28] sm:$0xf]
      %v4334 = vld [vmem:[%s355 + $0x2c] sm:$0xf]
      %v4335 = vld [vmem:[%s355 + $0x30] sm:$0xf]
      %v4336 = vld [vmem:[%s355 + $0x34] sm:$0xf]
      %v4337 = vld [vmem:[%s355 + $0x38] sm:$0xf]
      %v4338 = vld [vmem:[%s355 + $0x3c] sm:$0xf]
      %v4339 = vld [vmem:[%s355 + $0x40] sm:$0xf]
      %v4340 = vld [vmem:[%s355 + $0x44] sm:$0xf]
      %v4341 = vld [vmem:[%s355 + $0x48] sm:$0xf]
      %v4342 = vld [vmem:[%s355 + $0x4c] sm:$0xf]
      %v4343 = vld [vmem:[%s355 + $0x50] sm:$0xf]
      %v4344 = vld [vmem:[%s355 + $0x54] sm:$0xf]
      %v4345 = vld [vmem:[%s355 + $0x58] sm:$0xf]
      %v4346 = vld [vmem:[%s355 + $0x5c] sm:$0xf]
      %v4347 = vld [vmem:[%s355 + $0x60] sm:$0xf]
      %v4348 = vld [vmem:[%s355 + $0x64] sm:$0xf]
      %v4349 = vld [vmem:[%s355 + $0x68] sm:$0xf]
      %v4350 = vld [vmem:[%s355 + $0x6c] sm:$0xf]
      %v4351 = vld [vmem:[%s355 + $0x70] sm:$0xf]
      %v4352 = vld [vmem:[%s355 + $0x74] sm:$0xf]
      %v4353 = vld [vmem:[%s355 + $0x78] sm:$0xf]
      %v4354 = vld [vmem:[%s355 + $0x7c] sm:$0xf]
      %v4355 = vld [vmem:[%s355 + $0x80] sm:$0xf]
      %v4356 = vld [vmem:[%s355 + $0x84] sm:$0xf]
      %v4357 = vld [vmem:[%s355 + $0x88] sm:$0xf]
      %v4358 = vld [vmem:[%s355 + $0x8c] sm:$0xf]
      %v4359 = vld [vmem:[%s355 + $0x90] sm:$0xf]
      %v4360 = vld [vmem:[%s355 + $0x94] sm:$0xf]
      %v4361 = vld [vmem:[%s355 + $0x98] sm:$0xf]
      %v4362 = vld [vmem:[%s355 + $0x9c] sm:$0xf]
      %v4363 = vld [vmem:[%s355 + $0xa0] sm:$0xf]
      %v4364 = vld [vmem:[%s355 + $0xa4] sm:$0xf]
      %v4365 = vld [vmem:[%s355 + $0xa8] sm:$0xf]
      %v4366 = vld [vmem:[%s355 + $0xac] sm:$0xf]
      %v4367 = vld [vmem:[%s355 + $0xb0] sm:$0xf]
      %v4368 = vld [vmem:[%s355 + $0xb4] sm:$0xf]
      %v4369 = vld [vmem:[%s355 + $0xb8] sm:$0xf]
      %v4370 = vld [vmem:[%s355 + $0xbc] sm:$0xf]
      %v4371 = vld [vmem:[%s355 + $0xc0] sm:$0xf]
      %v4372 = vld [vmem:[%s355 + $0xc4] sm:$0xf]
      %v4373 = vld [vmem:[%s355 + $0xc8] sm:$0xf]
      %v4374 = vld [vmem:[%s355 + $0xcc] sm:$0xf]
      %v4375 = vld [vmem:[%s355 + $0xd0] sm:$0xf]
      %v4376 = vld [vmem:[%s355 + $0xd4] sm:$0xf]
      %v4377 = vld [vmem:[%s355 + $0xd8] sm:$0xf]
      %v4378 = vld [vmem:[%s355 + $0xdc] sm:$0xf]
      %v4379 = vld [vmem:[%s355 + $0xe0] sm:$0xf]
      %v4380 = vld [vmem:[%s355 + $0xe4] sm:$0xf]
      %v4381 = vld [vmem:[%s355 + $0xe8] sm:$0xf]
      %v4382 = vld [vmem:[%s355 + $0xec] sm:$0xf]
      %v4383 = vld [vmem:[%s355 + $0xf0] sm:$0xf]
      %v4384 = vld [vmem:[%s355 + $0xf4] sm:$0xf]
      %v4385 = vld [vmem:[%s355 + $0xf8] sm:$0xf]
      %v4386 = vld [vmem:[%s355 + $0xfc] sm:$0xf]
      %v4387 = vld [vmem:[%s355 + $0x100] sm:$0xf]
      %v4388 = vld [vmem:[%s355 + $0x104] sm:$0xf]
      %v4389 = vld [vmem:[%s355 + $0x108] sm:$0xf]
      %v4390 = vld [vmem:[%s355 + $0x10c] sm:$0xf]
      %v4391 = vld [vmem:[%s355 + $0x110] sm:$0xf]
      %v4392 = vld [vmem:[%s355 + $0x114] sm:$0xf]
      %v4393 = vld [vmem:[%s355 + $0x118] sm:$0xf]
      %v4394 = vld [vmem:[%s355 + $0x11c] sm:$0xf]
      %v4395 = vld [vmem:[%s355 + $0x120] sm:$0xf]
      %v4396 = vld [vmem:[%s355 + $0x124] sm:$0xf]
      %v4397 = vld [vmem:[%s355 + $0x128] sm:$0xf]
      %v4398 = vld [vmem:[%s355 + $0x12c] sm:$0xf]
      %v4399 = vld [vmem:[%s355 + $0x130] sm:$0xf]
      %v4400 = vld [vmem:[%s355 + $0x134] sm:$0xf]
      %v4401 = vld [vmem:[%s355 + $0x138] sm:$0xf]
      %v4402 = vld [vmem:[%s355 + $0x13c] sm:$0xf]
      %v4403 = vld [vmem:[%s355 + $0x140] sm:$0xf]
      %v4404 = vld [vmem:[%s355 + $0x144] sm:$0xf]
      %v4405 = vld [vmem:[%s355 + $0x148] sm:$0xf]
      %v4406 = vld [vmem:[%s355 + $0x14c] sm:$0xf]
      %v4407 = vld [vmem:[%s355 + $0x150] sm:$0xf]
      %v4408 = vld [vmem:[%s355 + $0x154] sm:$0xf]
      %v4409 = vld [vmem:[%s355 + $0x158] sm:$0xf]
      %v4410 = vld [vmem:[%s355 + $0x15c] sm:$0xf]
      %v4411 = vld [vmem:[%s355 + $0x160] sm:$0xf]
      %v4412 = vld [vmem:[%s355 + $0x164] sm:$0xf]
      %v4413 = vld [vmem:[%s355 + $0x168] sm:$0xf]
      %v4414 = vld [vmem:[%s355 + $0x16c] sm:$0xf]
      %v4415 = vld [vmem:[%s355 + $0x170] sm:$0xf]
      %v4416 = vld [vmem:[%s355 + $0x174] sm:$0xf]
      %v4417 = vld [vmem:[%s355 + $0x178] sm:$0xf]
      %v4418 = vld [vmem:[%s355 + $0x17c] sm:$0xf]
      %v4419 = vld [vmem:[%s355 + $0x180] sm:$0xf]
      %v4420 = vld [vmem:[%s355 + $0x184] sm:$0xf]
      %v4421 = vld [vmem:[%s355 + $0x188] sm:$0xf]
      %v4422 = vld [vmem:[%s355 + $0x18c] sm:$0xf]
      %v4423 = vld [vmem:[%s355 + $0x190] sm:$0xf]
      %v4424 = vld [vmem:[%s355 + $0x194] sm:$0xf]
      %v4425 = vld [vmem:[%s355 + $0x198] sm:$0xf]
      %v4426 = vld [vmem:[%s355 + $0x19c] sm:$0xf]
      %v4427 = vld [vmem:[%s355 + $0x1a0] sm:$0xf]
      %v4428 = vld [vmem:[%s355 + $0x1a4] sm:$0xf]
      %v4429 = vld [vmem:[%s355 + $0x1a8] sm:$0xf]
      %v4430 = vld [vmem:[%s355 + $0x1ac] sm:$0xf]
      %v4431 = vld [vmem:[%s355 + $0x1b0] sm:$0xf]
      %v4432 = vld [vmem:[%s355 + $0x1b4] sm:$0xf]
      %v4433 = vld [vmem:[%s355 + $0x1b8] sm:$0xf]
      %v4434 = vld [vmem:[%s355 + $0x1bc] sm:$0xf]
      %v4435 = vld [vmem:[%s355 + $0x1c0] sm:$0xf]
      %v4436 = vld [vmem:[%s355 + $0x1c4] sm:$0xf]
      %v4437 = vld [vmem:[%s355 + $0x1c8] sm:$0xf]
      %v4438 = vld [vmem:[%s355 + $0x1cc] sm:$0xf]
      %v4439 = vld [vmem:[%s355 + $0x1d0] sm:$0xf]
      %v4440 = vld [vmem:[%s355 + $0x1d4] sm:$0xf]
      %v4441 = vld [vmem:[%s355 + $0x1d8] sm:$0xf]
      %v4442 = vld [vmem:[%s355 + $0x1dc] sm:$0xf]
      %v4443 = vld [vmem:[%s355 + $0x1e0] sm:$0xf]
      %v4444 = vld [vmem:[%s355 + $0x1e4] sm:$0xf]
      %v4445 = vld [vmem:[%s355 + $0x1e8] sm:$0xf]
      %v4446 = vld [vmem:[%s355 + $0x1ec] sm:$0xf]
      %v4447 = vld [vmem:[%s355 + $0x1f0] sm:$0xf]
      %v4448 = vld [vmem:[%s355 + $0x1f4] sm:$0xf]
      %v4449 = vld [vmem:[%s355 + $0x1f8] sm:$0xf]
      %v4450 = vld [vmem:[%s355 + $0x1fc] sm:$0xf]
      %v4451 = vld [vmem:[%s355 + $0x200] sm:$0xf]
      %v4452 = vld [vmem:[%s355 + $0x204] sm:$0xf]
      %v4453 = vld [vmem:[%s355 + $0x208] sm:$0xf]
      %v4454 = vld [vmem:[%s355 + $0x20c] sm:$0xf]
      %v4455 = vld [vmem:[%s355 + $0x210] sm:$0xf]
      %v4456 = vld [vmem:[%s355 + $0x214] sm:$0xf]
      %v4457 = vld [vmem:[%s355 + $0x218] sm:$0xf]
      %v4458 = vld [vmem:[%s355 + $0x21c] sm:$0xf]
      %v4459 = vld [vmem:[%s355 + $0x220] sm:$0xf]
      %v4460 = vld [vmem:[%s355 + $0x224] sm:$0xf]
      %v4461 = vld [vmem:[%s355 + $0x228] sm:$0xf]
      %v4462 = vld [vmem:[%s355 + $0x22c] sm:$0xf]
      %v4463 = vld [vmem:[%s355 + $0x230] sm:$0xf]
      %v4464 = vld [vmem:[%s355 + $0x234] sm:$0xf]
      %v4465 = vld [vmem:[%s355 + $0x238] sm:$0xf]
      %v4466 = vld [vmem:[%s355 + $0x23c] sm:$0xf]
      %v4611 = vunpack.c.l.b16 %v4323
      %v4612 = vunpack.c.l.b16 %v4324
      %v4613 = vunpack.c.l.b16 %v4325
      %v4614 = vunpack.c.l.b16 %v4326
      %v4615 = vunpack.c.l.b16 %v4327
      %v4616 = vunpack.c.l.b16 %v4328
      %v4617 = vunpack.c.l.b16 %v4329
      %v4618 = vunpack.c.l.b16 %v4330
      %v4619 = vunpack.c.l.b16 %v4331
      %v4620 = vunpack.c.l.b16 %v4332
      %v4621 = vunpack.c.l.b16 %v4333
      %v4622 = vunpack.c.l.b16 %v4334
      %v4623 = vunpack.c.l.b16 %v4335
      %v4624 = vunpack.c.l.b16 %v4336
      %v4625 = vunpack.c.l.b16 %v4337
      %v4626 = vunpack.c.l.b16 %v4338
      %v4627 = vunpack.c.l.b16 %v4339
      %v4628 = vunpack.c.l.b16 %v4340
      %v4629 = vunpack.c.l.b16 %v4341
      %v4630 = vunpack.c.l.b16 %v4342
      %v4631 = vunpack.c.l.b16 %v4343
      %v4632 = vunpack.c.l.b16 %v4344
      %v4633 = vunpack.c.l.b16 %v4345
      %v4634 = vunpack.c.l.b16 %v4346
      %v4635 = vunpack.c.l.b16 %v4347
      %v4636 = vunpack.c.l.b16 %v4348
      %v4637 = vunpack.c.l.b16 %v4349
      %v4638 = vunpack.c.l.b16 %v4350
      %v4639 = vunpack.c.l.b16 %v4351
      %v4640 = vunpack.c.l.b16 %v4352
      %v4641 = vunpack.c.l.b16 %v4353
      %v4642 = vunpack.c.l.b16 %v4354
      %v4643 = vunpack.c.l.b16 %v4355
      %v4644 = vunpack.c.l.b16 %v4356
      %v4645 = vunpack.c.l.b16 %v4357
      %v4646 = vunpack.c.l.b16 %v4358
      %v4647 = vunpack.c.l.b16 %v4359
      %v4648 = vunpack.c.l.b16 %v4360
      %v4649 = vunpack.c.l.b16 %v4361
      %v4650 = vunpack.c.l.b16 %v4362
      %v4651 = vunpack.c.l.b16 %v4363
      %v4652 = vunpack.c.l.b16 %v4364
      %v4653 = vunpack.c.l.b16 %v4365
      %v4654 = vunpack.c.l.b16 %v4366
      %v4655 = vunpack.c.l.b16 %v4367
      %v4656 = vunpack.c.l.b16 %v4368
      %v4657 = vunpack.c.l.b16 %v4369
      %v4658 = vunpack.c.l.b16 %v4370
      %v4659 = vunpack.c.l.b16 %v4371
      %v4660 = vunpack.c.l.b16 %v4372
      %v4661 = vunpack.c.l.b16 %v4373
      %v4662 = vunpack.c.l.b16 %v4374
      %v4663 = vunpack.c.l.b16 %v4375
      %v4664 = vunpack.c.l.b16 %v4376
      %v4665 = vunpack.c.l.b16 %v4377
      %v4666 = vunpack.c.l.b16 %v4378
      %v4667 = vunpack.c.l.b16 %v4379
      %v4668 = vunpack.c.l.b16 %v4380
      %v4669 = vunpack.c.l.b16 %v4381
      %v4670 = vunpack.c.l.b16 %v4382
      %v4671 = vunpack.c.l.b16 %v4383
      %v4672 = vunpack.c.l.b16 %v4384
      %v4673 = vunpack.c.l.b16 %v4385
      %v4674 = vunpack.c.l.b16 %v4386
      %v4675 = vunpack.c.l.b16 %v4387
      %v4676 = vunpack.c.l.b16 %v4388
      %v4677 = vunpack.c.l.b16 %v4389
      %v4678 = vunpack.c.l.b16 %v4390
      %v4679 = vunpack.c.l.b16 %v4391
      %v4680 = vunpack.c.l.b16 %v4392
      %v4681 = vunpack.c.l.b16 %v4393
      %v4682 = vunpack.c.l.b16 %v4394
      %v4683 = vunpack.c.l.b16 %v4395
      %v4684 = vunpack.c.l.b16 %v4396
      %v4685 = vunpack.c.l.b16 %v4397
      %v4686 = vunpack.c.l.b16 %v4398
      %v4687 = vunpack.c.l.b16 %v4399
      %v4688 = vunpack.c.l.b16 %v4400
      %v4689 = vunpack.c.l.b16 %v4401
      %v4690 = vunpack.c.l.b16 %v4402
      %v4691 = vunpack.c.l.b16 %v4403
      %v4692 = vunpack.c.l.b16 %v4404
      %v4693 = vunpack.c.l.b16 %v4405
      %v4694 = vunpack.c.l.b16 %v4406
      %v4695 = vunpack.c.l.b16 %v4407
      %v4696 = vunpack.c.l.b16 %v4408
      %v4697 = vunpack.c.l.b16 %v4409
      %v4698 = vunpack.c.l.b16 %v4410
      %v4699 = vunpack.c.l.b16 %v4411
      %v4700 = vunpack.c.l.b16 %v4412
      %v4701 = vunpack.c.l.b16 %v4413
      %v4702 = vunpack.c.l.b16 %v4414
      %v4703 = vunpack.c.l.b16 %v4415
      %v4704 = vunpack.c.l.b16 %v4416
      %v4705 = vunpack.c.l.b16 %v4417
      %v4706 = vunpack.c.l.b16 %v4418
      %v4707 = vunpack.c.l.b16 %v4419
      %v4708 = vunpack.c.l.b16 %v4420
      %v4709 = vunpack.c.l.b16 %v4421
      %v4710 = vunpack.c.l.b16 %v4422
      %v4711 = vunpack.c.l.b16 %v4423
      %v4712 = vunpack.c.l.b16 %v4424
      %v4713 = vunpack.c.l.b16 %v4425
      %v4714 = vunpack.c.l.b16 %v4426
      %v4715 = vunpack.c.l.b16 %v4427
      %v4716 = vunpack.c.l.b16 %v4428
      %v4717 = vunpack.c.l.b16 %v4429
      %v4718 = vunpack.c.l.b16 %v4430
      %v4719 = vunpack.c.l.b16 %v4431
      %v4720 = vunpack.c.l.b16 %v4432
      %v4721 = vunpack.c.l.b16 %v4433
      %v4722 = vunpack.c.l.b16 %v4434
      %v4723 = vunpack.c.l.b16 %v4435
      %v4724 = vunpack.c.l.b16 %v4436
      %v4725 = vunpack.c.l.b16 %v4437
      %v4726 = vunpack.c.l.b16 %v4438
      %v4727 = vunpack.c.l.b16 %v4439
      %v4728 = vunpack.c.l.b16 %v4440
      %v4729 = vunpack.c.l.b16 %v4441
      %v4730 = vunpack.c.l.b16 %v4442
      %v4731 = vunpack.c.l.b16 %v4443
      %v4732 = vunpack.c.l.b16 %v4444
      %v4733 = vunpack.c.l.b16 %v4445
      %v4734 = vunpack.c.l.b16 %v4446
      %v4735 = vunpack.c.l.b16 %v4447
      %v4736 = vunpack.c.l.b16 %v4448
      %v4737 = vunpack.c.l.b16 %v4449
      %v4738 = vunpack.c.l.b16 %v4450
      %v4739 = vunpack.c.l.b16 %v4451
      %v4740 = vunpack.c.l.b16 %v4452
      %v4741 = vunpack.c.l.b16 %v4453
      %v4742 = vunpack.c.l.b16 %v4454
      %v4743 = vunpack.c.l.b16 %v4455
      %v4744 = vunpack.c.l.b16 %v4456
      %v4745 = vunpack.c.l.b16 %v4457
      %v4746 = vunpack.c.l.b16 %v4458
      %v4747 = vunpack.c.l.b16 %v4459
      %v4748 = vunpack.c.l.b16 %v4460
      %v4749 = vunpack.c.l.b16 %v4461
      %v4750 = vunpack.c.l.b16 %v4462
      %v4751 = vunpack.c.l.b16 %v4463
      %v4752 = vunpack.c.l.b16 %v4464
      %v4753 = vunpack.c.l.b16 %v4465
      %v4754 = vunpack.c.l.b16 %v4466
      %v4755 = vpack.c.b16 %v4612, %v4611
      %v4756 = vpack.c.b16 %v4614, %v4613
      %v4757 = vpack.c.b16 %v4616, %v4615
      %v4758 = vpack.c.b16 %v4618, %v4617
      %v4759 = vpack.c.b16 %v4620, %v4619
      %v4760 = vpack.c.b16 %v4622, %v4621
      %v4761 = vpack.c.b16 %v4624, %v4623
      %v4762 = vpack.c.b16 %v4626, %v4625
      %v4763 = vpack.c.b16 %v4628, %v4627
      %v4764 = vpack.c.b16 %v4630, %v4629
      %v4765 = vpack.c.b16 %v4632, %v4631
      %v4766 = vpack.c.b16 %v4634, %v4633
      %v4767 = vpack.c.b16 %v4636, %v4635
      %v4768 = vpack.c.b16 %v4638, %v4637
      %v4769 = vpack.c.b16 %v4640, %v4639
      %v4770 = vpack.c.b16 %v4642, %v4641
      %v4771 = vpack.c.b16 %v4644, %v4643
      %v4772 = vpack.c.b16 %v4646, %v4645
      %v4773 = vpack.c.b16 %v4648, %v4647
      %v4774 = vpack.c.b16 %v4650, %v4649
      %v4775 = vpack.c.b16 %v4652, %v4651
      %v4776 = vpack.c.b16 %v4654, %v4653
      %v4777 = vpack.c.b16 %v4656, %v4655
      %v4778 = vpack.c.b16 %v4658, %v4657
      %v4779 = vpack.c.b16 %v4660, %v4659
      %v4780 = vpack.c.b16 %v4662, %v4661
      %v4781 = vpack.c.b16 %v4664, %v4663
      %v4782 = vpack.c.b16 %v4666, %v4665
      %v4783 = vpack.c.b16 %v4668, %v4667
      %v4784 = vpack.c.b16 %v4670, %v4669
      %v4785 = vpack.c.b16 %v4672, %v4671
      %v4786 = vpack.c.b16 %v4674, %v4673
      %v4787 = vpack.c.b16 %v4676, %v4675
      %v4788 = vpack.c.b16 %v4678, %v4677
      %v4789 = vpack.c.b16 %v4680, %v4679
      %v4790 = vpack.c.b16 %v4682, %v4681
      %v4791 = vpack.c.b16 %v4684, %v4683
      %v4792 = vpack.c.b16 %v4686, %v4685
      %v4793 = vpack.c.b16 %v4688, %v4687
      %v4794 = vpack.c.b16 %v4690, %v4689
      %v4795 = vpack.c.b16 %v4692, %v4691
      %v4796 = vpack.c.b16 %v4694, %v4693
      %v4797 = vpack.c.b16 %v4696, %v4695
      %v4798 = vpack.c.b16 %v4698, %v4697
      %v4799 = vpack.c.b16 %v4700, %v4699
      %v4800 = vpack.c.b16 %v4702, %v4701
      %v4801 = vpack.c.b16 %v4704, %v4703
      %v4802 = vpack.c.b16 %v4706, %v4705
      %v4803 = vpack.c.b16 %v4708, %v4707
      %v4804 = vpack.c.b16 %v4710, %v4709
      %v4805 = vpack.c.b16 %v4712, %v4711
      %v4806 = vpack.c.b16 %v4714, %v4713
      %v4807 = vpack.c.b16 %v4716, %v4715
      %v4808 = vpack.c.b16 %v4718, %v4717
      %v4809 = vpack.c.b16 %v4720, %v4719
      %v4810 = vpack.c.b16 %v4722, %v4721
      %v4811 = vpack.c.b16 %v4724, %v4723
      %v4812 = vpack.c.b16 %v4726, %v4725
      %v4813 = vpack.c.b16 %v4728, %v4727
      %v4814 = vpack.c.b16 %v4730, %v4729
      %v4815 = vpack.c.b16 %v4732, %v4731
      %v4816 = vpack.c.b16 %v4734, %v4733
      %v4817 = vpack.c.b16 %v4736, %v4735
      %v4818 = vpack.c.b16 %v4738, %v4737
      %v4819 = vpack.c.b16 %v4740, %v4739
      %v4820 = vpack.c.b16 %v4742, %v4741
      %v4821 = vpack.c.b16 %v4744, %v4743
      %v4822 = vpack.c.b16 %v4746, %v4745
      %v4823 = vpack.c.b16 %v4748, %v4747
      %v4824 = vpack.c.b16 %v4750, %v4749
      %v4825 = vpack.c.b16 %v4752, %v4751
      %v4826 = vpack.c.b16 %v4754, %v4753
      %4899 = vmatprep.subr.bf16.mxu0 0
      %4900 = vmatpush1.bf16.msra.mxu0 %v4762
      %4901 = vmatprep.subr.bf16.mxu0 0
      %4902 = vmatpush1.bf16.msra.mxu0 %v4761
      %4903 = vmatprep.subr.bf16.mxu0 0
      %4904 = vmatpush1.bf16.msra.mxu0 %v4760
      %4905 = vmatprep.subr.bf16.mxu0 0
      %4906 = vmatpush1.bf16.msra.mxu0 %v4759
      %4907 = vmatprep.subr.bf16.mxu0 0
      %4908 = vmatpush1.bf16.msra.mxu0 %v4758
      %4909 = vmatprep.subr.bf16.mxu0 0
      %4910 = vmatpush1.bf16.msra.mxu0 %v4757
      %4911 = vmatprep.subr.bf16.mxu0 0
      %4912 = vmatpush1.bf16.msra.mxu0 %v4756
      %4913 = vmatprep.subr.bf16.mxu0 0
      %4914 = vmatpush1.bf16.msra.mxu0 %v4755
      %4915 = vmatprep.subr.bf16.mxu0 0
      %4916 = vmatpush2.bf16.msra.mxu0 %v4770
      %4917 = vmatprep.subr.bf16.mxu0 0
      %4918 = vmatpush2.bf16.msra.mxu0 %v4769
      %4919 = vmatprep.subr.bf16.mxu0 0
      %4920 = vmatpush2.bf16.msra.mxu0 %v4768
      %4921 = vmatprep.subr.bf16.mxu0 0
      %4922 = vmatpush2.bf16.msra.mxu0 %v4767
      %4923 = vmatprep.subr.bf16.mxu0 0
      %4924 = vmatpush2.bf16.msra.mxu0 %v4766
      %4925 = vmatprep.subr.bf16.mxu0 0
      %4926 = vmatpush2.bf16.msra.mxu0 %v4765
      %4927 = vmatprep.subr.bf16.mxu0 0
      %4928 = vmatpush2.bf16.msra.mxu0 %v4764
      %4929 = vmatprep.subr.bf16.mxu0 0
      %4930 = vmatpush2.bf16.msra.mxu0 %v4763
      %4931 = vmatprep.mubr.bf16.mxu0 %v2072
      %4932 = vmatmul.mubr.bf16.gmra.mxu0 %v2063
      %v4933 = vpop.f32.mrf.mxu0
      %v4934 = vadd.f32 0.0, %v4933
      %v4935 = vpop.f32.mrf.mxu0
      %v4936 = vpop.f32.mrf.mxu0
      %v4937 = vadd.f32 0.0, %v4936
      %v4938 = vpop.f32.mrf.mxu0
      %4939 = vmatprep.mubr.bf16.mxu0 %v2201
      %4940 = vmatmul.mubr.bf16.gmra.mxu0 %v2192
      %v4941 = vpop.f32.mrf.mxu0
      %v4942 = vadd.f32 0.0, %v4941
      %v4943 = vpop.f32.mrf.mxu0
      %v4944 = vpop.f32.mrf.mxu0
      %v4945 = vadd.f32 0.0, %v4944
      %v4946 = vpop.f32.mrf.mxu0
      %4947 = vmatprep.mubr.bf16.mxu0 %v2330
      %4948 = vmatmul.mubr.bf16.gmra.mxu0 %v2321
      %v4949 = vpop.f32.mrf.mxu0
      %v4950 = vadd.f32 0.0, %v4949
      %v4951 = vpop.f32.mrf.mxu0
      %v4952 = vpop.f32.mrf.mxu0
      %v4953 = vadd.f32 0.0, %v4952
      %v4954 = vpop.f32.mrf.mxu0
      %4955 = vmatprep.mubr.bf16.mxu0 %v2459
      %4956 = vmatmul.mubr.bf16.gmra.mxu0 %v2450
      %v4957 = vpop.f32.mrf.mxu0
      %v4958 = vadd.f32 0.0, %v4957
      %v4959 = vpop.f32.mrf.mxu0
      %v4960 = vpop.f32.mrf.mxu0
      %v4961 = vadd.f32 0.0, %v4960
      %v4962 = vpop.f32.mrf.mxu0
      %4963 = vmatprep.mubr.bf16.mxu0 %v2588
      %4964 = vmatmul.mubr.bf16.gmra.mxu0 %v2579
      %v4965 = vpop.f32.mrf.mxu0
      %v4966 = vadd.f32 0.0, %v4965
      %v4967 = vpop.f32.mrf.mxu0
      %v4968 = vpop.f32.mrf.mxu0
      %v4969 = vadd.f32 0.0, %v4968
      %v4970 = vpop.f32.mrf.mxu0
      %4971 = vmatprep.mubr.bf16.mxu0 %v2717
      %4972 = vmatmul.mubr.bf16.gmra.mxu0 %v2708
      %v4973 = vpop.f32.mrf.mxu0
      %v4974 = vadd.f32 0.0, %v4973
      %v4975 = vpop.f32.mrf.mxu0
      %v4976 = vpop.f32.mrf.mxu0
      %v4977 = vadd.f32 0.0, %v4976
      %v4978 = vpop.f32.mrf.mxu0
      %4979 = vmatprep.mubr.bf16.mxu0 %v2846
      %4980 = vmatmul.mubr.bf16.gmra.mxu0 %v2837
      %v4981 = vpop.f32.mrf.mxu0
      %v4982 = vadd.f32 0.0, %v4981
      %v4983 = vpop.f32.mrf.mxu0
      %v4984 = vpop.f32.mrf.mxu0
      %v4985 = vadd.f32 0.0, %v4984
      %v4986 = vpop.f32.mrf.mxu0
      %4987 = vmatprep.mubr.bf16.mxu0 %v2975
      %4988 = vmatmul.mubr.bf16.gmra.mxu0 %v2966
      %v4989 = vpop.f32.mrf.mxu0
      %v4990 = vadd.f32 0.0, %v4989
      %v4991 = vpop.f32.mrf.mxu0
      %v4992 = vpop.f32.mrf.mxu0
      %v4993 = vadd.f32 0.0, %v4992
      %v4994 = vpop.f32.mrf.mxu0
      %4995 = vmatprep.mubr.bf16.mxu0 %v3104
      %4996 = vmatmul.mubr.bf16.gmra.mxu0 %v3095
      %v4997 = vpop.f32.mrf.mxu0
      %v4998 = vadd.f32 0.0, %v4997
      %v4999 = vpop.f32.mrf.mxu0
      %v5000 = vpop.f32.mrf.mxu0
      %v5001 = vadd.f32 0.0, %v5000
      %v5002 = vpop.f32.mrf.mxu0
      %5003 = vmatprep.mubr.bf16.mxu0 %v3233
      %5004 = vmatmul.mubr.bf16.gmra.mxu0 %v3224
      %v5005 = vpop.f32.mrf.mxu0
      %v5006 = vadd.f32 0.0, %v5005
      %v5007 = vpop.f32.mrf.mxu0
      %v5008 = vpop.f32.mrf.mxu0
      %v5009 = vadd.f32 0.0, %v5008
      %v5010 = vpop.f32.mrf.mxu0
      %5011 = vmatprep.mubr.bf16.mxu0 %v3362
      %5012 = vmatmul.mubr.bf16.gmra.mxu0 %v3353
      %v5013 = vpop.f32.mrf.mxu0
      %v5014 = vadd.f32 0.0, %v5013
      %v5015 = vpop.f32.mrf.mxu0
      %v5016 = vpop.f32.mrf.mxu0
      %v5017 = vadd.f32 0.0, %v5016
      %v5018 = vpop.f32.mrf.mxu0
      %5019 = vmatprep.mubr.bf16.mxu0 %v3491
      %5020 = vmatmul.mubr.bf16.gmra.mxu0 %v3482
      %v5021 = vpop.f32.mrf.mxu0
      %v5022 = vadd.f32 0.0, %v5021
      %v5023 = vpop.f32.mrf.mxu0
      %v5024 = vpop.f32.mrf.mxu0
      %v5025 = vadd.f32 0.0, %v5024
      %v5026 = vpop.f32.mrf.mxu0
      %5027 = vmatprep.mubr.bf16.mxu0 %v3620
      %5028 = vmatmul.mubr.bf16.gmra.mxu0 %v3611
      %v5029 = vpop.f32.mrf.mxu0
      %v5030 = vadd.f32 0.0, %v5029
      %v5031 = vpop.f32.mrf.mxu0
      %v5032 = vpop.f32.mrf.mxu0
      %v5033 = vadd.f32 0.0, %v5032
      %v5034 = vpop.f32.mrf.mxu0
      %5035 = vmatprep.mubr.bf16.mxu0 %v3749
      %5036 = vmatmul.mubr.bf16.gmra.mxu0 %v3740
      %v5037 = vpop.f32.mrf.mxu0
      %v5038 = vadd.f32 0.0, %v5037
      %v5039 = vpop.f32.mrf.mxu0
      %v5040 = vpop.f32.mrf.mxu0
      %v5041 = vadd.f32 0.0, %v5040
      %v5042 = vpop.f32.mrf.mxu0
      %5043 = vmatprep.mubr.bf16.mxu0 %v3878
      %5044 = vmatmul.mubr.bf16.gmra.mxu0 %v3869
      %v5045 = vpop.f32.mrf.mxu0
      %v5046 = vadd.f32 0.0, %v5045
      %v5047 = vpop.f32.mrf.mxu0
      %v5048 = vpop.f32.mrf.mxu0
      %v5049 = vadd.f32 0.0, %v5048
      %v5050 = vpop.f32.mrf.mxu0
      %5051 = vmatprep.mubr.bf16.mxu0 %v4007
      %5052 = vmatmul.mubr.bf16.gmra.mxu0 %v3998
      %v5053 = vpop.f32.mrf.mxu0
      %v5054 = vadd.f32 0.0, %v5053
      %v5055 = vpop.f32.mrf.mxu0
      %v5056 = vpop.f32.mrf.mxu0
      %v5057 = vadd.f32 0.0, %v5056
      %v5058 = vpop.f32.mrf.mxu0
      %5059 = vdwg.mxu0
      %5060 = vmatprep.subr.bf16.mxu0 0
      %5061 = vmatpush1.bf16.msra.mxu0 %v4778
      %5062 = vmatprep.subr.bf16.mxu0 0
      %5063 = vmatpush1.bf16.msra.mxu0 %v4777
      %5064 = vmatprep.subr.bf16.mxu0 0
      %5065 = vmatpush1.bf16.msra.mxu0 %v4776
      %5066 = vmatprep.subr.bf16.mxu0 0
      %5067 = vmatpush1.bf16.msra.mxu0 %v4775
      %5068 = vmatprep.subr.bf16.mxu0 0
      %5069 = vmatpush1.bf16.msra.mxu0 %v4774
      %5070 = vmatprep.subr.bf16.mxu0 0
      %5071 = vmatpush1.bf16.msra.mxu0 %v4773
      %5072 = vmatprep.subr.bf16.mxu0 0
      %5073 = vmatpush1.bf16.msra.mxu0 %v4772
      %5074 = vmatprep.subr.bf16.mxu0 0
      %5075 = vmatpush1.bf16.msra.mxu0 %v4771
      %5076 = vmatprep.subr.bf16.mxu0 0
      %5077 = vmatpush2.bf16.msra.mxu0 %v4786
      %5078 = vmatprep.subr.bf16.mxu0 0
      %5079 = vmatpush2.bf16.msra.mxu0 %v4785
      %5080 = vmatprep.subr.bf16.mxu0 0
      %5081 = vmatpush2.bf16.msra.mxu0 %v4784
      %5082 = vmatprep.subr.bf16.mxu0 0
      %5083 = vmatpush2.bf16.msra.mxu0 %v4783
      %5084 = vmatprep.subr.bf16.mxu0 0
      %5085 = vmatpush2.bf16.msra.mxu0 %v4782
      %5086 = vmatprep.subr.bf16.mxu0 0
      %5087 = vmatpush2.bf16.msra.mxu0 %v4781
      %5088 = vmatprep.subr.bf16.mxu0 0
      %5089 = vmatpush2.bf16.msra.mxu0 %v4780
      %5090 = vmatprep.subr.bf16.mxu0 0
      %5091 = vmatpush2.bf16.msra.mxu0 %v4779
      %5092 = vmatprep.mubr.bf16.mxu0 %v2106
      %5093 = vmatmul.mubr.bf16.gmra.mxu0 %v2089
      %v5094 = vpop.f32.mrf.mxu0
      %v5095 = vadd.f32 %v4934, %v5094
      %v5096 = vpop.f32.mrf.mxu0
      %v5097 = vpop.f32.mrf.mxu0
      %v5098 = vadd.f32 %v4937, %v5097
      %v5099 = vpop.f32.mrf.mxu0
      %5100 = vmatprep.mubr.bf16.mxu0 %v2235
      %5101 = vmatmul.mubr.bf16.gmra.mxu0 %v2218
      %v5102 = vpop.f32.mrf.mxu0
      %v5103 = vadd.f32 %v4942, %v5102
      %v5104 = vpop.f32.mrf.mxu0
      %v5105 = vpop.f32.mrf.mxu0
      %v5106 = vadd.f32 %v4945, %v5105
      %v5107 = vpop.f32.mrf.mxu0
      %5108 = vmatprep.mubr.bf16.mxu0 %v2364
      %5109 = vmatmul.mubr.bf16.gmra.mxu0 %v2347
      %v5110 = vpop.f32.mrf.mxu0
      %v5111 = vadd.f32 %v4950, %v5110
      %v5112 = vpop.f32.mrf.mxu0
      %v5113 = vpop.f32.mrf.mxu0
      %v5114 = vadd.f32 %v4953, %v5113
      %v5115 = vpop.f32.mrf.mxu0
      %5116 = vmatprep.mubr.bf16.mxu0 %v2493
      %5117 = vmatmul.mubr.bf16.gmra.mxu0 %v2476
      %v5118 = vpop.f32.mrf.mxu0
      %v5119 = vadd.f32 %v4958, %v5118
      %v5120 = vpop.f32.mrf.mxu0
      %v5121 = vpop.f32.mrf.mxu0
      %v5122 = vadd.f32 %v4961, %v5121
      %v5123 = vpop.f32.mrf.mxu0
      %5124 = vmatprep.mubr.bf16.mxu0 %v2622
      %5125 = vmatmul.mubr.bf16.gmra.mxu0 %v2605
      %v5126 = vpop.f32.mrf.mxu0
      %v5127 = vadd.f32 %v4966, %v5126
      %v5128 = vpop.f32.mrf.mxu0
      %v5129 = vpop.f32.mrf.mxu0
      %v5130 = vadd.f32 %v4969, %v5129
      %v5131 = vpop.f32.mrf.mxu0
      %5132 = vmatprep.mubr.bf16.mxu0 %v2751
      %5133 = vmatmul.mubr.bf16.gmra.mxu0 %v2734
      %v5134 = vpop.f32.mrf.mxu0
      %v5135 = vadd.f32 %v4974, %v5134
      %v5136 = vpop.f32.mrf.mxu0
      %v5137 = vpop.f32.mrf.mxu0
      %v5138 = vadd.f32 %v4977, %v5137
      %v5139 = vpop.f32.mrf.mxu0
      %5140 = vmatprep.mubr.bf16.mxu0 %v2880
      %5141 = vmatmul.mubr.bf16.gmra.mxu0 %v2863
      %v5142 = vpop.f32.mrf.mxu0
      %v5143 = vadd.f32 %v4982, %v5142
      %v5144 = vpop.f32.mrf.mxu0
      %v5145 = vpop.f32.mrf.mxu0
      %v5146 = vadd.f32 %v4985, %v5145
      %v5147 = vpop.f32.mrf.mxu0
      %5148 = vmatprep.mubr.bf16.mxu0 %v3009
      %5149 = vmatmul.mubr.bf16.gmra.mxu0 %v2992
      %v5150 = vpop.f32.mrf.mxu0
      %v5151 = vadd.f32 %v4990, %v5150
      %v5152 = vpop.f32.mrf.mxu0
      %v5153 = vpop.f32.mrf.mxu0
      %v5154 = vadd.f32 %v4993, %v5153
      %v5155 = vpop.f32.mrf.mxu0
      %5156 = vmatprep.mubr.bf16.mxu0 %v3138
      %5157 = vmatmul.mubr.bf16.gmra.mxu0 %v3121
      %v5158 = vpop.f32.mrf.mxu0
      %v5159 = vadd.f32 %v4998, %v5158
      %v5160 = vpop.f32.mrf.mxu0
      %v5161 = vpop.f32.mrf.mxu0
      %v5162 = vadd.f32 %v5001, %v5161
      %v5163 = vpop.f32.mrf.mxu0
      %5164 = vmatprep.mubr.bf16.mxu0 %v3267
      %5165 = vmatmul.mubr.bf16.gmra.mxu0 %v3250
      %v5166 = vpop.f32.mrf.mxu0
      %v5167 = vadd.f32 %v5006, %v5166
      %v5168 = vpop.f32.mrf.mxu0
      %v5169 = vpop.f32.mrf.mxu0
      %v5170 = vadd.f32 %v5009, %v5169
      %v5171 = vpop.f32.mrf.mxu0
      %5172 = vmatprep.mubr.bf16.mxu0 %v3396
      %5173 = vmatmul.mubr.bf16.gmra.mxu0 %v3379
      %v5174 = vpop.f32.mrf.mxu0
      %v5175 = vadd.f32 %v5014, %v5174
      %v5176 = vpop.f32.mrf.mxu0
      %v5177 = vpop.f32.mrf.mxu0
      %v5178 = vadd.f32 %v5017, %v5177
      %v5179 = vpop.f32.mrf.mxu0
      %5180 = vmatprep.mubr.bf16.mxu0 %v3525
      %5181 = vmatmul.mubr.bf16.gmra.mxu0 %v3508
      %v5182 = vpop.f32.mrf.mxu0
      %v5183 = vadd.f32 %v5022, %v5182
      %v5184 = vpop.f32.mrf.mxu0
      %v5185 = vpop.f32.mrf.mxu0
      %v5186 = vadd.f32 %v5025, %v5185
      %v5187 = vpop.f32.mrf.mxu0
      %5188 = vmatprep.mubr.bf16.mxu0 %v3654
      %5189 = vmatmul.mubr.bf16.gmra.mxu0 %v3637
      %v5190 = vpop.f32.mrf.mxu0
      %v5191 = vadd.f32 %v5030, %v5190
      %v5192 = vpop.f32.mrf.mxu0
      %v5193 = vpop.f32.mrf.mxu0
      %v5194 = vadd.f32 %v5033, %v5193
      %v5195 = vpop.f32.mrf.mxu0
      %5196 = vmatprep.mubr.bf16.mxu0 %v3783
      %5197 = vmatmul.mubr.bf16.gmra.mxu0 %v3766
      %v5198 = vpop.f32.mrf.mxu0
      %v5199 = vadd.f32 %v5038, %v5198
      %v5200 = vpop.f32.mrf.mxu0
      %v5201 = vpop.f32.mrf.mxu0
      %v5202 = vadd.f32 %v5041, %v5201
      %v5203 = vpop.f32.mrf.mxu0
      %5204 = vmatprep.mubr.bf16.mxu0 %v3912
      %5205 = vmatmul.mubr.bf16.gmra.mxu0 %v3895
      %v5206 = vpop.f32.mrf.mxu0
      %v5207 = vadd.f32 %v5046, %v5206
      %v5208 = vpop.f32.mrf.mxu0
      %v5209 = vpop.f32.mrf.mxu0
      %v5210 = vadd.f32 %v5049, %v5209
      %v5211 = vpop.f32.mrf.mxu0
      %5212 = vmatprep.mubr.bf16.mxu0 %v4041
      %5213 = vmatmul.mubr.bf16.gmra.mxu0 %v4024
      %v5214 = vpop.f32.mrf.mxu0
      %v5215 = vadd.f32 %v5054, %v5214
      %v5216 = vpop.f32.mrf.mxu0
      %v5217 = vpop.f32.mrf.mxu0
      %v5218 = vadd.f32 %v5057, %v5217
      %v5219 = vpop.f32.mrf.mxu0
      %5220 = vdwg.mxu0
      %5221 = vmatprep.subr.bf16.mxu0 0
      %5222 = vmatpush1.bf16.msra.mxu0 %v4794
      %5223 = vmatprep.subr.bf16.mxu0 0
      %5224 = vmatpush1.bf16.msra.mxu0 %v4793
      %5225 = vmatprep.subr.bf16.mxu0 0
      %5226 = vmatpush1.bf16.msra.mxu0 %v4792
      %5227 = vmatprep.subr.bf16.mxu0 0
      %5228 = vmatpush1.bf16.msra.mxu0 %v4791
      %5229 = vmatprep.subr.bf16.mxu0 0
      %5230 = vmatpush1.bf16.msra.mxu0 %v4790
      %5231 = vmatprep.subr.bf16.mxu0 0
      %5232 = vmatpush1.bf16.msra.mxu0 %v4789
      %5233 = vmatprep.subr.bf16.mxu0 0
      %5234 = vmatpush1.bf16.msra.mxu0 %v4788
      %5235 = vmatprep.subr.bf16.mxu0 0
      %5236 = vmatpush1.bf16.msra.mxu0 %v4787
      %5237 = vmatprep.subr.bf16.mxu0 0
      %5238 = vmatpush2.bf16.msra.mxu0 %v4802
      %5239 = vmatprep.subr.bf16.mxu0 0
      %5240 = vmatpush2.bf16.msra.mxu0 %v4801
      %5241 = vmatprep.subr.bf16.mxu0 0
      %5242 = vmatpush2.bf16.msra.mxu0 %v4800
      %5243 = vmatprep.subr.bf16.mxu0 0
      %5244 = vmatpush2.bf16.msra.mxu0 %v4799
      %5245 = vmatprep.subr.bf16.mxu0 0
      %5246 = vmatpush2.bf16.msra.mxu0 %v4798
      %5247 = vmatprep.subr.bf16.mxu0 0
      %5248 = vmatpush2.bf16.msra.mxu0 %v4797
      %5249 = vmatprep.subr.bf16.mxu0 0
      %5250 = vmatpush2.bf16.msra.mxu0 %v4796
      %5251 = vmatprep.subr.bf16.mxu0 0
      %5252 = vmatpush2.bf16.msra.mxu0 %v4795
      %5253 = vmatprep.mubr.bf16.mxu0 %v2132
      %5254 = vmatmul.mubr.bf16.gmra.mxu0 %v2115
      %v5255 = vpop.f32.mrf.mxu0
      %v5256 = vadd.f32 %v5095, %v5255
      %v5257 = vpop.f32.mrf.mxu0
      %v5258 = vpop.f32.mrf.mxu0
      %v5259 = vadd.f32 %v5098, %v5258
      %v5260 = vpop.f32.mrf.mxu0
      %5261 = vmatprep.mubr.bf16.mxu0 %v2261
      %5262 = vmatmul.mubr.bf16.gmra.mxu0 %v2244
      %v5263 = vpop.f32.mrf.mxu0
      %v5264 = vadd.f32 %v5103, %v5263
      %v5265 = vpop.f32.mrf.mxu0
      %v5266 = vpop.f32.mrf.mxu0
      %v5267 = vadd.f32 %v5106, %v5266
      %v5268 = vpop.f32.mrf.mxu0
      %5269 = vmatprep.mubr.bf16.mxu0 %v2390
      %5270 = vmatmul.mubr.bf16.gmra.mxu0 %v2373
      %v5271 = vpop.f32.mrf.mxu0
      %v5272 = vadd.f32 %v5111, %v5271
      %v5273 = vpop.f32.mrf.mxu0
      %v5274 = vpop.f32.mrf.mxu0
      %v5275 = vadd.f32 %v5114, %v5274
      %v5276 = vpop.f32.mrf.mxu0
      %5277 = vmatprep.mubr.bf16.mxu0 %v2519
      %5278 = vmatmul.mubr.bf16.gmra.mxu0 %v2502
      %v5279 = vpop.f32.mrf.mxu0
      %v5280 = vadd.f32 %v5119, %v5279
      %v5281 = vpop.f32.mrf.mxu0
      %v5282 = vpop.f32.mrf.mxu0
      %v5283 = vadd.f32 %v5122, %v5282
      %v5284 = vpop.f32.mrf.mxu0
      %5285 = vmatprep.mubr.bf16.mxu0 %v2648
      %5286 = vmatmul.mubr.bf16.gmra.mxu0 %v2631
      %v5287 = vpop.f32.mrf.mxu0
      %v5288 = vadd.f32 %v5127, %v5287
      %v5289 = vpop.f32.mrf.mxu0
      %v5290 = vpop.f32.mrf.mxu0
      %v5291 = vadd.f32 %v5130, %v5290
      %v5292 = vpop.f32.mrf.mxu0
      %5293 = vmatprep.mubr.bf16.mxu0 %v2777
      %5294 = vmatmul.mubr.bf16.gmra.mxu0 %v2760
      %v5295 = vpop.f32.mrf.mxu0
      %v5296 = vadd.f32 %v5135, %v5295
      %v5297 = vpop.f32.mrf.mxu0
      %v5298 = vpop.f32.mrf.mxu0
      %v5299 = vadd.f32 %v5138, %v5298
      %v5300 = vpop.f32.mrf.mxu0
      %5301 = vmatprep.mubr.bf16.mxu0 %v2906
      %5302 = vmatmul.mubr.bf16.gmra.mxu0 %v2889
      %v5303 = vpop.f32.mrf.mxu0
      %v5304 = vadd.f32 %v5143, %v5303
      %v5305 = vpop.f32.mrf.mxu0
      %v5306 = vpop.f32.mrf.mxu0
      %v5307 = vadd.f32 %v5146, %v5306
      %v5308 = vpop.f32.mrf.mxu0
      %5309 = vmatprep.mubr.bf16.mxu0 %v3035
      %5310 = vmatmul.mubr.bf16.gmra.mxu0 %v3018
      %v5311 = vpop.f32.mrf.mxu0
      %v5312 = vadd.f32 %v5151, %v5311
      %v5313 = vpop.f32.mrf.mxu0
      %v5314 = vpop.f32.mrf.mxu0
      %v5315 = vadd.f32 %v5154, %v5314
      %v5316 = vpop.f32.mrf.mxu0
      %5317 = vmatprep.mubr.bf16.mxu0 %v3164
      %5318 = vmatmul.mubr.bf16.gmra.mxu0 %v3147
      %v5319 = vpop.f32.mrf.mxu0
      %v5320 = vadd.f32 %v5159, %v5319
      %v5321 = vpop.f32.mrf.mxu0
      %v5322 = vpop.f32.mrf.mxu0
      %v5323 = vadd.f32 %v5162, %v5322
      %v5324 = vpop.f32.mrf.mxu0
      %5325 = vmatprep.mubr.bf16.mxu0 %v3293
      %5326 = vmatmul.mubr.bf16.gmra.mxu0 %v3276
      %v5327 = vpop.f32.mrf.mxu0
      %v5328 = vadd.f32 %v5167, %v5327
      %v5329 = vpop.f32.mrf.mxu0
      %v5330 = vpop.f32.mrf.mxu0
      %v5331 = vadd.f32 %v5170, %v5330
      %v5332 = vpop.f32.mrf.mxu0
      %5333 = vmatprep.mubr.bf16.mxu0 %v3422
      %5334 = vmatmul.mubr.bf16.gmra.mxu0 %v3405
      %v5335 = vpop.f32.mrf.mxu0
      %v5336 = vadd.f32 %v5175, %v5335
      %v5337 = vpop.f32.mrf.mxu0
      %v5338 = vpop.f32.mrf.mxu0
      %v5339 = vadd.f32 %v5178, %v5338
      %v5340 = vpop.f32.mrf.mxu0
      %5341 = vmatprep.mubr.bf16.mxu0 %v3551
      %5342 = vmatmul.mubr.bf16.gmra.mxu0 %v3534
      %v5343 = vpop.f32.mrf.mxu0
      %v5344 = vadd.f32 %v5183, %v5343
      %v5345 = vpop.f32.mrf.mxu0
      %v5346 = vpop.f32.mrf.mxu0
      %v5347 = vadd.f32 %v5186, %v5346
      %v5348 = vpop.f32.mrf.mxu0
      %5349 = vmatprep.mubr.bf16.mxu0 %v3680
      %5350 = vmatmul.mubr.bf16.gmra.mxu0 %v3663
      %v5351 = vpop.f32.mrf.mxu0
      %v5352 = vadd.f32 %v5191, %v5351
      %v5353 = vpop.f32.mrf.mxu0
      %v5354 = vpop.f32.mrf.mxu0
      %v5355 = vadd.f32 %v5194, %v5354
      %v5356 = vpop.f32.mrf.mxu0
      %5357 = vmatprep.mubr.bf16.mxu0 %v3809
      %5358 = vmatmul.mubr.bf16.gmra.mxu0 %v3792
      %v5359 = vpop.f32.mrf.mxu0
      %v5360 = vadd.f32 %v5199, %v5359
      %v5361 = vpop.f32.mrf.mxu0
      %v5362 = vpop.f32.mrf.mxu0
      %v5363 = vadd.f32 %v5202, %v5362
      %v5364 = vpop.f32.mrf.mxu0
      %5365 = vmatprep.mubr.bf16.mxu0 %v3938
      %5366 = vmatmul.mubr.bf16.gmra.mxu0 %v3921
      %v5367 = vpop.f32.mrf.mxu0
      %v5368 = vadd.f32 %v5207, %v5367
      %v5369 = vpop.f32.mrf.mxu0
      %v5370 = vpop.f32.mrf.mxu0
      %v5371 = vadd.f32 %v5210, %v5370
      %v5372 = vpop.f32.mrf.mxu0
      %5373 = vmatprep.mubr.bf16.mxu0 %v4067
      %5374 = vmatmul.mubr.bf16.gmra.mxu0 %v4050
      %v5375 = vpop.f32.mrf.mxu0
      %v5376 = vadd.f32 %v5215, %v5375
      %v5377 = vpop.f32.mrf.mxu0
      %v5378 = vpop.f32.mrf.mxu0
      %v5379 = vadd.f32 %v5218, %v5378
      %v5380 = vpop.f32.mrf.mxu0
      %5381 = vdwg.mxu0
      %5382 = vmatprep.subr.bf16.mxu0 0
      %5383 = vmatpush1.bf16.msra.mxu0 %v4810
      %5384 = vmatprep.subr.bf16.mxu0 0
      %5385 = vmatpush1.bf16.msra.mxu0 %v4809
      %5386 = vmatprep.subr.bf16.mxu0 0
      %5387 = vmatpush1.bf16.msra.mxu0 %v4808
      %5388 = vmatprep.subr.bf16.mxu0 0
      %5389 = vmatpush1.bf16.msra.mxu0 %v4807
      %5390 = vmatprep.subr.bf16.mxu0 0
      %5391 = vmatpush1.bf16.msra.mxu0 %v4806
      %5392 = vmatprep.subr.bf16.mxu0 0
      %5393 = vmatpush1.bf16.msra.mxu0 %v4805
      %5394 = vmatprep.subr.bf16.mxu0 0
      %5395 = vmatpush1.bf16.msra.mxu0 %v4804
      %5396 = vmatprep.subr.bf16.mxu0 0
      %5397 = vmatpush1.bf16.msra.mxu0 %v4803
      %5398 = vmatprep.subr.bf16.mxu0 0
      %5399 = vmatpush2.bf16.msra.mxu0 %v4818
      %5400 = vmatprep.subr.bf16.mxu0 0
      %5401 = vmatpush2.bf16.msra.mxu0 %v4817
      %5402 = vmatprep.subr.bf16.mxu0 0
      %5403 = vmatpush2.bf16.msra.mxu0 %v4816
      %5404 = vmatprep.subr.bf16.mxu0 0
      %5405 = vmatpush2.bf16.msra.mxu0 %v4815
      %5406 = vmatprep.subr.bf16.mxu0 0
      %5407 = vmatpush2.bf16.msra.mxu0 %v4814
      %5408 = vmatprep.subr.bf16.mxu0 0
      %5409 = vmatpush2.bf16.msra.mxu0 %v4813
      %5410 = vmatprep.subr.bf16.mxu0 0
      %5411 = vmatpush2.bf16.msra.mxu0 %v4812
      %5412 = vmatprep.subr.bf16.mxu0 0
      %5413 = vmatpush2.bf16.msra.mxu0 %v4811
      %5414 = vmatprep.mubr.bf16.mxu0 %v2158
      %5415 = vmatmul.mubr.bf16.gmra.mxu0 %v2149
      %v5416 = vpop.f32.mrf.mxu0
      %v5417 = vadd.f32 %v5256, %v5416
      %v5418 = vpop.f32.mrf.mxu0
      %v5419 = vpop.f32.mrf.mxu0
      %v5420 = vadd.f32 %v5259, %v5419
      %v5421 = vpop.f32.mrf.mxu0
      %5422 = vmatprep.mubr.bf16.mxu0 %v2287
      %5423 = vmatmul.mubr.bf16.gmra.mxu0 %v2278
      %v5424 = vpop.f32.mrf.mxu0
      %v5425 = vadd.f32 %v5264, %v5424
      %v5426 = vpop.f32.mrf.mxu0
      %v5427 = vpop.f32.mrf.mxu0
      %v5428 = vadd.f32 %v5267, %v5427
      %v5429 = vpop.f32.mrf.mxu0
      %5430 = vmatprep.mubr.bf16.mxu0 %v2416
      %5431 = vmatmul.mubr.bf16.gmra.mxu0 %v2407
      %v5432 = vpop.f32.mrf.mxu0
      %v5433 = vadd.f32 %v5272, %v5432
      %v5434 = vpop.f32.mrf.mxu0
      %v5435 = vpop.f32.mrf.mxu0
      %v5436 = vadd.f32 %v5275, %v5435
      %v5437 = vpop.f32.mrf.mxu0
      %5438 = vmatprep.mubr.bf16.mxu0 %v2545
      %5439 = vmatmul.mubr.bf16.gmra.mxu0 %v2536
      %v5440 = vpop.f32.mrf.mxu0
      %v5441 = vadd.f32 %v5280, %v5440
      %v5442 = vpop.f32.mrf.mxu0
      %v5443 = vpop.f32.mrf.mxu0
      %v5444 = vadd.f32 %v5283, %v5443
      %v5445 = vpop.f32.mrf.mxu0
      %5446 = vmatprep.mubr.bf16.mxu0 %v2674
      %5447 = vmatmul.mubr.bf16.gmra.mxu0 %v2665
      %v5448 = vpop.f32.mrf.mxu0
      %v5449 = vadd.f32 %v5288, %v5448
      %v5450 = vpop.f32.mrf.mxu0
      %v5451 = vpop.f32.mrf.mxu0
      %v5452 = vadd.f32 %v5291, %v5451
      %v5453 = vpop.f32.mrf.mxu0
      %5454 = vmatprep.mubr.bf16.mxu0 %v2803
      %5455 = vmatmul.mubr.bf16.gmra.mxu0 %v2794
      %v5456 = vpop.f32.mrf.mxu0
      %v5457 = vadd.f32 %v5296, %v5456
      %v5458 = vpop.f32.mrf.mxu0
      %v5459 = vpop.f32.mrf.mxu0
      %v5460 = vadd.f32 %v5299, %v5459
      %v5461 = vpop.f32.mrf.mxu0
      %5462 = vmatprep.mubr.bf16.mxu0 %v2932
      %5463 = vmatmul.mubr.bf16.gmra.mxu0 %v2923
      %v5464 = vpop.f32.mrf.mxu0
      %v5465 = vadd.f32 %v5304, %v5464
      %v5466 = vpop.f32.mrf.mxu0
      %v5467 = vpop.f32.mrf.mxu0
      %v5468 = vadd.f32 %v5307, %v5467
      %v5469 = vpop.f32.mrf.mxu0
      %5470 = vmatprep.mubr.bf16.mxu0 %v3061
      %5471 = vmatmul.mubr.bf16.gmra.mxu0 %v3052
      %v5472 = vpop.f32.mrf.mxu0
      %v5473 = vadd.f32 %v5312, %v5472
      %v5474 = vpop.f32.mrf.mxu0
      %v5475 = vpop.f32.mrf.mxu0
      %v5476 = vadd.f32 %v5315, %v5475
      %v5477 = vpop.f32.mrf.mxu0
      %5478 = vmatprep.mubr.bf16.mxu0 %v3190
      %5479 = vmatmul.mubr.bf16.gmra.mxu0 %v3181
      %v5480 = vpop.f32.mrf.mxu0
      %v5481 = vadd.f32 %v5320, %v5480
      %v5482 = vpop.f32.mrf.mxu0
      %v5483 = vpop.f32.mrf.mxu0
      %v5484 = vadd.f32 %v5323, %v5483
      %v5485 = vpop.f32.mrf.mxu0
      %5486 = vmatprep.mubr.bf16.mxu0 %v3319
      %5487 = vmatmul.mubr.bf16.gmra.mxu0 %v3310
      %v5488 = vpop.f32.mrf.mxu0
      %v5489 = vadd.f32 %v5328, %v5488
      %v5490 = vpop.f32.mrf.mxu0
      %v5491 = vpop.f32.mrf.mxu0
      %v5492 = vadd.f32 %v5331, %v5491
      %v5493 = vpop.f32.mrf.mxu0
      %5494 = vmatprep.mubr.bf16.mxu0 %v3448
      %5495 = vmatmul.mubr.bf16.gmra.mxu0 %v3439
      %v5496 = vpop.f32.mrf.mxu0
      %v5497 = vadd.f32 %v5336, %v5496
      %v5498 = vpop.f32.mrf.mxu0
      %v5499 = vpop.f32.mrf.mxu0
      %v5500 = vadd.f32 %v5339, %v5499
      %v5501 = vpop.f32.mrf.mxu0
      %5502 = vmatprep.mubr.bf16.mxu0 %v3577
      %5503 = vmatmul.mubr.bf16.gmra.mxu0 %v3568
      %v5504 = vpop.f32.mrf.mxu0
      %v5505 = vadd.f32 %v5344, %v5504
      %v5506 = vpop.f32.mrf.mxu0
      %v5507 = vpop.f32.mrf.mxu0
      %v5508 = vadd.f32 %v5347, %v5507
      %v5509 = vpop.f32.mrf.mxu0
      %5510 = vmatprep.mubr.bf16.mxu0 %v3706
      %5511 = vmatmul.mubr.bf16.gmra.mxu0 %v3697
      %v5512 = vpop.f32.mrf.mxu0
      %v5513 = vadd.f32 %v5352, %v5512
      %v5514 = vpop.f32.mrf.mxu0
      %v5515 = vpop.f32.mrf.mxu0
      %v5516 = vadd.f32 %v5355, %v5515
      %v5517 = vpop.f32.mrf.mxu0
      %5518 = vmatprep.mubr.bf16.mxu0 %v3835
      %5519 = vmatmul.mubr.bf16.gmra.mxu0 %v3826
      %v5520 = vpop.f32.mrf.mxu0
      %v5521 = vadd.f32 %v5360, %v5520
      %v5522 = vpop.f32.mrf.mxu0
      %v5523 = vpop.f32.mrf.mxu0
      %v5524 = vadd.f32 %v5363, %v5523
      %v5525 = vpop.f32.mrf.mxu0
      %5526 = vmatprep.mubr.bf16.mxu0 %v3964
      %5527 = vmatmul.mubr.bf16.gmra.mxu0 %v3955
      %v5528 = vpop.f32.mrf.mxu0
      %v5529 = vadd.f32 %v5368, %v5528
      %v5530 = vpop.f32.mrf.mxu0
      %v5531 = vpop.f32.mrf.mxu0
      %v5532 = vadd.f32 %v5371, %v5531
      %v5533 = vpop.f32.mrf.mxu0
      %5534 = vmatprep.mubr.bf16.mxu0 %v4093
      %5535 = vmatmul.mubr.bf16.gmra.mxu0 %v4084
      %v5536 = vpop.f32.mrf.mxu0
      %v5537 = vadd.f32 %v5376, %v5536
      %v5538 = vpop.f32.mrf.mxu0
      %v5539 = vpop.f32.mrf.mxu0
      %v5540 = vadd.f32 %v5379, %v5539
      %v5541 = vpop.f32.mrf.mxu0
      %5542 = vdwg.mxu0
      %5543 = vmatprep.subr.bf16.mxu0 0
      %5544 = vmatpush1.bf16.msra.mxu0 %v4826
      %5545 = vmatprep.subr.bf16.mxu0 0
      %5546 = vmatpush1.bf16.msra.mxu0 %v4825
      %5547 = vmatprep.subr.bf16.mxu0 0
      %5548 = vmatpush1.bf16.msra.mxu0 %v4824
      %5549 = vmatprep.subr.bf16.mxu0 0
      %5550 = vmatpush1.bf16.msra.mxu0 %v4823
      %5551 = vmatprep.subr.bf16.mxu0 0
      %5552 = vmatpush1.bf16.msra.mxu0 %v4822
      %5553 = vmatprep.subr.bf16.mxu0 0
      %5554 = vmatpush1.bf16.msra.mxu0 %v4821
      %5555 = vmatprep.subr.bf16.mxu0 0
      %5556 = vmatpush1.bf16.msra.mxu0 %v4820
      %5557 = vmatprep.subr.bf16.mxu0 0
      %5558 = vmatpush1.bf16.msra.mxu0 %v4819
      %5559 = vmatprep.subr.bf16.mxu0 0
      %5560 = vmatpush2.bf16.msra.mxu0 0
      %5561 = vmatprep.subr.bf16.mxu0 0
      %5562 = vmatpush2.bf16.msra.mxu0 0
      %5563 = vmatprep.subr.bf16.mxu0 0
      %5564 = vmatpush2.bf16.msra.mxu0 0
      %5565 = vmatprep.subr.bf16.mxu0 0
      %5566 = vmatpush2.bf16.msra.mxu0 0
      %5567 = vmatprep.subr.bf16.mxu0 0
      %5568 = vmatpush2.bf16.msra.mxu0 0
      %5569 = vmatprep.subr.bf16.mxu0 0
      %5570 = vmatpush2.bf16.msra.mxu0 0
      %5571 = vmatprep.subr.bf16.mxu0 0
      %5572 = vmatpush2.bf16.msra.mxu0 0
      %5573 = vmatprep.subr.bf16.mxu0 0
      %5574 = vmatpush2.bf16.msra.mxu0 0
      %5575 = vmatprep.mubr.bf16.mxu0 0
      %5576 = vmatmul.mubr.bf16.gmra.mxu0 %v2175
      %v5577 = vpop.f32.mrf.mxu0
      %v5578 = vadd.f32 %v5417, %v5577
      %v5579 = vpop.f32.mrf.mxu0
      %v5580 = vpop.f32.mrf.mxu0
      %v5581 = vadd.f32 %v5420, %v5580
      %v5582 = vpop.f32.mrf.mxu0
      %5583 = vmatprep.mubr.bf16.mxu0 0
      %5584 = vmatmul.mubr.bf16.gmra.mxu0 %v2304
      %v5585 = vpop.f32.mrf.mxu0
      %v5586 = vadd.f32 %v5425, %v5585
      %v5587 = vpop.f32.mrf.mxu0
      %v5588 = vpop.f32.mrf.mxu0
      %v5589 = vadd.f32 %v5428, %v5588
      %v5590 = vpop.f32.mrf.mxu0
      %5591 = vmatprep.mubr.bf16.mxu0 0
      %5592 = vmatmul.mubr.bf16.gmra.mxu0 %v2433
      %v5593 = vpop.f32.mrf.mxu0
      %v5594 = vadd.f32 %v5433, %v5593
      %v5595 = vpop.f32.mrf.mxu0
      %v5596 = vpop.f32.mrf.mxu0
      %v5597 = vadd.f32 %v5436, %v5596
      %v5598 = vpop.f32.mrf.mxu0
      %5599 = vmatprep.mubr.bf16.mxu0 0
      %5600 = vmatmul.mubr.bf16.gmra.mxu0 %v2562
      %v5601 = vpop.f32.mrf.mxu0
      %v5602 = vadd.f32 %v5441, %v5601
      %v5603 = vpop.f32.mrf.mxu0
      %v5604 = vpop.f32.mrf.mxu0
      %v5605 = vadd.f32 %v5444, %v5604
      %v5606 = vpop.f32.mrf.mxu0
      %5607 = vmatprep.mubr.bf16.mxu0 0
      %5608 = vmatmul.mubr.bf16.gmra.mxu0 %v2691
      %v5609 = vpop.f32.mrf.mxu0
      %v5610 = vadd.f32 %v5449, %v5609
      %v5611 = vpop.f32.mrf.mxu0
      %v5612 = vpop.f32.mrf.mxu0
      %v5613 = vadd.f32 %v5452, %v5612
      %v5614 = vpop.f32.mrf.mxu0
      %5615 = vmatprep.mubr.bf16.mxu0 0
      %5616 = vmatmul.mubr.bf16.gmra.mxu0 %v2820
      %v5617 = vpop.f32.mrf.mxu0
      %v5618 = vadd.f32 %v5457, %v5617
      %v5619 = vpop.f32.mrf.mxu0
      %v5620 = vpop.f32.mrf.mxu0
      %v5621 = vadd.f32 %v5460, %v5620
      %v5622 = vpop.f32.mrf.mxu0
      %5623 = vmatprep.mubr.bf16.mxu0 0
      %5624 = vmatmul.mubr.bf16.gmra.mxu0 %v2949
      %v5625 = vpop.f32.mrf.mxu0
      %v5626 = vadd.f32 %v5465, %v5625
      %v5627 = vpop.f32.mrf.mxu0
      %v5628 = vpop.f32.mrf.mxu0
      %v5629 = vadd.f32 %v5468, %v5628
      %v5630 = vpop.f32.mrf.mxu0
      %5631 = vmatprep.mubr.bf16.mxu0 0
      %5632 = vmatmul.mubr.bf16.gmra.mxu0 %v3078
      %v5633 = vpop.f32.mrf.mxu0
      %v5634 = vadd.f32 %v5473, %v5633
      %v5635 = vpop.f32.mrf.mxu0
      %v5636 = vpop.f32.mrf.mxu0
      %v5637 = vadd.f32 %v5476, %v5636
      %v5638 = vpop.f32.mrf.mxu0
      %5639 = vmatprep.mubr.bf16.mxu0 0
      %5640 = vmatmul.mubr.bf16.gmra.mxu0 %v3207
      %v5641 = vpop.f32.mrf.mxu0
      %v5642 = vadd.f32 %v5481, %v5641
      %v5643 = vpop.f32.mrf.mxu0
      %v5644 = vpop.f32.mrf.mxu0
      %v5645 = vadd.f32 %v5484, %v5644
      %v5646 = vpop.f32.mrf.mxu0
      %5647 = vmatprep.mubr.bf16.mxu0 0
      %5648 = vmatmul.mubr.bf16.gmra.mxu0 %v3336
      %v5649 = vpop.f32.mrf.mxu0
      %v5650 = vadd.f32 %v5489, %v5649
      %v5651 = vpop.f32.mrf.mxu0
      %v5652 = vpop.f32.mrf.mxu0
      %v5653 = vadd.f32 %v5492, %v5652
      %v5654 = vpop.f32.mrf.mxu0
      %5655 = vmatprep.mubr.bf16.mxu0 0
      %5656 = vmatmul.mubr.bf16.gmra.mxu0 %v3465
      %v5657 = vpop.f32.mrf.mxu0
      %v5658 = vadd.f32 %v5497, %v5657
      %v5659 = vpop.f32.mrf.mxu0
      %v5660 = vpop.f32.mrf.mxu0
      %v5661 = vadd.f32 %v5500, %v5660
      %v5662 = vpop.f32.mrf.mxu0
      %5663 = vmatprep.mubr.bf16.mxu0 0
      %5664 = vmatmul.mubr.bf16.gmra.mxu0 %v3594
      %v5665 = vpop.f32.mrf.mxu0
      %v5666 = vadd.f32 %v5505, %v5665
      %v5667 = vpop.f32.mrf.mxu0
      %v5668 = vpop.f32.mrf.mxu0
      %v5669 = vadd.f32 %v5508, %v5668
      %v5670 = vpop.f32.mrf.mxu0
      %5671 = vmatprep.mubr.bf16.mxu0 0
      %5672 = vmatmul.mubr.bf16.gmra.mxu0 %v3723
      %v5673 = vpop.f32.mrf.mxu0
      %v5674 = vadd.f32 %v5513, %v5673
      %v5675 = vpop.f32.mrf.mxu0
      %v5676 = vpop.f32.mrf.mxu0
      %v5677 = vadd.f32 %v5516, %v5676
      %v5678 = vpop.f32.mrf.mxu0
      %5679 = vmatprep.mubr.bf16.mxu0 0
      %5680 = vmatmul.mubr.bf16.gmra.mxu0 %v3852
      %v5681 = vpop.f32.mrf.mxu0
      %v5682 = vadd.f32 %v5521, %v5681
      %v5683 = vpop.f32.mrf.mxu0
      %v5684 = vpop.f32.mrf.mxu0
      %v5685 = vadd.f32 %v5524, %v5684
      %v5686 = vpop.f32.mrf.mxu0
      %5687 = vmatprep.mubr.bf16.mxu0 0
      %5688 = vmatmul.mubr.bf16.gmra.mxu0 %v3981
      %v5689 = vpop.f32.mrf.mxu0
      %v5690 = vadd.f32 %v5529, %v5689
      %v5691 = vpop.f32.mrf.mxu0
      %v5692 = vpop.f32.mrf.mxu0
      %v5693 = vadd.f32 %v5532, %v5692
      %v5694 = vpop.f32.mrf.mxu0
      %5695 = vmatprep.mubr.bf16.mxu0 0
      %5696 = vmatmul.mubr.bf16.gmra.mxu0 %v4110
      %v5697 = vpop.f32.mrf.mxu0
      %v5698 = vadd.f32 %v5537, %v5697
      %v5699 = vpop.f32.mrf.mxu0
      %v5700 = vpop.f32.mrf.mxu0
      %v5701 = vadd.f32 %v5540, %v5700
      %v5702 = vpop.f32.mrf.mxu0
      %5703 = vdwg.mxu0
      %v5704 = vadd.f32 %v4291, %v5578
      %v5705 = vadd.f32 %v4292, %v5581
      %v5706 = vadd.f32 %v4293, %v5586
      %v5707 = vadd.f32 %v4294, %v5589
      %v5708 = vadd.f32 %v4295, %v5594
      %v5709 = vadd.f32 %v4296, %v5597
      %v5710 = vadd.f32 %v4297, %v5602
      %v5711 = vadd.f32 %v4298, %v5605
      %v5712 = vadd.f32 %v4299, %v5610
      %v5713 = vadd.f32 %v4300, %v5613
      %v5714 = vadd.f32 %v4301, %v5618
      %v5715 = vadd.f32 %v4302, %v5621
      %v5716 = vadd.f32 %v4303, %v5626
      %v5717 = vadd.f32 %v4304, %v5629
      %v5718 = vadd.f32 %v4305, %v5634
      %v5719 = vadd.f32 %v4306, %v5637
      %v5720 = vadd.f32 %v4307, %v5642
      %v5721 = vadd.f32 %v4308, %v5645
      %v5722 = vadd.f32 %v4309, %v5650
      %v5723 = vadd.f32 %v4310, %v5653
      %v5724 = vadd.f32 %v4311, %v5658
      %v5725 = vadd.f32 %v4312, %v5661
      %v5726 = vadd.f32 %v4313, %v5666
      %v5727 = vadd.f32 %v4314, %v5669
      %v5728 = vadd.f32 %v4315, %v5674
      %v5729 = vadd.f32 %v4316, %v5677
      %v5730 = vadd.f32 %v4317, %v5682
      %v5731 = vadd.f32 %v4318, %v5685
      %v5732 = vadd.f32 %v4319, %v5690
      %v5733 = vadd.f32 %v4320, %v5693
      %v5734 = vadd.f32 %v4321, %v5698
      %v5735 = vadd.f32 %v4322, %v5701
      %5736 = vst [vmem:[#allocation2] sm:$0xff] %v5704
      %5737 = vst [vmem:[#allocation2 + $0x8] sm:$0xff] %v5705
      %5738 = vst [vmem:[#allocation2 + $0x10] sm:$0xff] %v5706
      %5739 = vst [vmem:[#allocation2 + $0x18] sm:$0xff] %v5707
      %5740 = vst [vmem:[#allocation2 + $0x20] sm:$0xff] %v5708
      %5741 = vst [vmem:[#allocation2 + $0x28] sm:$0xff] %v5709
      %5742 = vst [vmem:[#allocation2 + $0x30] sm:$0xff] %v5710
      %5743 = vst [vmem:[#allocation2 + $0x38] sm:$0xff] %v5711
      %5744 = vst [vmem:[#allocation2 + $0x40] sm:$0xff] %v5712
      %5745 = vst [vmem:[#allocation2 + $0x48] sm:$0xff] %v5713
      %5746 = vst [vmem:[#allocation2 + $0x50] sm:$0xff] %v5714
      %5747 = vst [vmem:[#allocation2 + $0x58] sm:$0xff] %v5715
      %5748 = vst [vmem:[#allocation2 + $0x60] sm:$0xff] %v5716
      %5749 = vst [vmem:[#allocation2 + $0x68] sm:$0xff] %v5717
      %5750 = vst [vmem:[#allocation2 + $0x70] sm:$0xff] %v5718
      %5751 = vst [vmem:[#allocation2 + $0x78] sm:$0xff] %v5719
      %5752 = vst [vmem:[#allocation2 + $0x80] sm:$0xff] %v5720
      %5753 = vst [vmem:[#allocation2 + $0x88] sm:$0xff] %v5721
      %5754 = vst [vmem:[#allocation2 + $0x90] sm:$0xff] %v5722
      %5755 = vst [vmem:[#allocation2 + $0x98] sm:$0xff] %v5723
      %5756 = vst [vmem:[#allocation2 + $0xa0] sm:$0xff] %v5724
      %5757 = vst [vmem:[#allocation2 + $0xa8] sm:$0xff] %v5725
      %5758 = vst [vmem:[#allocation2 + $0xb0] sm:$0xff] %v5726
      %5759 = vst [vmem:[#allocation2 + $0xb8] sm:$0xff] %v5727
      %5760 = vst [vmem:[#allocation2 + $0xc0] sm:$0xff] %v5728
      %5761 = vst [vmem:[#allocation2 + $0xc8] sm:$0xff] %v5729
      %5762 = vst [vmem:[#allocation2 + $0xd0] sm:$0xff] %v5730
      %5763 = vst [vmem:[#allocation2 + $0xd8] sm:$0xff] %v5731
      %5764 = vst [vmem:[#allocation2 + $0xe0] sm:$0xff] %v5732
      %5765 = vst [vmem:[#allocation2 + $0xe8] sm:$0xff] %v5733
      %5766 = vst [vmem:[#allocation2 + $0xf0] sm:$0xff] %v5734
      %5767 = vst [vmem:[#allocation2 + $0xf8] sm:$0xff] %v5735
      // Predicated region
      $region45: #{_forward.5} parent=39 // pred_check
        %p5768 = pneg %p4255
      $region46: #{_forward.5} parent=39 // pred_check_branch
        %5770 = sbr.rel (%p5768) target = $region48
      $region47: #{_forward.5} parent=39 // pred_region
        %v5771 = vld [vmem:[#allocation2] sm:$0xff]
        %v5772 = vld [vmem:[#allocation2 + $0x8] sm:$0xff]
        %v5773 = vld [vmem:[#allocation2 + $0x10] sm:$0xff]
        %v5774 = vld [vmem:[#allocation2 + $0x18] sm:$0xff]
        %v5775 = vld [vmem:[#allocation2 + $0x20] sm:$0xff]
        %v5776 = vld [vmem:[#allocation2 + $0x28] sm:$0xff]
        %v5777 = vld [vmem:[#allocation2 + $0x30] sm:$0xff]
        %v5778 = vld [vmem:[#allocation2 + $0x38] sm:$0xff]
        %v5779 = vld [vmem:[#allocation2 + $0x40] sm:$0xff]
        %v5780 = vld [vmem:[#allocation2 + $0x48] sm:$0xff]
        %v5781 = vld [vmem:[#allocation2 + $0x50] sm:$0xff]
        %v5782 = vld [vmem:[#allocation2 + $0x58] sm:$0xff]
        %v5783 = vld [vmem:[#allocation2 + $0x60] sm:$0xff]
        %v5784 = vld [vmem:[#allocation2 + $0x68] sm:$0xff]
        %v5785 = vld [vmem:[#allocation2 + $0x70] sm:$0xff]
        %v5786 = vld [vmem:[#allocation2 + $0x78] sm:$0xff]
        %v5787 = vld [vmem:[#allocation2 + $0x80] sm:$0xff]
        %v5788 = vld [vmem:[#allocation2 + $0x88] sm:$0xff]
        %v5789 = vld [vmem:[#allocation2 + $0x90] sm:$0xff]
        %v5790 = vld [vmem:[#allocation2 + $0x98] sm:$0xff]
        %v5791 = vld [vmem:[#allocation2 + $0xa0] sm:$0xff]
        %v5792 = vld [vmem:[#allocation2 + $0xa8] sm:$0xff]
        %v5793 = vld [vmem:[#allocation2 + $0xb0] sm:$0xff]
        %v5794 = vld [vmem:[#allocation2 + $0xb8] sm:$0xff]
        %v5795 = vld [vmem:[#allocation2 + $0xc0] sm:$0xff]
        %v5796 = vld [vmem:[#allocation2 + $0xc8] sm:$0xff]
        %v5797 = vld [vmem:[#allocation2 + $0xd0] sm:$0xff]
        %v5798 = vld [vmem:[#allocation2 + $0xd8] sm:$0xff]
        %v5799 = vld [vmem:[#allocation2 + $0xe0] sm:$0xff]
        %v5800 = vld [vmem:[#allocation2 + $0xe8] sm:$0xff]
        %v5801 = vld [vmem:[#allocation2 + $0xf0] sm:$0xff]
        %v5802 = vld [vmem:[#allocation2 + $0xf8] sm:$0xff]
        %v5803 = vld [vmem:[%s4] sm:$0x1]
        %v5805 = vlaneseq
        %v5806 = vshrl.u32 %v5805, 7
        %v5807 = vsub.s32 0, %v5806
        %v5808 = vrot.slane %v5803, %v5807
        %v5810 = vadd.f32 %v5771, %v5808
        %v5811 = vadd.f32 %v5772, %v5808
        %v5812 = vadd.f32 %v5773, %v5808
        %v5813 = vadd.f32 %v5774, %v5808
        %v5814 = vadd.f32 %v5775, %v5808
        %v5815 = vadd.f32 %v5776, %v5808
        %v5816 = vadd.f32 %v5777, %v5808
        %v5817 = vadd.f32 %v5778, %v5808
        %v5818 = vadd.f32 %v5779, %v5808
        %v5819 = vadd.f32 %v5780, %v5808
        %v5820 = vadd.f32 %v5781, %v5808
        %v5821 = vadd.f32 %v5782, %v5808
        %v5822 = vadd.f32 %v5783, %v5808
        %v5823 = vadd.f32 %v5784, %v5808
        %v5824 = vadd.f32 %v5785, %v5808
        %v5825 = vadd.f32 %v5786, %v5808
        %v5826 = vadd.f32 %v5787, %v5808
        %v5827 = vadd.f32 %v5788, %v5808
        %v5828 = vadd.f32 %v5789, %v5808
        %v5829 = vadd.f32 %v5790, %v5808
        %v5830 = vadd.f32 %v5791, %v5808
        %v5831 = vadd.f32 %v5792, %v5808
        %v5832 = vadd.f32 %v5793, %v5808
        %v5833 = vadd.f32 %v5794, %v5808
        %v5834 = vadd.f32 %v5795, %v5808
        %v5835 = vadd.f32 %v5796, %v5808
        %v5836 = vadd.f32 %v5797, %v5808
        %v5837 = vadd.f32 %v5798, %v5808
        %v5838 = vadd.f32 %v5799, %v5808
        %v5839 = vadd.f32 %v5800, %v5808
        %v5840 = vadd.f32 %v5801, %v5808
        %v5841 = vadd.f32 %v5802, %v5808
        %v5842 = vadd.f32 %v5810, %v368
        %v5843 = vadd.f32 %v5811, %v369
        %v5844 = vadd.f32 %v5812, %v370
        %v5845 = vadd.f32 %v5813, %v371
        %v5846 = vadd.f32 %v5814, %v372
        %v5847 = vadd.f32 %v5815, %v373
        %v5848 = vadd.f32 %v5816, %v374
        %v5849 = vadd.f32 %v5817, %v375
        %v5850 = vadd.f32 %v5818, %v376
        %v5851 = vadd.f32 %v5819, %v377
        %v5852 = vadd.f32 %v5820, %v378
        %v5853 = vadd.f32 %v5821, %v379
        %v5854 = vadd.f32 %v5822, %v380
        %v5855 = vadd.f32 %v5823, %v381
        %v5856 = vadd.f32 %v5824, %v382
        %v5857 = vadd.f32 %v5825, %v383
        %v5858 = vadd.f32 %v5826, %v384
        %v5859 = vadd.f32 %v5827, %v385
        %v5860 = vadd.f32 %v5828, %v386
        %v5861 = vadd.f32 %v5829, %v387
        %v5862 = vadd.f32 %v5830, %v388
        %v5863 = vadd.f32 %v5831, %v389
        %v5864 = vadd.f32 %v5832, %v390
        %v5865 = vadd.f32 %v5833, %v391
        %v5866 = vadd.f32 %v5834, %v392
        %v5867 = vadd.f32 %v5835, %v393
        %v5868 = vadd.f32 %v5836, %v394
        %v5869 = vadd.f32 %v5837, %v395
        %v5870 = vadd.f32 %v5838, %v396
        %v5871 = vadd.f32 %v5839, %v397
        %v5872 = vadd.f32 %v5840, %v398
        %v5873 = vadd.f32 %v5841, %v399
        %5874 = vst [vmem:[%s360] sm:$0xff] %v5842
        %5875 = vst [vmem:[%s360 + $0x8] sm:$0xff] %v5843
        %5876 = vst [vmem:[%s360 + $0x10] sm:$0xff] %v5844
        %5877 = vst [vmem:[%s360 + $0x18] sm:$0xff] %v5845
        %5878 = vst [vmem:[%s360 + $0x20] sm:$0xff] %v5846
        %5879 = vst [vmem:[%s360 + $0x28] sm:$0xff] %v5847
        %5880 = vst [vmem:[%s360 + $0x30] sm:$0xff] %v5848
        %5881 = vst [vmem:[%s360 + $0x38] sm:$0xff] %v5849
        %5882 = vst [vmem:[%s360 + $0x40] sm:$0xff] %v5850
        %5883 = vst [vmem:[%s360 + $0x48] sm:$0xff] %v5851
        %5884 = vst [vmem:[%s360 + $0x50] sm:$0xff] %v5852
        %5885 = vst [vmem:[%s360 + $0x58] sm:$0xff] %v5853
        %5886 = vst [vmem:[%s360 + $0x60] sm:$0xff] %v5854
        %5887 = vst [vmem:[%s360 + $0x68] sm:$0xff] %v5855
        %5888 = vst [vmem:[%s360 + $0x70] sm:$0xff] %v5856
        %5889 = vst [vmem:[%s360 + $0x78] sm:$0xff] %v5857
        %5890 = vst [vmem:[%s360 + $0x80] sm:$0xff] %v5858
        %5891 = vst [vmem:[%s360 + $0x88] sm:$0xff] %v5859
        %5892 = vst [vmem:[%s360 + $0x90] sm:$0xff] %v5860
        %5893 = vst [vmem:[%s360 + $0x98] sm:$0xff] %v5861
        %5894 = vst [vmem:[%s360 + $0xa0] sm:$0xff] %v5862
        %5895 = vst [vmem:[%s360 + $0xa8] sm:$0xff] %v5863
        %5896 = vst [vmem:[%s360 + $0xb0] sm:$0xff] %v5864
        %5897 = vst [vmem:[%s360 + $0xb8] sm:$0xff] %v5865
        %5898 = vst [vmem:[%s360 + $0xc0] sm:$0xff] %v5866
        %5899 = vst [vmem:[%s360 + $0xc8] sm:$0xff] %v5867
        %5900 = vst [vmem:[%s360 + $0xd0] sm:$0xff] %v5868
        %5901 = vst [vmem:[%s360 + $0xd8] sm:$0xff] %v5869
        %5902 = vst [vmem:[%s360 + $0xe0] sm:$0xff] %v5870
        %5903 = vst [vmem:[%s360 + $0xe8] sm:$0xff] %v5871
        %5904 = vst [vmem:[%s360 + $0xf0] sm:$0xff] %v5872
        %5905 = vst [vmem:[%s360 + $0xf8] sm:$0xff] %v5873
        %v5906 = vadd.f32 %v5842, %v5843
        %v5907 = vadd.f32 %v5906, %v5844
        %v5908 = vadd.f32 %v5907, %v5845
        %v5909 = vadd.f32 %v5908, %v5846
        %v5910 = vadd.f32 %v5909, %v5847
        %v5911 = vadd.f32 %v5910, %v5848
        %v5912 = vadd.f32 %v5911, %v5849
        %v5913 = vadd.f32 %v5912, %v5850
        %v5914 = vadd.f32 %v5913, %v5851
        %v5915 = vadd.f32 %v5914, %v5852
        %v5916 = vadd.f32 %v5915, %v5853
        %v5917 = vadd.f32 %v5916, %v5854
        %v5918 = vadd.f32 %v5917, %v5855
        %v5919 = vadd.f32 %v5918, %v5856
        %v5920 = vadd.f32 %v5919, %v5857
        %v5921 = vadd.f32 %v5920, %v5858
        %v5922 = vadd.f32 %v5921, %v5859
        %v5923 = vadd.f32 %v5922, %v5860
        %v5924 = vadd.f32 %v5923, %v5861
        %v5925 = vadd.f32 %v5924, %v5862
        %v5926 = vadd.f32 %v5925, %v5863
        %v5927 = vadd.f32 %v5926, %v5864
        %v5928 = vadd.f32 %v5927, %v5865
        %v5929 = vadd.f32 %v5928, %v5866
        %v5930 = vadd.f32 %v5929, %v5867
        %v5931 = vadd.f32 %v5930, %v5868
        %v5932 = vadd.f32 %v5931, %v5869
        %v5933 = vadd.f32 %v5932, %v5870
        %v5934 = vadd.f32 %v5933, %v5871
        %v5935 = vadd.f32 %v5934, %v5872
        %v5936 = vadd.f32 %v5935, %v5873
        %v5937 = vrot.slane %v5936, 4
        %v5938 = vadd.f32 %v5936, %v5937
        %v5939 = vrot.slane %v5938, 2
        %v5940 = vadd.f32 %v5938, %v5939
        %v5941 = vrot.slane %v5940, 1
        %v5942 = vadd.f32 %v5940, %v5941
        %5943 = vst [vmem:[%s363] sm:$0x1] %v5942
        %v5944 = vmul.f32 %v5842, %v5842
        %v5945 = vmul.f32 %v5843, %v5843
        %v5946 = vmul.f32 %v5844, %v5844
        %v5947 = vmul.f32 %v5845, %v5845
        %v5948 = vmul.f32 %v5846, %v5846
        %v5949 = vmul.f32 %v5847, %v5847
        %v5950 = vmul.f32 %v5848, %v5848
        %v5951 = vmul.f32 %v5849, %v5849
        %v5952 = vmul.f32 %v5850, %v5850
        %v5953 = vmul.f32 %v5851, %v5851
        %v5954 = vmul.f32 %v5852, %v5852
        %v5955 = vmul.f32 %v5853, %v5853
        %v5956 = vmul.f32 %v5854, %v5854
        %v5957 = vmul.f32 %v5855, %v5855
        %v5958 = vmul.f32 %v5856, %v5856
        %v5959 = vmul.f32 %v5857, %v5857
        %v5960 = vmul.f32 %v5858, %v5858
        %v5961 = vmul.f32 %v5859, %v5859
        %v5962 = vmul.f32 %v5860, %v5860
        %v5963 = vmul.f32 %v5861, %v5861
        %v5964 = vmul.f32 %v5862, %v5862
        %v5965 = vmul.f32 %v5863, %v5863
        %v5966 = vmul.f32 %v5864, %v5864
        %v5967 = vmul.f32 %v5865, %v5865
        %v5968 = vmul.f32 %v5866, %v5866
        %v5969 = vmul.f32 %v5867, %v5867
        %v5970 = vmul.f32 %v5868, %v5868
        %v5971 = vmul.f32 %v5869, %v5869
        %v5972 = vmul.f32 %v5870, %v5870
        %v5973 = vmul.f32 %v5871, %v5871
        %v5974 = vmul.f32 %v5872, %v5872
        %v5975 = vmul.f32 %v5873, %v5873
        %v5976 = vadd.f32 %v5944, %v5945
        %v5977 = vadd.f32 %v5976, %v5946
        %v5978 = vadd.f32 %v5977, %v5947
        %v5979 = vadd.f32 %v5978, %v5948
        %v5980 = vadd.f32 %v5979, %v5949
        %v5981 = vadd.f32 %v5980, %v5950
        %v5982 = vadd.f32 %v5981, %v5951
        %v5983 = vadd.f32 %v5982, %v5952
        %v5984 = vadd.f32 %v5983, %v5953
        %v5985 = vadd.f32 %v5984, %v5954
        %v5986 = vadd.f32 %v5985, %v5955
        %v5987 = vadd.f32 %v5986, %v5956
        %v5988 = vadd.f32 %v5987, %v5957
        %v5989 = vadd.f32 %v5988, %v5958
        %v5990 = vadd.f32 %v5989, %v5959
        %v5991 = vadd.f32 %v5990, %v5960
        %v5992 = vadd.f32 %v5991, %v5961
        %v5993 = vadd.f32 %v5992, %v5962
        %v5994 = vadd.f32 %v5993, %v5963
        %v5995 = vadd.f32 %v5994, %v5964
        %v5996 = vadd.f32 %v5995, %v5965
        %v5997 = vadd.f32 %v5996, %v5966
        %v5998 = vadd.f32 %v5997, %v5967
        %v5999 = vadd.f32 %v5998, %v5968
        %v6000 = vadd.f32 %v5999, %v5969
        %v6001 = vadd.f32 %v6000, %v5970
        %v6002 = vadd.f32 %v6001, %v5971
        %v6003 = vadd.f32 %v6002, %v5972
        %v6004 = vadd.f32 %v6003, %v5973
        %v6005 = vadd.f32 %v6004, %v5974
        %v6006 = vadd.f32 %v6005, %v5975
        %v6007 = vrot.slane %v6006, 4
        %v6008 = vadd.f32 %v6006, %v6007
        %v6009 = vrot.slane %v6008, 2
        %v6010 = vadd.f32 %v6008, %v6009
        %v6011 = vrot.slane %v6010, 1
        %v6012 = vadd.f32 %v6010, %v6011
        %6013 = vst [vmem:[%s366] sm:$0x1] %v6012
      $region48: #{_forward.5} parent=39 // pred_fallthru
        _
      %p6014 = scmp.lt.s32.totalorder %s23, 1
      %s6015 = scalar_select %p6014, %s23, 1
      %s6016 = smul.addr %s6015, 32
      %s6017 = smul.addr %s6016, 8
      %s6018 = scalar_lea.vmem %s5, %s6017
      %p6019 = scmp.lt.s32.totalorder %s23, 1
      %s6020 = scalar_select %p6019, %s23, 1
      %s6021 = scalar_lea.vmem %s6, %s6020
      %p6022 = scmp.lt.s32.totalorder %s23, 1
      %s6023 = scalar_select %p6022, %s23, 1
      %s6024 = scalar_lea.vmem %s7, %s6023
      // Predicated region
      $region49: #{_forward.5} parent=39 // pred_check
        %p6025 = pneg %p176
      $region50: #{_forward.5} parent=39 // pred_check_branch
        %6027 = sbr.rel (%p6025) target = $region52
      $region51: #{_forward.5} parent=39 // pred_region
        _
      $region52: #{_forward.5} parent=39 // pred_fallthru
        _
      // Predicated region
      $region53: #{_forward.5} parent=39 // pred_check
        %p6028 = pneg %p202
      $region54: #{_forward.5} parent=39 // pred_check_branch
        %6030 = sbr.rel (%p6028) target = $region56
      $region55: #{_forward.5} parent=39 // pred_region
        _
      $region56: #{_forward.5} parent=39 // pred_fallthru
        _
      // Predicated region
      $region57: #{_forward.5} parent=39 // pred_check
        %p6031 = pneg %p228
      $region58: #{_forward.5} parent=39 // pred_check_branch
        %6033 = sbr.rel (%p6031) target = $region60
      $region59: #{_forward.5} parent=39 // pred_region
        _
      $region60: #{_forward.5} parent=39 // pred_fallthru
        _
    $region40: #{_forward.5} parent=5 // pred_fallthru
      _
    %p6034 = scmp.le.s32.totalorder 2, %s14
    // Predicated region
    $region61: #{_forward.5} parent=5 // pred_check
      %p6035 = pneg %p6034
    $region62: #{_forward.5} parent=5 // pred_check_branch
      %6037 = sbr.rel (%p6035) target = $region64
    $region63: #{_forward.5} parent=5 // pred_region
      %s6038 = ssub.s32 %s14, 2
      // Predicated region
      $region65: #{_forward.5} parent=63 // pred_check
        %p6039 = pneg %p182
      $region66: #{_forward.5} parent=63 // pred_check_branch
        %6041 = sbr.rel (%p6039) target = $region68
      $region67: #{_forward.5} parent=63 // pred_region
        %p6042 = scmp.lt.s32.totalorder %s25, 1
        %s6043 = scalar_select %p6042, %s25, 1
        %s6044 = smul.addr %s6043, 32
        %s6045 = smul.addr %s6044, 8
        %s6046 = scalar_lea.vmem %s5, %s6045
      $region68: #{_forward.5} parent=63 // pred_fallthru
        _
      // Predicated region
      $region69: #{_forward.5} parent=63 // pred_check
        %p6047 = pneg %p208
      $region70: #{_forward.5} parent=63 // pred_check_branch
        %6049 = sbr.rel (%p6047) target = $region72
      $region71: #{_forward.5} parent=63 // pred_region
        %p6050 = scmp.lt.s32.totalorder %s25, 1
        %s6051 = scalar_select %p6050, %s25, 1
        %s6052 = scalar_lea.vmem %s6, %s6051
      $region72: #{_forward.5} parent=63 // pred_fallthru
        _
      // Predicated region
      $region73: #{_forward.5} parent=63 // pred_check
        %p6053 = pneg %p234
      $region74: #{_forward.5} parent=63 // pred_check_branch
        %6055 = sbr.rel (%p6053) target = $region76
      $region75: #{_forward.5} parent=63 // pred_region
        %p6056 = scmp.lt.s32.totalorder %s25, 1
        %s6057 = scalar_select %p6056, %s25, 1
        %s6058 = scalar_lea.vmem %s7, %s6057
      $region76: #{_forward.5} parent=63 // pred_fallthru
        _
    $region64: #{_forward.5} parent=5 // pred_fallthru
      _
  $region6: #{_forward.5} parent=0 // loop_footer
    %s18 = sadd.s32 1, %s14
  $region7: #{_forward.5} parent=0 // loop_footer_branch
    %13 = sbr.rel target = $region3
  $region8: #{_forward.5} parent=0 // loop_exit
    _

// kernel: _forward.7
$region0: #{_forward.7}
  #allocation0 [shape = 'u32[]', space=smem, size = 0x4, offset = 0x4, fixed_abs, tag = 'smem constant byte address 0x4 - core index']
  #allocation1 [shape = 'u32[144,128]{1,0:T(1,128)}', space=vmem, size = 0x12000, scoped, tag = 'internal scratch']
  #allocation2 [shape = 'f32[256,128]{1,0:T(8,128)}', space=vmem, size = 0x20000, scoped, tag = 'scratch operand']
  #allocation3 [shape = 'bf16[18,48,128]{2,1,0:T(8,128)(2,1)}', space=vmem, size = 0x36000, scoped, tag = 'scratch operand']
  %s0 = inlined_call_operand.vmem [shape: f32[2,16,16,128], index: 0, kind: input, shape index: {}]
  %s1 = inlined_call_operand.vmem [shape: f32[1,128], index: 1, kind: input, shape index: {}]
  %s2 = inlined_call_operand.vmem [shape: f32[1,128], index: 2, kind: input, shape index: {}]
  %s3 = inlined_call_operand.vmem [shape: bf16[1,1152,128], index: 3, kind: input, shape index: {}]
  %s4 = inlined_call_operand.vmem [shape: f32[1,128], index: 4, kind: input, shape index: {}]
  %s5 = inlined_call_operand.vmem [shape: f32[2,16,16,128], index: 5, kind: output, shape index: {0}]
  %s6 = inlined_call_operand.hbm [shape: f32[2,1,128], index: 6, kind: output, shape index: {1}]
  %s7 = inlined_call_operand.hbm [shape: f32[2,1,128], index: 7, kind: output, shape index: {2}]
  %8 = xla_tuple %s5, %s6, %s7
  %s9 = sld [smem:[#allocation0]]
  $region77: #{_forward.7} parent=0
    _
  %s11 = ssub.s32 1, %s9
  %s12 = scalar_select 0, %s11, %s9
  $region1: #{_forward.7} parent=0
    #allocation4 [shape = 'u8[1024]{0}', space=vmem, size = 0x400, scoped, tag = 'output window, operand 1']
    #allocation5 [shape = 's32[2]{0}', space=sflag, size = 0x8, scoped, tag = 'scoped memory for _forward.7']
    #allocation6 [shape = 'u8[1024]{0}', space=vmem, size = 0x400, scoped, tag = 'output window, operand 2']
    #allocation7 [shape = 's32[2]{0}', space=sflag, size = 0x8, scoped, tag = 'scoped memory for _forward.7']
    %13 = vsyncpa [#allocation5], 0
    %s14 = scalar_lea.sflag [#allocation5], 1
    %15 = vsyncpa %s14, 0
    %16 = vsyncpa [#allocation7], 0
    %s17 = scalar_lea.sflag [#allocation7], 1
    %18 = vsyncpa %s17, 0
    loop: start=0, step=1, limit=4
    $region2: #{_forward.7} parent=1 // loop_pre_header
      _
    $region3: #{_forward.7} parent=1 // loop_header
      %s20 = sphi 0, %s24
      %p21 = scmp.ge.s32.totalorder %s20, 4
      %s27 = sphi 0, %s39
      %s28 = sphi 0, %s35
      %s29 = sphi 0, %s27
      %s30 = sphi 0, %s28
      %s31 = sphi 0, %s29
      %s32 = sphi 0, %s30
      %s44 = sphi 0, %s46
      %s47 = sphi 0, %s44
      %s48 = sphi 0, %s47
      %s64 = sphi 0, %s48
      %s70 = sphi 0, %s72
      %s73 = sphi 0, %s70
      %s74 = sphi 0, %s73
      %s90 = sphi 0, %s74
      %s96 = sphi 0, %s98
      %s99 = sphi 0, %s96
      %s100 = sphi 0, %s99
      %s116 = sphi 0, %s100
      %s122 = sphi 0, %s124
      %s125 = sphi 0, %s122
      %s126 = sphi 0, %s125
      %s142 = sphi 0, %s126
      %s146 = sphi 0, %s146
      %s148 = sphi 0, %s146
      %s149 = sphi 0, %s148
      %s163 = sphi 0, %s149
      %s169 = sphi 0, %s171
      %s172 = sphi 0, %s169
      %s173 = sphi 0, %s172
      %s189 = sphi 0, %s173
      %s195 = sphi 0, %s197
      %s198 = sphi 0, %s195
      %s199 = sphi 0, %s198
      %s215 = sphi 0, %s199
      %s221 = sphi 0, %s223
      %s224 = sphi 0, %s221
      %s225 = sphi 0, %s224
      %s241 = sphi 0, %s225
    $region4: #{_forward.7} parent=1 // loop_header_branch
      %23 = sbr.rel (%p21) target = $region8
    $region5: #{_forward.7} parent=1 // loop_body
      %s25 = ssub.s32 %s20, 1
      %s26 = ssub.s32 %s20, 2
      %s33 = sadd.s32 1, %s28
      %p34 = scmp.ge.s32.totalorder %s33, 1
      %s35 = scalar_select %p34, 0, %s33
      %s36 = sadd.s32 1, %s27
      %s37 = scalar_select %p34, %s36, %s27
      %p38 = scmp.ge.s32.totalorder %s37, 2
      %s39 = scalar_select %p38, 0, %s37
      %s40 = ssub.s32 %s27, %s39
      %s41 = ssub.s32 %s28, %s35
      %s42 = sor.u32 %s40, %s41
      %p43 = scmp.eq.s32.totalorder %s42, 0
      %s45 = sadd.s32 %s44, 1
      %s46 = scalar_select %p43, %s44, %s45
      %p49 = pneg %p43
      %p50 = scmp.eq.s32.totalorder %s20, 1
      %p51 = por %p49, %p50
      %p52 = scmp.ne.s32.totalorder %s44, %s47
      %p53 = scmp.eq.s32.totalorder %s20, 0
      %p54 = por %p52, %p53
      %p55 = scmp.ne.s32.totalorder %s44, %s47
      %p56 = scmp.eq.s32.totalorder %s25, 1
      %p57 = por %p55, %p56
      %p58 = scmp.ne.s32.totalorder %s47, %s48
      %p59 = scmp.eq.s32.totalorder %s25, 0
      %p60 = por %p58, %p59
      %p61 = scmp.ne.s32.totalorder %s47, %s48
      %p62 = scmp.eq.s32.totalorder %s26, 1
      %p63 = por %p61, %p62
      %p65 = scmp.ne.s32.totalorder %s48, %s64
      %p66 = scmp.eq.s32.totalorder %s26, 0
      %p67 = por %p65, %p66
      %s68 = ssub.s32 %s28, %s35
      %p69 = scmp.eq.s32.totalorder %s68, 0
      %s71 = sadd.s32 %s70, 1
      %s72 = scalar_select %p69, %s70, %s71
      %p75 = pneg %p69
      %p76 = scmp.eq.s32.totalorder %s20, 1
      %p77 = por %p75, %p76
      %p78 = scmp.ne.s32.totalorder %s70, %s73
      %p79 = scmp.eq.s32.totalorder %s20, 0
      %p80 = por %p78, %p79
      %p81 = scmp.ne.s32.totalorder %s70, %s73
      %p82 = scmp.eq.s32.totalorder %s25, 1
      %p83 = por %p81, %p82
      %p84 = scmp.ne.s32.totalorder %s73, %s74
      %p85 = scmp.eq.s32.totalorder %s25, 0
      %p86 = por %p84, %p85
      %p87 = scmp.ne.s32.totalorder %s73, %s74
      %p88 = scmp.eq.s32.totalorder %s26, 1
      %p89 = por %p87, %p88
      %p91 = scmp.ne.s32.totalorder %s74, %s90
      %p92 = scmp.eq.s32.totalorder %s26, 0
      %p93 = por %p91, %p92
      %s94 = ssub.s32 %s28, %s35
      %p95 = scmp.eq.s32.totalorder %s94, 0
      %s97 = sadd.s32 %s96, 1
      %s98 = scalar_select %p95, %s96, %s97
      %p101 = pneg %p95
      %p102 = scmp.eq.s32.totalorder %s20, 1
      %p103 = por %p101, %p102
      %p104 = scmp.ne.s32.totalorder %s96, %s99
      %p105 = scmp.eq.s32.totalorder %s20, 0
      %p106 = por %p104, %p105
      %p107 = scmp.ne.s32.totalorder %s96, %s99
      %p108 = scmp.eq.s32.totalorder %s25, 1
      %p109 = por %p107, %p108
      %p110 = scmp.ne.s32.totalorder %s99, %s100
      %p111 = scmp.eq.s32.totalorder %s25, 0
      %p112 = por %p110, %p111
      %p113 = scmp.ne.s32.totalorder %s99, %s100
      %p114 = scmp.eq.s32.totalorder %s26, 1
      %p115 = por %p113, %p114
      %p117 = scmp.ne.s32.totalorder %s100, %s116
      %p118 = scmp.eq.s32.totalorder %s26, 0
      %p119 = por %p117, %p118
      %s120 = ssub.s32 %s28, %s35
      %p121 = scmp.eq.s32.totalorder %s120, 0
      %s123 = sadd.s32 %s122, 1
      %s124 = scalar_select %p121, %s122, %s123
      %p127 = pneg %p121
      %p128 = scmp.eq.s32.totalorder %s20, 1
      %p129 = por %p127, %p128
      %p130 = scmp.ne.s32.totalorder %s122, %s125
      %p131 = scmp.eq.s32.totalorder %s20, 0
      %p132 = por %p130, %p131
      %p133 = scmp.ne.s32.totalorder %s122, %s125
      %p134 = scmp.eq.s32.totalorder %s25, 1
      %p135 = por %p133, %p134
      %p136 = scmp.ne.s32.totalorder %s125, %s126
      %p137 = scmp.eq.s32.totalorder %s25, 0
      %p138 = por %p136, %p137
      %p139 = scmp.ne.s32.totalorder %s125, %s126
      %p140 = scmp.eq.s32.totalorder %s26, 1
      %p141 = por %p139, %p140
      %p143 = scmp.ne.s32.totalorder %s126, %s142
      %p144 = scmp.eq.s32.totalorder %s26, 0
      %p145 = por %p143, %p144
      %s147 = sadd.s32 %s146, 1
      %p150 = scmp.eq.s32.totalorder %s20, 1
      %p151 = scmp.ne.s32.totalorder %s146, %s148
      %p152 = scmp.eq.s32.totalorder %s20, 0
      %p153 = por %p151, %p152
      %p154 = scmp.ne.s32.totalorder %s146, %s148
      %p155 = scmp.eq.s32.totalorder %s25, 1
      %p156 = por %p154, %p155
      %p157 = scmp.ne.s32.totalorder %s148, %s149
      %p158 = scmp.eq.s32.totalorder %s25, 0
      %p159 = por %p157, %p158
      %p160 = scmp.ne.s32.totalorder %s148, %s149
      %p161 = scmp.eq.s32.totalorder %s26, 1
      %p162 = por %p160, %p161
      %p164 = scmp.ne.s32.totalorder %s149, %s163
      %p165 = scmp.eq.s32.totalorder %s26, 0
      %p166 = por %p164, %p165
      %s167 = ssub.s32 %s27, %s39
      %p168 = scmp.eq.s32.totalorder %s167, 0
      %s170 = sadd.s32 %s169, 1
      %s171 = scalar_select %p168, %s169, %s170
      %p174 = pneg %p168
      %p175 = scmp.eq.s32.totalorder %s20, 1
      %p176 = por %p174, %p175
      %p177 = scmp.ne.s32.totalorder %s169, %s172
      %p178 = scmp.eq.s32.totalorder %s20, 0
      %p179 = por %p177, %p178
      %p180 = scmp.ne.s32.totalorder %s169, %s172
      %p181 = scmp.eq.s32.totalorder %s25, 1
      %p182 = por %p180, %p181
      %p183 = scmp.ne.s32.totalorder %s172, %s173
      %p184 = scmp.eq.s32.totalorder %s25, 0
      %p185 = por %p183, %p184
      %p186 = scmp.ne.s32.totalorder %s172, %s173
      %p187 = scmp.eq.s32.totalorder %s26, 1
      %p188 = por %p186, %p187
      %p190 = scmp.ne.s32.totalorder %s173, %s189
      %p191 = scmp.eq.s32.totalorder %s26, 0
      %p192 = por %p190, %p191
      %s193 = ssub.s32 %s27, %s39
      %p194 = scmp.eq.s32.totalorder %s193, 0
      %s196 = sadd.s32 %s195, 1
      %s197 = scalar_select %p194, %s195, %s196
      %p200 = pneg %p194
      %p201 = scmp.eq.s32.totalorder %s20, 1
      %p202 = por %p200, %p201
      %p203 = scmp.ne.s32.totalorder %s195, %s198
      %p204 = scmp.eq.s32.totalorder %s20, 0
      %p205 = por %p203, %p204
      %p206 = scmp.ne.s32.totalorder %s195, %s198
      %p207 = scmp.eq.s32.totalorder %s25, 1
      %p208 = por %p206, %p207
      %p209 = scmp.ne.s32.totalorder %s198, %s199
      %p210 = scmp.eq.s32.totalorder %s25, 0
      %p211 = por %p209, %p210
      %p212 = scmp.ne.s32.totalorder %s198, %s199
      %p213 = scmp.eq.s32.totalorder %s26, 1
      %p214 = por %p212, %p213
      %p216 = scmp.ne.s32.totalorder %s199, %s215
      %p217 = scmp.eq.s32.totalorder %s26, 0
      %p218 = por %p216, %p217
      %s219 = ssub.s32 %s27, %s39
      %p220 = scmp.eq.s32.totalorder %s219, 0
      %s222 = sadd.s32 %s221, 1
      %s223 = scalar_select %p220, %s221, %s222
      %p226 = pneg %p220
      %p227 = scmp.eq.s32.totalorder %s20, 1
      %p228 = por %p226, %p227
      %p229 = scmp.ne.s32.totalorder %s221, %s224
      %p230 = scmp.eq.s32.totalorder %s20, 0
      %p231 = por %p229, %p230
      %p232 = scmp.ne.s32.totalorder %s221, %s224
      %p233 = scmp.eq.s32.totalorder %s25, 1
      %p234 = por %p232, %p233
      %p235 = scmp.ne.s32.totalorder %s224, %s225
      %p236 = scmp.eq.s32.totalorder %s25, 0
      %p237 = por %p235, %p236
      %p238 = scmp.ne.s32.totalorder %s224, %s225
      %p239 = scmp.eq.s32.totalorder %s26, 1
      %p240 = por %p238, %p239
      %p242 = scmp.ne.s32.totalorder %s225, %s241
      %p243 = scmp.eq.s32.totalorder %s26, 0
      %p244 = por %p242, %p243
      %p245 = scmp.le.s32.totalorder 1, %s20
      %p246 = scmp.lt.s32.totalorder %s20, 3
      %p247 = pnand %p245, %p246
      %p248 = pneg %p247
      // Predicated region
      $region9: #{_forward.7} parent=5 // pred_check
        _
      $region10: #{_forward.7} parent=5 // pred_check_branch
        %250 = sbr.rel (%p247) target = $region12
      $region11: #{_forward.7} parent=5 // pred_region
        %s251 = ssub.s32 %s20, 1
        // Predicated region
        $region13: #{_forward.7} parent=11 // pred_check
          %p252 = pneg %p86
        $region14: #{_forward.7} parent=11 // pred_check_branch
          %254 = sbr.rel (%p252) target = $region16
        $region15: #{_forward.7} parent=11 // pred_region
          %p255 = scmp.lt.s32.totalorder %s30, 0
          %s256 = scalar_select %p255, %s30, 0
          %s257 = scalar_lea.vmem %s1, %s256
        $region16: #{_forward.7} parent=11 // pred_fallthru
          _
        // Predicated region
        $region17: #{_forward.7} parent=11 // pred_check
          %p258 = pneg %p112
        $region18: #{_forward.7} parent=11 // pred_check_branch
          %260 = sbr.rel (%p258) target = $region20
        $region19: #{_forward.7} parent=11 // pred_region
          %p261 = scmp.lt.s32.totalorder %s30, 0
          %s262 = scalar_select %p261, %s30, 0
          %s263 = scalar_lea.vmem %s2, %s262
        $region20: #{_forward.7} parent=11 // pred_fallthru
          _
        // Predicated region
        $region21: #{_forward.7} parent=11 // pred_check
          %p264 = pneg %p138
        $region22: #{_forward.7} parent=11 // pred_check_branch
          %266 = sbr.rel (%p264) target = $region24
        $region23: #{_forward.7} parent=11 // pred_region
          %p267 = scmp.lt.s32.totalorder %s30, 0
          %s268 = scalar_select %p267, %s30, 0
          %s269 = smul.addr %s268, 144
          %s270 = smul.addr %s269, 4
          %s271 = scalar_lea.vmem %s3, %s270
        $region24: #{_forward.7} parent=11 // pred_fallthru
          _
        // Predicated region
        $region25: #{_forward.7} parent=11 // pred_check
          %p272 = pneg %p159
        $region26: #{_forward.7} parent=11 // pred_check_branch
          %274 = sbr.rel (%p272) target = $region28
        $region27: #{_forward.7} parent=11 // pred_region
          _
        $region28: #{_forward.7} parent=11 // pred_fallthru
          _
      $region12: #{_forward.7} parent=5 // pred_fallthru
        _
      %p275 = scmp.lt.s32.totalorder %s20, 2
      // Predicated region
      $region29: #{_forward.7} parent=5 // pred_check
        %p276 = pneg %p275
      $region30: #{_forward.7} parent=5 // pred_check_branch
        %278 = sbr.rel (%p276) target = $region32
      $region31: #{_forward.7} parent=5 // pred_region
        // Predicated region
        $region33: #{_forward.7} parent=31 // pred_check
          %p279 = pneg %p54
        $region34: #{_forward.7} parent=31 // pred_check_branch
          %281 = sbr.rel (%p279) target = $region36
        $region35: #{_forward.7} parent=31 // pred_region
          %p282 = scmp.lt.s32.totalorder %s27, 1
          %s283 = scalar_select %p282, %s27, 1
          %p284 = scmp.lt.s32.totalorder %s28, 0
          %s285 = scalar_select %p284, %s28, 0
          %s286 = smul.addr %s283, 32
          %s287 = sadd.s32 %s285, %s286
          %s288 = smul.addr %s287, 8
          %s289 = scalar_lea.vmem %s0, %s288
        $region36: #{_forward.7} parent=31 // pred_fallthru
          _
      $region32: #{_forward.7} parent=5 // pred_fallthru
        _
      %p290 = scmp.le.s32.totalorder 1, %s20
      %p291 = scmp.lt.s32.totalorder %s20, 3
      %p292 = pnand %p290, %p291
      %p293 = pneg %p292
      // Predicated region
      $region37: #{_forward.7} parent=5 // pred_check
        _
      $region38: #{_forward.7} parent=5 // pred_check_branch
        %295 = sbr.rel (%p292) target = $region40
      $region39: #{_forward.7} parent=5 // pred_region
        %s296 = ssub.s32 %s20, 1
        %p297 = scmp.lt.s32.totalorder %s29, 1
        %s298 = scalar_select %p297, %s29, 1
        %p299 = scmp.lt.s32.totalorder %s30, 0
        %s300 = scalar_select %p299, %s30, 0
        %s301 = smul.addr %s298, 32
        %s302 = sadd.s32 %s300, %s301
        %s303 = smul.addr %s302, 8
        %s304 = scalar_lea.vmem %s0, %s303
        %p305 = pneg %p60
        %p306 = pneg %p57
        %p307 = scmp.lt.s32.totalorder %s30, 0
        %s308 = scalar_select %p307, %s30, 0
        %s309 = scalar_lea.vmem %s1, %s308
        %p310 = pneg %p86
        %p311 = pneg %p83
        %p312 = scmp.lt.s32.totalorder %s30, 0
        %s313 = scalar_select %p312, %s30, 0
        %s314 = scalar_lea.vmem %s2, %s313
        %p315 = pneg %p112
        %p316 = pneg %p109
        %p317 = scmp.lt.s32.totalorder %s30, 0
        %s318 = scalar_select %p317, %s30, 0
        %s319 = smul.addr %s318, 144
        %s320 = smul.addr %s319, 4
        %s321 = scalar_lea.vmem %s3, %s320
        %p322 = pneg %p138
        %p323 = pneg %p135
        %p324 = pneg %p159
        %p325 = pneg %p156
        %p326 = pneg %p185
        %p327 = pneg %p182
        %p328 = scmp.lt.s32.totalorder %s29, 1
        %s329 = scalar_select %p328, %s29, 1
        %s330 = smul.addr %s329, 32
        %s331 = smul.addr %s330, 8
        %s332 = scalar_lea.vmem %s5, %s331
        %p333 = pneg %p211
        %p334 = pneg %p208
        %s335 = sand.u32 %s198, 1
        %s336 = scalar_lea.sflag [#allocation5], %s335
        %s337 = sand.u32 %s198, 1
        %s338 = scalar_lea.vmem [#allocation4], %s337
        %p339 = pneg %p237
        %p340 = pneg %p234
        %s341 = sand.u32 %s224, 1
        %s342 = scalar_lea.sflag [#allocation7], %s341
        %s343 = sand.u32 %s224, 1
        %s344 = scalar_lea.vmem [#allocation6], %s343
        %p345 = scmp.lt.s32.totalorder %s29, 1
        %s346 = scalar_select %p345, %s29, 1
        %p347 = scmp.lt.s32.totalorder %s30, 0
        %s348 = scalar_select %p347, %s30, 0
        %s349 = smul.addr %s346, 32
        %s350 = sadd.s32 %s348, %s349
        %s351 = smul.addr %s350, 8
        %s352 = scalar_lea.vmem %s0, %s351
        %p353 = scmp.lt.s32.totalorder %s30, 0
        %s354 = scalar_select %p353, %s30, 0
        %s355 = scalar_lea.vmem %s1, %s354
        %p356 = scmp.lt.s32.totalorder %s30, 0
        %s357 = scalar_select %p356, %s30, 0
        %s358 = scalar_lea.vmem %s2, %s357
        %p359 = scmp.lt.s32.totalorder %s30, 0
        %s360 = scalar_select %p359, %s30, 0
        %s361 = smul.addr %s360, 144
        %s362 = smul.addr %s361, 4
        %s363 = scalar_lea.vmem %s3, %s362
        %p364 = scmp.lt.s32.totalorder %s29, 1
        %s365 = scalar_select %p364, %s29, 1
        %s366 = smul.addr %s365, 32
        %s367 = smul.addr %s366, 8
        %s368 = scalar_lea.vmem %s5, %s367
        %v370 = vld [vmem:[%s352] sm:$0xff]
        %v371 = vld [vmem:[%s352 + $0x8] sm:$0xff]
        %v372 = vld [vmem:[%s352 + $0x10] sm:$0xff]
        %v373 = vld [vmem:[%s352 + $0x18] sm:$0xff]
        %v374 = vld [vmem:[%s352 + $0x20] sm:$0xff]
        %v375 = vld [vmem:[%s352 + $0x28] sm:$0xff]
        %v376 = vld [vmem:[%s352 + $0x30] sm:$0xff]
        %v377 = vld [vmem:[%s352 + $0x38] sm:$0xff]
        %v378 = vld [vmem:[%s352 + $0x40] sm:$0xff]
        %v379 = vld [vmem:[%s352 + $0x48] sm:$0xff]
        %v380 = vld [vmem:[%s352 + $0x50] sm:$0xff]
        %v381 = vld [vmem:[%s352 + $0x58] sm:$0xff]
        %v382 = vld [vmem:[%s352 + $0x60] sm:$0xff]
        %v383 = vld [vmem:[%s352 + $0x68] sm:$0xff]
        %v384 = vld [vmem:[%s352 + $0x70] sm:$0xff]
        %v385 = vld [vmem:[%s352 + $0x78] sm:$0xff]
        %v386 = vld [vmem:[%s352 + $0x80] sm:$0xff]
        %v387 = vld [vmem:[%s352 + $0x88] sm:$0xff]
        %v388 = vld [vmem:[%s352 + $0x90] sm:$0xff]
        %v389 = vld [vmem:[%s352 + $0x98] sm:$0xff]
        %v390 = vld [vmem:[%s352 + $0xa0] sm:$0xff]
        %v391 = vld [vmem:[%s352 + $0xa8] sm:$0xff]
        %v392 = vld [vmem:[%s352 + $0xb0] sm:$0xff]
        %v393 = vld [vmem:[%s352 + $0xb8] sm:$0xff]
        %v394 = vld [vmem:[%s352 + $0xc0] sm:$0xff]
        %v395 = vld [vmem:[%s352 + $0xc8] sm:$0xff]
        %v396 = vld [vmem:[%s352 + $0xd0] sm:$0xff]
        %v397 = vld [vmem:[%s352 + $0xd8] sm:$0xff]
        %v398 = vld [vmem:[%s352 + $0xe0] sm:$0xff]
        %v399 = vld [vmem:[%s352 + $0xe8] sm:$0xff]
        %v400 = vld [vmem:[%s352 + $0xf0] sm:$0xff]
        %v401 = vld [vmem:[%s352 + $0xf8] sm:$0xff]
        %v402 = vld [vmem:[%s355] sm:$0x1]
        %v404 = vlaneseq
        %v405 = vshrl.u32 %v404, 7
        %v406 = vsub.s32 0, %v405
        %v407 = vrot.slane %v402, %v406
        %v409 = vmul.f32 %v370, %v407
        %v410 = vmul.f32 %v371, %v407
        %v411 = vmul.f32 %v372, %v407
        %v412 = vmul.f32 %v373, %v407
        %v413 = vmul.f32 %v374, %v407
        %v414 = vmul.f32 %v375, %v407
        %v415 = vmul.f32 %v376, %v407
        %v416 = vmul.f32 %v377, %v407
        %v417 = vmul.f32 %v378, %v407
        %v418 = vmul.f32 %v379, %v407
        %v419 = vmul.f32 %v380, %v407
        %v420 = vmul.f32 %v381, %v407
        %v421 = vmul.f32 %v382, %v407
        %v422 = vmul.f32 %v383, %v407
        %v423 = vmul.f32 %v384, %v407
        %v424 = vmul.f32 %v385, %v407
        %v425 = vmul.f32 %v386, %v407
        %v426 = vmul.f32 %v387, %v407
        %v427 = vmul.f32 %v388, %v407
        %v428 = vmul.f32 %v389, %v407
        %v429 = vmul.f32 %v390, %v407
        %v430 = vmul.f32 %v391, %v407
        %v431 = vmul.f32 %v392, %v407
        %v432 = vmul.f32 %v393, %v407
        %v433 = vmul.f32 %v394, %v407
        %v434 = vmul.f32 %v395, %v407
        %v435 = vmul.f32 %v396, %v407
        %v436 = vmul.f32 %v397, %v407
        %v437 = vmul.f32 %v398, %v407
        %v438 = vmul.f32 %v399, %v407
        %v439 = vmul.f32 %v400, %v407
        %v440 = vmul.f32 %v401, %v407
        %v441 = vld [vmem:[%s358] sm:$0x1]
        %v443 = vlaneseq
        %v444 = vshrl.u32 %v443, 7
        %v445 = vsub.s32 0, %v444
        %v446 = vrot.slane %v441, %v445
        %v448 = vadd.f32 %v409, %v446
        %v449 = vadd.f32 %v410, %v446
        %v450 = vadd.f32 %v411, %v446
        %v451 = vadd.f32 %v412, %v446
        %v452 = vadd.f32 %v413, %v446
        %v453 = vadd.f32 %v414, %v446
        %v454 = vadd.f32 %v415, %v446
        %v455 = vadd.f32 %v416, %v446
        %v456 = vadd.f32 %v417, %v446
        %v457 = vadd.f32 %v418, %v446
        %v458 = vadd.f32 %v419, %v446
        %v459 = vadd.f32 %v420, %v446
        %v460 = vadd.f32 %v421, %v446
        %v461 = vadd.f32 %v422, %v446
        %v462 = vadd.f32 %v423, %v446
        %v463 = vadd.f32 %v424, %v446
        %v464 = vadd.f32 %v425, %v446
        %v465 = vadd.f32 %v426, %v446
        %v466 = vadd.f32 %v427, %v446
        %v467 = vadd.f32 %v428, %v446
        %v468 = vadd.f32 %v429, %v446
        %v469 = vadd.f32 %v430, %v446
        %v470 = vadd.f32 %v431, %v446
        %v471 = vadd.f32 %v432, %v446
        %v472 = vadd.f32 %v433, %v446
        %v473 = vadd.f32 %v434, %v446
        %v474 = vadd.f32 %v435, %v446
        %v475 = vadd.f32 %v436, %v446
        %v476 = vadd.f32 %v437, %v446
        %v477 = vadd.f32 %v438, %v446
        %v478 = vadd.f32 %v439, %v446
        %v479 = vadd.f32 %v440, %v446
        %v480 = vmax.f32 %v448, 0.0
        %v481 = vmax.f32 %v449, 0.0
        %v482 = vmax.f32 %v450, 0.0
        %v483 = vmax.f32 %v451, 0.0
        %v484 = vmax.f32 %v452, 0.0
        %v485 = vmax.f32 %v453, 0.0
        %v486 = vmax.f32 %v454, 0.0
        %v487 = vmax.f32 %v455, 0.0
        %v488 = vmax.f32 %v456, 0.0
        %v489 = vmax.f32 %v457, 0.0
        %v490 = vmax.f32 %v458, 0.0
        %v491 = vmax.f32 %v459, 0.0
        %v492 = vmax.f32 %v460, 0.0
        %v493 = vmax.f32 %v461, 0.0
        %v494 = vmax.f32 %v462, 0.0
        %v495 = vmax.f32 %v463, 0.0
        %v496 = vmax.f32 %v464, 0.0
        %v497 = vmax.f32 %v465, 0.0
        %v498 = vmax.f32 %v466, 0.0
        %v499 = vmax.f32 %v467, 0.0
        %v500 = vmax.f32 %v468, 0.0
        %v501 = vmax.f32 %v469, 0.0
        %v502 = vmax.f32 %v470, 0.0
        %v503 = vmax.f32 %v471, 0.0
        %v504 = vmax.f32 %v472, 0.0
        %v505 = vmax.f32 %v473, 0.0
        %v506 = vmax.f32 %v474, 0.0
        %v507 = vmax.f32 %v475, 0.0
        %v508 = vmax.f32 %v476, 0.0
        %v509 = vmax.f32 %v477, 0.0
        %v510 = vmax.f32 %v478, 0.0
        %v511 = vmax.f32 %v479, 0.0
        %v512 = vpack.c.bf16 %v481, %v480
        %v513 = vpack.c.bf16 %v483, %v482
        %v514 = vpack.c.bf16 %v485, %v484
        %v515 = vpack.c.bf16 %v487, %v486
        %v516 = vpack.c.bf16 %v489, %v488
        %v517 = vpack.c.bf16 %v491, %v490
        %v518 = vpack.c.bf16 %v493, %v492
        %v519 = vpack.c.bf16 %v495, %v494
        %v520 = vpack.c.bf16 %v497, %v496
        %v521 = vpack.c.bf16 %v499, %v498
        %v522 = vpack.c.bf16 %v501, %v500
        %v523 = vpack.c.bf16 %v503, %v502
        %v524 = vpack.c.bf16 %v505, %v504
        %v525 = vpack.c.bf16 %v507, %v506
        %v526 = vpack.c.bf16 %v509, %v508
        %v527 = vpack.c.bf16 %v511, %v510
        %528 = vst [vmem:[#allocation3] sm:$0xf] 0
        %529 = vst [vmem:[#allocation3 + $0x4] sm:$0xf] 0
        %530 = vst [vmem:[#allocation3 + $0x8] sm:$0xf] 0
        %531 = vst [vmem:[#allocation3 + $0xc] sm:$0xf] 0
        %532 = vst [vmem:[#allocation3 + $0x10] sm:$0xf] 0
        %533 = vst [vmem:[#allocation3 + $0x14] sm:$0xf] 0
        %s534 = scalar_lea.vmem [#allocation3], 408
        %535 = vst [vmem:[%s534] sm:$0xf] 0
        %536 = vst [vmem:[%s534 + $0x4] sm:$0xf] 0
        %537 = vst [vmem:[%s534 + $0x8] sm:$0xf] 0
        %538 = vst [vmem:[%s534 + $0xc] sm:$0xf] 0
        %539 = vst [vmem:[%s534 + $0x10] sm:$0xf] 0
        %540 = vst [vmem:[%s534 + $0x14] sm:$0xf] 0
        %s541 = scalar_lea.vmem [#allocation3], 24
        %542 = vst [vmem:[%s541] sm:$0xf] 0
        %543 = vst [vmem:[%s541 + $0x4] sm:$0xf] 0
        %544 = vst [vmem:[%s541 + $0x18] sm:$0xf] 0
        %545 = vst [vmem:[%s541 + $0x1c] sm:$0xf] 0
        %546 = vst [vmem:[%s541 + $0x30] sm:$0xf] 0
        %547 = vst [vmem:[%s541 + $0x34] sm:$0xf] 0
        %548 = vst [vmem:[%s541 + $0x48] sm:$0xf] 0
        %549 = vst [vmem:[%s541 + $0x4c] sm:$0xf] 0
        %550 = vst [vmem:[%s541 + $0x60] sm:$0xf] 0
        %551 = vst [vmem:[%s541 + $0x64] sm:$0xf] 0
        %552 = vst [vmem:[%s541 + $0x78] sm:$0xf] 0
        %553 = vst [vmem:[%s541 + $0x7c] sm:$0xf] 0
        %554 = vst [vmem:[%s541 + $0x90] sm:$0xf] 0
        %555 = vst [vmem:[%s541 + $0x94] sm:$0xf] 0
        %556 = vst [vmem:[%s541 + $0xa8] sm:$0xf] 0
        %557 = vst [vmem:[%s541 + $0xac] sm:$0xf] 0
        %558 = vst [vmem:[%s541 + $0xc0] sm:$0xf] 0
        %559 = vst [vmem:[%s541 + $0xc4] sm:$0xf] 0
        %560 = vst [vmem:[%s541 + $0xd8] sm:$0xf] 0
        %561 = vst [vmem:[%s541 + $0xdc] sm:$0xf] 0
        %562 = vst [vmem:[%s541 + $0xf0] sm:$0xf] 0
        %563 = vst [vmem:[%s541 + $0xf4] sm:$0xf] 0
        %564 = vst [vmem:[%s541 + $0x108] sm:$0xf] 0
        %565 = vst [vmem:[%s541 + $0x10c] sm:$0xf] 0
        %566 = vst [vmem:[%s541 + $0x120] sm:$0xf] 0
        %567 = vst [vmem:[%s541 + $0x124] sm:$0xf] 0
        %568 = vst [vmem:[%s541 + $0x138] sm:$0xf] 0
        %569 = vst [vmem:[%s541 + $0x13c] sm:$0xf] 0
        %570 = vst [vmem:[%s541 + $0x150] sm:$0xf] 0
        %571 = vst [vmem:[%s541 + $0x154] sm:$0xf] 0
        %572 = vst [vmem:[%s541 + $0x168] sm:$0xf] 0
        %573 = vst [vmem:[%s541 + $0x16c] sm:$0xf] 0
        %574 = vst [vmem:[%s541 + $0x10] sm:$0xf] 0
        %575 = vst [vmem:[%s541 + $0x14] sm:$0xf] 0
        %576 = vst [vmem:[%s541 + $0x28] sm:$0xf] 0
        %577 = vst [vmem:[%s541 + $0x2c] sm:$0xf] 0
        %578 = vst [vmem:[%s541 + $0x40] sm:$0xf] 0
        %579 = vst [vmem:[%s541 + $0x44] sm:$0xf] 0
        %580 = vst [vmem:[%s541 + $0x58] sm:$0xf] 0
        %581 = vst [vmem:[%s541 + $0x5c] sm:$0xf] 0
        %582 = vst [vmem:[%s541 + $0x70] sm:$0xf] 0
        %583 = vst [vmem:[%s541 + $0x74] sm:$0xf] 0
        %584 = vst [vmem:[%s541 + $0x88] sm:$0xf] 0
        %585 = vst [vmem:[%s541 + $0x8c] sm:$0xf] 0
        %586 = vst [vmem:[%s541 + $0xa0] sm:$0xf] 0
        %587 = vst [vmem:[%s541 + $0xa4] sm:$0xf] 0
        %588 = vst [vmem:[%s541 + $0xb8] sm:$0xf] 0
        %589 = vst [vmem:[%s541 + $0xbc] sm:$0xf] 0
        %590 = vst [vmem:[%s541 + $0xd0] sm:$0xf] 0
        %591 = vst [vmem:[%s541 + $0xd4] sm:$0xf] 0
        %592 = vst [vmem:[%s541 + $0xe8] sm:$0xf] 0
        %593 = vst [vmem:[%s541 + $0xec] sm:$0xf] 0
        %594 = vst [vmem:[%s541 + $0x100] sm:$0xf] 0
        %595 = vst [vmem:[%s541 + $0x104] sm:$0xf] 0
        %596 = vst [vmem:[%s541 + $0x118] sm:$0xf] 0
        %597 = vst [vmem:[%s541 + $0x11c] sm:$0xf] 0
        %598 = vst [vmem:[%s541 + $0x130] sm:$0xf] 0
        %599 = vst [vmem:[%s541 + $0x134] sm:$0xf] 0
        %600 = vst [vmem:[%s541 + $0x148] sm:$0xf] 0
        %601 = vst [vmem:[%s541 + $0x14c] sm:$0xf] 0
        %602 = vst [vmem:[%s541 + $0x160] sm:$0xf] 0
        %603 = vst [vmem:[%s541 + $0x164] sm:$0xf] 0
        %604 = vst [vmem:[%s541 + $0x178] sm:$0xf] 0
        %605 = vst [vmem:[%s541 + $0x17c] sm:$0xf] 0
        %v622 = vunpack.c.l.b16 %v512
        %v623 = vunpack.c.h.b16 %v512
        %v624 = vunpack.c.l.b16 %v513
        %v625 = vunpack.c.h.b16 %v513
        %v626 = vunpack.c.l.b16 %v514
        %v627 = vunpack.c.h.b16 %v514
        %v628 = vunpack.c.l.b16 %v515
        %v629 = vunpack.c.h.b16 %v515
        %v630 = vunpack.c.l.b16 %v516
        %v631 = vunpack.c.h.b16 %v516
        %v632 = vunpack.c.l.b16 %v517
        %v633 = vunpack.c.h.b16 %v517
        %v634 = vunpack.c.l.b16 %v518
        %v635 = vunpack.c.h.b16 %v518
        %v636 = vunpack.c.l.b16 %v519
        %v637 = vunpack.c.h.b16 %v519
        %v638 = vunpack.c.l.b16 %v520
        %v639 = vunpack.c.h.b16 %v520
        %v640 = vunpack.c.l.b16 %v521
        %v641 = vunpack.c.h.b16 %v521
        %v642 = vunpack.c.l.b16 %v522
        %v643 = vunpack.c.h.b16 %v522
        %v644 = vunpack.c.l.b16 %v523
        %v645 = vunpack.c.h.b16 %v523
        %v646 = vunpack.c.l.b16 %v524
        %v647 = vunpack.c.h.b16 %v524
        %v648 = vunpack.c.l.b16 %v525
        %v649 = vunpack.c.h.b16 %v525
        %v650 = vunpack.c.l.b16 %v526
        %v651 = vunpack.c.h.b16 %v526
        %v652 = vunpack.c.l.b16 %v527
        %v653 = vunpack.c.h.b16 %v527
        %v654 = vpack.c.b16 %v622, %v622
        %v655 = vpack.c.b16 %v623, %v623
        %v656 = vpack.c.b16 %v624, %v624
        %v657 = vpack.c.b16 %v625, %v625
        %v658 = vpack.c.b16 %v626, %v626
        %v659 = vpack.c.b16 %v627, %v627
        %v660 = vpack.c.b16 %v628, %v628
        %v661 = vpack.c.b16 %v629, %v629
        %v662 = vpack.c.b16 %v630, %v630
        %v663 = vpack.c.b16 %v631, %v631
        %v664 = vpack.c.b16 %v632, %v632
        %v665 = vpack.c.b16 %v633, %v633
        %v666 = vpack.c.b16 %v634, %v634
        %v667 = vpack.c.b16 %v635, %v635
        %v668 = vpack.c.b16 %v636, %v636
        %v669 = vpack.c.b16 %v637, %v637
        %v670 = vpack.c.b16 %v638, %v638
        %v671 = vpack.c.b16 %v639, %v639
        %v672 = vpack.c.b16 %v640, %v640
        %v673 = vpack.c.b16 %v641, %v641
        %v674 = vpack.c.b16 %v642, %v642
        %v675 = vpack.c.b16 %v643, %v643
        %v676 = vpack.c.b16 %v644, %v644
        %v677 = vpack.c.b16 %v645, %v645
        %v678 = vpack.c.b16 %v646, %v646
        %v679 = vpack.c.b16 %v647, %v647
        %v680 = vpack.c.b16 %v648, %v648
        %v681 = vpack.c.b16 %v649, %v649
        %v682 = vpack.c.b16 %v650, %v650
        %v683 = vpack.c.b16 %v651, %v651
        %v684 = vpack.c.b16 %v652, %v652
        %v685 = vpack.c.b16 %v653, %v653
        %718 = vst [vmem:[%s541 + $0x8] sm:$0xf] %v654
        %719 = vst [vmem:[%s541 + $0xc] sm:$0xf] %v655
        %720 = vst [vmem:[%s541 + $0x20] sm:$0xf] %v656
        %721 = vst [vmem:[%s541 + $0x24] sm:$0xf] %v657
        %722 = vst [vmem:[%s541 + $0x38] sm:$0xf] %v658
        %723 = vst [vmem:[%s541 + $0x3c] sm:$0xf] %v659
        %724 = vst [vmem:[%s541 + $0x50] sm:$0xf] %v660
        %725 = vst [vmem:[%s541 + $0x54] sm:$0xf] %v661
        %726 = vst [vmem:[%s541 + $0x68] sm:$0xf] %v662
        %727 = vst [vmem:[%s541 + $0x6c] sm:$0xf] %v663
        %728 = vst [vmem:[%s541 + $0x80] sm:$0xf] %v664
        %729 = vst [vmem:[%s541 + $0x84] sm:$0xf] %v665
        %730 = vst [vmem:[%s541 + $0x98] sm:$0xf] %v666
        %731 = vst [vmem:[%s541 + $0x9c] sm:$0xf] %v667
        %732 = vst [vmem:[%s541 + $0xb0] sm:$0xf] %v668
        %733 = vst [vmem:[%s541 + $0xb4] sm:$0xf] %v669
        %734 = vst [vmem:[%s541 + $0xc8] sm:$0xf] %v670
        %735 = vst [vmem:[%s541 + $0xcc] sm:$0xf] %v671
        %736 = vst [vmem:[%s541 + $0xe0] sm:$0xf] %v672
        %737 = vst [vmem:[%s541 + $0xe4] sm:$0xf] %v673
        %738 = vst [vmem:[%s541 + $0xf8] sm:$0xf] %v674
        %739 = vst [vmem:[%s541 + $0xfc] sm:$0xf] %v675
        %740 = vst [vmem:[%s541 + $0x110] sm:$0xf] %v676
        %741 = vst [vmem:[%s541 + $0x114] sm:$0xf] %v677
        %742 = vst [vmem:[%s541 + $0x128] sm:$0xf] %v678
        %743 = vst [vmem:[%s541 + $0x12c] sm:$0xf] %v679
        %744 = vst [vmem:[%s541 + $0x140] sm:$0xf] %v680
        %745 = vst [vmem:[%s541 + $0x144] sm:$0xf] %v681
        %746 = vst [vmem:[%s541 + $0x158] sm:$0xf] %v682
        %747 = vst [vmem:[%s541 + $0x15c] sm:$0xf] %v683
        %748 = vst [vmem:[%s541 + $0x170] sm:$0xf] %v684
        %749 = vst [vmem:[%s541 + $0x174] sm:$0xf] %v685
        %v750 = vld [vmem:[#allocation3 + $0x4] sm:$0x8]
        %v751 = vld [vmem:[#allocation3 + $0x8] sm:$0xf]
        %v752 = vld [vmem:[#allocation3 + $0xc] sm:$0xf]
        %v753 = vld [vmem:[#allocation3 + $0x1c] sm:$0x8]
        %v754 = vld [vmem:[#allocation3 + $0x20] sm:$0xf]
        %v755 = vld [vmem:[#allocation3 + $0x24] sm:$0xf]
        %v756 = vld [vmem:[#allocation3 + $0x34] sm:$0x8]
        %v757 = vld [vmem:[#allocation3 + $0x38] sm:$0xf]
        %v758 = vld [vmem:[#allocation3 + $0x3c] sm:$0xf]
        %v759 = vld [vmem:[#allocation3 + $0x4c] sm:$0x8]
        %v760 = vld [vmem:[#allocation3 + $0x50] sm:$0xf]
        %v761 = vld [vmem:[#allocation3 + $0x54] sm:$0xf]
        %v762 = vld [vmem:[#allocation3 + $0x64] sm:$0x8]
        %v763 = vld [vmem:[#allocation3 + $0x68] sm:$0xf]
        %v764 = vld [vmem:[#allocation3 + $0x6c] sm:$0xf]
        %v765 = vld [vmem:[#allocation3 + $0x7c] sm:$0x8]
        %v766 = vld [vmem:[#allocation3 + $0x80] sm:$0xf]
        %v767 = vld [vmem:[#allocation3 + $0x84] sm:$0xf]
        %v768 = vld [vmem:[#allocation3 + $0x94] sm:$0x8]
        %v769 = vld [vmem:[#allocation3 + $0x98] sm:$0xf]
        %v770 = vld [vmem:[#allocation3 + $0x9c] sm:$0xf]
        %v771 = vld [vmem:[#allocation3 + $0xac] sm:$0x8]
        %v772 = vld [vmem:[#allocation3 + $0xb0] sm:$0xf]
        %v773 = vld [vmem:[#allocation3 + $0xb4] sm:$0xf]
        %v774 = vld [vmem:[#allocation3 + $0xc4] sm:$0x8]
        %v775 = vld [vmem:[#allocation3 + $0xc8] sm:$0xf]
        %v776 = vld [vmem:[#allocation3 + $0xcc] sm:$0xf]
        %v777 = vld [vmem:[#allocation3 + $0xdc] sm:$0x8]
        %v778 = vld [vmem:[#allocation3 + $0xe0] sm:$0xf]
        %v779 = vld [vmem:[#allocation3 + $0xe4] sm:$0xf]
        %v780 = vld [vmem:[#allocation3 + $0xf4] sm:$0x8]
        %v781 = vld [vmem:[#allocation3 + $0xf8] sm:$0xf]
        %v782 = vld [vmem:[#allocation3 + $0xfc] sm:$0xf]
        %v783 = vld [vmem:[#allocation3 + $0x10c] sm:$0x8]
        %v784 = vld [vmem:[#allocation3 + $0x110] sm:$0xf]
        %v785 = vld [vmem:[#allocation3 + $0x114] sm:$0xf]
        %v786 = vld [vmem:[#allocation3 + $0x124] sm:$0x8]
        %v787 = vld [vmem:[#allocation3 + $0x128] sm:$0xf]
        %v788 = vld [vmem:[#allocation3 + $0x12c] sm:$0xf]
        %v789 = vld [vmem:[#allocation3 + $0x13c] sm:$0x8]
        %v790 = vld [vmem:[#allocation3 + $0x140] sm:$0xf]
        %v791 = vld [vmem:[#allocation3 + $0x144] sm:$0xf]
        %v792 = vld [vmem:[#allocation3 + $0x154] sm:$0x8]
        %v793 = vld [vmem:[#allocation3 + $0x158] sm:$0xf]
        %v794 = vld [vmem:[#allocation3 + $0x15c] sm:$0xf]
        %v795 = vld [vmem:[#allocation3 + $0x16c] sm:$0x8]
        %v796 = vld [vmem:[#allocation3 + $0x170] sm:$0xf]
        %v797 = vld [vmem:[#allocation3 + $0x174] sm:$0xf]
        %v798 = vld [vmem:[#allocation3 + $0x10] sm:$0x1]
        %v799 = vld [vmem:[#allocation3 + $0x28] sm:$0x1]
        %v800 = vld [vmem:[#allocation3 + $0x40] sm:$0x1]
        %v801 = vld [vmem:[#allocation3 + $0x58] sm:$0x1]
        %v802 = vld [vmem:[#allocation3 + $0x70] sm:$0x1]
        %v803 = vld [vmem:[#allocation3 + $0x88] sm:$0x1]
        %v804 = vld [vmem:[#allocation3 + $0xa0] sm:$0x1]
        %v805 = vld [vmem:[#allocation3 + $0xb8] sm:$0x1]
        %v806 = vld [vmem:[#allocation3 + $0xd0] sm:$0x1]
        %v807 = vld [vmem:[#allocation3 + $0xe8] sm:$0x1]
        %v808 = vld [vmem:[#allocation3 + $0x100] sm:$0x1]
        %v809 = vld [vmem:[#allocation3 + $0x118] sm:$0x1]
        %v810 = vld [vmem:[#allocation3 + $0x130] sm:$0x1]
        %v811 = vld [vmem:[#allocation3 + $0x148] sm:$0x1]
        %v812 = vld [vmem:[#allocation3 + $0x160] sm:$0x1]
        %v813 = vld [vmem:[#allocation3 + $0x178] sm:$0x1]
        %v814 = vld [vmem:[%s541 + $0x4] sm:$0x8]
        %v815 = vld [vmem:[%s541 + $0x8] sm:$0xf]
        %v816 = vld [vmem:[%s541 + $0xc] sm:$0xf]
        %v817 = vld [vmem:[%s541 + $0x1c] sm:$0x8]
        %v818 = vld [vmem:[%s541 + $0x20] sm:$0xf]
        %v819 = vld [vmem:[%s541 + $0x24] sm:$0xf]
        %v820 = vld [vmem:[%s541 + $0x34] sm:$0x8]
        %v821 = vld [vmem:[%s541 + $0x38] sm:$0xf]
        %v822 = vld [vmem:[%s541 + $0x3c] sm:$0xf]
        %v823 = vld [vmem:[%s541 + $0x4c] sm:$0x8]
        %v824 = vld [vmem:[%s541 + $0x50] sm:$0xf]
        %v825 = vld [vmem:[%s541 + $0x54] sm:$0xf]
        %v826 = vld [vmem:[%s541 + $0x64] sm:$0x8]
        %v827 = vld [vmem:[%s541 + $0x68] sm:$0xf]
        %v828 = vld [vmem:[%s541 + $0x6c] sm:$0xf]
        %v829 = vld [vmem:[%s541 + $0x7c] sm:$0x8]
        %v830 = vld [vmem:[%s541 + $0x80] sm:$0xf]
        %v831 = vld [vmem:[%s541 + $0x84] sm:$0xf]
        %v832 = vld [vmem:[%s541 + $0x94] sm:$0x8]
        %v833 = vld [vmem:[%s541 + $0x98] sm:$0xf]
        %v834 = vld [vmem:[%s541 + $0x9c] sm:$0xf]
        %v835 = vld [vmem:[%s541 + $0xac] sm:$0x8]
        %v836 = vld [vmem:[%s541 + $0xb0] sm:$0xf]
        %v837 = vld [vmem:[%s541 + $0xb4] sm:$0xf]
        %v838 = vld [vmem:[%s541 + $0xc4] sm:$0x8]
        %v839 = vld [vmem:[%s541 + $0xc8] sm:$0xf]
        %v840 = vld [vmem:[%s541 + $0xcc] sm:$0xf]
        %v841 = vld [vmem:[%s541 + $0xdc] sm:$0x8]
        %v842 = vld [vmem:[%s541 + $0xe0] sm:$0xf]
        %v843 = vld [vmem:[%s541 + $0xe4] sm:$0xf]
        %v844 = vld [vmem:[%s541 + $0xf4] sm:$0x8]
        %v845 = vld [vmem:[%s541 + $0xf8] sm:$0xf]
        %v846 = vld [vmem:[%s541 + $0xfc] sm:$0xf]
        %v847 = vld [vmem:[%s541 + $0x10c] sm:$0x8]
        %v848 = vld [vmem:[%s541 + $0x110] sm:$0xf]
        %v849 = vld [vmem:[%s541 + $0x114] sm:$0xf]
        %v850 = vld [vmem:[%s541 + $0x124] sm:$0x8]
        %v851 = vld [vmem:[%s541 + $0x128] sm:$0xf]
        %v852 = vld [vmem:[%s541 + $0x12c] sm:$0xf]
        %v853 = vld [vmem:[%s541 + $0x13c] sm:$0x8]
        %v854 = vld [vmem:[%s541 + $0x140] sm:$0xf]
        %v855 = vld [vmem:[%s541 + $0x144] sm:$0xf]
        %v856 = vld [vmem:[%s541 + $0x154] sm:$0x8]
        %v857 = vld [vmem:[%s541 + $0x158] sm:$0xf]
        %v858 = vld [vmem:[%s541 + $0x15c] sm:$0xf]
        %v859 = vld [vmem:[%s541 + $0x16c] sm:$0x8]
        %v860 = vld [vmem:[%s541 + $0x170] sm:$0xf]
        %v861 = vld [vmem:[%s541 + $0x174] sm:$0xf]
        %v862 = vld [vmem:[%s541 + $0x10] sm:$0x1]
        %v863 = vld [vmem:[%s541 + $0x28] sm:$0x1]
        %v864 = vld [vmem:[%s541 + $0x40] sm:$0x1]
        %v865 = vld [vmem:[%s541 + $0x58] sm:$0x1]
        %v866 = vld [vmem:[%s541 + $0x70] sm:$0x1]
        %v867 = vld [vmem:[%s541 + $0x88] sm:$0x1]
        %v868 = vld [vmem:[%s541 + $0xa0] sm:$0x1]
        %v869 = vld [vmem:[%s541 + $0xb8] sm:$0x1]
        %v870 = vld [vmem:[%s541 + $0xd0] sm:$0x1]
        %v871 = vld [vmem:[%s541 + $0xe8] sm:$0x1]
        %v872 = vld [vmem:[%s541 + $0x100] sm:$0x1]
        %v873 = vld [vmem:[%s541 + $0x118] sm:$0x1]
        %v874 = vld [vmem:[%s541 + $0x130] sm:$0x1]
        %v875 = vld [vmem:[%s541 + $0x148] sm:$0x1]
        %v876 = vld [vmem:[%s541 + $0x160] sm:$0x1]
        %v877 = vld [vmem:[%s541 + $0x178] sm:$0x1]
        %s878 = scalar_lea.vmem [#allocation3], 48
        %v879 = vld [vmem:[%s878 + $0x4] sm:$0x8]
        %v880 = vld [vmem:[%s878 + $0x8] sm:$0xf]
        %v881 = vld [vmem:[%s878 + $0xc] sm:$0xf]
        %v882 = vld [vmem:[%s878 + $0x1c] sm:$0x8]
        %v883 = vld [vmem:[%s878 + $0x20] sm:$0xf]
        %v884 = vld [vmem:[%s878 + $0x24] sm:$0xf]
        %v885 = vld [vmem:[%s878 + $0x34] sm:$0x8]
        %v886 = vld [vmem:[%s878 + $0x38] sm:$0xf]
        %v887 = vld [vmem:[%s878 + $0x3c] sm:$0xf]
        %v888 = vld [vmem:[%s878 + $0x4c] sm:$0x8]
        %v889 = vld [vmem:[%s878 + $0x50] sm:$0xf]
        %v890 = vld [vmem:[%s878 + $0x54] sm:$0xf]
        %v891 = vld [vmem:[%s878 + $0x64] sm:$0x8]
        %v892 = vld [vmem:[%s878 + $0x68] sm:$0xf]
        %v893 = vld [vmem:[%s878 + $0x6c] sm:$0xf]
        %v894 = vld [vmem:[%s878 + $0x7c] sm:$0x8]
        %v895 = vld [vmem:[%s878 + $0x80] sm:$0xf]
        %v896 = vld [vmem:[%s878 + $0x84] sm:$0xf]
        %v897 = vld [vmem:[%s878 + $0x94] sm:$0x8]
        %v898 = vld [vmem:[%s878 + $0x98] sm:$0xf]
        %v899 = vld [vmem:[%s878 + $0x9c] sm:$0xf]
        %v900 = vld [vmem:[%s878 + $0xac] sm:$0x8]
        %v901 = vld [vmem:[%s878 + $0xb0] sm:$0xf]
        %v902 = vld [vmem:[%s878 + $0xb4] sm:$0xf]
        %v903 = vld [vmem:[%s878 + $0xc4] sm:$0x8]
        %v904 = vld [vmem:[%s878 + $0xc8] sm:$0xf]
        %v905 = vld [vmem:[%s878 + $0xcc] sm:$0xf]
        %v906 = vld [vmem:[%s878 + $0xdc] sm:$0x8]
        %v907 = vld [vmem:[%s878 + $0xe0] sm:$0xf]
        %v908 = vld [vmem:[%s878 + $0xe4] sm:$0xf]
        %v909 = vld [vmem:[%s878 + $0xf4] sm:$0x8]
        %v910 = vld [vmem:[%s878 + $0xf8] sm:$0xf]
        %v911 = vld [vmem:[%s878 + $0xfc] sm:$0xf]
        %v912 = vld [vmem:[%s878 + $0x10c] sm:$0x8]
        %v913 = vld [vmem:[%s878 + $0x110] sm:$0xf]
        %v914 = vld [vmem:[%s878 + $0x114] sm:$0xf]
        %v915 = vld [vmem:[%s878 + $0x124] sm:$0x8]
        %v916 = vld [vmem:[%s878 + $0x128] sm:$0xf]
        %v917 = vld [vmem:[%s878 + $0x12c] sm:$0xf]
        %v918 = vld [vmem:[%s878 + $0x13c] sm:$0x8]
        %v919 = vld [vmem:[%s878 + $0x140] sm:$0xf]
        %v920 = vld [vmem:[%s878 + $0x144] sm:$0xf]
        %v921 = vld [vmem:[%s878 + $0x154] sm:$0x8]
        %v922 = vld [vmem:[%s878 + $0x158] sm:$0xf]
        %v923 = vld [vmem:[%s878 + $0x15c] sm:$0xf]
        %v924 = vld [vmem:[%s878 + $0x16c] sm:$0x8]
        %v925 = vld [vmem:[%s878 + $0x170] sm:$0xf]
        %v926 = vld [vmem:[%s878 + $0x174] sm:$0xf]
        %v927 = vld [vmem:[%s878 + $0x10] sm:$0x1]
        %v928 = vld [vmem:[%s878 + $0x28] sm:$0x1]
        %v929 = vld [vmem:[%s878 + $0x40] sm:$0x1]
        %v930 = vld [vmem:[%s878 + $0x58] sm:$0x1]
        %v931 = vld [vmem:[%s878 + $0x70] sm:$0x1]
        %v932 = vld [vmem:[%s878 + $0x88] sm:$0x1]
        %v933 = vld [vmem:[%s878 + $0xa0] sm:$0x1]
        %v934 = vld [vmem:[%s878 + $0xb8] sm:$0x1]
        %v935 = vld [vmem:[%s878 + $0xd0] sm:$0x1]
        %v936 = vld [vmem:[%s878 + $0xe8] sm:$0x1]
        %v937 = vld [vmem:[%s878 + $0x100] sm:$0x1]
        %v938 = vld [vmem:[%s878 + $0x118] sm:$0x1]
        %v939 = vld [vmem:[%s878 + $0x130] sm:$0x1]
        %v940 = vld [vmem:[%s878 + $0x148] sm:$0x1]
        %v941 = vld [vmem:[%s878 + $0x160] sm:$0x1]
        %v942 = vld [vmem:[%s878 + $0x178] sm:$0x1]
        %v991 = vunpack.c.l.b16 %v750
        %v992 = vunpack.c.l.b16 %v751
        %v993 = vunpack.c.l.b16 %v752
        %v994 = vunpack.c.l.b16 %v753
        %v995 = vunpack.c.l.b16 %v754
        %v996 = vunpack.c.l.b16 %v755
        %v997 = vunpack.c.l.b16 %v756
        %v998 = vunpack.c.l.b16 %v757
        %v999 = vunpack.c.l.b16 %v758
        %v1000 = vunpack.c.l.b16 %v759
        %v1001 = vunpack.c.l.b16 %v760
        %v1002 = vunpack.c.l.b16 %v761
        %v1003 = vunpack.c.l.b16 %v762
        %v1004 = vunpack.c.l.b16 %v763
        %v1005 = vunpack.c.l.b16 %v764
        %v1006 = vunpack.c.l.b16 %v765
        %v1007 = vunpack.c.l.b16 %v766
        %v1008 = vunpack.c.l.b16 %v767
        %v1009 = vunpack.c.l.b16 %v768
        %v1010 = vunpack.c.l.b16 %v769
        %v1011 = vunpack.c.l.b16 %v770
        %v1012 = vunpack.c.l.b16 %v771
        %v1013 = vunpack.c.l.b16 %v772
        %v1014 = vunpack.c.l.b16 %v773
        %v1015 = vunpack.c.l.b16 %v774
        %v1016 = vunpack.c.l.b16 %v775
        %v1017 = vunpack.c.l.b16 %v776
        %v1018 = vunpack.c.l.b16 %v777
        %v1019 = vunpack.c.l.b16 %v778
        %v1020 = vunpack.c.l.b16 %v779
        %v1021 = vunpack.c.l.b16 %v780
        %v1022 = vunpack.c.l.b16 %v781
        %v1023 = vunpack.c.l.b16 %v782
        %v1024 = vunpack.c.l.b16 %v783
        %v1025 = vunpack.c.l.b16 %v784
        %v1026 = vunpack.c.l.b16 %v785
        %v1027 = vunpack.c.l.b16 %v786
        %v1028 = vunpack.c.l.b16 %v787
        %v1029 = vunpack.c.l.b16 %v788
        %v1030 = vunpack.c.l.b16 %v789
        %v1031 = vunpack.c.l.b16 %v790
        %v1032 = vunpack.c.l.b16 %v791
        %v1033 = vunpack.c.l.b16 %v792
        %v1034 = vunpack.c.l.b16 %v793
        %v1035 = vunpack.c.l.b16 %v794
        %v1036 = vunpack.c.l.b16 %v795
        %v1037 = vunpack.c.l.b16 %v796
        %v1038 = vunpack.c.l.b16 %v797
        %v1039 = vpack.c.b16 %v992, %v991
        %v1040 = vpack.c.b16 %v993, %v993
        %v1041 = vpack.c.b16 %v995, %v994
        %v1042 = vpack.c.b16 %v996, %v996
        %v1043 = vpack.c.b16 %v998, %v997
        %v1044 = vpack.c.b16 %v999, %v999
        %v1045 = vpack.c.b16 %v1001, %v1000
        %v1046 = vpack.c.b16 %v1002, %v1002
        %v1047 = vpack.c.b16 %v1004, %v1003
        %v1048 = vpack.c.b16 %v1005, %v1005
        %v1049 = vpack.c.b16 %v1007, %v1006
        %v1050 = vpack.c.b16 %v1008, %v1008
        %v1051 = vpack.c.b16 %v1010, %v1009
        %v1052 = vpack.c.b16 %v1011, %v1011
        %v1053 = vpack.c.b16 %v1013, %v1012
        %v1054 = vpack.c.b16 %v1014, %v1014
        %v1055 = vpack.c.b16 %v1016, %v1015
        %v1056 = vpack.c.b16 %v1017, %v1017
        %v1057 = vpack.c.b16 %v1019, %v1018
        %v1058 = vpack.c.b16 %v1020, %v1020
        %v1059 = vpack.c.b16 %v1022, %v1021
        %v1060 = vpack.c.b16 %v1023, %v1023
        %v1061 = vpack.c.b16 %v1025, %v1024
        %v1062 = vpack.c.b16 %v1026, %v1026
        %v1063 = vpack.c.b16 %v1028, %v1027
        %v1064 = vpack.c.b16 %v1029, %v1029
        %v1065 = vpack.c.b16 %v1031, %v1030
        %v1066 = vpack.c.b16 %v1032, %v1032
        %v1067 = vpack.c.b16 %v1034, %v1033
        %v1068 = vpack.c.b16 %v1035, %v1035
        %v1069 = vpack.c.b16 %v1037, %v1036
        %v1070 = vpack.c.b16 %v1038, %v1038
        %v1071 = vpack.c.b16 %v993, %v992
        %v1072 = vpack.c.b16 %v996, %v995
        %v1073 = vpack.c.b16 %v999, %v998
        %v1074 = vpack.c.b16 %v1002, %v1001
        %v1075 = vpack.c.b16 %v1005, %v1004
        %v1076 = vpack.c.b16 %v1008, %v1007
        %v1077 = vpack.c.b16 %v1011, %v1010
        %v1078 = vpack.c.b16 %v1014, %v1013
        %v1079 = vpack.c.b16 %v1017, %v1016
        %v1080 = vpack.c.b16 %v1020, %v1019
        %v1081 = vpack.c.b16 %v1023, %v1022
        %v1082 = vpack.c.b16 %v1026, %v1025
        %v1083 = vpack.c.b16 %v1029, %v1028
        %v1084 = vpack.c.b16 %v1032, %v1031
        %v1085 = vpack.c.b16 %v1035, %v1034
        %v1086 = vpack.c.b16 %v1038, %v1037
        %v1088 = vshrl.u32 %v1071, 16
        %v1090 = vrot.slane %v1088, 4
        %v1091 = vshll.u32 %v1071, 16
        %v1093 = vrot.slane %v1091, 5
        %v1094 = vor.u32 %v1090, %v1093
        %v1096 = vshrl.u32 %v1072, 16
        %v1098 = vrot.slane %v1096, 4
        %v1099 = vshll.u32 %v1072, 16
        %v1101 = vrot.slane %v1099, 5
        %v1102 = vor.u32 %v1098, %v1101
        %v1104 = vshrl.u32 %v1073, 16
        %v1106 = vrot.slane %v1104, 4
        %v1107 = vshll.u32 %v1073, 16
        %v1109 = vrot.slane %v1107, 5
        %v1110 = vor.u32 %v1106, %v1109
        %v1112 = vshrl.u32 %v1074, 16
        %v1114 = vrot.slane %v1112, 4
        %v1115 = vshll.u32 %v1074, 16
        %v1117 = vrot.slane %v1115, 5
        %v1118 = vor.u32 %v1114, %v1117
        %v1120 = vshrl.u32 %v1075, 16
        %v1122 = vrot.slane %v1120, 4
        %v1123 = vshll.u32 %v1075, 16
        %v1125 = vrot.slane %v1123, 5
        %v1126 = vor.u32 %v1122, %v1125
        %v1128 = vshrl.u32 %v1076, 16
        %v1130 = vrot.slane %v1128, 4
        %v1131 = vshll.u32 %v1076, 16
        %v1133 = vrot.slane %v1131, 5
        %v1134 = vor.u32 %v1130, %v1133
        %v1136 = vshrl.u32 %v1077, 16
        %v1138 = vrot.slane %v1136, 4
        %v1139 = vshll.u32 %v1077, 16
        %v1141 = vrot.slane %v1139, 5
        %v1142 = vor.u32 %v1138, %v1141
        %v1144 = vshrl.u32 %v1078, 16
        %v1146 = vrot.slane %v1144, 4
        %v1147 = vshll.u32 %v1078, 16
        %v1149 = vrot.slane %v1147, 5
        %v1150 = vor.u32 %v1146, %v1149
        %v1152 = vshrl.u32 %v1079, 16
        %v1154 = vrot.slane %v1152, 4
        %v1155 = vshll.u32 %v1079, 16
        %v1157 = vrot.slane %v1155, 5
        %v1158 = vor.u32 %v1154, %v1157
        %v1160 = vshrl.u32 %v1080, 16
        %v1162 = vrot.slane %v1160, 4
        %v1163 = vshll.u32 %v1080, 16
        %v1165 = vrot.slane %v1163, 5
        %v1166 = vor.u32 %v1162, %v1165
        %v1168 = vshrl.u32 %v1081, 16
        %v1170 = vrot.slane %v1168, 4
        %v1171 = vshll.u32 %v1081, 16
        %v1173 = vrot.slane %v1171, 5
        %v1174 = vor.u32 %v1170, %v1173
        %v1176 = vshrl.u32 %v1082, 16
        %v1178 = vrot.slane %v1176, 4
        %v1179 = vshll.u32 %v1082, 16
        %v1181 = vrot.slane %v1179, 5
        %v1182 = vor.u32 %v1178, %v1181
        %v1184 = vshrl.u32 %v1083, 16
        %v1186 = vrot.slane %v1184, 4
        %v1187 = vshll.u32 %v1083, 16
        %v1189 = vrot.slane %v1187, 5
        %v1190 = vor.u32 %v1186, %v1189
        %v1192 = vshrl.u32 %v1084, 16
        %v1194 = vrot.slane %v1192, 4
        %v1195 = vshll.u32 %v1084, 16
        %v1197 = vrot.slane %v1195, 5
        %v1198 = vor.u32 %v1194, %v1197
        %v1200 = vshrl.u32 %v1085, 16
        %v1202 = vrot.slane %v1200, 4
        %v1203 = vshll.u32 %v1085, 16
        %v1205 = vrot.slane %v1203, 5
        %v1206 = vor.u32 %v1202, %v1205
        %v1208 = vshrl.u32 %v1086, 16
        %v1210 = vrot.slane %v1208, 4
        %v1211 = vshll.u32 %v1086, 16
        %v1213 = vrot.slane %v1211, 5
        %v1214 = vor.u32 %v1210, %v1213
        %v1231 = vunpack.c.l.b16 %v798
        %v1232 = vunpack.c.l.b16 %v799
        %v1233 = vunpack.c.l.b16 %v800
        %v1234 = vunpack.c.l.b16 %v801
        %v1235 = vunpack.c.l.b16 %v802
        %v1236 = vunpack.c.l.b16 %v803
        %v1237 = vunpack.c.l.b16 %v804
        %v1238 = vunpack.c.l.b16 %v805
        %v1239 = vunpack.c.l.b16 %v806
        %v1240 = vunpack.c.l.b16 %v807
        %v1241 = vunpack.c.l.b16 %v808
        %v1242 = vunpack.c.l.b16 %v809
        %v1243 = vunpack.c.l.b16 %v810
        %v1244 = vunpack.c.l.b16 %v811
        %v1245 = vunpack.c.l.b16 %v812
        %v1246 = vunpack.c.l.b16 %v813
        %v1247 = vpack.c.b16 %v1231, %v1231
        %v1248 = vpack.c.b16 %v1232, %v1232
        %v1249 = vpack.c.b16 %v1233, %v1233
        %v1250 = vpack.c.b16 %v1234, %v1234
        %v1251 = vpack.c.b16 %v1235, %v1235
        %v1252 = vpack.c.b16 %v1236, %v1236
        %v1253 = vpack.c.b16 %v1237, %v1237
        %v1254 = vpack.c.b16 %v1238, %v1238
        %v1255 = vpack.c.b16 %v1239, %v1239
        %v1256 = vpack.c.b16 %v1240, %v1240
        %v1257 = vpack.c.b16 %v1241, %v1241
        %v1258 = vpack.c.b16 %v1242, %v1242
        %v1259 = vpack.c.b16 %v1243, %v1243
        %v1260 = vpack.c.b16 %v1244, %v1244
        %v1261 = vpack.c.b16 %v1245, %v1245
        %v1262 = vpack.c.b16 %v1246, %v1246
        %vm1263 = vcmask 1042432
        %v1264 = vrot.slane %v1071, 5
        %v1265 = vrot.slane %v1247, 5
        %v1266 = vsel %vm1263, %v1264, %v1265
        %v1267 = vrot.slane %v1072, 5
        %v1268 = vrot.slane %v1248, 5
        %v1269 = vsel %vm1263, %v1267, %v1268
        %v1270 = vrot.slane %v1073, 5
        %v1271 = vrot.slane %v1249, 5
        %v1272 = vsel %vm1263, %v1270, %v1271
        %v1273 = vrot.slane %v1074, 5
        %v1274 = vrot.slane %v1250, 5
        %v1275 = vsel %vm1263, %v1273, %v1274
        %v1276 = vrot.slane %v1075, 5
        %v1277 = vrot.slane %v1251, 5
        %v1278 = vsel %vm1263, %v1276, %v1277
        %v1279 = vrot.slane %v1076, 5
        %v1280 = vrot.slane %v1252, 5
        %v1281 = vsel %vm1263, %v1279, %v1280
        %v1282 = vrot.slane %v1077, 5
        %v1283 = vrot.slane %v1253, 5
        %v1284 = vsel %vm1263, %v1282, %v1283
        %v1285 = vrot.slane %v1078, 5
        %v1286 = vrot.slane %v1254, 5
        %v1287 = vsel %vm1263, %v1285, %v1286
        %v1288 = vrot.slane %v1079, 5
        %v1289 = vrot.slane %v1255, 5
        %v1290 = vsel %vm1263, %v1288, %v1289
        %v1291 = vrot.slane %v1080, 5
        %v1292 = vrot.slane %v1256, 5
        %v1293 = vsel %vm1263, %v1291, %v1292
        %v1294 = vrot.slane %v1081, 5
        %v1295 = vrot.slane %v1257, 5
        %v1296 = vsel %vm1263, %v1294, %v1295
        %v1297 = vrot.slane %v1082, 5
        %v1298 = vrot.slane %v1258, 5
        %v1299 = vsel %vm1263, %v1297, %v1298
        %v1300 = vrot.slane %v1083, 5
        %v1301 = vrot.slane %v1259, 5
        %v1302 = vsel %vm1263, %v1300, %v1301
        %v1303 = vrot.slane %v1084, 5
        %v1304 = vrot.slane %v1260, 5
        %v1305 = vsel %vm1263, %v1303, %v1304
        %v1306 = vrot.slane %v1085, 5
        %v1307 = vrot.slane %v1261, 5
        %v1308 = vsel %vm1263, %v1306, %v1307
        %v1309 = vrot.slane %v1086, 5
        %v1310 = vrot.slane %v1262, 5
        %v1311 = vsel %vm1263, %v1309, %v1310
        %v1360 = vunpack.c.l.b16 %v814
        %v1361 = vunpack.c.l.b16 %v815
        %v1362 = vunpack.c.l.b16 %v816
        %v1363 = vunpack.c.l.b16 %v817
        %v1364 = vunpack.c.l.b16 %v818
        %v1365 = vunpack.c.l.b16 %v819
        %v1366 = vunpack.c.l.b16 %v820
        %v1367 = vunpack.c.l.b16 %v821
        %v1368 = vunpack.c.l.b16 %v822
        %v1369 = vunpack.c.l.b16 %v823
        %v1370 = vunpack.c.l.b16 %v824
        %v1371 = vunpack.c.l.b16 %v825
        %v1372 = vunpack.c.l.b16 %v826
        %v1373 = vunpack.c.l.b16 %v827
        %v1374 = vunpack.c.l.b16 %v828
        %v1375 = vunpack.c.l.b16 %v829
        %v1376 = vunpack.c.l.b16 %v830
        %v1377 = vunpack.c.l.b16 %v831
        %v1378 = vunpack.c.l.b16 %v832
        %v1379 = vunpack.c.l.b16 %v833
        %v1380 = vunpack.c.l.b16 %v834
        %v1381 = vunpack.c.l.b16 %v835
        %v1382 = vunpack.c.l.b16 %v836
        %v1383 = vunpack.c.l.b16 %v837
        %v1384 = vunpack.c.l.b16 %v838
        %v1385 = vunpack.c.l.b16 %v839
        %v1386 = vunpack.c.l.b16 %v840
        %v1387 = vunpack.c.l.b16 %v841
        %v1388 = vunpack.c.l.b16 %v842
        %v1389 = vunpack.c.l.b16 %v843
        %v1390 = vunpack.c.l.b16 %v844
        %v1391 = vunpack.c.l.b16 %v845
        %v1392 = vunpack.c.l.b16 %v846
        %v1393 = vunpack.c.l.b16 %v847
        %v1394 = vunpack.c.l.b16 %v848
        %v1395 = vunpack.c.l.b16 %v849
        %v1396 = vunpack.c.l.b16 %v850
        %v1397 = vunpack.c.l.b16 %v851
        %v1398 = vunpack.c.l.b16 %v852
        %v1399 = vunpack.c.l.b16 %v853
        %v1400 = vunpack.c.l.b16 %v854
        %v1401 = vunpack.c.l.b16 %v855
        %v1402 = vunpack.c.l.b16 %v856
        %v1403 = vunpack.c.l.b16 %v857
        %v1404 = vunpack.c.l.b16 %v858
        %v1405 = vunpack.c.l.b16 %v859
        %v1406 = vunpack.c.l.b16 %v860
        %v1407 = vunpack.c.l.b16 %v861
        %v1408 = vpack.c.b16 %v1361, %v1360
        %v1409 = vpack.c.b16 %v1362, %v1362
        %v1410 = vpack.c.b16 %v1364, %v1363
        %v1411 = vpack.c.b16 %v1365, %v1365
        %v1412 = vpack.c.b16 %v1367, %v1366
        %v1413 = vpack.c.b16 %v1368, %v1368
        %v1414 = vpack.c.b16 %v1370, %v1369
        %v1415 = vpack.c.b16 %v1371, %v1371
        %v1416 = vpack.c.b16 %v1373, %v1372
        %v1417 = vpack.c.b16 %v1374, %v1374
        %v1418 = vpack.c.b16 %v1376, %v1375
        %v1419 = vpack.c.b16 %v1377, %v1377
        %v1420 = vpack.c.b16 %v1379, %v1378
        %v1421 = vpack.c.b16 %v1380, %v1380
        %v1422 = vpack.c.b16 %v1382, %v1381
        %v1423 = vpack.c.b16 %v1383, %v1383
        %v1424 = vpack.c.b16 %v1385, %v1384
        %v1425 = vpack.c.b16 %v1386, %v1386
        %v1426 = vpack.c.b16 %v1388, %v1387
        %v1427 = vpack.c.b16 %v1389, %v1389
        %v1428 = vpack.c.b16 %v1391, %v1390
        %v1429 = vpack.c.b16 %v1392, %v1392
        %v1430 = vpack.c.b16 %v1394, %v1393
        %v1431 = vpack.c.b16 %v1395, %v1395
        %v1432 = vpack.c.b16 %v1397, %v1396
        %v1433 = vpack.c.b16 %v1398, %v1398
        %v1434 = vpack.c.b16 %v1400, %v1399
        %v1435 = vpack.c.b16 %v1401, %v1401
        %v1436 = vpack.c.b16 %v1403, %v1402
        %v1437 = vpack.c.b16 %v1404, %v1404
        %v1438 = vpack.c.b16 %v1406, %v1405
        %v1439 = vpack.c.b16 %v1407, %v1407
        %v1440 = vpack.c.b16 %v1362, %v1361
        %v1441 = vpack.c.b16 %v1365, %v1364
        %v1442 = vpack.c.b16 %v1368, %v1367
        %v1443 = vpack.c.b16 %v1371, %v1370
        %v1444 = vpack.c.b16 %v1374, %v1373
        %v1445 = vpack.c.b16 %v1377, %v1376
        %v1446 = vpack.c.b16 %v1380, %v1379
        %v1447 = vpack.c.b16 %v1383, %v1382
        %v1448 = vpack.c.b16 %v1386, %v1385
        %v1449 = vpack.c.b16 %v1389, %v1388
        %v1450 = vpack.c.b16 %v1392, %v1391
        %v1451 = vpack.c.b16 %v1395, %v1394
        %v1452 = vpack.c.b16 %v1398, %v1397
        %v1453 = vpack.c.b16 %v1401, %v1400
        %v1454 = vpack.c.b16 %v1404, %v1403
        %v1455 = vpack.c.b16 %v1407, %v1406
        %v1457 = vshrl.u32 %v1440, 16
        %v1459 = vrot.slane %v1457, 4
        %v1460 = vshll.u32 %v1440, 16
        %v1462 = vrot.slane %v1460, 5
        %v1463 = vor.u32 %v1459, %v1462
        %v1465 = vshrl.u32 %v1441, 16
        %v1467 = vrot.slane %v1465, 4
        %v1468 = vshll.u32 %v1441, 16
        %v1470 = vrot.slane %v1468, 5
        %v1471 = vor.u32 %v1467, %v1470
        %v1473 = vshrl.u32 %v1442, 16
        %v1475 = vrot.slane %v1473, 4
        %v1476 = vshll.u32 %v1442, 16
        %v1478 = vrot.slane %v1476, 5
        %v1479 = vor.u32 %v1475, %v1478
        %v1481 = vshrl.u32 %v1443, 16
        %v1483 = vrot.slane %v1481, 4
        %v1484 = vshll.u32 %v1443, 16
        %v1486 = vrot.slane %v1484, 5
        %v1487 = vor.u32 %v1483, %v1486
        %v1489 = vshrl.u32 %v1444, 16
        %v1491 = vrot.slane %v1489, 4
        %v1492 = vshll.u32 %v1444, 16
        %v1494 = vrot.slane %v1492, 5
        %v1495 = vor.u32 %v1491, %v1494
        %v1497 = vshrl.u32 %v1445, 16
        %v1499 = vrot.slane %v1497, 4
        %v1500 = vshll.u32 %v1445, 16
        %v1502 = vrot.slane %v1500, 5
        %v1503 = vor.u32 %v1499, %v1502
        %v1505 = vshrl.u32 %v1446, 16
        %v1507 = vrot.slane %v1505, 4
        %v1508 = vshll.u32 %v1446, 16
        %v1510 = vrot.slane %v1508, 5
        %v1511 = vor.u32 %v1507, %v1510
        %v1513 = vshrl.u32 %v1447, 16
        %v1515 = vrot.slane %v1513, 4
        %v1516 = vshll.u32 %v1447, 16
        %v1518 = vrot.slane %v1516, 5
        %v1519 = vor.u32 %v1515, %v1518
        %v1521 = vshrl.u32 %v1448, 16
        %v1523 = vrot.slane %v1521, 4
        %v1524 = vshll.u32 %v1448, 16
        %v1526 = vrot.slane %v1524, 5
        %v1527 = vor.u32 %v1523, %v1526
        %v1529 = vshrl.u32 %v1449, 16
        %v1531 = vrot.slane %v1529, 4
        %v1532 = vshll.u32 %v1449, 16
        %v1534 = vrot.slane %v1532, 5
        %v1535 = vor.u32 %v1531, %v1534
        %v1537 = vshrl.u32 %v1450, 16
        %v1539 = vrot.slane %v1537, 4
        %v1540 = vshll.u32 %v1450, 16
        %v1542 = vrot.slane %v1540, 5
        %v1543 = vor.u32 %v1539, %v1542
        %v1545 = vshrl.u32 %v1451, 16
        %v1547 = vrot.slane %v1545, 4
        %v1548 = vshll.u32 %v1451, 16
        %v1550 = vrot.slane %v1548, 5
        %v1551 = vor.u32 %v1547, %v1550
        %v1553 = vshrl.u32 %v1452, 16
        %v1555 = vrot.slane %v1553, 4
        %v1556 = vshll.u32 %v1452, 16
        %v1558 = vrot.slane %v1556, 5
        %v1559 = vor.u32 %v1555, %v1558
        %v1561 = vshrl.u32 %v1453, 16
        %v1563 = vrot.slane %v1561, 4
        %v1564 = vshll.u32 %v1453, 16
        %v1566 = vrot.slane %v1564, 5
        %v1567 = vor.u32 %v1563, %v1566
        %v1569 = vshrl.u32 %v1454, 16
        %v1571 = vrot.slane %v1569, 4
        %v1572 = vshll.u32 %v1454, 16
        %v1574 = vrot.slane %v1572, 5
        %v1575 = vor.u32 %v1571, %v1574
        %v1577 = vshrl.u32 %v1455, 16
        %v1579 = vrot.slane %v1577, 4
        %v1580 = vshll.u32 %v1455, 16
        %v1582 = vrot.slane %v1580, 5
        %v1583 = vor.u32 %v1579, %v1582
        %v1600 = vunpack.c.l.b16 %v862
        %v1601 = vunpack.c.l.b16 %v863
        %v1602 = vunpack.c.l.b16 %v864
        %v1603 = vunpack.c.l.b16 %v865
        %v1604 = vunpack.c.l.b16 %v866
        %v1605 = vunpack.c.l.b16 %v867
        %v1606 = vunpack.c.l.b16 %v868
        %v1607 = vunpack.c.l.b16 %v869
        %v1608 = vunpack.c.l.b16 %v870
        %v1609 = vunpack.c.l.b16 %v871
        %v1610 = vunpack.c.l.b16 %v872
        %v1611 = vunpack.c.l.b16 %v873
        %v1612 = vunpack.c.l.b16 %v874
        %v1613 = vunpack.c.l.b16 %v875
        %v1614 = vunpack.c.l.b16 %v876
        %v1615 = vunpack.c.l.b16 %v877
        %v1616 = vpack.c.b16 %v1600, %v1600
        %v1617 = vpack.c.b16 %v1601, %v1601
        %v1618 = vpack.c.b16 %v1602, %v1602
        %v1619 = vpack.c.b16 %v1603, %v1603
        %v1620 = vpack.c.b16 %v1604, %v1604
        %v1621 = vpack.c.b16 %v1605, %v1605
        %v1622 = vpack.c.b16 %v1606, %v1606
        %v1623 = vpack.c.b16 %v1607, %v1607
        %v1624 = vpack.c.b16 %v1608, %v1608
        %v1625 = vpack.c.b16 %v1609, %v1609
        %v1626 = vpack.c.b16 %v1610, %v1610
        %v1627 = vpack.c.b16 %v1611, %v1611
        %v1628 = vpack.c.b16 %v1612, %v1612
        %v1629 = vpack.c.b16 %v1613, %v1613
        %v1630 = vpack.c.b16 %v1614, %v1614
        %v1631 = vpack.c.b16 %v1615, %v1615
        %v1632 = vrot.slane %v1440, 5
        %v1633 = vrot.slane %v1616, 5
        %v1634 = vsel %vm1263, %v1632, %v1633
        %v1635 = vrot.slane %v1441, 5
        %v1636 = vrot.slane %v1617, 5
        %v1637 = vsel %vm1263, %v1635, %v1636
        %v1638 = vrot.slane %v1442, 5
        %v1639 = vrot.slane %v1618, 5
        %v1640 = vsel %vm1263, %v1638, %v1639
        %v1641 = vrot.slane %v1443, 5
        %v1642 = vrot.slane %v1619, 5
        %v1643 = vsel %vm1263, %v1641, %v1642
        %v1644 = vrot.slane %v1444, 5
        %v1645 = vrot.slane %v1620, 5
        %v1646 = vsel %vm1263, %v1644, %v1645
        %v1647 = vrot.slane %v1445, 5
        %v1648 = vrot.slane %v1621, 5
        %v1649 = vsel %vm1263, %v1647, %v1648
        %v1650 = vrot.slane %v1446, 5
        %v1651 = vrot.slane %v1622, 5
        %v1652 = vsel %vm1263, %v1650, %v1651
        %v1653 = vrot.slane %v1447, 5
        %v1654 = vrot.slane %v1623, 5
        %v1655 = vsel %vm1263, %v1653, %v1654
        %v1656 = vrot.slane %v1448, 5
        %v1657 = vrot.slane %v1624, 5
        %v1658 = vsel %vm1263, %v1656, %v1657
        %v1659 = vrot.slane %v1449, 5
        %v1660 = vrot.slane %v1625, 5
        %v1661 = vsel %vm1263, %v1659, %v1660
        %v1662 = vrot.slane %v1450, 5
        %v1663 = vrot.slane %v1626, 5
        %v1664 = vsel %vm1263, %v1662, %v1663
        %v1665 = vrot.slane %v1451, 5
        %v1666 = vrot.slane %v1627, 5
        %v1667 = vsel %vm1263, %v1665, %v1666
        %v1668 = vrot.slane %v1452, 5
        %v1669 = vrot.slane %v1628, 5
        %v1670 = vsel %vm1263, %v1668, %v1669
        %v1671 = vrot.slane %v1453, 5
        %v1672 = vrot.slane %v1629, 5
        %v1673 = vsel %vm1263, %v1671, %v1672
        %v1674 = vrot.slane %v1454, 5
        %v1675 = vrot.slane %v1630, 5
        %v1676 = vsel %vm1263, %v1674, %v1675
        %v1677 = vrot.slane %v1455, 5
        %v1678 = vrot.slane %v1631, 5
        %v1679 = vsel %vm1263, %v1677, %v1678
        %v1728 = vunpack.c.l.b16 %v879
        %v1729 = vunpack.c.l.b16 %v880
        %v1730 = vunpack.c.l.b16 %v881
        %v1731 = vunpack.c.l.b16 %v882
        %v1732 = vunpack.c.l.b16 %v883
        %v1733 = vunpack.c.l.b16 %v884
        %v1734 = vunpack.c.l.b16 %v885
        %v1735 = vunpack.c.l.b16 %v886
        %v1736 = vunpack.c.l.b16 %v887
        %v1737 = vunpack.c.l.b16 %v888
        %v1738 = vunpack.c.l.b16 %v889
        %v1739 = vunpack.c.l.b16 %v890
        %v1740 = vunpack.c.l.b16 %v891
        %v1741 = vunpack.c.l.b16 %v892
        %v1742 = vunpack.c.l.b16 %v893
        %v1743 = vunpack.c.l.b16 %v894
        %v1744 = vunpack.c.l.b16 %v895
        %v1745 = vunpack.c.l.b16 %v896
        %v1746 = vunpack.c.l.b16 %v897
        %v1747 = vunpack.c.l.b16 %v898
        %v1748 = vunpack.c.l.b16 %v899
        %v1749 = vunpack.c.l.b16 %v900
        %v1750 = vunpack.c.l.b16 %v901
        %v1751 = vunpack.c.l.b16 %v902
        %v1752 = vunpack.c.l.b16 %v903
        %v1753 = vunpack.c.l.b16 %v904
        %v1754 = vunpack.c.l.b16 %v905
        %v1755 = vunpack.c.l.b16 %v906
        %v1756 = vunpack.c.l.b16 %v907
        %v1757 = vunpack.c.l.b16 %v908
        %v1758 = vunpack.c.l.b16 %v909
        %v1759 = vunpack.c.l.b16 %v910
        %v1760 = vunpack.c.l.b16 %v911
        %v1761 = vunpack.c.l.b16 %v912
        %v1762 = vunpack.c.l.b16 %v913
        %v1763 = vunpack.c.l.b16 %v914
        %v1764 = vunpack.c.l.b16 %v915
        %v1765 = vunpack.c.l.b16 %v916
        %v1766 = vunpack.c.l.b16 %v917
        %v1767 = vunpack.c.l.b16 %v918
        %v1768 = vunpack.c.l.b16 %v919
        %v1769 = vunpack.c.l.b16 %v920
        %v1770 = vunpack.c.l.b16 %v921
        %v1771 = vunpack.c.l.b16 %v922
        %v1772 = vunpack.c.l.b16 %v923
        %v1773 = vunpack.c.l.b16 %v924
        %v1774 = vunpack.c.l.b16 %v925
        %v1775 = vunpack.c.l.b16 %v926
        %v1776 = vpack.c.b16 %v1729, %v1728
        %v1777 = vpack.c.b16 %v1730, %v1730
        %v1778 = vpack.c.b16 %v1732, %v1731
        %v1779 = vpack.c.b16 %v1733, %v1733
        %v1780 = vpack.c.b16 %v1735, %v1734
        %v1781 = vpack.c.b16 %v1736, %v1736
        %v1782 = vpack.c.b16 %v1738, %v1737
        %v1783 = vpack.c.b16 %v1739, %v1739
        %v1784 = vpack.c.b16 %v1741, %v1740
        %v1785 = vpack.c.b16 %v1742, %v1742
        %v1786 = vpack.c.b16 %v1744, %v1743
        %v1787 = vpack.c.b16 %v1745, %v1745
        %v1788 = vpack.c.b16 %v1747, %v1746
        %v1789 = vpack.c.b16 %v1748, %v1748
        %v1790 = vpack.c.b16 %v1750, %v1749
        %v1791 = vpack.c.b16 %v1751, %v1751
        %v1792 = vpack.c.b16 %v1753, %v1752
        %v1793 = vpack.c.b16 %v1754, %v1754
        %v1794 = vpack.c.b16 %v1756, %v1755
        %v1795 = vpack.c.b16 %v1757, %v1757
        %v1796 = vpack.c.b16 %v1759, %v1758
        %v1797 = vpack.c.b16 %v1760, %v1760
        %v1798 = vpack.c.b16 %v1762, %v1761
        %v1799 = vpack.c.b16 %v1763, %v1763
        %v1800 = vpack.c.b16 %v1765, %v1764
        %v1801 = vpack.c.b16 %v1766, %v1766
        %v1802 = vpack.c.b16 %v1768, %v1767
        %v1803 = vpack.c.b16 %v1769, %v1769
        %v1804 = vpack.c.b16 %v1771, %v1770
        %v1805 = vpack.c.b16 %v1772, %v1772
        %v1806 = vpack.c.b16 %v1774, %v1773
        %v1807 = vpack.c.b16 %v1775, %v1775
        %v1808 = vpack.c.b16 %v1730, %v1729
        %v1809 = vpack.c.b16 %v1733, %v1732
        %v1810 = vpack.c.b16 %v1736, %v1735
        %v1811 = vpack.c.b16 %v1739, %v1738
        %v1812 = vpack.c.b16 %v1742, %v1741
        %v1813 = vpack.c.b16 %v1745, %v1744
        %v1814 = vpack.c.b16 %v1748, %v1747
        %v1815 = vpack.c.b16 %v1751, %v1750
        %v1816 = vpack.c.b16 %v1754, %v1753
        %v1817 = vpack.c.b16 %v1757, %v1756
        %v1818 = vpack.c.b16 %v1760, %v1759
        %v1819 = vpack.c.b16 %v1763, %v1762
        %v1820 = vpack.c.b16 %v1766, %v1765
        %v1821 = vpack.c.b16 %v1769, %v1768
        %v1822 = vpack.c.b16 %v1772, %v1771
        %v1823 = vpack.c.b16 %v1775, %v1774
        %v1825 = vshrl.u32 %v1808, 16
        %v1827 = vrot.slane %v1825, 4
        %v1828 = vshll.u32 %v1808, 16
        %v1830 = vrot.slane %v1828, 5
        %v1831 = vor.u32 %v1827, %v1830
        %v1833 = vshrl.u32 %v1809, 16
        %v1835 = vrot.slane %v1833, 4
        %v1836 = vshll.u32 %v1809, 16
        %v1838 = vrot.slane %v1836, 5
        %v1839 = vor.u32 %v1835, %v1838
        %v1841 = vshrl.u32 %v1810, 16
        %v1843 = vrot.slane %v1841, 4
        %v1844 = vshll.u32 %v1810, 16
        %v1846 = vrot.slane %v1844, 5
        %v1847 = vor.u32 %v1843, %v1846
        %v1849 = vshrl.u32 %v1811, 16
        %v1851 = vrot.slane %v1849, 4
        %v1852 = vshll.u32 %v1811, 16
        %v1854 = vrot.slane %v1852, 5
        %v1855 = vor.u32 %v1851, %v1854
        %v1857 = vshrl.u32 %v1812, 16
        %v1859 = vrot.slane %v1857, 4
        %v1860 = vshll.u32 %v1812, 16
        %v1862 = vrot.slane %v1860, 5
        %v1863 = vor.u32 %v1859, %v1862
        %v1865 = vshrl.u32 %v1813, 16
        %v1867 = vrot.slane %v1865, 4
        %v1868 = vshll.u32 %v1813, 16
        %v1870 = vrot.slane %v1868, 5
        %v1871 = vor.u32 %v1867, %v1870
        %v1873 = vshrl.u32 %v1814, 16
        %v1875 = vrot.slane %v1873, 4
        %v1876 = vshll.u32 %v1814, 16
        %v1878 = vrot.slane %v1876, 5
        %v1879 = vor.u32 %v1875, %v1878
        %v1881 = vshrl.u32 %v1815, 16
        %v1883 = vrot.slane %v1881, 4
        %v1884 = vshll.u32 %v1815, 16
        %v1886 = vrot.slane %v1884, 5
        %v1887 = vor.u32 %v1883, %v1886
        %v1889 = vshrl.u32 %v1816, 16
        %v1891 = vrot.slane %v1889, 4
        %v1892 = vshll.u32 %v1816, 16
        %v1894 = vrot.slane %v1892, 5
        %v1895 = vor.u32 %v1891, %v1894
        %v1897 = vshrl.u32 %v1817, 16
        %v1899 = vrot.slane %v1897, 4
        %v1900 = vshll.u32 %v1817, 16
        %v1902 = vrot.slane %v1900, 5
        %v1903 = vor.u32 %v1899, %v1902
        %v1905 = vshrl.u32 %v1818, 16
        %v1907 = vrot.slane %v1905, 4
        %v1908 = vshll.u32 %v1818, 16
        %v1910 = vrot.slane %v1908, 5
        %v1911 = vor.u32 %v1907, %v1910
        %v1913 = vshrl.u32 %v1819, 16
        %v1915 = vrot.slane %v1913, 4
        %v1916 = vshll.u32 %v1819, 16
        %v1918 = vrot.slane %v1916, 5
        %v1919 = vor.u32 %v1915, %v1918
        %v1921 = vshrl.u32 %v1820, 16
        %v1923 = vrot.slane %v1921, 4
        %v1924 = vshll.u32 %v1820, 16
        %v1926 = vrot.slane %v1924, 5
        %v1927 = vor.u32 %v1923, %v1926
        %v1929 = vshrl.u32 %v1821, 16
        %v1931 = vrot.slane %v1929, 4
        %v1932 = vshll.u32 %v1821, 16
        %v1934 = vrot.slane %v1932, 5
        %v1935 = vor.u32 %v1931, %v1934
        %v1937 = vshrl.u32 %v1822, 16
        %v1939 = vrot.slane %v1937, 4
        %v1940 = vshll.u32 %v1822, 16
        %v1942 = vrot.slane %v1940, 5
        %v1943 = vor.u32 %v1939, %v1942
        %v1945 = vshrl.u32 %v1823, 16
        %v1947 = vrot.slane %v1945, 4
        %v1948 = vshll.u32 %v1823, 16
        %v1950 = vrot.slane %v1948, 5
        %v1951 = vor.u32 %v1947, %v1950
        %v1968 = vunpack.c.l.b16 %v927
        %v1969 = vunpack.c.l.b16 %v928
        %v1970 = vunpack.c.l.b16 %v929
        %v1971 = vunpack.c.l.b16 %v930
        %v1972 = vunpack.c.l.b16 %v931
        %v1973 = vunpack.c.l.b16 %v932
        %v1974 = vunpack.c.l.b16 %v933
        %v1975 = vunpack.c.l.b16 %v934
        %v1976 = vunpack.c.l.b16 %v935
        %v1977 = vunpack.c.l.b16 %v936
        %v1978 = vunpack.c.l.b16 %v937
        %v1979 = vunpack.c.l.b16 %v938
        %v1980 = vunpack.c.l.b16 %v939
        %v1981 = vunpack.c.l.b16 %v940
        %v1982 = vunpack.c.l.b16 %v941
        %v1983 = vunpack.c.l.b16 %v942
        %v1984 = vpack.c.b16 %v1968, %v1968
        %v1985 = vpack.c.b16 %v1969, %v1969
        %v1986 = vpack.c.b16 %v1970, %v1970
        %v1987 = vpack.c.b16 %v1971, %v1971
        %v1988 = vpack.c.b16 %v1972, %v1972
        %v1989 = vpack.c.b16 %v1973, %v1973
        %v1990 = vpack.c.b16 %v1974, %v1974
        %v1991 = vpack.c.b16 %v1975, %v1975
        %v1992 = vpack.c.b16 %v1976, %v1976
        %v1993 = vpack.c.b16 %v1977, %v1977
        %v1994 = vpack.c.b16 %v1978, %v1978
        %v1995 = vpack.c.b16 %v1979, %v1979
        %v1996 = vpack.c.b16 %v1980, %v1980
        %v1997 = vpack.c.b16 %v1981, %v1981
        %v1998 = vpack.c.b16 %v1982, %v1982
        %v1999 = vpack.c.b16 %v1983, %v1983
        %v2000 = vrot.slane %v1808, 5
        %v2001 = vrot.slane %v1984, 5
        %v2002 = vsel %vm1263, %v2000, %v2001
        %v2003 = vrot.slane %v1809, 5
        %v2004 = vrot.slane %v1985, 5
        %v2005 = vsel %vm1263, %v2003, %v2004
        %v2006 = vrot.slane %v1810, 5
        %v2007 = vrot.slane %v1986, 5
        %v2008 = vsel %vm1263, %v2006, %v2007
        %v2009 = vrot.slane %v1811, 5
        %v2010 = vrot.slane %v1987, 5
        %v2011 = vsel %vm1263, %v2009, %v2010
        %v2012 = vrot.slane %v1812, 5
        %v2013 = vrot.slane %v1988, 5
        %v2014 = vsel %vm1263, %v2012, %v2013
        %v2015 = vrot.slane %v1813, 5
        %v2016 = vrot.slane %v1989, 5
        %v2017 = vsel %vm1263, %v2015, %v2016
        %v2018 = vrot.slane %v1814, 5
        %v2019 = vrot.slane %v1990, 5
        %v2020 = vsel %vm1263, %v2018, %v2019
        %v2021 = vrot.slane %v1815, 5
        %v2022 = vrot.slane %v1991, 5
        %v2023 = vsel %vm1263, %v2021, %v2022
        %v2024 = vrot.slane %v1816, 5
        %v2025 = vrot.slane %v1992, 5
        %v2026 = vsel %vm1263, %v2024, %v2025
        %v2027 = vrot.slane %v1817, 5
        %v2028 = vrot.slane %v1993, 5
        %v2029 = vsel %vm1263, %v2027, %v2028
        %v2030 = vrot.slane %v1818, 5
        %v2031 = vrot.slane %v1994, 5
        %v2032 = vsel %vm1263, %v2030, %v2031
        %v2033 = vrot.slane %v1819, 5
        %v2034 = vrot.slane %v1995, 5
        %v2035 = vsel %vm1263, %v2033, %v2034
        %v2036 = vrot.slane %v1820, 5
        %v2037 = vrot.slane %v1996, 5
        %v2038 = vsel %vm1263, %v2036, %v2037
        %v2039 = vrot.slane %v1821, 5
        %v2040 = vrot.slane %v1997, 5
        %v2041 = vsel %vm1263, %v2039, %v2040
        %v2042 = vrot.slane %v1822, 5
        %v2043 = vrot.slane %v1998, 5
        %v2044 = vsel %vm1263, %v2042, %v2043
        %v2045 = vrot.slane %v1823, 5
        %v2046 = vrot.slane %v1999, 5
        %v2047 = vsel %vm1263, %v2045, %v2046
        %vm2048 = vsmask.f32 4352
        %v2050 = vshrl.u32 %v1039, 16
        %v2052 = vrot.slane %v2050, 3
        %v2053 = vshll.u32 %v1039, 16
        %v2055 = vrot.slane %v2053, 4
        %v2056 = vor.u32 %v2052, %v2055
        %v2058 = vshrl.u32 %v1040, 16
        %v2060 = vrot.slane %v2058, 3
        %v2061 = vshll.u32 %v1040, 16
        %v2063 = vrot.slane %v2061, 4
        %v2064 = vor.u32 %v2060, %v2063
        %v2065 = vsel %vm2048, %v2056, %v2064
        %v2067 = vshrl.u32 %v1094, 16
        %v2069 = vrot.slane %v2067, 3
        %v2070 = vshll.u32 %v1094, 16
        %v2072 = vrot.slane %v2070, 4
        %v2073 = vor.u32 %v2069, %v2072
        %v2074 = vsel %vm2048, %v2073, %v2073
        %v2076 = vshrl.u32 %v1264, 16
        %v2078 = vrot.slane %v2076, 3
        %v2079 = vshll.u32 %v1264, 16
        %v2081 = vrot.slane %v2079, 4
        %v2082 = vor.u32 %v2078, %v2081
        %v2084 = vshrl.u32 %v1266, 16
        %v2086 = vrot.slane %v2084, 3
        %v2087 = vshll.u32 %v1266, 16
        %v2089 = vrot.slane %v2087, 4
        %v2090 = vor.u32 %v2086, %v2089
        %v2091 = vsel %vm2048, %v2082, %v2090
        %v2093 = vshrl.u32 %v1408, 16
        %v2095 = vrot.slane %v2093, 3
        %v2096 = vshll.u32 %v1408, 16
        %v2098 = vrot.slane %v2096, 4
        %v2099 = vor.u32 %v2095, %v2098
        %v2101 = vshrl.u32 %v1409, 16
        %v2103 = vrot.slane %v2101, 3
        %v2104 = vshll.u32 %v1409, 16
        %v2106 = vrot.slane %v2104, 4
        %v2107 = vor.u32 %v2103, %v2106
        %v2108 = vsel %vm2048, %v2099, %v2107
        %v2110 = vshrl.u32 %v1463, 16
        %v2112 = vrot.slane %v2110, 3
        %v2113 = vshll.u32 %v1463, 16
        %v2115 = vrot.slane %v2113, 4
        %v2116 = vor.u32 %v2112, %v2115
        %v2117 = vsel %vm2048, %v2116, %v2116
        %v2119 = vshrl.u32 %v1632, 16
        %v2121 = vrot.slane %v2119, 3
        %v2122 = vshll.u32 %v1632, 16
        %v2124 = vrot.slane %v2122, 4
        %v2125 = vor.u32 %v2121, %v2124
        %v2127 = vshrl.u32 %v1634, 16
        %v2129 = vrot.slane %v2127, 3
        %v2130 = vshll.u32 %v1634, 16
        %v2132 = vrot.slane %v2130, 4
        %v2133 = vor.u32 %v2129, %v2132
        %v2134 = vsel %vm2048, %v2125, %v2133
        %v2136 = vshrl.u32 %v1776, 16
        %v2138 = vrot.slane %v2136, 3
        %v2139 = vshll.u32 %v1776, 16
        %v2141 = vrot.slane %v2139, 4
        %v2142 = vor.u32 %v2138, %v2141
        %v2144 = vshrl.u32 %v1777, 16
        %v2146 = vrot.slane %v2144, 3
        %v2147 = vshll.u32 %v1777, 16
        %v2149 = vrot.slane %v2147, 4
        %v2150 = vor.u32 %v2146, %v2149
        %v2151 = vsel %vm2048, %v2142, %v2150
        %v2153 = vshrl.u32 %v1831, 16
        %v2155 = vrot.slane %v2153, 3
        %v2156 = vshll.u32 %v1831, 16
        %v2158 = vrot.slane %v2156, 4
        %v2159 = vor.u32 %v2155, %v2158
        %v2160 = vsel %vm2048, %v2159, %v2159
        %v2162 = vshrl.u32 %v2000, 16
        %v2164 = vrot.slane %v2162, 3
        %v2165 = vshll.u32 %v2000, 16
        %v2167 = vrot.slane %v2165, 4
        %v2168 = vor.u32 %v2164, %v2167
        %v2170 = vshrl.u32 %v2002, 16
        %v2172 = vrot.slane %v2170, 3
        %v2173 = vshll.u32 %v2002, 16
        %v2175 = vrot.slane %v2173, 4
        %v2176 = vor.u32 %v2172, %v2175
        %v2177 = vsel %vm2048, %v2168, %v2176
        %v2179 = vshrl.u32 %v1041, 16
        %v2181 = vrot.slane %v2179, 3
        %v2182 = vshll.u32 %v1041, 16
        %v2184 = vrot.slane %v2182, 4
        %v2185 = vor.u32 %v2181, %v2184
        %v2187 = vshrl.u32 %v1042, 16
        %v2189 = vrot.slane %v2187, 3
        %v2190 = vshll.u32 %v1042, 16
        %v2192 = vrot.slane %v2190, 4
        %v2193 = vor.u32 %v2189, %v2192
        %v2194 = vsel %vm2048, %v2185, %v2193
        %v2196 = vshrl.u32 %v1102, 16
        %v2198 = vrot.slane %v2196, 3
        %v2199 = vshll.u32 %v1102, 16
        %v2201 = vrot.slane %v2199, 4
        %v2202 = vor.u32 %v2198, %v2201
        %v2203 = vsel %vm2048, %v2202, %v2202
        %v2205 = vshrl.u32 %v1267, 16
        %v2207 = vrot.slane %v2205, 3
        %v2208 = vshll.u32 %v1267, 16
        %v2210 = vrot.slane %v2208, 4
        %v2211 = vor.u32 %v2207, %v2210
        %v2213 = vshrl.u32 %v1269, 16
        %v2215 = vrot.slane %v2213, 3
        %v2216 = vshll.u32 %v1269, 16
        %v2218 = vrot.slane %v2216, 4
        %v2219 = vor.u32 %v2215, %v2218
        %v2220 = vsel %vm2048, %v2211, %v2219
        %v2222 = vshrl.u32 %v1410, 16
        %v2224 = vrot.slane %v2222, 3
        %v2225 = vshll.u32 %v1410, 16
        %v2227 = vrot.slane %v2225, 4
        %v2228 = vor.u32 %v2224, %v2227
        %v2230 = vshrl.u32 %v1411, 16
        %v2232 = vrot.slane %v2230, 3
        %v2233 = vshll.u32 %v1411, 16
        %v2235 = vrot.slane %v2233, 4
        %v2236 = vor.u32 %v2232, %v2235
        %v2237 = vsel %vm2048, %v2228, %v2236
        %v2239 = vshrl.u32 %v1471, 16
        %v2241 = vrot.slane %v2239, 3
        %v2242 = vshll.u32 %v1471, 16
        %v2244 = vrot.slane %v2242, 4
        %v2245 = vor.u32 %v2241, %v2244
        %v2246 = vsel %vm2048, %v2245, %v2245
        %v2248 = vshrl.u32 %v1635, 16
        %v2250 = vrot.slane %v2248, 3
        %v2251 = vshll.u32 %v1635, 16
        %v2253 = vrot.slane %v2251, 4
        %v2254 = vor.u32 %v2250, %v2253
        %v2256 = vshrl.u32 %v1637, 16
        %v2258 = vrot.slane %v2256, 3
        %v2259 = vshll.u32 %v1637, 16
        %v2261 = vrot.slane %v2259, 4
        %v2262 = vor.u32 %v2258, %v2261
        %v2263 = vsel %vm2048, %v2254, %v2262
        %v2265 = vshrl.u32 %v1778, 16
        %v2267 = vrot.slane %v2265, 3
        %v2268 = vshll.u32 %v1778, 16
        %v2270 = vrot.slane %v2268, 4
        %v2271 = vor.u32 %v2267, %v2270
        %v2273 = vshrl.u32 %v1779, 16
        %v2275 = vrot.slane %v2273, 3
        %v2276 = vshll.u32 %v1779, 16
        %v2278 = vrot.slane %v2276, 4
        %v2279 = vor.u32 %v2275, %v2278
        %v2280 = vsel %vm2048, %v2271, %v2279
        %v2282 = vshrl.u32 %v1839, 16
        %v2284 = vrot.slane %v2282, 3
        %v2285 = vshll.u32 %v1839, 16
        %v2287 = vrot.slane %v2285, 4
        %v2288 = vor.u32 %v2284, %v2287
        %v2289 = vsel %vm2048, %v2288, %v2288
        %v2291 = vshrl.u32 %v2003, 16
        %v2293 = vrot.slane %v2291, 3
        %v2294 = vshll.u32 %v2003, 16
        %v2296 = vrot.slane %v2294, 4
        %v2297 = vor.u32 %v2293, %v2296
        %v2299 = vshrl.u32 %v2005, 16
        %v2301 = vrot.slane %v2299, 3
        %v2302 = vshll.u32 %v2005, 16
        %v2304 = vrot.slane %v2302, 4
        %v2305 = vor.u32 %v2301, %v2304
        %v2306 = vsel %vm2048, %v2297, %v2305
        %v2308 = vshrl.u32 %v1043, 16
        %v2310 = vrot.slane %v2308, 3
        %v2311 = vshll.u32 %v1043, 16
        %v2313 = vrot.slane %v2311, 4
        %v2314 = vor.u32 %v2310, %v2313
        %v2316 = vshrl.u32 %v1044, 16
        %v2318 = vrot.slane %v2316, 3
        %v2319 = vshll.u32 %v1044, 16
        %v2321 = vrot.slane %v2319, 4
        %v2322 = vor.u32 %v2318, %v2321
        %v2323 = vsel %vm2048, %v2314, %v2322
        %v2325 = vshrl.u32 %v1110, 16
        %v2327 = vrot.slane %v2325, 3
        %v2328 = vshll.u32 %v1110, 16
        %v2330 = vrot.slane %v2328, 4
        %v2331 = vor.u32 %v2327, %v2330
        %v2332 = vsel %vm2048, %v2331, %v2331
        %v2334 = vshrl.u32 %v1270, 16
        %v2336 = vrot.slane %v2334, 3
        %v2337 = vshll.u32 %v1270, 16
        %v2339 = vrot.slane %v2337, 4
        %v2340 = vor.u32 %v2336, %v2339
        %v2342 = vshrl.u32 %v1272, 16
        %v2344 = vrot.slane %v2342, 3
        %v2345 = vshll.u32 %v1272, 16
        %v2347 = vrot.slane %v2345, 4
        %v2348 = vor.u32 %v2344, %v2347
        %v2349 = vsel %vm2048, %v2340, %v2348
        %v2351 = vshrl.u32 %v1412, 16
        %v2353 = vrot.slane %v2351, 3
        %v2354 = vshll.u32 %v1412, 16
        %v2356 = vrot.slane %v2354, 4
        %v2357 = vor.u32 %v2353, %v2356
        %v2359 = vshrl.u32 %v1413, 16
        %v2361 = vrot.slane %v2359, 3
        %v2362 = vshll.u32 %v1413, 16
        %v2364 = vrot.slane %v2362, 4
        %v2365 = vor.u32 %v2361, %v2364
        %v2366 = vsel %vm2048, %v2357, %v2365
        %v2368 = vshrl.u32 %v1479, 16
        %v2370 = vrot.slane %v2368, 3
        %v2371 = vshll.u32 %v1479, 16
        %v2373 = vrot.slane %v2371, 4
        %v2374 = vor.u32 %v2370, %v2373
        %v2375 = vsel %vm2048, %v2374, %v2374
        %v2377 = vshrl.u32 %v1638, 16
        %v2379 = vrot.slane %v2377, 3
        %v2380 = vshll.u32 %v1638, 16
        %v2382 = vrot.slane %v2380, 4
        %v2383 = vor.u32 %v2379, %v2382
        %v2385 = vshrl.u32 %v1640, 16
        %v2387 = vrot.slane %v2385, 3
        %v2388 = vshll.u32 %v1640, 16
        %v2390 = vrot.slane %v2388, 4
        %v2391 = vor.u32 %v2387, %v2390
        %v2392 = vsel %vm2048, %v2383, %v2391
        %v2394 = vshrl.u32 %v1780, 16
        %v2396 = vrot.slane %v2394, 3
        %v2397 = vshll.u32 %v1780, 16
        %v2399 = vrot.slane %v2397, 4
        %v2400 = vor.u32 %v2396, %v2399
        %v2402 = vshrl.u32 %v1781, 16
        %v2404 = vrot.slane %v2402, 3
        %v2405 = vshll.u32 %v1781, 16
        %v2407 = vrot.slane %v2405, 4
        %v2408 = vor.u32 %v2404, %v2407
        %v2409 = vsel %vm2048, %v2400, %v2408
        %v2411 = vshrl.u32 %v1847, 16
        %v2413 = vrot.slane %v2411, 3
        %v2414 = vshll.u32 %v1847, 16
        %v2416 = vrot.slane %v2414, 4
        %v2417 = vor.u32 %v2413, %v2416
        %v2418 = vsel %vm2048, %v2417, %v2417
        %v2420 = vshrl.u32 %v2006, 16
        %v2422 = vrot.slane %v2420, 3
        %v2423 = vshll.u32 %v2006, 16
        %v2425 = vrot.slane %v2423, 4
        %v2426 = vor.u32 %v2422, %v2425
        %v2428 = vshrl.u32 %v2008, 16
        %v2430 = vrot.slane %v2428, 3
        %v2431 = vshll.u32 %v2008, 16
        %v2433 = vrot.slane %v2431, 4
        %v2434 = vor.u32 %v2430, %v2433
        %v2435 = vsel %vm2048, %v2426, %v2434
        %v2437 = vshrl.u32 %v1045, 16
        %v2439 = vrot.slane %v2437, 3
        %v2440 = vshll.u32 %v1045, 16
        %v2442 = vrot.slane %v2440, 4
        %v2443 = vor.u32 %v2439, %v2442
        %v2445 = vshrl.u32 %v1046, 16
        %v2447 = vrot.slane %v2445, 3
        %v2448 = vshll.u32 %v1046, 16
        %v2450 = vrot.slane %v2448, 4
        %v2451 = vor.u32 %v2447, %v2450
        %v2452 = vsel %vm2048, %v2443, %v2451
        %v2454 = vshrl.u32 %v1118, 16
        %v2456 = vrot.slane %v2454, 3
        %v2457 = vshll.u32 %v1118, 16
        %v2459 = vrot.slane %v2457, 4
        %v2460 = vor.u32 %v2456, %v2459
        %v2461 = vsel %vm2048, %v2460, %v2460
        %v2463 = vshrl.u32 %v1273, 16
        %v2465 = vrot.slane %v2463, 3
        %v2466 = vshll.u32 %v1273, 16
        %v2468 = vrot.slane %v2466, 4
        %v2469 = vor.u32 %v2465, %v2468
        %v2471 = vshrl.u32 %v1275, 16
        %v2473 = vrot.slane %v2471, 3
        %v2474 = vshll.u32 %v1275, 16
        %v2476 = vrot.slane %v2474, 4
        %v2477 = vor.u32 %v2473, %v2476
        %v2478 = vsel %vm2048, %v2469, %v2477
        %v2480 = vshrl.u32 %v1414, 16
        %v2482 = vrot.slane %v2480, 3
        %v2483 = vshll.u32 %v1414, 16
        %v2485 = vrot.slane %v2483, 4
        %v2486 = vor.u32 %v2482, %v2485
        %v2488 = vshrl.u32 %v1415, 16
        %v2490 = vrot.slane %v2488, 3
        %v2491 = vshll.u32 %v1415, 16
        %v2493 = vrot.slane %v2491, 4
        %v2494 = vor.u32 %v2490, %v2493
        %v2495 = vsel %vm2048, %v2486, %v2494
        %v2497 = vshrl.u32 %v1487, 16
        %v2499 = vrot.slane %v2497, 3
        %v2500 = vshll.u32 %v1487, 16
        %v2502 = vrot.slane %v2500, 4
        %v2503 = vor.u32 %v2499, %v2502
        %v2504 = vsel %vm2048, %v2503, %v2503
        %v2506 = vshrl.u32 %v1641, 16
        %v2508 = vrot.slane %v2506, 3
        %v2509 = vshll.u32 %v1641, 16
        %v2511 = vrot.slane %v2509, 4
        %v2512 = vor.u32 %v2508, %v2511
        %v2514 = vshrl.u32 %v1643, 16
        %v2516 = vrot.slane %v2514, 3
        %v2517 = vshll.u32 %v1643, 16
        %v2519 = vrot.slane %v2517, 4
        %v2520 = vor.u32 %v2516, %v2519
        %v2521 = vsel %vm2048, %v2512, %v2520
        %v2523 = vshrl.u32 %v1782, 16
        %v2525 = vrot.slane %v2523, 3
        %v2526 = vshll.u32 %v1782, 16
        %v2528 = vrot.slane %v2526, 4
        %v2529 = vor.u32 %v2525, %v2528
        %v2531 = vshrl.u32 %v1783, 16
        %v2533 = vrot.slane %v2531, 3
        %v2534 = vshll.u32 %v1783, 16
        %v2536 = vrot.slane %v2534, 4
        %v2537 = vor.u32 %v2533, %v2536
        %v2538 = vsel %vm2048, %v2529, %v2537
        %v2540 = vshrl.u32 %v1855, 16
        %v2542 = vrot.slane %v2540, 3
        %v2543 = vshll.u32 %v1855, 16
        %v2545 = vrot.slane %v2543, 4
        %v2546 = vor.u32 %v2542, %v2545
        %v2547 = vsel %vm2048, %v2546, %v2546
        %v2549 = vshrl.u32 %v2009, 16
        %v2551 = vrot.slane %v2549, 3
        %v2552 = vshll.u32 %v2009, 16
        %v2554 = vrot.slane %v2552, 4
        %v2555 = vor.u32 %v2551, %v2554
        %v2557 = vshrl.u32 %v2011, 16
        %v2559 = vrot.slane %v2557, 3
        %v2560 = vshll.u32 %v2011, 16
        %v2562 = vrot.slane %v2560, 4
        %v2563 = vor.u32 %v2559, %v2562
        %v2564 = vsel %vm2048, %v2555, %v2563
        %v2566 = vshrl.u32 %v1047, 16
        %v2568 = vrot.slane %v2566, 3
        %v2569 = vshll.u32 %v1047, 16
        %v2571 = vrot.slane %v2569, 4
        %v2572 = vor.u32 %v2568, %v2571
        %v2574 = vshrl.u32 %v1048, 16
        %v2576 = vrot.slane %v2574, 3
        %v2577 = vshll.u32 %v1048, 16
        %v2579 = vrot.slane %v2577, 4
        %v2580 = vor.u32 %v2576, %v2579
        %v2581 = vsel %vm2048, %v2572, %v2580
        %v2583 = vshrl.u32 %v1126, 16
        %v2585 = vrot.slane %v2583, 3
        %v2586 = vshll.u32 %v1126, 16
        %v2588 = vrot.slane %v2586, 4
        %v2589 = vor.u32 %v2585, %v2588
        %v2590 = vsel %vm2048, %v2589, %v2589
        %v2592 = vshrl.u32 %v1276, 16
        %v2594 = vrot.slane %v2592, 3
        %v2595 = vshll.u32 %v1276, 16
        %v2597 = vrot.slane %v2595, 4
        %v2598 = vor.u32 %v2594, %v2597
        %v2600 = vshrl.u32 %v1278, 16
        %v2602 = vrot.slane %v2600, 3
        %v2603 = vshll.u32 %v1278, 16
        %v2605 = vrot.slane %v2603, 4
        %v2606 = vor.u32 %v2602, %v2605
        %v2607 = vsel %vm2048, %v2598, %v2606
        %v2609 = vshrl.u32 %v1416, 16
        %v2611 = vrot.slane %v2609, 3
        %v2612 = vshll.u32 %v1416, 16
        %v2614 = vrot.slane %v2612, 4
        %v2615 = vor.u32 %v2611, %v2614
        %v2617 = vshrl.u32 %v1417, 16
        %v2619 = vrot.slane %v2617, 3
        %v2620 = vshll.u32 %v1417, 16
        %v2622 = vrot.slane %v2620, 4
        %v2623 = vor.u32 %v2619, %v2622
        %v2624 = vsel %vm2048, %v2615, %v2623
        %v2626 = vshrl.u32 %v1495, 16
        %v2628 = vrot.slane %v2626, 3
        %v2629 = vshll.u32 %v1495, 16
        %v2631 = vrot.slane %v2629, 4
        %v2632 = vor.u32 %v2628, %v2631
        %v2633 = vsel %vm2048, %v2632, %v2632
        %v2635 = vshrl.u32 %v1644, 16
        %v2637 = vrot.slane %v2635, 3
        %v2638 = vshll.u32 %v1644, 16
        %v2640 = vrot.slane %v2638, 4
        %v2641 = vor.u32 %v2637, %v2640
        %v2643 = vshrl.u32 %v1646, 16
        %v2645 = vrot.slane %v2643, 3
        %v2646 = vshll.u32 %v1646, 16
        %v2648 = vrot.slane %v2646, 4
        %v2649 = vor.u32 %v2645, %v2648
        %v2650 = vsel %vm2048, %v2641, %v2649
        %v2652 = vshrl.u32 %v1784, 16
        %v2654 = vrot.slane %v2652, 3
        %v2655 = vshll.u32 %v1784, 16
        %v2657 = vrot.slane %v2655, 4
        %v2658 = vor.u32 %v2654, %v2657
        %v2660 = vshrl.u32 %v1785, 16
        %v2662 = vrot.slane %v2660, 3
        %v2663 = vshll.u32 %v1785, 16
        %v2665 = vrot.slane %v2663, 4
        %v2666 = vor.u32 %v2662, %v2665
        %v2667 = vsel %vm2048, %v2658, %v2666
        %v2669 = vshrl.u32 %v1863, 16
        %v2671 = vrot.slane %v2669, 3
        %v2672 = vshll.u32 %v1863, 16
        %v2674 = vrot.slane %v2672, 4
        %v2675 = vor.u32 %v2671, %v2674
        %v2676 = vsel %vm2048, %v2675, %v2675
        %v2678 = vshrl.u32 %v2012, 16
        %v2680 = vrot.slane %v2678, 3
        %v2681 = vshll.u32 %v2012, 16
        %v2683 = vrot.slane %v2681, 4
        %v2684 = vor.u32 %v2680, %v2683
        %v2686 = vshrl.u32 %v2014, 16
        %v2688 = vrot.slane %v2686, 3
        %v2689 = vshll.u32 %v2014, 16
        %v2691 = vrot.slane %v2689, 4
        %v2692 = vor.u32 %v2688, %v2691
        %v2693 = vsel %vm2048, %v2684, %v2692
        %v2695 = vshrl.u32 %v1049, 16
        %v2697 = vrot.slane %v2695, 3
        %v2698 = vshll.u32 %v1049, 16
        %v2700 = vrot.slane %v2698, 4
        %v2701 = vor.u32 %v2697, %v2700
        %v2703 = vshrl.u32 %v1050, 16
        %v2705 = vrot.slane %v2703, 3
        %v2706 = vshll.u32 %v1050, 16
        %v2708 = vrot.slane %v2706, 4
        %v2709 = vor.u32 %v2705, %v2708
        %v2710 = vsel %vm2048, %v2701, %v2709
        %v2712 = vshrl.u32 %v1134, 16
        %v2714 = vrot.slane %v2712, 3
        %v2715 = vshll.u32 %v1134, 16
        %v2717 = vrot.slane %v2715, 4
        %v2718 = vor.u32 %v2714, %v2717
        %v2719 = vsel %vm2048, %v2718, %v2718
        %v2721 = vshrl.u32 %v1279, 16
        %v2723 = vrot.slane %v2721, 3
        %v2724 = vshll.u32 %v1279, 16
        %v2726 = vrot.slane %v2724, 4
        %v2727 = vor.u32 %v2723, %v2726
        %v2729 = vshrl.u32 %v1281, 16
        %v2731 = vrot.slane %v2729, 3
        %v2732 = vshll.u32 %v1281, 16
        %v2734 = vrot.slane %v2732, 4
        %v2735 = vor.u32 %v2731, %v2734
        %v2736 = vsel %vm2048, %v2727, %v2735
        %v2738 = vshrl.u32 %v1418, 16
        %v2740 = vrot.slane %v2738, 3
        %v2741 = vshll.u32 %v1418, 16
        %v2743 = vrot.slane %v2741, 4
        %v2744 = vor.u32 %v2740, %v2743
        %v2746 = vshrl.u32 %v1419, 16
        %v2748 = vrot.slane %v2746, 3
        %v2749 = vshll.u32 %v1419, 16
        %v2751 = vrot.slane %v2749, 4
        %v2752 = vor.u32 %v2748, %v2751
        %v2753 = vsel %vm2048, %v2744, %v2752
        %v2755 = vshrl.u32 %v1503, 16
        %v2757 = vrot.slane %v2755, 3
        %v2758 = vshll.u32 %v1503, 16
        %v2760 = vrot.slane %v2758, 4
        %v2761 = vor.u32 %v2757, %v2760
        %v2762 = vsel %vm2048, %v2761, %v2761
        %v2764 = vshrl.u32 %v1647, 16
        %v2766 = vrot.slane %v2764, 3
        %v2767 = vshll.u32 %v1647, 16
        %v2769 = vrot.slane %v2767, 4
        %v2770 = vor.u32 %v2766, %v2769
        %v2772 = vshrl.u32 %v1649, 16
        %v2774 = vrot.slane %v2772, 3
        %v2775 = vshll.u32 %v1649, 16
        %v2777 = vrot.slane %v2775, 4
        %v2778 = vor.u32 %v2774, %v2777
        %v2779 = vsel %vm2048, %v2770, %v2778
        %v2781 = vshrl.u32 %v1786, 16
        %v2783 = vrot.slane %v2781, 3
        %v2784 = vshll.u32 %v1786, 16
        %v2786 = vrot.slane %v2784, 4
        %v2787 = vor.u32 %v2783, %v2786
        %v2789 = vshrl.u32 %v1787, 16
        %v2791 = vrot.slane %v2789, 3
        %v2792 = vshll.u32 %v1787, 16
        %v2794 = vrot.slane %v2792, 4
        %v2795 = vor.u32 %v2791, %v2794
        %v2796 = vsel %vm2048, %v2787, %v2795
        %v2798 = vshrl.u32 %v1871, 16
        %v2800 = vrot.slane %v2798, 3
        %v2801 = vshll.u32 %v1871, 16
        %v2803 = vrot.slane %v2801, 4
        %v2804 = vor.u32 %v2800, %v2803
        %v2805 = vsel %vm2048, %v2804, %v2804
        %v2807 = vshrl.u32 %v2015, 16
        %v2809 = vrot.slane %v2807, 3
        %v2810 = vshll.u32 %v2015, 16
        %v2812 = vrot.slane %v2810, 4
        %v2813 = vor.u32 %v2809, %v2812
        %v2815 = vshrl.u32 %v2017, 16
        %v2817 = vrot.slane %v2815, 3
        %v2818 = vshll.u32 %v2017, 16
        %v2820 = vrot.slane %v2818, 4
        %v2821 = vor.u32 %v2817, %v2820
        %v2822 = vsel %vm2048, %v2813, %v2821
        %v2824 = vshrl.u32 %v1051, 16
        %v2826 = vrot.slane %v2824, 3
        %v2827 = vshll.u32 %v1051, 16
        %v2829 = vrot.slane %v2827, 4
        %v2830 = vor.u32 %v2826, %v2829
        %v2832 = vshrl.u32 %v1052, 16
        %v2834 = vrot.slane %v2832, 3
        %v2835 = vshll.u32 %v1052, 16
        %v2837 = vrot.slane %v2835, 4
        %v2838 = vor.u32 %v2834, %v2837
        %v2839 = vsel %vm2048, %v2830, %v2838
        %v2841 = vshrl.u32 %v1142, 16
        %v2843 = vrot.slane %v2841, 3
        %v2844 = vshll.u32 %v1142, 16
        %v2846 = vrot.slane %v2844, 4
        %v2847 = vor.u32 %v2843, %v2846
        %v2848 = vsel %vm2048, %v2847, %v2847
        %v2850 = vshrl.u32 %v1282, 16
        %v2852 = vrot.slane %v2850, 3
        %v2853 = vshll.u32 %v1282, 16
        %v2855 = vrot.slane %v2853, 4
        %v2856 = vor.u32 %v2852, %v2855
        %v2858 = vshrl.u32 %v1284, 16
        %v2860 = vrot.slane %v2858, 3
        %v2861 = vshll.u32 %v1284, 16
        %v2863 = vrot.slane %v2861, 4
        %v2864 = vor.u32 %v2860, %v2863
        %v2865 = vsel %vm2048, %v2856, %v2864
        %v2867 = vshrl.u32 %v1420, 16
        %v2869 = vrot.slane %v2867, 3
        %v2870 = vshll.u32 %v1420, 16
        %v2872 = vrot.slane %v2870, 4
        %v2873 = vor.u32 %v2869, %v2872
        %v2875 = vshrl.u32 %v1421, 16
        %v2877 = vrot.slane %v2875, 3
        %v2878 = vshll.u32 %v1421, 16
        %v2880 = vrot.slane %v2878, 4
        %v2881 = vor.u32 %v2877, %v2880
        %v2882 = vsel %vm2048, %v2873, %v2881
        %v2884 = vshrl.u32 %v1511, 16
        %v2886 = vrot.slane %v2884, 3
        %v2887 = vshll.u32 %v1511, 16
        %v2889 = vrot.slane %v2887, 4
        %v2890 = vor.u32 %v2886, %v2889
        %v2891 = vsel %vm2048, %v2890, %v2890
        %v2893 = vshrl.u32 %v1650, 16
        %v2895 = vrot.slane %v2893, 3
        %v2896 = vshll.u32 %v1650, 16
        %v2898 = vrot.slane %v2896, 4
        %v2899 = vor.u32 %v2895, %v2898
        %v2901 = vshrl.u32 %v1652, 16
        %v2903 = vrot.slane %v2901, 3
        %v2904 = vshll.u32 %v1652, 16
        %v2906 = vrot.slane %v2904, 4
        %v2907 = vor.u32 %v2903, %v2906
        %v2908 = vsel %vm2048, %v2899, %v2907
        %v2910 = vshrl.u32 %v1788, 16
        %v2912 = vrot.slane %v2910, 3
        %v2913 = vshll.u32 %v1788, 16
        %v2915 = vrot.slane %v2913, 4
        %v2916 = vor.u32 %v2912, %v2915
        %v2918 = vshrl.u32 %v1789, 16
        %v2920 = vrot.slane %v2918, 3
        %v2921 = vshll.u32 %v1789, 16
        %v2923 = vrot.slane %v2921, 4
        %v2924 = vor.u32 %v2920, %v2923
        %v2925 = vsel %vm2048, %v2916, %v2924
        %v2927 = vshrl.u32 %v1879, 16
        %v2929 = vrot.slane %v2927, 3
        %v2930 = vshll.u32 %v1879, 16
        %v2932 = vrot.slane %v2930, 4
        %v2933 = vor.u32 %v2929, %v2932
        %v2934 = vsel %vm2048, %v2933, %v2933
        %v2936 = vshrl.u32 %v2018, 16
        %v2938 = vrot.slane %v2936, 3
        %v2939 = vshll.u32 %v2018, 16
        %v2941 = vrot.slane %v2939, 4
        %v2942 = vor.u32 %v2938, %v2941
        %v2944 = vshrl.u32 %v2020, 16
        %v2946 = vrot.slane %v2944, 3
        %v2947 = vshll.u32 %v2020, 16
        %v2949 = vrot.slane %v2947, 4
        %v2950 = vor.u32 %v2946, %v2949
        %v2951 = vsel %vm2048, %v2942, %v2950
        %v2953 = vshrl.u32 %v1053, 16
        %v2955 = vrot.slane %v2953, 3
        %v2956 = vshll.u32 %v1053, 16
        %v2958 = vrot.slane %v2956, 4
        %v2959 = vor.u32 %v2955, %v2958
        %v2961 = vshrl.u32 %v1054, 16
        %v2963 = vrot.slane %v2961, 3
        %v2964 = vshll.u32 %v1054, 16
        %v2966 = vrot.slane %v2964, 4
        %v2967 = vor.u32 %v2963, %v2966
        %v2968 = vsel %vm2048, %v2959, %v2967
        %v2970 = vshrl.u32 %v1150, 16
        %v2972 = vrot.slane %v2970, 3
        %v2973 = vshll.u32 %v1150, 16
        %v2975 = vrot.slane %v2973, 4
        %v2976 = vor.u32 %v2972, %v2975
        %v2977 = vsel %vm2048, %v2976, %v2976
        %v2979 = vshrl.u32 %v1285, 16
        %v2981 = vrot.slane %v2979, 3
        %v2982 = vshll.u32 %v1285, 16
        %v2984 = vrot.slane %v2982, 4
        %v2985 = vor.u32 %v2981, %v2984
        %v2987 = vshrl.u32 %v1287, 16
        %v2989 = vrot.slane %v2987, 3
        %v2990 = vshll.u32 %v1287, 16
        %v2992 = vrot.slane %v2990, 4
        %v2993 = vor.u32 %v2989, %v2992
        %v2994 = vsel %vm2048, %v2985, %v2993
        %v2996 = vshrl.u32 %v1422, 16
        %v2998 = vrot.slane %v2996, 3
        %v2999 = vshll.u32 %v1422, 16
        %v3001 = vrot.slane %v2999, 4
        %v3002 = vor.u32 %v2998, %v3001
        %v3004 = vshrl.u32 %v1423, 16
        %v3006 = vrot.slane %v3004, 3
        %v3007 = vshll.u32 %v1423, 16
        %v3009 = vrot.slane %v3007, 4
        %v3010 = vor.u32 %v3006, %v3009
        %v3011 = vsel %vm2048, %v3002, %v3010
        %v3013 = vshrl.u32 %v1519, 16
        %v3015 = vrot.slane %v3013, 3
        %v3016 = vshll.u32 %v1519, 16
        %v3018 = vrot.slane %v3016, 4
        %v3019 = vor.u32 %v3015, %v3018
        %v3020 = vsel %vm2048, %v3019, %v3019
        %v3022 = vshrl.u32 %v1653, 16
        %v3024 = vrot.slane %v3022, 3
        %v3025 = vshll.u32 %v1653, 16
        %v3027 = vrot.slane %v3025, 4
        %v3028 = vor.u32 %v3024, %v3027
        %v3030 = vshrl.u32 %v1655, 16
        %v3032 = vrot.slane %v3030, 3
        %v3033 = vshll.u32 %v1655, 16
        %v3035 = vrot.slane %v3033, 4
        %v3036 = vor.u32 %v3032, %v3035
        %v3037 = vsel %vm2048, %v3028, %v3036
        %v3039 = vshrl.u32 %v1790, 16
        %v3041 = vrot.slane %v3039, 3
        %v3042 = vshll.u32 %v1790, 16
        %v3044 = vrot.slane %v3042, 4
        %v3045 = vor.u32 %v3041, %v3044
        %v3047 = vshrl.u32 %v1791, 16
        %v3049 = vrot.slane %v3047, 3
        %v3050 = vshll.u32 %v1791, 16
        %v3052 = vrot.slane %v3050, 4
        %v3053 = vor.u32 %v3049, %v3052
        %v3054 = vsel %vm2048, %v3045, %v3053
        %v3056 = vshrl.u32 %v1887, 16
        %v3058 = vrot.slane %v3056, 3
        %v3059 = vshll.u32 %v1887, 16
        %v3061 = vrot.slane %v3059, 4
        %v3062 = vor.u32 %v3058, %v3061
        %v3063 = vsel %vm2048, %v3062, %v3062
        %v3065 = vshrl.u32 %v2021, 16
        %v3067 = vrot.slane %v3065, 3
        %v3068 = vshll.u32 %v2021, 16
        %v3070 = vrot.slane %v3068, 4
        %v3071 = vor.u32 %v3067, %v3070
        %v3073 = vshrl.u32 %v2023, 16
        %v3075 = vrot.slane %v3073, 3
        %v3076 = vshll.u32 %v2023, 16
        %v3078 = vrot.slane %v3076, 4
        %v3079 = vor.u32 %v3075, %v3078
        %v3080 = vsel %vm2048, %v3071, %v3079
        %v3082 = vshrl.u32 %v1055, 16
        %v3084 = vrot.slane %v3082, 3
        %v3085 = vshll.u32 %v1055, 16
        %v3087 = vrot.slane %v3085, 4
        %v3088 = vor.u32 %v3084, %v3087
        %v3090 = vshrl.u32 %v1056, 16
        %v3092 = vrot.slane %v3090, 3
        %v3093 = vshll.u32 %v1056, 16
        %v3095 = vrot.slane %v3093, 4
        %v3096 = vor.u32 %v3092, %v3095
        %v3097 = vsel %vm2048, %v3088, %v3096
        %v3099 = vshrl.u32 %v1158, 16
        %v3101 = vrot.slane %v3099, 3
        %v3102 = vshll.u32 %v1158, 16
        %v3104 = vrot.slane %v3102, 4
        %v3105 = vor.u32 %v3101, %v3104
        %v3106 = vsel %vm2048, %v3105, %v3105
        %v3108 = vshrl.u32 %v1288, 16
        %v3110 = vrot.slane %v3108, 3
        %v3111 = vshll.u32 %v1288, 16
        %v3113 = vrot.slane %v3111, 4
        %v3114 = vor.u32 %v3110, %v3113
        %v3116 = vshrl.u32 %v1290, 16
        %v3118 = vrot.slane %v3116, 3
        %v3119 = vshll.u32 %v1290, 16
        %v3121 = vrot.slane %v3119, 4
        %v3122 = vor.u32 %v3118, %v3121
        %v3123 = vsel %vm2048, %v3114, %v3122
        %v3125 = vshrl.u32 %v1424, 16
        %v3127 = vrot.slane %v3125, 3
        %v3128 = vshll.u32 %v1424, 16
        %v3130 = vrot.slane %v3128, 4
        %v3131 = vor.u32 %v3127, %v3130
        %v3133 = vshrl.u32 %v1425, 16
        %v3135 = vrot.slane %v3133, 3
        %v3136 = vshll.u32 %v1425, 16
        %v3138 = vrot.slane %v3136, 4
        %v3139 = vor.u32 %v3135, %v3138
        %v3140 = vsel %vm2048, %v3131, %v3139
        %v3142 = vshrl.u32 %v1527, 16
        %v3144 = vrot.slane %v3142, 3
        %v3145 = vshll.u32 %v1527, 16
        %v3147 = vrot.slane %v3145, 4
        %v3148 = vor.u32 %v3144, %v3147
        %v3149 = vsel %vm2048, %v3148, %v3148
        %v3151 = vshrl.u32 %v1656, 16
        %v3153 = vrot.slane %v3151, 3
        %v3154 = vshll.u32 %v1656, 16
        %v3156 = vrot.slane %v3154, 4
        %v3157 = vor.u32 %v3153, %v3156
        %v3159 = vshrl.u32 %v1658, 16
        %v3161 = vrot.slane %v3159, 3
        %v3162 = vshll.u32 %v1658, 16
        %v3164 = vrot.slane %v3162, 4
        %v3165 = vor.u32 %v3161, %v3164
        %v3166 = vsel %vm2048, %v3157, %v3165
        %v3168 = vshrl.u32 %v1792, 16
        %v3170 = vrot.slane %v3168, 3
        %v3171 = vshll.u32 %v1792, 16
        %v3173 = vrot.slane %v3171, 4
        %v3174 = vor.u32 %v3170, %v3173
        %v3176 = vshrl.u32 %v1793, 16
        %v3178 = vrot.slane %v3176, 3
        %v3179 = vshll.u32 %v1793, 16
        %v3181 = vrot.slane %v3179, 4
        %v3182 = vor.u32 %v3178, %v3181
        %v3183 = vsel %vm2048, %v3174, %v3182
        %v3185 = vshrl.u32 %v1895, 16
        %v3187 = vrot.slane %v3185, 3
        %v3188 = vshll.u32 %v1895, 16
        %v3190 = vrot.slane %v3188, 4
        %v3191 = vor.u32 %v3187, %v3190
        %v3192 = vsel %vm2048, %v3191, %v3191
        %v3194 = vshrl.u32 %v2024, 16
        %v3196 = vrot.slane %v3194, 3
        %v3197 = vshll.u32 %v2024, 16
        %v3199 = vrot.slane %v3197, 4
        %v3200 = vor.u32 %v3196, %v3199
        %v3202 = vshrl.u32 %v2026, 16
        %v3204 = vrot.slane %v3202, 3
        %v3205 = vshll.u32 %v2026, 16
        %v3207 = vrot.slane %v3205, 4
        %v3208 = vor.u32 %v3204, %v3207
        %v3209 = vsel %vm2048, %v3200, %v3208
        %v3211 = vshrl.u32 %v1057, 16
        %v3213 = vrot.slane %v3211, 3
        %v3214 = vshll.u32 %v1057, 16
        %v3216 = vrot.slane %v3214, 4
        %v3217 = vor.u32 %v3213, %v3216
        %v3219 = vshrl.u32 %v1058, 16
        %v3221 = vrot.slane %v3219, 3
        %v3222 = vshll.u32 %v1058, 16
        %v3224 = vrot.slane %v3222, 4
        %v3225 = vor.u32 %v3221, %v3224
        %v3226 = vsel %vm2048, %v3217, %v3225
        %v3228 = vshrl.u32 %v1166, 16
        %v3230 = vrot.slane %v3228, 3
        %v3231 = vshll.u32 %v1166, 16
        %v3233 = vrot.slane %v3231, 4
        %v3234 = vor.u32 %v3230, %v3233
        %v3235 = vsel %vm2048, %v3234, %v3234
        %v3237 = vshrl.u32 %v1291, 16
        %v3239 = vrot.slane %v3237, 3
        %v3240 = vshll.u32 %v1291, 16
        %v3242 = vrot.slane %v3240, 4
        %v3243 = vor.u32 %v3239, %v3242
        %v3245 = vshrl.u32 %v1293, 16
        %v3247 = vrot.slane %v3245, 3
        %v3248 = vshll.u32 %v1293, 16
        %v3250 = vrot.slane %v3248, 4
        %v3251 = vor.u32 %v3247, %v3250
        %v3252 = vsel %vm2048, %v3243, %v3251
        %v3254 = vshrl.u32 %v1426, 16
        %v3256 = vrot.slane %v3254, 3
        %v3257 = vshll.u32 %v1426, 16
        %v3259 = vrot.slane %v3257, 4
        %v3260 = vor.u32 %v3256, %v3259
        %v3262 = vshrl.u32 %v1427, 16
        %v3264 = vrot.slane %v3262, 3
        %v3265 = vshll.u32 %v1427, 16
        %v3267 = vrot.slane %v3265, 4
        %v3268 = vor.u32 %v3264, %v3267
        %v3269 = vsel %vm2048, %v3260, %v3268
        %v3271 = vshrl.u32 %v1535, 16
        %v3273 = vrot.slane %v3271, 3
        %v3274 = vshll.u32 %v1535, 16
        %v3276 = vrot.slane %v3274, 4
        %v3277 = vor.u32 %v3273, %v3276
        %v3278 = vsel %vm2048, %v3277, %v3277
        %v3280 = vshrl.u32 %v1659, 16
        %v3282 = vrot.slane %v3280, 3
        %v3283 = vshll.u32 %v1659, 16
        %v3285 = vrot.slane %v3283, 4
        %v3286 = vor.u32 %v3282, %v3285
        %v3288 = vshrl.u32 %v1661, 16
        %v3290 = vrot.slane %v3288, 3
        %v3291 = vshll.u32 %v1661, 16
        %v3293 = vrot.slane %v3291, 4
        %v3294 = vor.u32 %v3290, %v3293
        %v3295 = vsel %vm2048, %v3286, %v3294
        %v3297 = vshrl.u32 %v1794, 16
        %v3299 = vrot.slane %v3297, 3
        %v3300 = vshll.u32 %v1794, 16
        %v3302 = vrot.slane %v3300, 4
        %v3303 = vor.u32 %v3299, %v3302
        %v3305 = vshrl.u32 %v1795, 16
        %v3307 = vrot.slane %v3305, 3
        %v3308 = vshll.u32 %v1795, 16
        %v3310 = vrot.slane %v3308, 4
        %v3311 = vor.u32 %v3307, %v3310
        %v3312 = vsel %vm2048, %v3303, %v3311
        %v3314 = vshrl.u32 %v1903, 16
        %v3316 = vrot.slane %v3314, 3
        %v3317 = vshll.u32 %v1903, 16
        %v3319 = vrot.slane %v3317, 4
        %v3320 = vor.u32 %v3316, %v3319
        %v3321 = vsel %vm2048, %v3320, %v3320
        %v3323 = vshrl.u32 %v2027, 16
        %v3325 = vrot.slane %v3323, 3
        %v3326 = vshll.u32 %v2027, 16
        %v3328 = vrot.slane %v3326, 4
        %v3329 = vor.u32 %v3325, %v3328
        %v3331 = vshrl.u32 %v2029, 16
        %v3333 = vrot.slane %v3331, 3
        %v3334 = vshll.u32 %v2029, 16
        %v3336 = vrot.slane %v3334, 4
        %v3337 = vor.u32 %v3333, %v3336
        %v3338 = vsel %vm2048, %v3329, %v3337
        %v3340 = vshrl.u32 %v1059, 16
        %v3342 = vrot.slane %v3340, 3
        %v3343 = vshll.u32 %v1059, 16
        %v3345 = vrot.slane %v3343, 4
        %v3346 = vor.u32 %v3342, %v3345
        %v3348 = vshrl.u32 %v1060, 16
        %v3350 = vrot.slane %v3348, 3
        %v3351 = vshll.u32 %v1060, 16
        %v3353 = vrot.slane %v3351, 4
        %v3354 = vor.u32 %v3350, %v3353
        %v3355 = vsel %vm2048, %v3346, %v3354
        %v3357 = vshrl.u32 %v1174, 16
        %v3359 = vrot.slane %v3357, 3
        %v3360 = vshll.u32 %v1174, 16
        %v3362 = vrot.slane %v3360, 4
        %v3363 = vor.u32 %v3359, %v3362
        %v3364 = vsel %vm2048, %v3363, %v3363
        %v3366 = vshrl.u32 %v1294, 16
        %v3368 = vrot.slane %v3366, 3
        %v3369 = vshll.u32 %v1294, 16
        %v3371 = vrot.slane %v3369, 4
        %v3372 = vor.u32 %v3368, %v3371
        %v3374 = vshrl.u32 %v1296, 16
        %v3376 = vrot.slane %v3374, 3
        %v3377 = vshll.u32 %v1296, 16
        %v3379 = vrot.slane %v3377, 4
        %v3380 = vor.u32 %v3376, %v3379
        %v3381 = vsel %vm2048, %v3372, %v3380
        %v3383 = vshrl.u32 %v1428, 16
        %v3385 = vrot.slane %v3383, 3
        %v3386 = vshll.u32 %v1428, 16
        %v3388 = vrot.slane %v3386, 4
        %v3389 = vor.u32 %v3385, %v3388
        %v3391 = vshrl.u32 %v1429, 16
        %v3393 = vrot.slane %v3391, 3
        %v3394 = vshll.u32 %v1429, 16
        %v3396 = vrot.slane %v3394, 4
        %v3397 = vor.u32 %v3393, %v3396
        %v3398 = vsel %vm2048, %v3389, %v3397
        %v3400 = vshrl.u32 %v1543, 16
        %v3402 = vrot.slane %v3400, 3
        %v3403 = vshll.u32 %v1543, 16
        %v3405 = vrot.slane %v3403, 4
        %v3406 = vor.u32 %v3402, %v3405
        %v3407 = vsel %vm2048, %v3406, %v3406
        %v3409 = vshrl.u32 %v1662, 16
        %v3411 = vrot.slane %v3409, 3
        %v3412 = vshll.u32 %v1662, 16
        %v3414 = vrot.slane %v3412, 4
        %v3415 = vor.u32 %v3411, %v3414
        %v3417 = vshrl.u32 %v1664, 16
        %v3419 = vrot.slane %v3417, 3
        %v3420 = vshll.u32 %v1664, 16
        %v3422 = vrot.slane %v3420, 4
        %v3423 = vor.u32 %v3419, %v3422
        %v3424 = vsel %vm2048, %v3415, %v3423
        %v3426 = vshrl.u32 %v1796, 16
        %v3428 = vrot.slane %v3426, 3
        %v3429 = vshll.u32 %v1796, 16
        %v3431 = vrot.slane %v3429, 4
        %v3432 = vor.u32 %v3428, %v3431
        %v3434 = vshrl.u32 %v1797, 16
        %v3436 = vrot.slane %v3434, 3
        %v3437 = vshll.u32 %v1797, 16
        %v3439 = vrot.slane %v3437, 4
        %v3440 = vor.u32 %v3436, %v3439
        %v3441 = vsel %vm2048, %v3432, %v3440
        %v3443 = vshrl.u32 %v1911, 16
        %v3445 = vrot.slane %v3443, 3
        %v3446 = vshll.u32 %v1911, 16
        %v3448 = vrot.slane %v3446, 4
        %v3449 = vor.u32 %v3445, %v3448
        %v3450 = vsel %vm2048, %v3449, %v3449
        %v3452 = vshrl.u32 %v2030, 16
        %v3454 = vrot.slane %v3452, 3
        %v3455 = vshll.u32 %v2030, 16
        %v3457 = vrot.slane %v3455, 4
        %v3458 = vor.u32 %v3454, %v3457
        %v3460 = vshrl.u32 %v2032, 16
        %v3462 = vrot.slane %v3460, 3
        %v3463 = vshll.u32 %v2032, 16
        %v3465 = vrot.slane %v3463, 4
        %v3466 = vor.u32 %v3462, %v3465
        %v3467 = vsel %vm2048, %v3458, %v3466
        %v3469 = vshrl.u32 %v1061, 16
        %v3471 = vrot.slane %v3469, 3
        %v3472 = vshll.u32 %v1061, 16
        %v3474 = vrot.slane %v3472, 4
        %v3475 = vor.u32 %v3471, %v3474
        %v3477 = vshrl.u32 %v1062, 16
        %v3479 = vrot.slane %v3477, 3
        %v3480 = vshll.u32 %v1062, 16
        %v3482 = vrot.slane %v3480, 4
        %v3483 = vor.u32 %v3479, %v3482
        %v3484 = vsel %vm2048, %v3475, %v3483
        %v3486 = vshrl.u32 %v1182, 16
        %v3488 = vrot.slane %v3486, 3
        %v3489 = vshll.u32 %v1182, 16
        %v3491 = vrot.slane %v3489, 4
        %v3492 = vor.u32 %v3488, %v3491
        %v3493 = vsel %vm2048, %v3492, %v3492
        %v3495 = vshrl.u32 %v1297, 16
        %v3497 = vrot.slane %v3495, 3
        %v3498 = vshll.u32 %v1297, 16
        %v3500 = vrot.slane %v3498, 4
        %v3501 = vor.u32 %v3497, %v3500
        %v3503 = vshrl.u32 %v1299, 16
        %v3505 = vrot.slane %v3503, 3
        %v3506 = vshll.u32 %v1299, 16
        %v3508 = vrot.slane %v3506, 4
        %v3509 = vor.u32 %v3505, %v3508
        %v3510 = vsel %vm2048, %v3501, %v3509
        %v3512 = vshrl.u32 %v1430, 16
        %v3514 = vrot.slane %v3512, 3
        %v3515 = vshll.u32 %v1430, 16
        %v3517 = vrot.slane %v3515, 4
        %v3518 = vor.u32 %v3514, %v3517
        %v3520 = vshrl.u32 %v1431, 16
        %v3522 = vrot.slane %v3520, 3
        %v3523 = vshll.u32 %v1431, 16
        %v3525 = vrot.slane %v3523, 4
        %v3526 = vor.u32 %v3522, %v3525
        %v3527 = vsel %vm2048, %v3518, %v3526
        %v3529 = vshrl.u32 %v1551, 16
        %v3531 = vrot.slane %v3529, 3
        %v3532 = vshll.u32 %v1551, 16
        %v3534 = vrot.slane %v3532, 4
        %v3535 = vor.u32 %v3531, %v3534
        %v3536 = vsel %vm2048, %v3535, %v3535
        %v3538 = vshrl.u32 %v1665, 16
        %v3540 = vrot.slane %v3538, 3
        %v3541 = vshll.u32 %v1665, 16
        %v3543 = vrot.slane %v3541, 4
        %v3544 = vor.u32 %v3540, %v3543
        %v3546 = vshrl.u32 %v1667, 16
        %v3548 = vrot.slane %v3546, 3
        %v3549 = vshll.u32 %v1667, 16
        %v3551 = vrot.slane %v3549, 4
        %v3552 = vor.u32 %v3548, %v3551
        %v3553 = vsel %vm2048, %v3544, %v3552
        %v3555 = vshrl.u32 %v1798, 16
        %v3557 = vrot.slane %v3555, 3
        %v3558 = vshll.u32 %v1798, 16
        %v3560 = vrot.slane %v3558, 4
        %v3561 = vor.u32 %v3557, %v3560
        %v3563 = vshrl.u32 %v1799, 16
        %v3565 = vrot.slane %v3563, 3
        %v3566 = vshll.u32 %v1799, 16
        %v3568 = vrot.slane %v3566, 4
        %v3569 = vor.u32 %v3565, %v3568
        %v3570 = vsel %vm2048, %v3561, %v3569
        %v3572 = vshrl.u32 %v1919, 16
        %v3574 = vrot.slane %v3572, 3
        %v3575 = vshll.u32 %v1919, 16
        %v3577 = vrot.slane %v3575, 4
        %v3578 = vor.u32 %v3574, %v3577
        %v3579 = vsel %vm2048, %v3578, %v3578
        %v3581 = vshrl.u32 %v2033, 16
        %v3583 = vrot.slane %v3581, 3
        %v3584 = vshll.u32 %v2033, 16
        %v3586 = vrot.slane %v3584, 4
        %v3587 = vor.u32 %v3583, %v3586
        %v3589 = vshrl.u32 %v2035, 16
        %v3591 = vrot.slane %v3589, 3
        %v3592 = vshll.u32 %v2035, 16
        %v3594 = vrot.slane %v3592, 4
        %v3595 = vor.u32 %v3591, %v3594
        %v3596 = vsel %vm2048, %v3587, %v3595
        %v3598 = vshrl.u32 %v1063, 16
        %v3600 = vrot.slane %v3598, 3
        %v3601 = vshll.u32 %v1063, 16
        %v3603 = vrot.slane %v3601, 4
        %v3604 = vor.u32 %v3600, %v3603
        %v3606 = vshrl.u32 %v1064, 16
        %v3608 = vrot.slane %v3606, 3
        %v3609 = vshll.u32 %v1064, 16
        %v3611 = vrot.slane %v3609, 4
        %v3612 = vor.u32 %v3608, %v3611
        %v3613 = vsel %vm2048, %v3604, %v3612
        %v3615 = vshrl.u32 %v1190, 16
        %v3617 = vrot.slane %v3615, 3
        %v3618 = vshll.u32 %v1190, 16
        %v3620 = vrot.slane %v3618, 4
        %v3621 = vor.u32 %v3617, %v3620
        %v3622 = vsel %vm2048, %v3621, %v3621
        %v3624 = vshrl.u32 %v1300, 16
        %v3626 = vrot.slane %v3624, 3
        %v3627 = vshll.u32 %v1300, 16
        %v3629 = vrot.slane %v3627, 4
        %v3630 = vor.u32 %v3626, %v3629
        %v3632 = vshrl.u32 %v1302, 16
        %v3634 = vrot.slane %v3632, 3
        %v3635 = vshll.u32 %v1302, 16
        %v3637 = vrot.slane %v3635, 4
        %v3638 = vor.u32 %v3634, %v3637
        %v3639 = vsel %vm2048, %v3630, %v3638
        %v3641 = vshrl.u32 %v1432, 16
        %v3643 = vrot.slane %v3641, 3
        %v3644 = vshll.u32 %v1432, 16
        %v3646 = vrot.slane %v3644, 4
        %v3647 = vor.u32 %v3643, %v3646
        %v3649 = vshrl.u32 %v1433, 16
        %v3651 = vrot.slane %v3649, 3
        %v3652 = vshll.u32 %v1433, 16
        %v3654 = vrot.slane %v3652, 4
        %v3655 = vor.u32 %v3651, %v3654
        %v3656 = vsel %vm2048, %v3647, %v3655
        %v3658 = vshrl.u32 %v1559, 16
        %v3660 = vrot.slane %v3658, 3
        %v3661 = vshll.u32 %v1559, 16
        %v3663 = vrot.slane %v3661, 4
        %v3664 = vor.u32 %v3660, %v3663
        %v3665 = vsel %vm2048, %v3664, %v3664
        %v3667 = vshrl.u32 %v1668, 16
        %v3669 = vrot.slane %v3667, 3
        %v3670 = vshll.u32 %v1668, 16
        %v3672 = vrot.slane %v3670, 4
        %v3673 = vor.u32 %v3669, %v3672
        %v3675 = vshrl.u32 %v1670, 16
        %v3677 = vrot.slane %v3675, 3
        %v3678 = vshll.u32 %v1670, 16
        %v3680 = vrot.slane %v3678, 4
        %v3681 = vor.u32 %v3677, %v3680
        %v3682 = vsel %vm2048, %v3673, %v3681
        %v3684 = vshrl.u32 %v1800, 16
        %v3686 = vrot.slane %v3684, 3
        %v3687 = vshll.u32 %v1800, 16
        %v3689 = vrot.slane %v3687, 4
        %v3690 = vor.u32 %v3686, %v3689
        %v3692 = vshrl.u32 %v1801, 16
        %v3694 = vrot.slane %v3692, 3
        %v3695 = vshll.u32 %v1801, 16
        %v3697 = vrot.slane %v3695, 4
        %v3698 = vor.u32 %v3694, %v3697
        %v3699 = vsel %vm2048, %v3690, %v3698
        %v3701 = vshrl.u32 %v1927, 16
        %v3703 = vrot.slane %v3701, 3
        %v3704 = vshll.u32 %v1927, 16
        %v3706 = vrot.slane %v3704, 4
        %v3707 = vor.u32 %v3703, %v3706
        %v3708 = vsel %vm2048, %v3707, %v3707
        %v3710 = vshrl.u32 %v2036, 16
        %v3712 = vrot.slane %v3710, 3
        %v3713 = vshll.u32 %v2036, 16
        %v3715 = vrot.slane %v3713, 4
        %v3716 = vor.u32 %v3712, %v3715
        %v3718 = vshrl.u32 %v2038, 16
        %v3720 = vrot.slane %v3718, 3
        %v3721 = vshll.u32 %v2038, 16
        %v3723 = vrot.slane %v3721, 4
        %v3724 = vor.u32 %v3720, %v3723
        %v3725 = vsel %vm2048, %v3716, %v3724
        %v3727 = vshrl.u32 %v1065, 16
        %v3729 = vrot.slane %v3727, 3
        %v3730 = vshll.u32 %v1065, 16
        %v3732 = vrot.slane %v3730, 4
        %v3733 = vor.u32 %v3729, %v3732
        %v3735 = vshrl.u32 %v1066, 16
        %v3737 = vrot.slane %v3735, 3
        %v3738 = vshll.u32 %v1066, 16
        %v3740 = vrot.slane %v3738, 4
        %v3741 = vor.u32 %v3737, %v3740
        %v3742 = vsel %vm2048, %v3733, %v3741
        %v3744 = vshrl.u32 %v1198, 16
        %v3746 = vrot.slane %v3744, 3
        %v3747 = vshll.u32 %v1198, 16
        %v3749 = vrot.slane %v3747, 4
        %v3750 = vor.u32 %v3746, %v3749
        %v3751 = vsel %vm2048, %v3750, %v3750
        %v3753 = vshrl.u32 %v1303, 16
        %v3755 = vrot.slane %v3753, 3
        %v3756 = vshll.u32 %v1303, 16
        %v3758 = vrot.slane %v3756, 4
        %v3759 = vor.u32 %v3755, %v3758
        %v3761 = vshrl.u32 %v1305, 16
        %v3763 = vrot.slane %v3761, 3
        %v3764 = vshll.u32 %v1305, 16
        %v3766 = vrot.slane %v3764, 4
        %v3767 = vor.u32 %v3763, %v3766
        %v3768 = vsel %vm2048, %v3759, %v3767
        %v3770 = vshrl.u32 %v1434, 16
        %v3772 = vrot.slane %v3770, 3
        %v3773 = vshll.u32 %v1434, 16
        %v3775 = vrot.slane %v3773, 4
        %v3776 = vor.u32 %v3772, %v3775
        %v3778 = vshrl.u32 %v1435, 16
        %v3780 = vrot.slane %v3778, 3
        %v3781 = vshll.u32 %v1435, 16
        %v3783 = vrot.slane %v3781, 4
        %v3784 = vor.u32 %v3780, %v3783
        %v3785 = vsel %vm2048, %v3776, %v3784
        %v3787 = vshrl.u32 %v1567, 16
        %v3789 = vrot.slane %v3787, 3
        %v3790 = vshll.u32 %v1567, 16
        %v3792 = vrot.slane %v3790, 4
        %v3793 = vor.u32 %v3789, %v3792
        %v3794 = vsel %vm2048, %v3793, %v3793
        %v3796 = vshrl.u32 %v1671, 16
        %v3798 = vrot.slane %v3796, 3
        %v3799 = vshll.u32 %v1671, 16
        %v3801 = vrot.slane %v3799, 4
        %v3802 = vor.u32 %v3798, %v3801
        %v3804 = vshrl.u32 %v1673, 16
        %v3806 = vrot.slane %v3804, 3
        %v3807 = vshll.u32 %v1673, 16
        %v3809 = vrot.slane %v3807, 4
        %v3810 = vor.u32 %v3806, %v3809
        %v3811 = vsel %vm2048, %v3802, %v3810
        %v3813 = vshrl.u32 %v1802, 16
        %v3815 = vrot.slane %v3813, 3
        %v3816 = vshll.u32 %v1802, 16
        %v3818 = vrot.slane %v3816, 4
        %v3819 = vor.u32 %v3815, %v3818
        %v3821 = vshrl.u32 %v1803, 16
        %v3823 = vrot.slane %v3821, 3
        %v3824 = vshll.u32 %v1803, 16
        %v3826 = vrot.slane %v3824, 4
        %v3827 = vor.u32 %v3823, %v3826
        %v3828 = vsel %vm2048, %v3819, %v3827
        %v3830 = vshrl.u32 %v1935, 16
        %v3832 = vrot.slane %v3830, 3
        %v3833 = vshll.u32 %v1935, 16
        %v3835 = vrot.slane %v3833, 4
        %v3836 = vor.u32 %v3832, %v3835
        %v3837 = vsel %vm2048, %v3836, %v3836
        %v3839 = vshrl.u32 %v2039, 16
        %v3841 = vrot.slane %v3839, 3
        %v3842 = vshll.u32 %v2039, 16
        %v3844 = vrot.slane %v3842, 4
        %v3845 = vor.u32 %v3841, %v3844
        %v3847 = vshrl.u32 %v2041, 16
        %v3849 = vrot.slane %v3847, 3
        %v3850 = vshll.u32 %v2041, 16
        %v3852 = vrot.slane %v3850, 4
        %v3853 = vor.u32 %v3849, %v3852
        %v3854 = vsel %vm2048, %v3845, %v3853
        %v3856 = vshrl.u32 %v1067, 16
        %v3858 = vrot.slane %v3856, 3
        %v3859 = vshll.u32 %v1067, 16
        %v3861 = vrot.slane %v3859, 4
        %v3862 = vor.u32 %v3858, %v3861
        %v3864 = vshrl.u32 %v1068, 16
        %v3866 = vrot.slane %v3864, 3
        %v3867 = vshll.u32 %v1068, 16
        %v3869 = vrot.slane %v3867, 4
        %v3870 = vor.u32 %v3866, %v3869
        %v3871 = vsel %vm2048, %v3862, %v3870
        %v3873 = vshrl.u32 %v1206, 16
        %v3875 = vrot.slane %v3873, 3
        %v3876 = vshll.u32 %v1206, 16
        %v3878 = vrot.slane %v3876, 4
        %v3879 = vor.u32 %v3875, %v3878
        %v3880 = vsel %vm2048, %v3879, %v3879
        %v3882 = vshrl.u32 %v1306, 16
        %v3884 = vrot.slane %v3882, 3
        %v3885 = vshll.u32 %v1306, 16
        %v3887 = vrot.slane %v3885, 4
        %v3888 = vor.u32 %v3884, %v3887
        %v3890 = vshrl.u32 %v1308, 16
        %v3892 = vrot.slane %v3890, 3
        %v3893 = vshll.u32 %v1308, 16
        %v3895 = vrot.slane %v3893, 4
        %v3896 = vor.u32 %v3892, %v3895
        %v3897 = vsel %vm2048, %v3888, %v3896
        %v3899 = vshrl.u32 %v1436, 16
        %v3901 = vrot.slane %v3899, 3
        %v3902 = vshll.u32 %v1436, 16
        %v3904 = vrot.slane %v3902, 4
        %v3905 = vor.u32 %v3901, %v3904
        %v3907 = vshrl.u32 %v1437, 16
        %v3909 = vrot.slane %v3907, 3
        %v3910 = vshll.u32 %v1437, 16
        %v3912 = vrot.slane %v3910, 4
        %v3913 = vor.u32 %v3909, %v3912
        %v3914 = vsel %vm2048, %v3905, %v3913
        %v3916 = vshrl.u32 %v1575, 16
        %v3918 = vrot.slane %v3916, 3
        %v3919 = vshll.u32 %v1575, 16
        %v3921 = vrot.slane %v3919, 4
        %v3922 = vor.u32 %v3918, %v3921
        %v3923 = vsel %vm2048, %v3922, %v3922
        %v3925 = vshrl.u32 %v1674, 16
        %v3927 = vrot.slane %v3925, 3
        %v3928 = vshll.u32 %v1674, 16
        %v3930 = vrot.slane %v3928, 4
        %v3931 = vor.u32 %v3927, %v3930
        %v3933 = vshrl.u32 %v1676, 16
        %v3935 = vrot.slane %v3933, 3
        %v3936 = vshll.u32 %v1676, 16
        %v3938 = vrot.slane %v3936, 4
        %v3939 = vor.u32 %v3935, %v3938
        %v3940 = vsel %vm2048, %v3931, %v3939
        %v3942 = vshrl.u32 %v1804, 16
        %v3944 = vrot.slane %v3942, 3
        %v3945 = vshll.u32 %v1804, 16
        %v3947 = vrot.slane %v3945, 4
        %v3948 = vor.u32 %v3944, %v3947
        %v3950 = vshrl.u32 %v1805, 16
        %v3952 = vrot.slane %v3950, 3
        %v3953 = vshll.u32 %v1805, 16
        %v3955 = vrot.slane %v3953, 4
        %v3956 = vor.u32 %v3952, %v3955
        %v3957 = vsel %vm2048, %v3948, %v3956
        %v3959 = vshrl.u32 %v1943, 16
        %v3961 = vrot.slane %v3959, 3
        %v3962 = vshll.u32 %v1943, 16
        %v3964 = vrot.slane %v3962, 4
        %v3965 = vor.u32 %v3961, %v3964
        %v3966 = vsel %vm2048, %v3965, %v3965
        %v3968 = vshrl.u32 %v2042, 16
        %v3970 = vrot.slane %v3968, 3
        %v3971 = vshll.u32 %v2042, 16
        %v3973 = vrot.slane %v3971, 4
        %v3974 = vor.u32 %v3970, %v3973
        %v3976 = vshrl.u32 %v2044, 16
        %v3978 = vrot.slane %v3976, 3
        %v3979 = vshll.u32 %v2044, 16
        %v3981 = vrot.slane %v3979, 4
        %v3982 = vor.u32 %v3978, %v3981
        %v3983 = vsel %vm2048, %v3974, %v3982
        %v3985 = vshrl.u32 %v1069, 16
        %v3987 = vrot.slane %v3985, 3
        %v3988 = vshll.u32 %v1069, 16
        %v3990 = vrot.slane %v3988, 4
        %v3991 = vor.u32 %v3987, %v3990
        %v3993 = vshrl.u32 %v1070, 16
        %v3995 = vrot.slane %v3993, 3
        %v3996 = vshll.u32 %v1070, 16
        %v3998 = vrot.slane %v3996, 4
        %v3999 = vor.u32 %v3995, %v3998
        %v4000 = vsel %vm2048, %v3991, %v3999
        %v4002 = vshrl.u32 %v1214, 16
        %v4004 = vrot.slane %v4002, 3
        %v4005 = vshll.u32 %v1214, 16
        %v4007 = vrot.slane %v4005, 4
        %v4008 = vor.u32 %v4004, %v4007
        %v4009 = vsel %vm2048, %v4008, %v4008
        %v4011 = vshrl.u32 %v1309, 16
        %v4013 = vrot.slane %v4011, 3
        %v4014 = vshll.u32 %v1309, 16
        %v4016 = vrot.slane %v4014, 4
        %v4017 = vor.u32 %v4013, %v4016
        %v4019 = vshrl.u32 %v1311, 16
        %v4021 = vrot.slane %v4019, 3
        %v4022 = vshll.u32 %v1311, 16
        %v4024 = vrot.slane %v4022, 4
        %v4025 = vor.u32 %v4021, %v4024
        %v4026 = vsel %vm2048, %v4017, %v4025
        %v4028 = vshrl.u32 %v1438, 16
        %v4030 = vrot.slane %v4028, 3
        %v4031 = vshll.u32 %v1438, 16
        %v4033 = vrot.slane %v4031, 4
        %v4034 = vor.u32 %v4030, %v4033
        %v4036 = vshrl.u32 %v1439, 16
        %v4038 = vrot.slane %v4036, 3
        %v4039 = vshll.u32 %v1439, 16
        %v4041 = vrot.slane %v4039, 4
        %v4042 = vor.u32 %v4038, %v4041
        %v4043 = vsel %vm2048, %v4034, %v4042
        %v4045 = vshrl.u32 %v1583, 16
        %v4047 = vrot.slane %v4045, 3
        %v4048 = vshll.u32 %v1583, 16
        %v4050 = vrot.slane %v4048, 4
        %v4051 = vor.u32 %v4047, %v4050
        %v4052 = vsel %vm2048, %v4051, %v4051
        %v4054 = vshrl.u32 %v1677, 16
        %v4056 = vrot.slane %v4054, 3
        %v4057 = vshll.u32 %v1677, 16
        %v4059 = vrot.slane %v4057, 4
        %v4060 = vor.u32 %v4056, %v4059
        %v4062 = vshrl.u32 %v1679, 16
        %v4064 = vrot.slane %v4062, 3
        %v4065 = vshll.u32 %v1679, 16
        %v4067 = vrot.slane %v4065, 4
        %v4068 = vor.u32 %v4064, %v4067
        %v4069 = vsel %vm2048, %v4060, %v4068
        %v4071 = vshrl.u32 %v1806, 16
        %v4073 = vrot.slane %v4071, 3
        %v4074 = vshll.u32 %v1806, 16
        %v4076 = vrot.slane %v4074, 4
        %v4077 = vor.u32 %v4073, %v4076
        %v4079 = vshrl.u32 %v1807, 16
        %v4081 = vrot.slane %v4079, 3
        %v4082 = vshll.u32 %v1807, 16
        %v4084 = vrot.slane %v4082, 4
        %v4085 = vor.u32 %v4081, %v4084
        %v4086 = vsel %vm2048, %v4077, %v4085
        %v4088 = vshrl.u32 %v1951, 16
        %v4090 = vrot.slane %v4088, 3
        %v4091 = vshll.u32 %v1951, 16
        %v4093 = vrot.slane %v4091, 4
        %v4094 = vor.u32 %v4090, %v4093
        %v4095 = vsel %vm2048, %v4094, %v4094
        %v4097 = vshrl.u32 %v2045, 16
        %v4099 = vrot.slane %v4097, 3
        %v4100 = vshll.u32 %v2045, 16
        %v4102 = vrot.slane %v4100, 4
        %v4103 = vor.u32 %v4099, %v4102
        %v4105 = vshrl.u32 %v2047, 16
        %v4107 = vrot.slane %v4105, 3
        %v4108 = vshll.u32 %v2047, 16
        %v4110 = vrot.slane %v4108, 4
        %v4111 = vor.u32 %v4107, %v4110
        %v4112 = vsel %vm2048, %v4103, %v4111
        %p4257 = scmp.eq.s32.totalorder %s30, 0
        // Predicated region
        $region41: #{_forward.7} parent=39 // pred_check
          %p4258 = pneg %p4257
        $region42: #{_forward.7} parent=39 // pred_check_branch
          %4260 = sbr.rel (%p4258) target = $region44
        $region43: #{_forward.7} parent=39 // pred_region
          %4261 = vst [vmem:[#allocation2] sm:$0xff] 0.0
          %4262 = vst [vmem:[#allocation2 + $0x8] sm:$0xff] 0.0
          %4263 = vst [vmem:[#allocation2 + $0x10] sm:$0xff] 0.0
          %4264 = vst [vmem:[#allocation2 + $0x18] sm:$0xff] 0.0
          %4265 = vst [vmem:[#allocation2 + $0x20] sm:$0xff] 0.0
          %4266 = vst [vmem:[#allocation2 + $0x28] sm:$0xff] 0.0
          %4267 = vst [vmem:[#allocation2 + $0x30] sm:$0xff] 0.0
          %4268 = vst [vmem:[#allocation2 + $0x38] sm:$0xff] 0.0
          %4269 = vst [vmem:[#allocation2 + $0x40] sm:$0xff] 0.0
          %4270 = vst [vmem:[#allocation2 + $0x48] sm:$0xff] 0.0
          %4271 = vst [vmem:[#allocation2 + $0x50] sm:$0xff] 0.0
          %4272 = vst [vmem:[#allocation2 + $0x58] sm:$0xff] 0.0
          %4273 = vst [vmem:[#allocation2 + $0x60] sm:$0xff] 0.0
          %4274 = vst [vmem:[#allocation2 + $0x68] sm:$0xff] 0.0
          %4275 = vst [vmem:[#allocation2 + $0x70] sm:$0xff] 0.0
          %4276 = vst [vmem:[#allocation2 + $0x78] sm:$0xff] 0.0
          %4277 = vst [vmem:[#allocation2 + $0x80] sm:$0xff] 0.0
          %4278 = vst [vmem:[#allocation2 + $0x88] sm:$0xff] 0.0
          %4279 = vst [vmem:[#allocation2 + $0x90] sm:$0xff] 0.0
          %4280 = vst [vmem:[#allocation2 + $0x98] sm:$0xff] 0.0
          %4281 = vst [vmem:[#allocation2 + $0xa0] sm:$0xff] 0.0
          %4282 = vst [vmem:[#allocation2 + $0xa8] sm:$0xff] 0.0
          %4283 = vst [vmem:[#allocation2 + $0xb0] sm:$0xff] 0.0
          %4284 = vst [vmem:[#allocation2 + $0xb8] sm:$0xff] 0.0
          %4285 = vst [vmem:[#allocation2 + $0xc0] sm:$0xff] 0.0
          %4286 = vst [vmem:[#allocation2 + $0xc8] sm:$0xff] 0.0
          %4287 = vst [vmem:[#allocation2 + $0xd0] sm:$0xff] 0.0
          %4288 = vst [vmem:[#allocation2 + $0xd8] sm:$0xff] 0.0
          %4289 = vst [vmem:[#allocation2 + $0xe0] sm:$0xff] 0.0
          %4290 = vst [vmem:[#allocation2 + $0xe8] sm:$0xff] 0.0
          %4291 = vst [vmem:[#allocation2 + $0xf0] sm:$0xff] 0.0
          %4292 = vst [vmem:[#allocation2 + $0xf8] sm:$0xff] 0.0
        $region44: #{_forward.7} parent=39 // pred_fallthru
          _
        %v4293 = vld [vmem:[#allocation2] sm:$0xff]
        %v4294 = vld [vmem:[#allocation2 + $0x8] sm:$0xff]
        %v4295 = vld [vmem:[#allocation2 + $0x10] sm:$0xff]
        %v4296 = vld [vmem:[#allocation2 + $0x18] sm:$0xff]
        %v4297 = vld [vmem:[#allocation2 + $0x20] sm:$0xff]
        %v4298 = vld [vmem:[#allocation2 + $0x28] sm:$0xff]
        %v4299 = vld [vmem:[#allocation2 + $0x30] sm:$0xff]
        %v4300 = vld [vmem:[#allocation2 + $0x38] sm:$0xff]
        %v4301 = vld [vmem:[#allocation2 + $0x40] sm:$0xff]
        %v4302 = vld [vmem:[#allocation2 + $0x48] sm:$0xff]
        %v4303 = vld [vmem:[#allocation2 + $0x50] sm:$0xff]
        %v4304 = vld [vmem:[#allocation2 + $0x58] sm:$0xff]
        %v4305 = vld [vmem:[#allocation2 + $0x60] sm:$0xff]
        %v4306 = vld [vmem:[#allocation2 + $0x68] sm:$0xff]
        %v4307 = vld [vmem:[#allocation2 + $0x70] sm:$0xff]
        %v4308 = vld [vmem:[#allocation2 + $0x78] sm:$0xff]
        %v4309 = vld [vmem:[#allocation2 + $0x80] sm:$0xff]
        %v4310 = vld [vmem:[#allocation2 + $0x88] sm:$0xff]
        %v4311 = vld [vmem:[#allocation2 + $0x90] sm:$0xff]
        %v4312 = vld [vmem:[#allocation2 + $0x98] sm:$0xff]
        %v4313 = vld [vmem:[#allocation2 + $0xa0] sm:$0xff]
        %v4314 = vld [vmem:[#allocation2 + $0xa8] sm:$0xff]
        %v4315 = vld [vmem:[#allocation2 + $0xb0] sm:$0xff]
        %v4316 = vld [vmem:[#allocation2 + $0xb8] sm:$0xff]
        %v4317 = vld [vmem:[#allocation2 + $0xc0] sm:$0xff]
        %v4318 = vld [vmem:[#allocation2 + $0xc8] sm:$0xff]
        %v4319 = vld [vmem:[#allocation2 + $0xd0] sm:$0xff]
        %v4320 = vld [vmem:[#allocation2 + $0xd8] sm:$0xff]
        %v4321 = vld [vmem:[#allocation2 + $0xe0] sm:$0xff]
        %v4322 = vld [vmem:[#allocation2 + $0xe8] sm:$0xff]
        %v4323 = vld [vmem:[#allocation2 + $0xf0] sm:$0xff]
        %v4324 = vld [vmem:[#allocation2 + $0xf8] sm:$0xff]
        %v4325 = vld [vmem:[%s363] sm:$0xf]
        %v4326 = vld [vmem:[%s363 + $0x4] sm:$0xf]
        %v4327 = vld [vmem:[%s363 + $0x8] sm:$0xf]
        %v4328 = vld [vmem:[%s363 + $0xc] sm:$0xf]
        %v4329 = vld [vmem:[%s363 + $0x10] sm:$0xf]
        %v4330 = vld [vmem:[%s363 + $0x14] sm:$0xf]
        %v4331 = vld [vmem:[%s363 + $0x18] sm:$0xf]
        %v4332 = vld [vmem:[%s363 + $0x1c] sm:$0xf]
        %v4333 = vld [vmem:[%s363 + $0x20] sm:$0xf]
        %v4334 = vld [vmem:[%s363 + $0x24] sm:$0xf]
        %v4335 = vld [vmem:[%s363 + $0x28] sm:$0xf]
        %v4336 = vld [vmem:[%s363 + $0x2c] sm:$0xf]
        %v4337 = vld [vmem:[%s363 + $0x30] sm:$0xf]
        %v4338 = vld [vmem:[%s363 + $0x34] sm:$0xf]
        %v4339 = vld [vmem:[%s363 + $0x38] sm:$0xf]
        %v4340 = vld [vmem:[%s363 + $0x3c] sm:$0xf]
        %v4341 = vld [vmem:[%s363 + $0x40] sm:$0xf]
        %v4342 = vld [vmem:[%s363 + $0x44] sm:$0xf]
        %v4343 = vld [vmem:[%s363 + $0x48] sm:$0xf]
        %v4344 = vld [vmem:[%s363 + $0x4c] sm:$0xf]
        %v4345 = vld [vmem:[%s363 + $0x50] sm:$0xf]
        %v4346 = vld [vmem:[%s363 + $0x54] sm:$0xf]
        %v4347 = vld [vmem:[%s363 + $0x58] sm:$0xf]
        %v4348 = vld [vmem:[%s363 + $0x5c] sm:$0xf]
        %v4349 = vld [vmem:[%s363 + $0x60] sm:$0xf]
        %v4350 = vld [vmem:[%s363 + $0x64] sm:$0xf]
        %v4351 = vld [vmem:[%s363 + $0x68] sm:$0xf]
        %v4352 = vld [vmem:[%s363 + $0x6c] sm:$0xf]
        %v4353 = vld [vmem:[%s363 + $0x70] sm:$0xf]
        %v4354 = vld [vmem:[%s363 + $0x74] sm:$0xf]
        %v4355 = vld [vmem:[%s363 + $0x78] sm:$0xf]
        %v4356 = vld [vmem:[%s363 + $0x7c] sm:$0xf]
        %v4357 = vld [vmem:[%s363 + $0x80] sm:$0xf]
        %v4358 = vld [vmem:[%s363 + $0x84] sm:$0xf]
        %v4359 = vld [vmem:[%s363 + $0x88] sm:$0xf]
        %v4360 = vld [vmem:[%s363 + $0x8c] sm:$0xf]
        %v4361 = vld [vmem:[%s363 + $0x90] sm:$0xf]
        %v4362 = vld [vmem:[%s363 + $0x94] sm:$0xf]
        %v4363 = vld [vmem:[%s363 + $0x98] sm:$0xf]
        %v4364 = vld [vmem:[%s363 + $0x9c] sm:$0xf]
        %v4365 = vld [vmem:[%s363 + $0xa0] sm:$0xf]
        %v4366 = vld [vmem:[%s363 + $0xa4] sm:$0xf]
        %v4367 = vld [vmem:[%s363 + $0xa8] sm:$0xf]
        %v4368 = vld [vmem:[%s363 + $0xac] sm:$0xf]
        %v4369 = vld [vmem:[%s363 + $0xb0] sm:$0xf]
        %v4370 = vld [vmem:[%s363 + $0xb4] sm:$0xf]
        %v4371 = vld [vmem:[%s363 + $0xb8] sm:$0xf]
        %v4372 = vld [vmem:[%s363 + $0xbc] sm:$0xf]
        %v4373 = vld [vmem:[%s363 + $0xc0] sm:$0xf]
        %v4374 = vld [vmem:[%s363 + $0xc4] sm:$0xf]
        %v4375 = vld [vmem:[%s363 + $0xc8] sm:$0xf]
        %v4376 = vld [vmem:[%s363 + $0xcc] sm:$0xf]
        %v4377 = vld [vmem:[%s363 + $0xd0] sm:$0xf]
        %v4378 = vld [vmem:[%s363 + $0xd4] sm:$0xf]
        %v4379 = vld [vmem:[%s363 + $0xd8] sm:$0xf]
        %v4380 = vld [vmem:[%s363 + $0xdc] sm:$0xf]
        %v4381 = vld [vmem:[%s363 + $0xe0] sm:$0xf]
        %v4382 = vld [vmem:[%s363 + $0xe4] sm:$0xf]
        %v4383 = vld [vmem:[%s363 + $0xe8] sm:$0xf]
        %v4384 = vld [vmem:[%s363 + $0xec] sm:$0xf]
        %v4385 = vld [vmem:[%s363 + $0xf0] sm:$0xf]
        %v4386 = vld [vmem:[%s363 + $0xf4] sm:$0xf]
        %v4387 = vld [vmem:[%s363 + $0xf8] sm:$0xf]
        %v4388 = vld [vmem:[%s363 + $0xfc] sm:$0xf]
        %v4389 = vld [vmem:[%s363 + $0x100] sm:$0xf]
        %v4390 = vld [vmem:[%s363 + $0x104] sm:$0xf]
        %v4391 = vld [vmem:[%s363 + $0x108] sm:$0xf]
        %v4392 = vld [vmem:[%s363 + $0x10c] sm:$0xf]
        %v4393 = vld [vmem:[%s363 + $0x110] sm:$0xf]
        %v4394 = vld [vmem:[%s363 + $0x114] sm:$0xf]
        %v4395 = vld [vmem:[%s363 + $0x118] sm:$0xf]
        %v4396 = vld [vmem:[%s363 + $0x11c] sm:$0xf]
        %v4397 = vld [vmem:[%s363 + $0x120] sm:$0xf]
        %v4398 = vld [vmem:[%s363 + $0x124] sm:$0xf]
        %v4399 = vld [vmem:[%s363 + $0x128] sm:$0xf]
        %v4400 = vld [vmem:[%s363 + $0x12c] sm:$0xf]
        %v4401 = vld [vmem:[%s363 + $0x130] sm:$0xf]
        %v4402 = vld [vmem:[%s363 + $0x134] sm:$0xf]
        %v4403 = vld [vmem:[%s363 + $0x138] sm:$0xf]
        %v4404 = vld [vmem:[%s363 + $0x13c] sm:$0xf]
        %v4405 = vld [vmem:[%s363 + $0x140] sm:$0xf]
        %v4406 = vld [vmem:[%s363 + $0x144] sm:$0xf]
        %v4407 = vld [vmem:[%s363 + $0x148] sm:$0xf]
        %v4408 = vld [vmem:[%s363 + $0x14c] sm:$0xf]
        %v4409 = vld [vmem:[%s363 + $0x150] sm:$0xf]
        %v4410 = vld [vmem:[%s363 + $0x154] sm:$0xf]
        %v4411 = vld [vmem:[%s363 + $0x158] sm:$0xf]
        %v4412 = vld [vmem:[%s363 + $0x15c] sm:$0xf]
        %v4413 = vld [vmem:[%s363 + $0x160] sm:$0xf]
        %v4414 = vld [vmem:[%s363 + $0x164] sm:$0xf]
        %v4415 = vld [vmem:[%s363 + $0x168] sm:$0xf]
        %v4416 = vld [vmem:[%s363 + $0x16c] sm:$0xf]
        %v4417 = vld [vmem:[%s363 + $0x170] sm:$0xf]
        %v4418 = vld [vmem:[%s363 + $0x174] sm:$0xf]
        %v4419 = vld [vmem:[%s363 + $0x178] sm:$0xf]
        %v4420 = vld [vmem:[%s363 + $0x17c] sm:$0xf]
        %v4421 = vld [vmem:[%s363 + $0x180] sm:$0xf]
        %v4422 = vld [vmem:[%s363 + $0x184] sm:$0xf]
        %v4423 = vld [vmem:[%s363 + $0x188] sm:$0xf]
        %v4424 = vld [vmem:[%s363 + $0x18c] sm:$0xf]
        %v4425 = vld [vmem:[%s363 + $0x190] sm:$0xf]
        %v4426 = vld [vmem:[%s363 + $0x194] sm:$0xf]
        %v4427 = vld [vmem:[%s363 + $0x198] sm:$0xf]
        %v4428 = vld [vmem:[%s363 + $0x19c] sm:$0xf]
        %v4429 = vld [vmem:[%s363 + $0x1a0] sm:$0xf]
        %v4430 = vld [vmem:[%s363 + $0x1a4] sm:$0xf]
        %v4431 = vld [vmem:[%s363 + $0x1a8] sm:$0xf]
        %v4432 = vld [vmem:[%s363 + $0x1ac] sm:$0xf]
        %v4433 = vld [vmem:[%s363 + $0x1b0] sm:$0xf]
        %v4434 = vld [vmem:[%s363 + $0x1b4] sm:$0xf]
        %v4435 = vld [vmem:[%s363 + $0x1b8] sm:$0xf]
        %v4436 = vld [vmem:[%s363 + $0x1bc] sm:$0xf]
        %v4437 = vld [vmem:[%s363 + $0x1c0] sm:$0xf]
        %v4438 = vld [vmem:[%s363 + $0x1c4] sm:$0xf]
        %v4439 = vld [vmem:[%s363 + $0x1c8] sm:$0xf]
        %v4440 = vld [vmem:[%s363 + $0x1cc] sm:$0xf]
        %v4441 = vld [vmem:[%s363 + $0x1d0] sm:$0xf]
        %v4442 = vld [vmem:[%s363 + $0x1d4] sm:$0xf]
        %v4443 = vld [vmem:[%s363 + $0x1d8] sm:$0xf]
        %v4444 = vld [vmem:[%s363 + $0x1dc] sm:$0xf]
        %v4445 = vld [vmem:[%s363 + $0x1e0] sm:$0xf]
        %v4446 = vld [vmem:[%s363 + $0x1e4] sm:$0xf]
        %v4447 = vld [vmem:[%s363 + $0x1e8] sm:$0xf]
        %v4448 = vld [vmem:[%s363 + $0x1ec] sm:$0xf]
        %v4449 = vld [vmem:[%s363 + $0x1f0] sm:$0xf]
        %v4450 = vld [vmem:[%s363 + $0x1f4] sm:$0xf]
        %v4451 = vld [vmem:[%s363 + $0x1f8] sm:$0xf]
        %v4452 = vld [vmem:[%s363 + $0x1fc] sm:$0xf]
        %v4453 = vld [vmem:[%s363 + $0x200] sm:$0xf]
        %v4454 = vld [vmem:[%s363 + $0x204] sm:$0xf]
        %v4455 = vld [vmem:[%s363 + $0x208] sm:$0xf]
        %v4456 = vld [vmem:[%s363 + $0x20c] sm:$0xf]
        %v4457 = vld [vmem:[%s363 + $0x210] sm:$0xf]
        %v4458 = vld [vmem:[%s363 + $0x214] sm:$0xf]
        %v4459 = vld [vmem:[%s363 + $0x218] sm:$0xf]
        %v4460 = vld [vmem:[%s363 + $0x21c] sm:$0xf]
        %v4461 = vld [vmem:[%s363 + $0x220] sm:$0xf]
        %v4462 = vld [vmem:[%s363 + $0x224] sm:$0xf]
        %v4463 = vld [vmem:[%s363 + $0x228] sm:$0xf]
        %v4464 = vld [vmem:[%s363 + $0x22c] sm:$0xf]
        %v4465 = vld [vmem:[%s363 + $0x230] sm:$0xf]
        %v4466 = vld [vmem:[%s363 + $0x234] sm:$0xf]
        %v4467 = vld [vmem:[%s363 + $0x238] sm:$0xf]
        %v4468 = vld [vmem:[%s363 + $0x23c] sm:$0xf]
        %v4613 = vunpack.c.l.b16 %v4325
        %v4614 = vunpack.c.l.b16 %v4326
        %v4615 = vunpack.c.l.b16 %v4327
        %v4616 = vunpack.c.l.b16 %v4328
        %v4617 = vunpack.c.l.b16 %v4329
        %v4618 = vunpack.c.l.b16 %v4330
        %v4619 = vunpack.c.l.b16 %v4331
        %v4620 = vunpack.c.l.b16 %v4332
        %v4621 = vunpack.c.l.b16 %v4333
        %v4622 = vunpack.c.l.b16 %v4334
        %v4623 = vunpack.c.l.b16 %v4335
        %v4624 = vunpack.c.l.b16 %v4336
        %v4625 = vunpack.c.l.b16 %v4337
        %v4626 = vunpack.c.l.b16 %v4338
        %v4627 = vunpack.c.l.b16 %v4339
        %v4628 = vunpack.c.l.b16 %v4340
        %v4629 = vunpack.c.l.b16 %v4341
        %v4630 = vunpack.c.l.b16 %v4342
        %v4631 = vunpack.c.l.b16 %v4343
        %v4632 = vunpack.c.l.b16 %v4344
        %v4633 = vunpack.c.l.b16 %v4345
        %v4634 = vunpack.c.l.b16 %v4346
        %v4635 = vunpack.c.l.b16 %v4347
        %v4636 = vunpack.c.l.b16 %v4348
        %v4637 = vunpack.c.l.b16 %v4349
        %v4638 = vunpack.c.l.b16 %v4350
        %v4639 = vunpack.c.l.b16 %v4351
        %v4640 = vunpack.c.l.b16 %v4352
        %v4641 = vunpack.c.l.b16 %v4353
        %v4642 = vunpack.c.l.b16 %v4354
        %v4643 = vunpack.c.l.b16 %v4355
        %v4644 = vunpack.c.l.b16 %v4356
        %v4645 = vunpack.c.l.b16 %v4357
        %v4646 = vunpack.c.l.b16 %v4358
        %v4647 = vunpack.c.l.b16 %v4359
        %v4648 = vunpack.c.l.b16 %v4360
        %v4649 = vunpack.c.l.b16 %v4361
        %v4650 = vunpack.c.l.b16 %v4362
        %v4651 = vunpack.c.l.b16 %v4363
        %v4652 = vunpack.c.l.b16 %v4364
        %v4653 = vunpack.c.l.b16 %v4365
        %v4654 = vunpack.c.l.b16 %v4366
        %v4655 = vunpack.c.l.b16 %v4367
        %v4656 = vunpack.c.l.b16 %v4368
        %v4657 = vunpack.c.l.b16 %v4369
        %v4658 = vunpack.c.l.b16 %v4370
        %v4659 = vunpack.c.l.b16 %v4371
        %v4660 = vunpack.c.l.b16 %v4372
        %v4661 = vunpack.c.l.b16 %v4373
        %v4662 = vunpack.c.l.b16 %v4374
        %v4663 = vunpack.c.l.b16 %v4375
        %v4664 = vunpack.c.l.b16 %v4376
        %v4665 = vunpack.c.l.b16 %v4377
        %v4666 = vunpack.c.l.b16 %v4378
        %v4667 = vunpack.c.l.b16 %v4379
        %v4668 = vunpack.c.l.b16 %v4380
        %v4669 = vunpack.c.l.b16 %v4381
        %v4670 = vunpack.c.l.b16 %v4382
        %v4671 = vunpack.c.l.b16 %v4383
        %v4672 = vunpack.c.l.b16 %v4384
        %v4673 = vunpack.c.l.b16 %v4385
        %v4674 = vunpack.c.l.b16 %v4386
        %v4675 = vunpack.c.l.b16 %v4387
        %v4676 = vunpack.c.l.b16 %v4388
        %v4677 = vunpack.c.l.b16 %v4389
        %v4678 = vunpack.c.l.b16 %v4390
        %v4679 = vunpack.c.l.b16 %v4391
        %v4680 = vunpack.c.l.b16 %v4392
        %v4681 = vunpack.c.l.b16 %v4393
        %v4682 = vunpack.c.l.b16 %v4394
        %v4683 = vunpack.c.l.b16 %v4395
        %v4684 = vunpack.c.l.b16 %v4396
        %v4685 = vunpack.c.l.b16 %v4397
        %v4686 = vunpack.c.l.b16 %v4398
        %v4687 = vunpack.c.l.b16 %v4399
        %v4688 = vunpack.c.l.b16 %v4400
        %v4689 = vunpack.c.l.b16 %v4401
        %v4690 = vunpack.c.l.b16 %v4402
        %v4691 = vunpack.c.l.b16 %v4403
        %v4692 = vunpack.c.l.b16 %v4404
        %v4693 = vunpack.c.l.b16 %v4405
        %v4694 = vunpack.c.l.b16 %v4406
        %v4695 = vunpack.c.l.b16 %v4407
        %v4696 = vunpack.c.l.b16 %v4408
        %v4697 = vunpack.c.l.b16 %v4409
        %v4698 = vunpack.c.l.b16 %v4410
        %v4699 = vunpack.c.l.b16 %v4411
        %v4700 = vunpack.c.l.b16 %v4412
        %v4701 = vunpack.c.l.b16 %v4413
        %v4702 = vunpack.c.l.b16 %v4414
        %v4703 = vunpack.c.l.b16 %v4415
        %v4704 = vunpack.c.l.b16 %v4416
        %v4705 = vunpack.c.l.b16 %v4417
        %v4706 = vunpack.c.l.b16 %v4418
        %v4707 = vunpack.c.l.b16 %v4419
        %v4708 = vunpack.c.l.b16 %v4420
        %v4709 = vunpack.c.l.b16 %v4421
        %v4710 = vunpack.c.l.b16 %v4422
        %v4711 = vunpack.c.l.b16 %v4423
        %v4712 = vunpack.c.l.b16 %v4424
        %v4713 = vunpack.c.l.b16 %v4425
        %v4714 = vunpack.c.l.b16 %v4426
        %v4715 = vunpack.c.l.b16 %v4427
        %v4716 = vunpack.c.l.b16 %v4428
        %v4717 = vunpack.c.l.b16 %v4429
        %v4718 = vunpack.c.l.b16 %v4430
        %v4719 = vunpack.c.l.b16 %v4431
        %v4720 = vunpack.c.l.b16 %v4432
        %v4721 = vunpack.c.l.b16 %v4433
        %v4722 = vunpack.c.l.b16 %v4434
        %v4723 = vunpack.c.l.b16 %v4435
        %v4724 = vunpack.c.l.b16 %v4436
        %v4725 = vunpack.c.l.b16 %v4437
        %v4726 = vunpack.c.l.b16 %v4438
        %v4727 = vunpack.c.l.b16 %v4439
        %v4728 = vunpack.c.l.b16 %v4440
        %v4729 = vunpack.c.l.b16 %v4441
        %v4730 = vunpack.c.l.b16 %v4442
        %v4731 = vunpack.c.l.b16 %v4443
        %v4732 = vunpack.c.l.b16 %v4444
        %v4733 = vunpack.c.l.b16 %v4445
        %v4734 = vunpack.c.l.b16 %v4446
        %v4735 = vunpack.c.l.b16 %v4447
        %v4736 = vunpack.c.l.b16 %v4448
        %v4737 = vunpack.c.l.b16 %v4449
        %v4738 = vunpack.c.l.b16 %v4450
        %v4739 = vunpack.c.l.b16 %v4451
        %v4740 = vunpack.c.l.b16 %v4452
        %v4741 = vunpack.c.l.b16 %v4453
        %v4742 = vunpack.c.l.b16 %v4454
        %v4743 = vunpack.c.l.b16 %v4455
        %v4744 = vunpack.c.l.b16 %v4456
        %v4745 = vunpack.c.l.b16 %v4457
        %v4746 = vunpack.c.l.b16 %v4458
        %v4747 = vunpack.c.l.b16 %v4459
        %v4748 = vunpack.c.l.b16 %v4460
        %v4749 = vunpack.c.l.b16 %v4461
        %v4750 = vunpack.c.l.b16 %v4462
        %v4751 = vunpack.c.l.b16 %v4463
        %v4752 = vunpack.c.l.b16 %v4464
        %v4753 = vunpack.c.l.b16 %v4465
        %v4754 = vunpack.c.l.b16 %v4466
        %v4755 = vunpack.c.l.b16 %v4467
        %v4756 = vunpack.c.l.b16 %v4468
        %v4757 = vpack.c.b16 %v4614, %v4613
        %v4758 = vpack.c.b16 %v4616, %v4615
        %v4759 = vpack.c.b16 %v4618, %v4617
        %v4760 = vpack.c.b16 %v4620, %v4619
        %v4761 = vpack.c.b16 %v4622, %v4621
        %v4762 = vpack.c.b16 %v4624, %v4623
        %v4763 = vpack.c.b16 %v4626, %v4625
        %v4764 = vpack.c.b16 %v4628, %v4627
        %v4765 = vpack.c.b16 %v4630, %v4629
        %v4766 = vpack.c.b16 %v4632, %v4631
        %v4767 = vpack.c.b16 %v4634, %v4633
        %v4768 = vpack.c.b16 %v4636, %v4635
        %v4769 = vpack.c.b16 %v4638, %v4637
        %v4770 = vpack.c.b16 %v4640, %v4639
        %v4771 = vpack.c.b16 %v4642, %v4641
        %v4772 = vpack.c.b16 %v4644, %v4643
        %v4773 = vpack.c.b16 %v4646, %v4645
        %v4774 = vpack.c.b16 %v4648, %v4647
        %v4775 = vpack.c.b16 %v4650, %v4649
        %v4776 = vpack.c.b16 %v4652, %v4651
        %v4777 = vpack.c.b16 %v4654, %v4653
        %v4778 = vpack.c.b16 %v4656, %v4655
        %v4779 = vpack.c.b16 %v4658, %v4657
        %v4780 = vpack.c.b16 %v4660, %v4659
        %v4781 = vpack.c.b16 %v4662, %v4661
        %v4782 = vpack.c.b16 %v4664, %v4663
        %v4783 = vpack.c.b16 %v4666, %v4665
        %v4784 = vpack.c.b16 %v4668, %v4667
        %v4785 = vpack.c.b16 %v4670, %v4669
        %v4786 = vpack.c.b16 %v4672, %v4671
        %v4787 = vpack.c.b16 %v4674, %v4673
        %v4788 = vpack.c.b16 %v4676, %v4675
        %v4789 = vpack.c.b16 %v4678, %v4677
        %v4790 = vpack.c.b16 %v4680, %v4679
        %v4791 = vpack.c.b16 %v4682, %v4681
        %v4792 = vpack.c.b16 %v4684, %v4683
        %v4793 = vpack.c.b16 %v4686, %v4685
        %v4794 = vpack.c.b16 %v4688, %v4687
        %v4795 = vpack.c.b16 %v4690, %v4689
        %v4796 = vpack.c.b16 %v4692, %v4691
        %v4797 = vpack.c.b16 %v4694, %v4693
        %v4798 = vpack.c.b16 %v4696, %v4695
        %v4799 = vpack.c.b16 %v4698, %v4697
        %v4800 = vpack.c.b16 %v4700, %v4699
        %v4801 = vpack.c.b16 %v4702, %v4701
        %v4802 = vpack.c.b16 %v4704, %v4703
        %v4803 = vpack.c.b16 %v4706, %v4705
        %v4804 = vpack.c.b16 %v4708, %v4707
        %v4805 = vpack.c.b16 %v4710, %v4709
        %v4806 = vpack.c.b16 %v4712, %v4711
        %v4807 = vpack.c.b16 %v4714, %v4713
        %v4808 = vpack.c.b16 %v4716, %v4715
        %v4809 = vpack.c.b16 %v4718, %v4717
        %v4810 = vpack.c.b16 %v4720, %v4719
        %v4811 = vpack.c.b16 %v4722, %v4721
        %v4812 = vpack.c.b16 %v4724, %v4723
        %v4813 = vpack.c.b16 %v4726, %v4725
        %v4814 = vpack.c.b16 %v4728, %v4727
        %v4815 = vpack.c.b16 %v4730, %v4729
        %v4816 = vpack.c.b16 %v4732, %v4731
        %v4817 = vpack.c.b16 %v4734, %v4733
        %v4818 = vpack.c.b16 %v4736, %v4735
        %v4819 = vpack.c.b16 %v4738, %v4737
        %v4820 = vpack.c.b16 %v4740, %v4739
        %v4821 = vpack.c.b16 %v4742, %v4741
        %v4822 = vpack.c.b16 %v4744, %v4743
        %v4823 = vpack.c.b16 %v4746, %v4745
        %v4824 = vpack.c.b16 %v4748, %v4747
        %v4825 = vpack.c.b16 %v4750, %v4749
        %v4826 = vpack.c.b16 %v4752, %v4751
        %v4827 = vpack.c.b16 %v4754, %v4753
        %v4828 = vpack.c.b16 %v4756, %v4755
        %4901 = vmatprep.subr.bf16.mxu0 0
        %4902 = vmatpush1.bf16.msra.mxu0 %v4764
        %4903 = vmatprep.subr.bf16.mxu0 0
        %4904 = vmatpush1.bf16.msra.mxu0 %v4763
        %4905 = vmatprep.subr.bf16.mxu0 0
        %4906 = vmatpush1.bf16.msra.mxu0 %v4762
        %4907 = vmatprep.subr.bf16.mxu0 0
        %4908 = vmatpush1.bf16.msra.mxu0 %v4761
        %4909 = vmatprep.subr.bf16.mxu0 0
        %4910 = vmatpush1.bf16.msra.mxu0 %v4760
        %4911 = vmatprep.subr.bf16.mxu0 0
        %4912 = vmatpush1.bf16.msra.mxu0 %v4759
        %4913 = vmatprep.subr.bf16.mxu0 0
        %4914 = vmatpush1.bf16.msra.mxu0 %v4758
        %4915 = vmatprep.subr.bf16.mxu0 0
        %4916 = vmatpush1.bf16.msra.mxu0 %v4757
        %4917 = vmatprep.subr.bf16.mxu0 0
        %4918 = vmatpush2.bf16.msra.mxu0 %v4772
        %4919 = vmatprep.subr.bf16.mxu0 0
        %4920 = vmatpush2.bf16.msra.mxu0 %v4771
        %4921 = vmatprep.subr.bf16.mxu0 0
        %4922 = vmatpush2.bf16.msra.mxu0 %v4770
        %4923 = vmatprep.subr.bf16.mxu0 0
        %4924 = vmatpush2.bf16.msra.mxu0 %v4769
        %4925 = vmatprep.subr.bf16.mxu0 0
        %4926 = vmatpush2.bf16.msra.mxu0 %v4768
        %4927 = vmatprep.subr.bf16.mxu0 0
        %4928 = vmatpush2.bf16.msra.mxu0 %v4767
        %4929 = vmatprep.subr.bf16.mxu0 0
        %4930 = vmatpush2.bf16.msra.mxu0 %v4766
        %4931 = vmatprep.subr.bf16.mxu0 0
        %4932 = vmatpush2.bf16.msra.mxu0 %v4765
        %4933 = vmatprep.mubr.bf16.mxu0 %v2074
        %4934 = vmatmul.mubr.bf16.gmra.mxu0 %v2065
        %v4935 = vpop.f32.mrf.mxu0
        %v4936 = vadd.f32 0.0, %v4935
        %v4937 = vpop.f32.mrf.mxu0
        %v4938 = vpop.f32.mrf.mxu0
        %v4939 = vadd.f32 0.0, %v4938
        %v4940 = vpop.f32.mrf.mxu0
        %4941 = vmatprep.mubr.bf16.mxu0 %v2203
        %4942 = vmatmul.mubr.bf16.gmra.mxu0 %v2194
        %v4943 = vpop.f32.mrf.mxu0
        %v4944 = vadd.f32 0.0, %v4943
        %v4945 = vpop.f32.mrf.mxu0
        %v4946 = vpop.f32.mrf.mxu0
        %v4947 = vadd.f32 0.0, %v4946
        %v4948 = vpop.f32.mrf.mxu0
        %4949 = vmatprep.mubr.bf16.mxu0 %v2332
        %4950 = vmatmul.mubr.bf16.gmra.mxu0 %v2323
        %v4951 = vpop.f32.mrf.mxu0
        %v4952 = vadd.f32 0.0, %v4951
        %v4953 = vpop.f32.mrf.mxu0
        %v4954 = vpop.f32.mrf.mxu0
        %v4955 = vadd.f32 0.0, %v4954
        %v4956 = vpop.f32.mrf.mxu0
        %4957 = vmatprep.mubr.bf16.mxu0 %v2461
        %4958 = vmatmul.mubr.bf16.gmra.mxu0 %v2452
        %v4959 = vpop.f32.mrf.mxu0
        %v4960 = vadd.f32 0.0, %v4959
        %v4961 = vpop.f32.mrf.mxu0
        %v4962 = vpop.f32.mrf.mxu0
        %v4963 = vadd.f32 0.0, %v4962
        %v4964 = vpop.f32.mrf.mxu0
        %4965 = vmatprep.mubr.bf16.mxu0 %v2590
        %4966 = vmatmul.mubr.bf16.gmra.mxu0 %v2581
        %v4967 = vpop.f32.mrf.mxu0
        %v4968 = vadd.f32 0.0, %v4967
        %v4969 = vpop.f32.mrf.mxu0
        %v4970 = vpop.f32.mrf.mxu0
        %v4971 = vadd.f32 0.0, %v4970
        %v4972 = vpop.f32.mrf.mxu0
        %4973 = vmatprep.mubr.bf16.mxu0 %v2719
        %4974 = vmatmul.mubr.bf16.gmra.mxu0 %v2710
        %v4975 = vpop.f32.mrf.mxu0
        %v4976 = vadd.f32 0.0, %v4975
        %v4977 = vpop.f32.mrf.mxu0
        %v4978 = vpop.f32.mrf.mxu0
        %v4979 = vadd.f32 0.0, %v4978
        %v4980 = vpop.f32.mrf.mxu0
        %4981 = vmatprep.mubr.bf16.mxu0 %v2848
        %4982 = vmatmul.mubr.bf16.gmra.mxu0 %v2839
        %v4983 = vpop.f32.mrf.mxu0
        %v4984 = vadd.f32 0.0, %v4983
        %v4985 = vpop.f32.mrf.mxu0
        %v4986 = vpop.f32.mrf.mxu0
        %v4987 = vadd.f32 0.0, %v4986
        %v4988 = vpop.f32.mrf.mxu0
        %4989 = vmatprep.mubr.bf16.mxu0 %v2977
        %4990 = vmatmul.mubr.bf16.gmra.mxu0 %v2968
        %v4991 = vpop.f32.mrf.mxu0
        %v4992 = vadd.f32 0.0, %v4991
        %v4993 = vpop.f32.mrf.mxu0
        %v4994 = vpop.f32.mrf.mxu0
        %v4995 = vadd.f32 0.0, %v4994
        %v4996 = vpop.f32.mrf.mxu0
        %4997 = vmatprep.mubr.bf16.mxu0 %v3106
        %4998 = vmatmul.mubr.bf16.gmra.mxu0 %v3097
        %v4999 = vpop.f32.mrf.mxu0
        %v5000 = vadd.f32 0.0, %v4999
        %v5001 = vpop.f32.mrf.mxu0
        %v5002 = vpop.f32.mrf.mxu0
        %v5003 = vadd.f32 0.0, %v5002
        %v5004 = vpop.f32.mrf.mxu0
        %5005 = vmatprep.mubr.bf16.mxu0 %v3235
        %5006 = vmatmul.mubr.bf16.gmra.mxu0 %v3226
        %v5007 = vpop.f32.mrf.mxu0
        %v5008 = vadd.f32 0.0, %v5007
        %v5009 = vpop.f32.mrf.mxu0
        %v5010 = vpop.f32.mrf.mxu0
        %v5011 = vadd.f32 0.0, %v5010
        %v5012 = vpop.f32.mrf.mxu0
        %5013 = vmatprep.mubr.bf16.mxu0 %v3364
        %5014 = vmatmul.mubr.bf16.gmra.mxu0 %v3355
        %v5015 = vpop.f32.mrf.mxu0
        %v5016 = vadd.f32 0.0, %v5015
        %v5017 = vpop.f32.mrf.mxu0
        %v5018 = vpop.f32.mrf.mxu0
        %v5019 = vadd.f32 0.0, %v5018
        %v5020 = vpop.f32.mrf.mxu0
        %5021 = vmatprep.mubr.bf16.mxu0 %v3493
        %5022 = vmatmul.mubr.bf16.gmra.mxu0 %v3484
        %v5023 = vpop.f32.mrf.mxu0
        %v5024 = vadd.f32 0.0, %v5023
        %v5025 = vpop.f32.mrf.mxu0
        %v5026 = vpop.f32.mrf.mxu0
        %v5027 = vadd.f32 0.0, %v5026
        %v5028 = vpop.f32.mrf.mxu0
        %5029 = vmatprep.mubr.bf16.mxu0 %v3622
        %5030 = vmatmul.mubr.bf16.gmra.mxu0 %v3613
        %v5031 = vpop.f32.mrf.mxu0
        %v5032 = vadd.f32 0.0, %v5031
        %v5033 = vpop.f32.mrf.mxu0
        %v5034 = vpop.f32.mrf.mxu0
        %v5035 = vadd.f32 0.0, %v5034
        %v5036 = vpop.f32.mrf.mxu0
        %5037 = vmatprep.mubr.bf16.mxu0 %v3751
        %5038 = vmatmul.mubr.bf16.gmra.mxu0 %v3742
        %v5039 = vpop.f32.mrf.mxu0
        %v5040 = vadd.f32 0.0, %v5039
        %v5041 = vpop.f32.mrf.mxu0
        %v5042 = vpop.f32.mrf.mxu0
        %v5043 = vadd.f32 0.0, %v5042
        %v5044 = vpop.f32.mrf.mxu0
        %5045 = vmatprep.mubr.bf16.mxu0 %v3880
        %5046 = vmatmul.mubr.bf16.gmra.mxu0 %v3871
        %v5047 = vpop.f32.mrf.mxu0
        %v5048 = vadd.f32 0.0, %v5047
        %v5049 = vpop.f32.mrf.mxu0
        %v5050 = vpop.f32.mrf.mxu0
        %v5051 = vadd.f32 0.0, %v5050
        %v5052 = vpop.f32.mrf.mxu0
        %5053 = vmatprep.mubr.bf16.mxu0 %v4009
        %5054 = vmatmul.mubr.bf16.gmra.mxu0 %v4000
        %v5055 = vpop.f32.mrf.mxu0
        %v5056 = vadd.f32 0.0, %v5055
        %v5057 = vpop.f32.mrf.mxu0
        %v5058 = vpop.f32.mrf.mxu0
        %v5059 = vadd.f32 0.0, %v5058
        %v5060 = vpop.f32.mrf.mxu0
        %5061 = vdwg.mxu0
        %5062 = vmatprep.subr.bf16.mxu0 0
        %5063 = vmatpush1.bf16.msra.mxu0 %v4780
        %5064 = vmatprep.subr.bf16.mxu0 0
        %5065 = vmatpush1.bf16.msra.mxu0 %v4779
        %5066 = vmatprep.subr.bf16.mxu0 0
        %5067 = vmatpush1.bf16.msra.mxu0 %v4778
        %5068 = vmatprep.subr.bf16.mxu0 0
        %5069 = vmatpush1.bf16.msra.mxu0 %v4777
        %5070 = vmatprep.subr.bf16.mxu0 0
        %5071 = vmatpush1.bf16.msra.mxu0 %v4776
        %5072 = vmatprep.subr.bf16.mxu0 0
        %5073 = vmatpush1.bf16.msra.mxu0 %v4775
        %5074 = vmatprep.subr.bf16.mxu0 0
        %5075 = vmatpush1.bf16.msra.mxu0 %v4774
        %5076 = vmatprep.subr.bf16.mxu0 0
        %5077 = vmatpush1.bf16.msra.mxu0 %v4773
        %5078 = vmatprep.subr.bf16.mxu0 0
        %5079 = vmatpush2.bf16.msra.mxu0 %v4788
        %5080 = vmatprep.subr.bf16.mxu0 0
        %5081 = vmatpush2.bf16.msra.mxu0 %v4787
        %5082 = vmatprep.subr.bf16.mxu0 0
        %5083 = vmatpush2.bf16.msra.mxu0 %v4786
        %5084 = vmatprep.subr.bf16.mxu0 0
        %5085 = vmatpush2.bf16.msra.mxu0 %v4785
        %5086 = vmatprep.subr.bf16.mxu0 0
        %5087 = vmatpush2.bf16.msra.mxu0 %v4784
        %5088 = vmatprep.subr.bf16.mxu0 0
        %5089 = vmatpush2.bf16.msra.mxu0 %v4783
        %5090 = vmatprep.subr.bf16.mxu0 0
        %5091 = vmatpush2.bf16.msra.mxu0 %v4782
        %5092 = vmatprep.subr.bf16.mxu0 0
        %5093 = vmatpush2.bf16.msra.mxu0 %v4781
        %5094 = vmatprep.mubr.bf16.mxu0 %v2108
        %5095 = vmatmul.mubr.bf16.gmra.mxu0 %v2091
        %v5096 = vpop.f32.mrf.mxu0
        %v5097 = vadd.f32 %v4936, %v5096
        %v5098 = vpop.f32.mrf.mxu0
        %v5099 = vpop.f32.mrf.mxu0
        %v5100 = vadd.f32 %v4939, %v5099
        %v5101 = vpop.f32.mrf.mxu0
        %5102 = vmatprep.mubr.bf16.mxu0 %v2237
        %5103 = vmatmul.mubr.bf16.gmra.mxu0 %v2220
        %v5104 = vpop.f32.mrf.mxu0
        %v5105 = vadd.f32 %v4944, %v5104
        %v5106 = vpop.f32.mrf.mxu0
        %v5107 = vpop.f32.mrf.mxu0
        %v5108 = vadd.f32 %v4947, %v5107
        %v5109 = vpop.f32.mrf.mxu0
        %5110 = vmatprep.mubr.bf16.mxu0 %v2366
        %5111 = vmatmul.mubr.bf16.gmra.mxu0 %v2349
        %v5112 = vpop.f32.mrf.mxu0
        %v5113 = vadd.f32 %v4952, %v5112
        %v5114 = vpop.f32.mrf.mxu0
        %v5115 = vpop.f32.mrf.mxu0
        %v5116 = vadd.f32 %v4955, %v5115
        %v5117 = vpop.f32.mrf.mxu0
        %5118 = vmatprep.mubr.bf16.mxu0 %v2495
        %5119 = vmatmul.mubr.bf16.gmra.mxu0 %v2478
        %v5120 = vpop.f32.mrf.mxu0
        %v5121 = vadd.f32 %v4960, %v5120
        %v5122 = vpop.f32.mrf.mxu0
        %v5123 = vpop.f32.mrf.mxu0
        %v5124 = vadd.f32 %v4963, %v5123
        %v5125 = vpop.f32.mrf.mxu0
        %5126 = vmatprep.mubr.bf16.mxu0 %v2624
        %5127 = vmatmul.mubr.bf16.gmra.mxu0 %v2607
        %v5128 = vpop.f32.mrf.mxu0
        %v5129 = vadd.f32 %v4968, %v5128
        %v5130 = vpop.f32.mrf.mxu0
        %v5131 = vpop.f32.mrf.mxu0
        %v5132 = vadd.f32 %v4971, %v5131
        %v5133 = vpop.f32.mrf.mxu0
        %5134 = vmatprep.mubr.bf16.mxu0 %v2753
        %5135 = vmatmul.mubr.bf16.gmra.mxu0 %v2736
        %v5136 = vpop.f32.mrf.mxu0
        %v5137 = vadd.f32 %v4976, %v5136
        %v5138 = vpop.f32.mrf.mxu0
        %v5139 = vpop.f32.mrf.mxu0
        %v5140 = vadd.f32 %v4979, %v5139
        %v5141 = vpop.f32.mrf.mxu0
        %5142 = vmatprep.mubr.bf16.mxu0 %v2882
        %5143 = vmatmul.mubr.bf16.gmra.mxu0 %v2865
        %v5144 = vpop.f32.mrf.mxu0
        %v5145 = vadd.f32 %v4984, %v5144
        %v5146 = vpop.f32.mrf.mxu0
        %v5147 = vpop.f32.mrf.mxu0
        %v5148 = vadd.f32 %v4987, %v5147
        %v5149 = vpop.f32.mrf.mxu0
        %5150 = vmatprep.mubr.bf16.mxu0 %v3011
        %5151 = vmatmul.mubr.bf16.gmra.mxu0 %v2994
        %v5152 = vpop.f32.mrf.mxu0
        %v5153 = vadd.f32 %v4992, %v5152
        %v5154 = vpop.f32.mrf.mxu0
        %v5155 = vpop.f32.mrf.mxu0
        %v5156 = vadd.f32 %v4995, %v5155
        %v5157 = vpop.f32.mrf.mxu0
        %5158 = vmatprep.mubr.bf16.mxu0 %v3140
        %5159 = vmatmul.mubr.bf16.gmra.mxu0 %v3123
        %v5160 = vpop.f32.mrf.mxu0
        %v5161 = vadd.f32 %v5000, %v5160
        %v5162 = vpop.f32.mrf.mxu0
        %v5163 = vpop.f32.mrf.mxu0
        %v5164 = vadd.f32 %v5003, %v5163
        %v5165 = vpop.f32.mrf.mxu0
        %5166 = vmatprep.mubr.bf16.mxu0 %v3269
        %5167 = vmatmul.mubr.bf16.gmra.mxu0 %v3252
        %v5168 = vpop.f32.mrf.mxu0
        %v5169 = vadd.f32 %v5008, %v5168
        %v5170 = vpop.f32.mrf.mxu0
        %v5171 = vpop.f32.mrf.mxu0
        %v5172 = vadd.f32 %v5011, %v5171
        %v5173 = vpop.f32.mrf.mxu0
        %5174 = vmatprep.mubr.bf16.mxu0 %v3398
        %5175 = vmatmul.mubr.bf16.gmra.mxu0 %v3381
        %v5176 = vpop.f32.mrf.mxu0
        %v5177 = vadd.f32 %v5016, %v5176
        %v5178 = vpop.f32.mrf.mxu0
        %v5179 = vpop.f32.mrf.mxu0
        %v5180 = vadd.f32 %v5019, %v5179
        %v5181 = vpop.f32.mrf.mxu0
        %5182 = vmatprep.mubr.bf16.mxu0 %v3527
        %5183 = vmatmul.mubr.bf16.gmra.mxu0 %v3510
        %v5184 = vpop.f32.mrf.mxu0
        %v5185 = vadd.f32 %v5024, %v5184
        %v5186 = vpop.f32.mrf.mxu0
        %v5187 = vpop.f32.mrf.mxu0
        %v5188 = vadd.f32 %v5027, %v5187
        %v5189 = vpop.f32.mrf.mxu0
        %5190 = vmatprep.mubr.bf16.mxu0 %v3656
        %5191 = vmatmul.mubr.bf16.gmra.mxu0 %v3639
        %v5192 = vpop.f32.mrf.mxu0
        %v5193 = vadd.f32 %v5032, %v5192
        %v5194 = vpop.f32.mrf.mxu0
        %v5195 = vpop.f32.mrf.mxu0
        %v5196 = vadd.f32 %v5035, %v5195
        %v5197 = vpop.f32.mrf.mxu0
        %5198 = vmatprep.mubr.bf16.mxu0 %v3785
        %5199 = vmatmul.mubr.bf16.gmra.mxu0 %v3768
        %v5200 = vpop.f32.mrf.mxu0
        %v5201 = vadd.f32 %v5040, %v5200
        %v5202 = vpop.f32.mrf.mxu0
        %v5203 = vpop.f32.mrf.mxu0
        %v5204 = vadd.f32 %v5043, %v5203
        %v5205 = vpop.f32.mrf.mxu0
        %5206 = vmatprep.mubr.bf16.mxu0 %v3914
        %5207 = vmatmul.mubr.bf16.gmra.mxu0 %v3897
        %v5208 = vpop.f32.mrf.mxu0
        %v5209 = vadd.f32 %v5048, %v5208
        %v5210 = vpop.f32.mrf.mxu0
        %v5211 = vpop.f32.mrf.mxu0
        %v5212 = vadd.f32 %v5051, %v5211
        %v5213 = vpop.f32.mrf.mxu0
        %5214 = vmatprep.mubr.bf16.mxu0 %v4043
        %5215 = vmatmul.mubr.bf16.gmra.mxu0 %v4026
        %v5216 = vpop.f32.mrf.mxu0
        %v5217 = vadd.f32 %v5056, %v5216
        %v5218 = vpop.f32.mrf.mxu0
        %v5219 = vpop.f32.mrf.mxu0
        %v5220 = vadd.f32 %v5059, %v5219
        %v5221 = vpop.f32.mrf.mxu0
        %5222 = vdwg.mxu0
        %5223 = vmatprep.subr.bf16.mxu0 0
        %5224 = vmatpush1.bf16.msra.mxu0 %v4796
        %5225 = vmatprep.subr.bf16.mxu0 0
        %5226 = vmatpush1.bf16.msra.mxu0 %v4795
        %5227 = vmatprep.subr.bf16.mxu0 0
        %5228 = vmatpush1.bf16.msra.mxu0 %v4794
        %5229 = vmatprep.subr.bf16.mxu0 0
        %5230 = vmatpush1.bf16.msra.mxu0 %v4793
        %5231 = vmatprep.subr.bf16.mxu0 0
        %5232 = vmatpush1.bf16.msra.mxu0 %v4792
        %5233 = vmatprep.subr.bf16.mxu0 0
        %5234 = vmatpush1.bf16.msra.mxu0 %v4791
        %5235 = vmatprep.subr.bf16.mxu0 0
        %5236 = vmatpush1.bf16.msra.mxu0 %v4790
        %5237 = vmatprep.subr.bf16.mxu0 0
        %5238 = vmatpush1.bf16.msra.mxu0 %v4789
        %5239 = vmatprep.subr.bf16.mxu0 0
        %5240 = vmatpush2.bf16.msra.mxu0 %v4804
        %5241 = vmatprep.subr.bf16.mxu0 0
        %5242 = vmatpush2.bf16.msra.mxu0 %v4803
        %5243 = vmatprep.subr.bf16.mxu0 0
        %5244 = vmatpush2.bf16.msra.mxu0 %v4802
        %5245 = vmatprep.subr.bf16.mxu0 0
        %5246 = vmatpush2.bf16.msra.mxu0 %v4801
        %5247 = vmatprep.subr.bf16.mxu0 0
        %5248 = vmatpush2.bf16.msra.mxu0 %v4800
        %5249 = vmatprep.subr.bf16.mxu0 0
        %5250 = vmatpush2.bf16.msra.mxu0 %v4799
        %5251 = vmatprep.subr.bf16.mxu0 0
        %5252 = vmatpush2.bf16.msra.mxu0 %v4798
        %5253 = vmatprep.subr.bf16.mxu0 0
        %5254 = vmatpush2.bf16.msra.mxu0 %v4797
        %5255 = vmatprep.mubr.bf16.mxu0 %v2134
        %5256 = vmatmul.mubr.bf16.gmra.mxu0 %v2117
        %v5257 = vpop.f32.mrf.mxu0
        %v5258 = vadd.f32 %v5097, %v5257
        %v5259 = vpop.f32.mrf.mxu0
        %v5260 = vpop.f32.mrf.mxu0
        %v5261 = vadd.f32 %v5100, %v5260
        %v5262 = vpop.f32.mrf.mxu0
        %5263 = vmatprep.mubr.bf16.mxu0 %v2263
        %5264 = vmatmul.mubr.bf16.gmra.mxu0 %v2246
        %v5265 = vpop.f32.mrf.mxu0
        %v5266 = vadd.f32 %v5105, %v5265
        %v5267 = vpop.f32.mrf.mxu0
        %v5268 = vpop.f32.mrf.mxu0
        %v5269 = vadd.f32 %v5108, %v5268
        %v5270 = vpop.f32.mrf.mxu0
        %5271 = vmatprep.mubr.bf16.mxu0 %v2392
        %5272 = vmatmul.mubr.bf16.gmra.mxu0 %v2375
        %v5273 = vpop.f32.mrf.mxu0
        %v5274 = vadd.f32 %v5113, %v5273
        %v5275 = vpop.f32.mrf.mxu0
        %v5276 = vpop.f32.mrf.mxu0
        %v5277 = vadd.f32 %v5116, %v5276
        %v5278 = vpop.f32.mrf.mxu0
        %5279 = vmatprep.mubr.bf16.mxu0 %v2521
        %5280 = vmatmul.mubr.bf16.gmra.mxu0 %v2504
        %v5281 = vpop.f32.mrf.mxu0
        %v5282 = vadd.f32 %v5121, %v5281
        %v5283 = vpop.f32.mrf.mxu0
        %v5284 = vpop.f32.mrf.mxu0
        %v5285 = vadd.f32 %v5124, %v5284
        %v5286 = vpop.f32.mrf.mxu0
        %5287 = vmatprep.mubr.bf16.mxu0 %v2650
        %5288 = vmatmul.mubr.bf16.gmra.mxu0 %v2633
        %v5289 = vpop.f32.mrf.mxu0
        %v5290 = vadd.f32 %v5129, %v5289
        %v5291 = vpop.f32.mrf.mxu0
        %v5292 = vpop.f32.mrf.mxu0
        %v5293 = vadd.f32 %v5132, %v5292
        %v5294 = vpop.f32.mrf.mxu0
        %5295 = vmatprep.mubr.bf16.mxu0 %v2779
        %5296 = vmatmul.mubr.bf16.gmra.mxu0 %v2762
        %v5297 = vpop.f32.mrf.mxu0
        %v5298 = vadd.f32 %v5137, %v5297
        %v5299 = vpop.f32.mrf.mxu0
        %v5300 = vpop.f32.mrf.mxu0
        %v5301 = vadd.f32 %v5140, %v5300
        %v5302 = vpop.f32.mrf.mxu0
        %5303 = vmatprep.mubr.bf16.mxu0 %v2908
        %5304 = vmatmul.mubr.bf16.gmra.mxu0 %v2891
        %v5305 = vpop.f32.mrf.mxu0
        %v5306 = vadd.f32 %v5145, %v5305
        %v5307 = vpop.f32.mrf.mxu0
        %v5308 = vpop.f32.mrf.mxu0
        %v5309 = vadd.f32 %v5148, %v5308
        %v5310 = vpop.f32.mrf.mxu0
        %5311 = vmatprep.mubr.bf16.mxu0 %v3037
        %5312 = vmatmul.mubr.bf16.gmra.mxu0 %v3020
        %v5313 = vpop.f32.mrf.mxu0
        %v5314 = vadd.f32 %v5153, %v5313
        %v5315 = vpop.f32.mrf.mxu0
        %v5316 = vpop.f32.mrf.mxu0
        %v5317 = vadd.f32 %v5156, %v5316
        %v5318 = vpop.f32.mrf.mxu0
        %5319 = vmatprep.mubr.bf16.mxu0 %v3166
        %5320 = vmatmul.mubr.bf16.gmra.mxu0 %v3149
        %v5321 = vpop.f32.mrf.mxu0
        %v5322 = vadd.f32 %v5161, %v5321
        %v5323 = vpop.f32.mrf.mxu0
        %v5324 = vpop.f32.mrf.mxu0
        %v5325 = vadd.f32 %v5164, %v5324
        %v5326 = vpop.f32.mrf.mxu0
        %5327 = vmatprep.mubr.bf16.mxu0 %v3295
        %5328 = vmatmul.mubr.bf16.gmra.mxu0 %v3278
        %v5329 = vpop.f32.mrf.mxu0
        %v5330 = vadd.f32 %v5169, %v5329
        %v5331 = vpop.f32.mrf.mxu0
        %v5332 = vpop.f32.mrf.mxu0
        %v5333 = vadd.f32 %v5172, %v5332
        %v5334 = vpop.f32.mrf.mxu0
        %5335 = vmatprep.mubr.bf16.mxu0 %v3424
        %5336 = vmatmul.mubr.bf16.gmra.mxu0 %v3407
        %v5337 = vpop.f32.mrf.mxu0
        %v5338 = vadd.f32 %v5177, %v5337
        %v5339 = vpop.f32.mrf.mxu0
        %v5340 = vpop.f32.mrf.mxu0
        %v5341 = vadd.f32 %v5180, %v5340
        %v5342 = vpop.f32.mrf.mxu0
        %5343 = vmatprep.mubr.bf16.mxu0 %v3553
        %5344 = vmatmul.mubr.bf16.gmra.mxu0 %v3536
        %v5345 = vpop.f32.mrf.mxu0
        %v5346 = vadd.f32 %v5185, %v5345
        %v5347 = vpop.f32.mrf.mxu0
        %v5348 = vpop.f32.mrf.mxu0
        %v5349 = vadd.f32 %v5188, %v5348
        %v5350 = vpop.f32.mrf.mxu0
        %5351 = vmatprep.mubr.bf16.mxu0 %v3682
        %5352 = vmatmul.mubr.bf16.gmra.mxu0 %v3665
        %v5353 = vpop.f32.mrf.mxu0
        %v5354 = vadd.f32 %v5193, %v5353
        %v5355 = vpop.f32.mrf.mxu0
        %v5356 = vpop.f32.mrf.mxu0
        %v5357 = vadd.f32 %v5196, %v5356
        %v5358 = vpop.f32.mrf.mxu0
        %5359 = vmatprep.mubr.bf16.mxu0 %v3811
        %5360 = vmatmul.mubr.bf16.gmra.mxu0 %v3794
        %v5361 = vpop.f32.mrf.mxu0
        %v5362 = vadd.f32 %v5201, %v5361
        %v5363 = vpop.f32.mrf.mxu0
        %v5364 = vpop.f32.mrf.mxu0
        %v5365 = vadd.f32 %v5204, %v5364
        %v5366 = vpop.f32.mrf.mxu0
        %5367 = vmatprep.mubr.bf16.mxu0 %v3940
        %5368 = vmatmul.mubr.bf16.gmra.mxu0 %v3923
        %v5369 = vpop.f32.mrf.mxu0
        %v5370 = vadd.f32 %v5209, %v5369
        %v5371 = vpop.f32.mrf.mxu0
        %v5372 = vpop.f32.mrf.mxu0
        %v5373 = vadd.f32 %v5212, %v5372
        %v5374 = vpop.f32.mrf.mxu0
        %5375 = vmatprep.mubr.bf16.mxu0 %v4069
        %5376 = vmatmul.mubr.bf16.gmra.mxu0 %v4052
        %v5377 = vpop.f32.mrf.mxu0
        %v5378 = vadd.f32 %v5217, %v5377
        %v5379 = vpop.f32.mrf.mxu0
        %v5380 = vpop.f32.mrf.mxu0
        %v5381 = vadd.f32 %v5220, %v5380
        %v5382 = vpop.f32.mrf.mxu0
        %5383 = vdwg.mxu0
        %5384 = vmatprep.subr.bf16.mxu0 0
        %5385 = vmatpush1.bf16.msra.mxu0 %v4812
        %5386 = vmatprep.subr.bf16.mxu0 0
        %5387 = vmatpush1.bf16.msra.mxu0 %v4811
        %5388 = vmatprep.subr.bf16.mxu0 0
        %5389 = vmatpush1.bf16.msra.mxu0 %v4810
        %5390 = vmatprep.subr.bf16.mxu0 0
        %5391 = vmatpush1.bf16.msra.mxu0 %v4809
        %5392 = vmatprep.subr.bf16.mxu0 0
        %5393 = vmatpush1.bf16.msra.mxu0 %v4808
        %5394 = vmatprep.subr.bf16.mxu0 0
        %5395 = vmatpush1.bf16.msra.mxu0 %v4807
        %5396 = vmatprep.subr.bf16.mxu0 0
        %5397 = vmatpush1.bf16.msra.mxu0 %v4806
        %5398 = vmatprep.subr.bf16.mxu0 0
        %5399 = vmatpush1.bf16.msra.mxu0 %v4805
        %5400 = vmatprep.subr.bf16.mxu0 0
        %5401 = vmatpush2.bf16.msra.mxu0 %v4820
        %5402 = vmatprep.subr.bf16.mxu0 0
        %5403 = vmatpush2.bf16.msra.mxu0 %v4819
        %5404 = vmatprep.subr.bf16.mxu0 0
        %5405 = vmatpush2.bf16.msra.mxu0 %v4818
        %5406 = vmatprep.subr.bf16.mxu0 0
        %5407 = vmatpush2.bf16.msra.mxu0 %v4817
        %5408 = vmatprep.subr.bf16.mxu0 0
        %5409 = vmatpush2.bf16.msra.mxu0 %v4816
        %5410 = vmatprep.subr.bf16.mxu0 0
        %5411 = vmatpush2.bf16.msra.mxu0 %v4815
        %5412 = vmatprep.subr.bf16.mxu0 0
        %5413 = vmatpush2.bf16.msra.mxu0 %v4814
        %5414 = vmatprep.subr.bf16.mxu0 0
        %5415 = vmatpush2.bf16.msra.mxu0 %v4813
        %5416 = vmatprep.mubr.bf16.mxu0 %v2160
        %5417 = vmatmul.mubr.bf16.gmra.mxu0 %v2151
        %v5418 = vpop.f32.mrf.mxu0
        %v5419 = vadd.f32 %v5258, %v5418
        %v5420 = vpop.f32.mrf.mxu0
        %v5421 = vpop.f32.mrf.mxu0
        %v5422 = vadd.f32 %v5261, %v5421
        %v5423 = vpop.f32.mrf.mxu0
        %5424 = vmatprep.mubr.bf16.mxu0 %v2289
        %5425 = vmatmul.mubr.bf16.gmra.mxu0 %v2280
        %v5426 = vpop.f32.mrf.mxu0
        %v5427 = vadd.f32 %v5266, %v5426
        %v5428 = vpop.f32.mrf.mxu0
        %v5429 = vpop.f32.mrf.mxu0
        %v5430 = vadd.f32 %v5269, %v5429
        %v5431 = vpop.f32.mrf.mxu0
        %5432 = vmatprep.mubr.bf16.mxu0 %v2418
        %5433 = vmatmul.mubr.bf16.gmra.mxu0 %v2409
        %v5434 = vpop.f32.mrf.mxu0
        %v5435 = vadd.f32 %v5274, %v5434
        %v5436 = vpop.f32.mrf.mxu0
        %v5437 = vpop.f32.mrf.mxu0
        %v5438 = vadd.f32 %v5277, %v5437
        %v5439 = vpop.f32.mrf.mxu0
        %5440 = vmatprep.mubr.bf16.mxu0 %v2547
        %5441 = vmatmul.mubr.bf16.gmra.mxu0 %v2538
        %v5442 = vpop.f32.mrf.mxu0
        %v5443 = vadd.f32 %v5282, %v5442
        %v5444 = vpop.f32.mrf.mxu0
        %v5445 = vpop.f32.mrf.mxu0
        %v5446 = vadd.f32 %v5285, %v5445
        %v5447 = vpop.f32.mrf.mxu0
        %5448 = vmatprep.mubr.bf16.mxu0 %v2676
        %5449 = vmatmul.mubr.bf16.gmra.mxu0 %v2667
        %v5450 = vpop.f32.mrf.mxu0
        %v5451 = vadd.f32 %v5290, %v5450
        %v5452 = vpop.f32.mrf.mxu0
        %v5453 = vpop.f32.mrf.mxu0
        %v5454 = vadd.f32 %v5293, %v5453
        %v5455 = vpop.f32.mrf.mxu0
        %5456 = vmatprep.mubr.bf16.mxu0 %v2805
        %5457 = vmatmul.mubr.bf16.gmra.mxu0 %v2796
        %v5458 = vpop.f32.mrf.mxu0
        %v5459 = vadd.f32 %v5298, %v5458
        %v5460 = vpop.f32.mrf.mxu0
        %v5461 = vpop.f32.mrf.mxu0
        %v5462 = vadd.f32 %v5301, %v5461
        %v5463 = vpop.f32.mrf.mxu0
        %5464 = vmatprep.mubr.bf16.mxu0 %v2934
        %5465 = vmatmul.mubr.bf16.gmra.mxu0 %v2925
        %v5466 = vpop.f32.mrf.mxu0
        %v5467 = vadd.f32 %v5306, %v5466
        %v5468 = vpop.f32.mrf.mxu0
        %v5469 = vpop.f32.mrf.mxu0
        %v5470 = vadd.f32 %v5309, %v5469
        %v5471 = vpop.f32.mrf.mxu0
        %5472 = vmatprep.mubr.bf16.mxu0 %v3063
        %5473 = vmatmul.mubr.bf16.gmra.mxu0 %v3054
        %v5474 = vpop.f32.mrf.mxu0
        %v5475 = vadd.f32 %v5314, %v5474
        %v5476 = vpop.f32.mrf.mxu0
        %v5477 = vpop.f32.mrf.mxu0
        %v5478 = vadd.f32 %v5317, %v5477
        %v5479 = vpop.f32.mrf.mxu0
        %5480 = vmatprep.mubr.bf16.mxu0 %v3192
        %5481 = vmatmul.mubr.bf16.gmra.mxu0 %v3183
        %v5482 = vpop.f32.mrf.mxu0
        %v5483 = vadd.f32 %v5322, %v5482
        %v5484 = vpop.f32.mrf.mxu0
        %v5485 = vpop.f32.mrf.mxu0
        %v5486 = vadd.f32 %v5325, %v5485
        %v5487 = vpop.f32.mrf.mxu0
        %5488 = vmatprep.mubr.bf16.mxu0 %v3321
        %5489 = vmatmul.mubr.bf16.gmra.mxu0 %v3312
        %v5490 = vpop.f32.mrf.mxu0
        %v5491 = vadd.f32 %v5330, %v5490
        %v5492 = vpop.f32.mrf.mxu0
        %v5493 = vpop.f32.mrf.mxu0
        %v5494 = vadd.f32 %v5333, %v5493
        %v5495 = vpop.f32.mrf.mxu0
        %5496 = vmatprep.mubr.bf16.mxu0 %v3450
        %5497 = vmatmul.mubr.bf16.gmra.mxu0 %v3441
        %v5498 = vpop.f32.mrf.mxu0
        %v5499 = vadd.f32 %v5338, %v5498
        %v5500 = vpop.f32.mrf.mxu0
        %v5501 = vpop.f32.mrf.mxu0
        %v5502 = vadd.f32 %v5341, %v5501
        %v5503 = vpop.f32.mrf.mxu0
        %5504 = vmatprep.mubr.bf16.mxu0 %v3579
        %5505 = vmatmul.mubr.bf16.gmra.mxu0 %v3570
        %v5506 = vpop.f32.mrf.mxu0
        %v5507 = vadd.f32 %v5346, %v5506
        %v5508 = vpop.f32.mrf.mxu0
        %v5509 = vpop.f32.mrf.mxu0
        %v5510 = vadd.f32 %v5349, %v5509
        %v5511 = vpop.f32.mrf.mxu0
        %5512 = vmatprep.mubr.bf16.mxu0 %v3708
        %5513 = vmatmul.mubr.bf16.gmra.mxu0 %v3699
        %v5514 = vpop.f32.mrf.mxu0
        %v5515 = vadd.f32 %v5354, %v5514
        %v5516 = vpop.f32.mrf.mxu0
        %v5517 = vpop.f32.mrf.mxu0
        %v5518 = vadd.f32 %v5357, %v5517
        %v5519 = vpop.f32.mrf.mxu0
        %5520 = vmatprep.mubr.bf16.mxu0 %v3837
        %5521 = vmatmul.mubr.bf16.gmra.mxu0 %v3828
        %v5522 = vpop.f32.mrf.mxu0
        %v5523 = vadd.f32 %v5362, %v5522
        %v5524 = vpop.f32.mrf.mxu0
        %v5525 = vpop.f32.mrf.mxu0
        %v5526 = vadd.f32 %v5365, %v5525
        %v5527 = vpop.f32.mrf.mxu0
        %5528 = vmatprep.mubr.bf16.mxu0 %v3966
        %5529 = vmatmul.mubr.bf16.gmra.mxu0 %v3957
        %v5530 = vpop.f32.mrf.mxu0
        %v5531 = vadd.f32 %v5370, %v5530
        %v5532 = vpop.f32.mrf.mxu0
        %v5533 = vpop.f32.mrf.mxu0
        %v5534 = vadd.f32 %v5373, %v5533
        %v5535 = vpop.f32.mrf.mxu0
        %5536 = vmatprep.mubr.bf16.mxu0 %v4095
        %5537 = vmatmul.mubr.bf16.gmra.mxu0 %v4086
        %v5538 = vpop.f32.mrf.mxu0
        %v5539 = vadd.f32 %v5378, %v5538
        %v5540 = vpop.f32.mrf.mxu0
        %v5541 = vpop.f32.mrf.mxu0
        %v5542 = vadd.f32 %v5381, %v5541
        %v5543 = vpop.f32.mrf.mxu0
        %5544 = vdwg.mxu0
        %5545 = vmatprep.subr.bf16.mxu0 0
        %5546 = vmatpush1.bf16.msra.mxu0 %v4828
        %5547 = vmatprep.subr.bf16.mxu0 0
        %5548 = vmatpush1.bf16.msra.mxu0 %v4827
        %5549 = vmatprep.subr.bf16.mxu0 0
        %5550 = vmatpush1.bf16.msra.mxu0 %v4826
        %5551 = vmatprep.subr.bf16.mxu0 0
        %5552 = vmatpush1.bf16.msra.mxu0 %v4825
        %5553 = vmatprep.subr.bf16.mxu0 0
        %5554 = vmatpush1.bf16.msra.mxu0 %v4824
        %5555 = vmatprep.subr.bf16.mxu0 0
        %5556 = vmatpush1.bf16.msra.mxu0 %v4823
        %5557 = vmatprep.subr.bf16.mxu0 0
        %5558 = vmatpush1.bf16.msra.mxu0 %v4822
        %5559 = vmatprep.subr.bf16.mxu0 0
        %5560 = vmatpush1.bf16.msra.mxu0 %v4821
        %5561 = vmatprep.subr.bf16.mxu0 0
        %5562 = vmatpush2.bf16.msra.mxu0 0
        %5563 = vmatprep.subr.bf16.mxu0 0
        %5564 = vmatpush2.bf16.msra.mxu0 0
        %5565 = vmatprep.subr.bf16.mxu0 0
        %5566 = vmatpush2.bf16.msra.mxu0 0
        %5567 = vmatprep.subr.bf16.mxu0 0
        %5568 = vmatpush2.bf16.msra.mxu0 0
        %5569 = vmatprep.subr.bf16.mxu0 0
        %5570 = vmatpush2.bf16.msra.mxu0 0
        %5571 = vmatprep.subr.bf16.mxu0 0
        %5572 = vmatpush2.bf16.msra.mxu0 0
        %5573 = vmatprep.subr.bf16.mxu0 0
        %5574 = vmatpush2.bf16.msra.mxu0 0
        %5575 = vmatprep.subr.bf16.mxu0 0
        %5576 = vmatpush2.bf16.msra.mxu0 0
        %5577 = vmatprep.mubr.bf16.mxu0 0
        %5578 = vmatmul.mubr.bf16.gmra.mxu0 %v2177
        %v5579 = vpop.f32.mrf.mxu0
        %v5580 = vadd.f32 %v5419, %v5579
        %v5581 = vpop.f32.mrf.mxu0
        %v5582 = vpop.f32.mrf.mxu0
        %v5583 = vadd.f32 %v5422, %v5582
        %v5584 = vpop.f32.mrf.mxu0
        %5585 = vmatprep.mubr.bf16.mxu0 0
        %5586 = vmatmul.mubr.bf16.gmra.mxu0 %v2306
        %v5587 = vpop.f32.mrf.mxu0
        %v5588 = vadd.f32 %v5427, %v5587
        %v5589 = vpop.f32.mrf.mxu0
        %v5590 = vpop.f32.mrf.mxu0
        %v5591 = vadd.f32 %v5430, %v5590
        %v5592 = vpop.f32.mrf.mxu0
        %5593 = vmatprep.mubr.bf16.mxu0 0
        %5594 = vmatmul.mubr.bf16.gmra.mxu0 %v2435
        %v5595 = vpop.f32.mrf.mxu0
        %v5596 = vadd.f32 %v5435, %v5595
        %v5597 = vpop.f32.mrf.mxu0
        %v5598 = vpop.f32.mrf.mxu0
        %v5599 = vadd.f32 %v5438, %v5598
        %v5600 = vpop.f32.mrf.mxu0
        %5601 = vmatprep.mubr.bf16.mxu0 0
        %5602 = vmatmul.mubr.bf16.gmra.mxu0 %v2564
        %v5603 = vpop.f32.mrf.mxu0
        %v5604 = vadd.f32 %v5443, %v5603
        %v5605 = vpop.f32.mrf.mxu0
        %v5606 = vpop.f32.mrf.mxu0
        %v5607 = vadd.f32 %v5446, %v5606
        %v5608 = vpop.f32.mrf.mxu0
        %5609 = vmatprep.mubr.bf16.mxu0 0
        %5610 = vmatmul.mubr.bf16.gmra.mxu0 %v2693
        %v5611 = vpop.f32.mrf.mxu0
        %v5612 = vadd.f32 %v5451, %v5611
        %v5613 = vpop.f32.mrf.mxu0
        %v5614 = vpop.f32.mrf.mxu0
        %v5615 = vadd.f32 %v5454, %v5614
        %v5616 = vpop.f32.mrf.mxu0
        %5617 = vmatprep.mubr.bf16.mxu0 0
        %5618 = vmatmul.mubr.bf16.gmra.mxu0 %v2822
        %v5619 = vpop.f32.mrf.mxu0
        %v5620 = vadd.f32 %v5459, %v5619
        %v5621 = vpop.f32.mrf.mxu0
        %v5622 = vpop.f32.mrf.mxu0
        %v5623 = vadd.f32 %v5462, %v5622
        %v5624 = vpop.f32.mrf.mxu0
        %5625 = vmatprep.mubr.bf16.mxu0 0
        %5626 = vmatmul.mubr.bf16.gmra.mxu0 %v2951
        %v5627 = vpop.f32.mrf.mxu0
        %v5628 = vadd.f32 %v5467, %v5627
        %v5629 = vpop.f32.mrf.mxu0
        %v5630 = vpop.f32.mrf.mxu0
        %v5631 = vadd.f32 %v5470, %v5630
        %v5632 = vpop.f32.mrf.mxu0
        %5633 = vmatprep.mubr.bf16.mxu0 0
        %5634 = vmatmul.mubr.bf16.gmra.mxu0 %v3080
        %v5635 = vpop.f32.mrf.mxu0
        %v5636 = vadd.f32 %v5475, %v5635
        %v5637 = vpop.f32.mrf.mxu0
        %v5638 = vpop.f32.mrf.mxu0
        %v5639 = vadd.f32 %v5478, %v5638
        %v5640 = vpop.f32.mrf.mxu0
        %5641 = vmatprep.mubr.bf16.mxu0 0
        %5642 = vmatmul.mubr.bf16.gmra.mxu0 %v3209
        %v5643 = vpop.f32.mrf.mxu0
        %v5644 = vadd.f32 %v5483, %v5643
        %v5645 = vpop.f32.mrf.mxu0
        %v5646 = vpop.f32.mrf.mxu0
        %v5647 = vadd.f32 %v5486, %v5646
        %v5648 = vpop.f32.mrf.mxu0
        %5649 = vmatprep.mubr.bf16.mxu0 0
        %5650 = vmatmul.mubr.bf16.gmra.mxu0 %v3338
        %v5651 = vpop.f32.mrf.mxu0
        %v5652 = vadd.f32 %v5491, %v5651
        %v5653 = vpop.f32.mrf.mxu0
        %v5654 = vpop.f32.mrf.mxu0
        %v5655 = vadd.f32 %v5494, %v5654
        %v5656 = vpop.f32.mrf.mxu0
        %5657 = vmatprep.mubr.bf16.mxu0 0
        %5658 = vmatmul.mubr.bf16.gmra.mxu0 %v3467
        %v5659 = vpop.f32.mrf.mxu0
        %v5660 = vadd.f32 %v5499, %v5659
        %v5661 = vpop.f32.mrf.mxu0
        %v5662 = vpop.f32.mrf.mxu0
        %v5663 = vadd.f32 %v5502, %v5662
        %v5664 = vpop.f32.mrf.mxu0
        %5665 = vmatprep.mubr.bf16.mxu0 0
        %5666 = vmatmul.mubr.bf16.gmra.mxu0 %v3596
        %v5667 = vpop.f32.mrf.mxu0
        %v5668 = vadd.f32 %v5507, %v5667
        %v5669 = vpop.f32.mrf.mxu0
        %v5670 = vpop.f32.mrf.mxu0
        %v5671 = vadd.f32 %v5510, %v5670
        %v5672 = vpop.f32.mrf.mxu0
        %5673 = vmatprep.mubr.bf16.mxu0 0
        %5674 = vmatmul.mubr.bf16.gmra.mxu0 %v3725
        %v5675 = vpop.f32.mrf.mxu0
        %v5676 = vadd.f32 %v5515, %v5675
        %v5677 = vpop.f32.mrf.mxu0
        %v5678 = vpop.f32.mrf.mxu0
        %v5679 = vadd.f32 %v5518, %v5678
        %v5680 = vpop.f32.mrf.mxu0
        %5681 = vmatprep.mubr.bf16.mxu0 0
        %5682 = vmatmul.mubr.bf16.gmra.mxu0 %v3854
        %v5683 = vpop.f32.mrf.mxu0
        %v5684 = vadd.f32 %v5523, %v5683
        %v5685 = vpop.f32.mrf.mxu0
        %v5686 = vpop.f32.mrf.mxu0
        %v5687 = vadd.f32 %v5526, %v5686
        %v5688 = vpop.f32.mrf.mxu0
        %5689 = vmatprep.mubr.bf16.mxu0 0
        %5690 = vmatmul.mubr.bf16.gmra.mxu0 %v3983
        %v5691 = vpop.f32.mrf.mxu0
        %v5692 = vadd.f32 %v5531, %v5691
        %v5693 = vpop.f32.mrf.mxu0
        %v5694 = vpop.f32.mrf.mxu0
        %v5695 = vadd.f32 %v5534, %v5694
        %v5696 = vpop.f32.mrf.mxu0
        %5697 = vmatprep.mubr.bf16.mxu0 0
        %5698 = vmatmul.mubr.bf16.gmra.mxu0 %v4112
        %v5699 = vpop.f32.mrf.mxu0
        %v5700 = vadd.f32 %v5539, %v5699
        %v5701 = vpop.f32.mrf.mxu0
        %v5702 = vpop.f32.mrf.mxu0
        %v5703 = vadd.f32 %v5542, %v5702
        %v5704 = vpop.f32.mrf.mxu0
        %5705 = vdwg.mxu0
        %v5706 = vadd.f32 %v4293, %v5580
        %v5707 = vadd.f32 %v4294, %v5583
        %v5708 = vadd.f32 %v4295, %v5588
        %v5709 = vadd.f32 %v4296, %v5591
        %v5710 = vadd.f32 %v4297, %v5596
        %v5711 = vadd.f32 %v4298, %v5599
        %v5712 = vadd.f32 %v4299, %v5604
        %v5713 = vadd.f32 %v4300, %v5607
        %v5714 = vadd.f32 %v4301, %v5612
        %v5715 = vadd.f32 %v4302, %v5615
        %v5716 = vadd.f32 %v4303, %v5620
        %v5717 = vadd.f32 %v4304, %v5623
        %v5718 = vadd.f32 %v4305, %v5628
        %v5719 = vadd.f32 %v4306, %v5631
        %v5720 = vadd.f32 %v4307, %v5636
        %v5721 = vadd.f32 %v4308, %v5639
        %v5722 = vadd.f32 %v4309, %v5644
        %v5723 = vadd.f32 %v4310, %v5647
        %v5724 = vadd.f32 %v4311, %v5652
        %v5725 = vadd.f32 %v4312, %v5655
        %v5726 = vadd.f32 %v4313, %v5660
        %v5727 = vadd.f32 %v4314, %v5663
        %v5728 = vadd.f32 %v4315, %v5668
        %v5729 = vadd.f32 %v4316, %v5671
        %v5730 = vadd.f32 %v4317, %v5676
        %v5731 = vadd.f32 %v4318, %v5679
        %v5732 = vadd.f32 %v4319, %v5684
        %v5733 = vadd.f32 %v4320, %v5687
        %v5734 = vadd.f32 %v4321, %v5692
        %v5735 = vadd.f32 %v4322, %v5695
        %v5736 = vadd.f32 %v4323, %v5700
        %v5737 = vadd.f32 %v4324, %v5703
        %5738 = vst [vmem:[#allocation2] sm:$0xff] %v5706
        %5739 = vst [vmem:[#allocation2 + $0x8] sm:$0xff] %v5707
        %5740 = vst [vmem:[#allocation2 + $0x10] sm:$0xff] %v5708
        %5741 = vst [vmem:[#allocation2 + $0x18] sm:$0xff] %v5709
        %5742 = vst [vmem:[#allocation2 + $0x20] sm:$0xff] %v5710
        %5743 = vst [vmem:[#allocation2 + $0x28] sm:$0xff] %v5711
        %5744 = vst [vmem:[#allocation2 + $0x30] sm:$0xff] %v5712
        %5745 = vst [vmem:[#allocation2 + $0x38] sm:$0xff] %v5713
        %5746 = vst [vmem:[#allocation2 + $0x40] sm:$0xff] %v5714
        %5747 = vst [vmem:[#allocation2 + $0x48] sm:$0xff] %v5715
        %5748 = vst [vmem:[#allocation2 + $0x50] sm:$0xff] %v5716
        %5749 = vst [vmem:[#allocation2 + $0x58] sm:$0xff] %v5717
        %5750 = vst [vmem:[#allocation2 + $0x60] sm:$0xff] %v5718
        %5751 = vst [vmem:[#allocation2 + $0x68] sm:$0xff] %v5719
        %5752 = vst [vmem:[#allocation2 + $0x70] sm:$0xff] %v5720
        %5753 = vst [vmem:[#allocation2 + $0x78] sm:$0xff] %v5721
        %5754 = vst [vmem:[#allocation2 + $0x80] sm:$0xff] %v5722
        %5755 = vst [vmem:[#allocation2 + $0x88] sm:$0xff] %v5723
        %5756 = vst [vmem:[#allocation2 + $0x90] sm:$0xff] %v5724
        %5757 = vst [vmem:[#allocation2 + $0x98] sm:$0xff] %v5725
        %5758 = vst [vmem:[#allocation2 + $0xa0] sm:$0xff] %v5726
        %5759 = vst [vmem:[#allocation2 + $0xa8] sm:$0xff] %v5727
        %5760 = vst [vmem:[#allocation2 + $0xb0] sm:$0xff] %v5728
        %5761 = vst [vmem:[#allocation2 + $0xb8] sm:$0xff] %v5729
        %5762 = vst [vmem:[#allocation2 + $0xc0] sm:$0xff] %v5730
        %5763 = vst [vmem:[#allocation2 + $0xc8] sm:$0xff] %v5731
        %5764 = vst [vmem:[#allocation2 + $0xd0] sm:$0xff] %v5732
        %5765 = vst [vmem:[#allocation2 + $0xd8] sm:$0xff] %v5733
        %5766 = vst [vmem:[#allocation2 + $0xe0] sm:$0xff] %v5734
        %5767 = vst [vmem:[#allocation2 + $0xe8] sm:$0xff] %v5735
        %5768 = vst [vmem:[#allocation2 + $0xf0] sm:$0xff] %v5736
        %5769 = vst [vmem:[#allocation2 + $0xf8] sm:$0xff] %v5737
        // Predicated region
        $region45: #{_forward.7} parent=39 // pred_check
          %p5770 = pneg %p4257
        $region46: #{_forward.7} parent=39 // pred_check_branch
          %5772 = sbr.rel (%p5770) target = $region48
        $region47: #{_forward.7} parent=39 // pred_region
          %v5773 = vld [vmem:[#allocation2] sm:$0xff]
          %v5774 = vld [vmem:[#allocation2 + $0x8] sm:$0xff]
          %v5775 = vld [vmem:[#allocation2 + $0x10] sm:$0xff]
          %v5776 = vld [vmem:[#allocation2 + $0x18] sm:$0xff]
          %v5777 = vld [vmem:[#allocation2 + $0x20] sm:$0xff]
          %v5778 = vld [vmem:[#allocation2 + $0x28] sm:$0xff]
          %v5779 = vld [vmem:[#allocation2 + $0x30] sm:$0xff]
          %v5780 = vld [vmem:[#allocation2 + $0x38] sm:$0xff]
          %v5781 = vld [vmem:[#allocation2 + $0x40] sm:$0xff]
          %v5782 = vld [vmem:[#allocation2 + $0x48] sm:$0xff]
          %v5783 = vld [vmem:[#allocation2 + $0x50] sm:$0xff]
          %v5784 = vld [vmem:[#allocation2 + $0x58] sm:$0xff]
          %v5785 = vld [vmem:[#allocation2 + $0x60] sm:$0xff]
          %v5786 = vld [vmem:[#allocation2 + $0x68] sm:$0xff]
          %v5787 = vld [vmem:[#allocation2 + $0x70] sm:$0xff]
          %v5788 = vld [vmem:[#allocation2 + $0x78] sm:$0xff]
          %v5789 = vld [vmem:[#allocation2 + $0x80] sm:$0xff]
          %v5790 = vld [vmem:[#allocation2 + $0x88] sm:$0xff]
          %v5791 = vld [vmem:[#allocation2 + $0x90] sm:$0xff]
          %v5792 = vld [vmem:[#allocation2 + $0x98] sm:$0xff]
          %v5793 = vld [vmem:[#allocation2 + $0xa0] sm:$0xff]
          %v5794 = vld [vmem:[#allocation2 + $0xa8] sm:$0xff]
          %v5795 = vld [vmem:[#allocation2 + $0xb0] sm:$0xff]
          %v5796 = vld [vmem:[#allocation2 + $0xb8] sm:$0xff]
          %v5797 = vld [vmem:[#allocation2 + $0xc0] sm:$0xff]
          %v5798 = vld [vmem:[#allocation2 + $0xc8] sm:$0xff]
          %v5799 = vld [vmem:[#allocation2 + $0xd0] sm:$0xff]
          %v5800 = vld [vmem:[#allocation2 + $0xd8] sm:$0xff]
          %v5801 = vld [vmem:[#allocation2 + $0xe0] sm:$0xff]
          %v5802 = vld [vmem:[#allocation2 + $0xe8] sm:$0xff]
          %v5803 = vld [vmem:[#allocation2 + $0xf0] sm:$0xff]
          %v5804 = vld [vmem:[#allocation2 + $0xf8] sm:$0xff]
          %v5805 = vld [vmem:[%s4] sm:$0x1]
          %v5807 = vlaneseq
          %v5808 = vshrl.u32 %v5807, 7
          %v5809 = vsub.s32 0, %v5808
          %v5810 = vrot.slane %v5805, %v5809
          %v5812 = vadd.f32 %v5773, %v5810
          %v5813 = vadd.f32 %v5774, %v5810
          %v5814 = vadd.f32 %v5775, %v5810
          %v5815 = vadd.f32 %v5776, %v5810
          %v5816 = vadd.f32 %v5777, %v5810
          %v5817 = vadd.f32 %v5778, %v5810
          %v5818 = vadd.f32 %v5779, %v5810
          %v5819 = vadd.f32 %v5780, %v5810
          %v5820 = vadd.f32 %v5781, %v5810
          %v5821 = vadd.f32 %v5782, %v5810
          %v5822 = vadd.f32 %v5783, %v5810
          %v5823 = vadd.f32 %v5784, %v5810
          %v5824 = vadd.f32 %v5785, %v5810
          %v5825 = vadd.f32 %v5786, %v5810
          %v5826 = vadd.f32 %v5787, %v5810
          %v5827 = vadd.f32 %v5788, %v5810
          %v5828 = vadd.f32 %v5789, %v5810
          %v5829 = vadd.f32 %v5790, %v5810
          %v5830 = vadd.f32 %v5791, %v5810
          %v5831 = vadd.f32 %v5792, %v5810
          %v5832 = vadd.f32 %v5793, %v5810
          %v5833 = vadd.f32 %v5794, %v5810
          %v5834 = vadd.f32 %v5795, %v5810
          %v5835 = vadd.f32 %v5796, %v5810
          %v5836 = vadd.f32 %v5797, %v5810
          %v5837 = vadd.f32 %v5798, %v5810
          %v5838 = vadd.f32 %v5799, %v5810
          %v5839 = vadd.f32 %v5800, %v5810
          %v5840 = vadd.f32 %v5801, %v5810
          %v5841 = vadd.f32 %v5802, %v5810
          %v5842 = vadd.f32 %v5803, %v5810
          %v5843 = vadd.f32 %v5804, %v5810
          %5844 = vst [vmem:[%s368] sm:$0xff] %v5812
          %5845 = vst [vmem:[%s368 + $0x8] sm:$0xff] %v5813
          %5846 = vst [vmem:[%s368 + $0x10] sm:$0xff] %v5814
          %5847 = vst [vmem:[%s368 + $0x18] sm:$0xff] %v5815
          %5848 = vst [vmem:[%s368 + $0x20] sm:$0xff] %v5816
          %5849 = vst [vmem:[%s368 + $0x28] sm:$0xff] %v5817
          %5850 = vst [vmem:[%s368 + $0x30] sm:$0xff] %v5818
          %5851 = vst [vmem:[%s368 + $0x38] sm:$0xff] %v5819
          %5852 = vst [vmem:[%s368 + $0x40] sm:$0xff] %v5820
          %5853 = vst [vmem:[%s368 + $0x48] sm:$0xff] %v5821
          %5854 = vst [vmem:[%s368 + $0x50] sm:$0xff] %v5822
          %5855 = vst [vmem:[%s368 + $0x58] sm:$0xff] %v5823
          %5856 = vst [vmem:[%s368 + $0x60] sm:$0xff] %v5824
          %5857 = vst [vmem:[%s368 + $0x68] sm:$0xff] %v5825
          %5858 = vst [vmem:[%s368 + $0x70] sm:$0xff] %v5826
          %5859 = vst [vmem:[%s368 + $0x78] sm:$0xff] %v5827
          %5860 = vst [vmem:[%s368 + $0x80] sm:$0xff] %v5828
          %5861 = vst [vmem:[%s368 + $0x88] sm:$0xff] %v5829
          %5862 = vst [vmem:[%s368 + $0x90] sm:$0xff] %v5830
          %5863 = vst [vmem:[%s368 + $0x98] sm:$0xff] %v5831
          %5864 = vst [vmem:[%s368 + $0xa0] sm:$0xff] %v5832
          %5865 = vst [vmem:[%s368 + $0xa8] sm:$0xff] %v5833
          %5866 = vst [vmem:[%s368 + $0xb0] sm:$0xff] %v5834
          %5867 = vst [vmem:[%s368 + $0xb8] sm:$0xff] %v5835
          %5868 = vst [vmem:[%s368 + $0xc0] sm:$0xff] %v5836
          %5869 = vst [vmem:[%s368 + $0xc8] sm:$0xff] %v5837
          %5870 = vst [vmem:[%s368 + $0xd0] sm:$0xff] %v5838
          %5871 = vst [vmem:[%s368 + $0xd8] sm:$0xff] %v5839
          %5872 = vst [vmem:[%s368 + $0xe0] sm:$0xff] %v5840
          %5873 = vst [vmem:[%s368 + $0xe8] sm:$0xff] %v5841
          %5874 = vst [vmem:[%s368 + $0xf0] sm:$0xff] %v5842
          %5875 = vst [vmem:[%s368 + $0xf8] sm:$0xff] %v5843
          %v5876 = vadd.f32 %v5812, %v5813
          %v5877 = vadd.f32 %v5876, %v5814
          %v5878 = vadd.f32 %v5877, %v5815
          %v5879 = vadd.f32 %v5878, %v5816
          %v5880 = vadd.f32 %v5879, %v5817
          %v5881 = vadd.f32 %v5880, %v5818
          %v5882 = vadd.f32 %v5881, %v5819
          %v5883 = vadd.f32 %v5882, %v5820
          %v5884 = vadd.f32 %v5883, %v5821
          %v5885 = vadd.f32 %v5884, %v5822
          %v5886 = vadd.f32 %v5885, %v5823
          %v5887 = vadd.f32 %v5886, %v5824
          %v5888 = vadd.f32 %v5887, %v5825
          %v5889 = vadd.f32 %v5888, %v5826
          %v5890 = vadd.f32 %v5889, %v5827
          %v5891 = vadd.f32 %v5890, %v5828
          %v5892 = vadd.f32 %v5891, %v5829
          %v5893 = vadd.f32 %v5892, %v5830
          %v5894 = vadd.f32 %v5893, %v5831
          %v5895 = vadd.f32 %v5894, %v5832
          %v5896 = vadd.f32 %v5895, %v5833
          %v5897 = vadd.f32 %v5896, %v5834
          %v5898 = vadd.f32 %v5897, %v5835
          %v5899 = vadd.f32 %v5898, %v5836
          %v5900 = vadd.f32 %v5899, %v5837
          %v5901 = vadd.f32 %v5900, %v5838
          %v5902 = vadd.f32 %v5901, %v5839
          %v5903 = vadd.f32 %v5902, %v5840
          %v5904 = vadd.f32 %v5903, %v5841
          %v5905 = vadd.f32 %v5904, %v5842
          %v5906 = vadd.f32 %v5905, %v5843
          %v5907 = vrot.slane %v5906, 4
          %v5908 = vadd.f32 %v5906, %v5907
          %v5909 = vrot.slane %v5908, 2
          %v5910 = vadd.f32 %v5908, %v5909
          %v5911 = vrot.slane %v5910, 1
          %v5912 = vadd.f32 %v5910, %v5911
          %5913 = vst [vmem:[%s338] sm:$0x1] %v5912
          %v5914 = vmul.f32 %v5812, %v5812
          %v5915 = vmul.f32 %v5813, %v5813
          %v5916 = vmul.f32 %v5814, %v5814
          %v5917 = vmul.f32 %v5815, %v5815
          %v5918 = vmul.f32 %v5816, %v5816
          %v5919 = vmul.f32 %v5817, %v5817
          %v5920 = vmul.f32 %v5818, %v5818
          %v5921 = vmul.f32 %v5819, %v5819
          %v5922 = vmul.f32 %v5820, %v5820
          %v5923 = vmul.f32 %v5821, %v5821
          %v5924 = vmul.f32 %v5822, %v5822
          %v5925 = vmul.f32 %v5823, %v5823
          %v5926 = vmul.f32 %v5824, %v5824
          %v5927 = vmul.f32 %v5825, %v5825
          %v5928 = vmul.f32 %v5826, %v5826
          %v5929 = vmul.f32 %v5827, %v5827
          %v5930 = vmul.f32 %v5828, %v5828
          %v5931 = vmul.f32 %v5829, %v5829
          %v5932 = vmul.f32 %v5830, %v5830
          %v5933 = vmul.f32 %v5831, %v5831
          %v5934 = vmul.f32 %v5832, %v5832
          %v5935 = vmul.f32 %v5833, %v5833
          %v5936 = vmul.f32 %v5834, %v5834
          %v5937 = vmul.f32 %v5835, %v5835
          %v5938 = vmul.f32 %v5836, %v5836
          %v5939 = vmul.f32 %v5837, %v5837
          %v5940 = vmul.f32 %v5838, %v5838
          %v5941 = vmul.f32 %v5839, %v5839
          %v5942 = vmul.f32 %v5840, %v5840
          %v5943 = vmul.f32 %v5841, %v5841
          %v5944 = vmul.f32 %v5842, %v5842
          %v5945 = vmul.f32 %v5843, %v5843
          %v5946 = vadd.f32 %v5914, %v5915
          %v5947 = vadd.f32 %v5946, %v5916
          %v5948 = vadd.f32 %v5947, %v5917
          %v5949 = vadd.f32 %v5948, %v5918
          %v5950 = vadd.f32 %v5949, %v5919
          %v5951 = vadd.f32 %v5950, %v5920
          %v5952 = vadd.f32 %v5951, %v5921
          %v5953 = vadd.f32 %v5952, %v5922
          %v5954 = vadd.f32 %v5953, %v5923
          %v5955 = vadd.f32 %v5954, %v5924
          %v5956 = vadd.f32 %v5955, %v5925
          %v5957 = vadd.f32 %v5956, %v5926
          %v5958 = vadd.f32 %v5957, %v5927
          %v5959 = vadd.f32 %v5958, %v5928
          %v5960 = vadd.f32 %v5959, %v5929
          %v5961 = vadd.f32 %v5960, %v5930
          %v5962 = vadd.f32 %v5961, %v5931
          %v5963 = vadd.f32 %v5962, %v5932
          %v5964 = vadd.f32 %v5963, %v5933
          %v5965 = vadd.f32 %v5964, %v5934
          %v5966 = vadd.f32 %v5965, %v5935
          %v5967 = vadd.f32 %v5966, %v5936
          %v5968 = vadd.f32 %v5967, %v5937
          %v5969 = vadd.f32 %v5968, %v5938
          %v5970 = vadd.f32 %v5969, %v5939
          %v5971 = vadd.f32 %v5970, %v5940
          %v5972 = vadd.f32 %v5971, %v5941
          %v5973 = vadd.f32 %v5972, %v5942
          %v5974 = vadd.f32 %v5973, %v5943
          %v5975 = vadd.f32 %v5974, %v5944
          %v5976 = vadd.f32 %v5975, %v5945
          %v5977 = vrot.slane %v5976, 4
          %v5978 = vadd.f32 %v5976, %v5977
          %v5979 = vrot.slane %v5978, 2
          %v5980 = vadd.f32 %v5978, %v5979
          %v5981 = vrot.slane %v5980, 1
          %v5982 = vadd.f32 %v5980, %v5981
          %5983 = vst [vmem:[%s344] sm:$0x1] %v5982
        $region48: #{_forward.7} parent=39 // pred_fallthru
          _
        %p5984 = scmp.lt.s32.totalorder %s29, 1
        %s5985 = scalar_select %p5984, %s29, 1
        %s5986 = smul.addr %s5985, 32
        %s5987 = smul.addr %s5986, 8
        %s5988 = scalar_lea.vmem %s5, %s5987
        %s5989 = sand.u32 %s198, 1
        %s5990 = scalar_lea.sflag [#allocation5], %s5989
        %s5991 = sand.u32 %s198, 1
        %s5992 = scalar_lea.vmem [#allocation4], %s5991
        %s5993 = sand.u32 %s224, 1
        %s5994 = scalar_lea.sflag [#allocation7], %s5993
        %s5995 = sand.u32 %s224, 1
        %s5996 = scalar_lea.vmem [#allocation6], %s5995
        // Predicated region
        $region49: #{_forward.7} parent=39 // pred_check
          %p5997 = pneg %p182
        $region50: #{_forward.7} parent=39 // pred_check_branch
          %5999 = sbr.rel (%p5997) target = $region52
        $region51: #{_forward.7} parent=39 // pred_region
          _
        $region52: #{_forward.7} parent=39 // pred_fallthru
          _
        // Predicated region
        $region53: #{_forward.7} parent=39 // pred_check
          %p6000 = pneg %p208
        $region54: #{_forward.7} parent=39 // pred_check_branch
          %6002 = sbr.rel (%p6000) target = $region56
        $region55: #{_forward.7} parent=39 // pred_region
          %s6004 = ssub.s32 16, 16
          %6005 = vsyncadd %s5990, %s6004
          %s6006 = smul.addr %s29, 16
          %s6007 = scalar_lea.hbm %s6, %s6006
          %s6009 = sshll.u32 %s5992, 4
          %s6010 = int_to_ptr.vmem [resolvable:$true] %s6009
          %6012 = dma.vmem_to_hbm [thread:$0]  %s6010, 16, %s6007, %s5990
        $region56: #{_forward.7} parent=39 // pred_fallthru
          _
        // Predicated region
        $region57: #{_forward.7} parent=39 // pred_check
          %p6013 = pneg %p234
        $region58: #{_forward.7} parent=39 // pred_check_branch
          %6015 = sbr.rel (%p6013) target = $region60
        $region59: #{_forward.7} parent=39 // pred_region
          %s6017 = ssub.s32 16, 16
          %6018 = vsyncadd %s5994, %s6017
          %s6019 = smul.addr %s29, 16
          %s6020 = scalar_lea.hbm %s7, %s6019
          %s6022 = sshll.u32 %s5996, 4
          %s6023 = int_to_ptr.vmem [resolvable:$true] %s6022
          %6025 = dma.vmem_to_hbm [thread:$0]  %s6023, 16, %s6020, %s5994
        $region60: #{_forward.7} parent=39 // pred_fallthru
          _
      $region40: #{_forward.7} parent=5 // pred_fallthru
        _
      %p6026 = scmp.le.s32.totalorder 2, %s20
      // Predicated region
      $region61: #{_forward.7} parent=5 // pred_check
        %p6027 = pneg %p6026
      $region62: #{_forward.7} parent=5 // pred_check_branch
        %6029 = sbr.rel (%p6027) target = $region64
      $region63: #{_forward.7} parent=5 // pred_region
        %s6030 = ssub.s32 %s20, 2
        // Predicated region
        $region65: #{_forward.7} parent=63 // pred_check
          %p6031 = pneg %p188
        $region66: #{_forward.7} parent=63 // pred_check_branch
          %6033 = sbr.rel (%p6031) target = $region68
        $region67: #{_forward.7} parent=63 // pred_region
          %p6034 = scmp.lt.s32.totalorder %s31, 1
          %s6035 = scalar_select %p6034, %s31, 1
          %s6036 = smul.addr %s6035, 32
          %s6037 = smul.addr %s6036, 8
          %s6038 = scalar_lea.vmem %s5, %s6037
        $region68: #{_forward.7} parent=63 // pred_fallthru
          _
        // Predicated region
        $region69: #{_forward.7} parent=63 // pred_check
          %p6039 = pneg %p214
        $region70: #{_forward.7} parent=63 // pred_check_branch
          %6041 = sbr.rel (%p6039) target = $region72
        $region71: #{_forward.7} parent=63 // pred_region
          %s6042 = sand.u32 %s199, 1
          %s6043 = scalar_lea.sflag [#allocation5], %s6042
          %s6044 = sand.u32 %s199, 1
          %s6045 = scalar_lea.vmem [#allocation4], %s6044
          %6046 = dma.done %s6043, 16
        $region72: #{_forward.7} parent=63 // pred_fallthru
          _
        // Predicated region
        $region73: #{_forward.7} parent=63 // pred_check
          %p6047 = pneg %p240
        $region74: #{_forward.7} parent=63 // pred_check_branch
          %6049 = sbr.rel (%p6047) target = $region76
        $region75: #{_forward.7} parent=63 // pred_region
          %s6050 = sand.u32 %s225, 1
          %s6051 = scalar_lea.sflag [#allocation7], %s6050
          %s6052 = sand.u32 %s225, 1
          %s6053 = scalar_lea.vmem [#allocation6], %s6052
          %6054 = dma.done %s6051, 16
        $region76: #{_forward.7} parent=63 // pred_fallthru
          _
      $region64: #{_forward.7} parent=5 // pred_fallthru
        _
    $region6: #{_forward.7} parent=1 // loop_footer
      %s24 = sadd.s32 1, %s20
    $region7: #{_forward.7} parent=1 // loop_footer_branch
      %19 = sbr.rel target = $region3
    $region8: #{_forward.7} parent=1 // loop_exit
      _
    %6055 = vsyncpa [#allocation5], 1
    %s6056 = scalar_lea.sflag [#allocation5], 1
    %6057 = vsyncpa %s6056, 1
    %6058 = vsyncpa [#allocation7], 1
    %s6059 = scalar_lea.sflag [#allocation7], 1
    %6060 = vsyncpa %s6059, 1

</llo_original>
